<compile_context>
chip_gen: v7x
topology: tpu7x:2x2x1
jax: 0.10.0
libtpu: 0.0.40
codegen_flags: <defaults>
</compile_context>

<pallas_src>
import functools

import jax
import jax.numpy as jnp
import numpy as np
from jax.experimental import pallas as pl
from jax.experimental.pallas import tpu as pltpu

# -------------------- small config consistent with the module --------------------
BATCH       = 2
IN_CHANNELS = 3
NUM_FRAMES  = 4
IMAGE_SIZE  = (16, 16)
PATCH_SIZE  = (2, 8, 8)        # (t, p, p) tubelet
EMBED_DIM   = 32
DEPTH       = 2
NUM_HEADS   = 4
MLP_RATIO   = 4.0
NUM_CLASSES = 2
LN_EPS      = 1e-5
FFN_DIM     = int(EMBED_DIM * MLP_RATIO)
OUT_LANES   = 128              # lane-dense padded width of the classification head


# ------------------------------ in-kernel helpers --------------------------------
def _layernorm(x, w, b):
    mu = jnp.mean(x, axis=-1, keepdims=True)
    var = jnp.mean((x - mu) * (x - mu), axis=-1, keepdims=True)
    return (x - mu) * jax.lax.rsqrt(var + LN_EPS) * w + b


def _erf_approx(x):
    # Abramowitz & Stegun 7.1.26, |error| < 1.5e-7: matches PyTorch's exact-erf GELU.
    a1, a2, a3, a4, a5 = 0.254829592, -0.284496736, 1.421413741, -1.453152027, 1.061405429
    p = 0.3275911
    ax = jnp.abs(x)
    t = 1.0 / (1.0 + p * ax)
    poly = ((((a5 * t + a4) * t + a3) * t + a2) * t + a1) * t
    y = 1.0 - poly * jnp.exp(-ax * ax)
    return jnp.where(x >= 0.0, y, -y)


def _gelu_exact(x):
    return 0.5 * x * (1.0 + _erf_approx(x * 0.7071067811865476))


# --------------------- fused whole-model kernel (BB batch elems / grid step) -------
def fused_forward_kernel(pe_ref, wemb_ref, pos_ref,
                         wqkv_ref, bqkv_ref, wo_ref, bo_ref,
                         ln1w_ref, ln1b_ref, w1_ref, b1_ref, w2_ref, b2_ref,
                         ln2w_ref, ln2b_ref, normw_ref, normb_ref,
                         whead_ref, bhead_ref,
                         out_ref, *, depth, num_heads):
    bb = pe_ref.shape[0]                       # batch elements handled by this step
    E = pos_ref.shape[1]
    Dh = E // num_heads
    scale = 1.0 / float(np.sqrt(Dh))

    for b in range(bb):                        # statically unrolled (bb is 1 or 2)
        # Patch-embed (Conv3d-as-matmul), conv bias and [CLS] row all come out of ONE
        # lane-dense matmul thanks to the indicator columns built in the wrapper.
        h = jnp.dot(pe_ref[b], wemb_ref[...],
                    preferred_element_type=jnp.float32) + pos_ref[...]        # (S, E)

        for l in range(depth):                 # post-norm encoder layers, unrolled
            # Fused QKV: single (S,E)@(E,3E) matmul, weight kept lane-dense.
            qkv = jnp.dot(h, wqkv_ref[l],
                          preferred_element_type=jnp.float32) + bqkv_ref[l]   # (S, 3E)

            attn = bo_ref[l]                   # (1,E); broadcasts on first accumulate
            for hh in range(num_heads):
                lo = hh * Dh
                q = qkv[:, lo:lo + Dh]                                        # (S, Dh)
                k = qkv[:, E + lo:E + lo + Dh]
                v = qkv[:, 2 * E + lo:2 * E + lo + Dh]

                s = jnp.einsum("qd,kd->qk", q, k,
                               preferred_element_type=jnp.float32) * scale    # (S, S)
                s = s - jnp.max(s, axis=-1, keepdims=True)
                e = jnp.exp(s)
                prob = e * pl.reciprocal(jnp.sum(e, axis=-1, keepdims=True),
                                         approx=True)
                o = jnp.dot(prob, v, preferred_element_type=jnp.float32)      # (S, Dh)
                # Head merge folded into the output projection: aligned sublane slice
                # of the lane-dense (E,E) wo; identical to (S,E)@(E,E) after concat.
                attn = attn + jnp.dot(o, wo_ref[l][lo:lo + Dh, :],
                                      preferred_element_type=jnp.float32)

            h1 = _layernorm(h + attn, ln1w_ref[l], ln1b_ref[l])
            ff = jnp.dot(
                _gelu_exact(jnp.dot(h1, w1_ref[l], preferred_element_type=jnp.float32)
                            + b1_ref[l]),
                w2_ref[l], preferred_element_type=jnp.float32) + b2_ref[l]
            h = _layernorm(h1 + ff, ln2w_ref[l], ln2b_ref[l])

        # Final LayerNorm on the CLS token + lane-dense (padded) classification head.
        y = _layernorm(h[0:1, :], normw_ref[...], normb_ref[...])             # (1, E)
        out_ref[b] = jnp.dot(y, whead_ref[...],
                             preferred_element_type=jnp.float32) + bhead_ref[...]


# -------------------------------- JAX glue (layout only) --------------------------
def extract_patches(x, t, p):
    # NCTHW video -> (B, N, C*t*p*p) flattened tubelets, matching Conv3d's weight
    # flattening order (C, t, p, p) and output ordering (T_p, H_p, W_p).
    B, C, T, H, W = x.shape
    Tp, Hp, Wp = T // t, H // p, W // p
    xr = x.reshape(B, C, Tp, t, Hp, p, Wp, p)
    xr = jnp.transpose(xr, (0, 2, 4, 6, 1, 3, 5, 7))
    return xr.reshape(B, Tp * Hp * Wp, C * t * p * p)


def _stack_layers(layers):
    names = ("wqkv", "bqkv", "wo", "bo", "ln1w", "ln1b",
             "w1", "b1", "w2", "b2", "ln2w", "ln2b")
    return {n: jnp.stack([L[n] for L in layers], axis=0) for n in names}


def _multi_tensorcore_chip():
    # v7x has 2 TensorCores per chip (v4 / v5p megacore also shard "parallel" grid
    # axes across cores); v5e / v6e are single-core -> fold the batch instead.
    try:
        kind = jax.devices()[0].device_kind.lower()
    except Exception:
        return False
    return any(tag in kind for tag in ("v7", "v4", "v5p"))


def video_transformer_forward(x, params):
    t, p, _ = PATCH_SIZE
    pats = extract_patches(x, t, p)                       # (B, N, K)
    B, N, K = pats.shape
    E, C, S = EMBED_DIM, NUM_CLASSES, N + 1

    # Fold Conv3d-as-matmul, its bias and the [CLS] token into ONE matmul via two
    # indicator columns (exact linear-algebra refactoring, done once in the wrapper).
    ind = jnp.zeros((B, S, 2), jnp.float32)
    ind = ind.at[:, 0, 0].set(1.0)                        # col 0 -> cls_token row
    ind = ind.at[:, 1:, 1].set(1.0)                       # col 1 -> conv bias (patch rows)
    pats_full = jnp.concatenate(
        [ind, jnp.concatenate([jnp.zeros((B, 1, K), jnp.float32), pats], axis=1)],
        axis=-1)                                          # (B, S, K+2)
    w_emb = jnp.concatenate([params["cls_token"].reshape(1, E),
                             params["b_patch"].reshape(1, E),
                             params["w_patch"]], axis=0)  # (K+2, E)
    pos = params["pos_embed"].reshape(S, E)

    # Lane-dense classification head: pad C -> OUT_LANES; sliced back after the call.
    whead = jnp.zeros((E, OUT_LANES), jnp.float32).at[:, :C].set(params["w_head"])
    bhead = jnp.zeros((1, OUT_LANES), jnp.float32).at[:, :C].set(
        params["b_head"].reshape(1, C))

    sl = _stack_layers(params["layers"])

    # Chip-gated batch handling: fold the batch into one grid step on single-core
    # chips; keep a parallel per-batch grid on multi-core chips (v7x).
    multi_core = _multi_tensorcore_chip()
    bb = 1 if multi_core else B
    grid = (B // bb,)
    dims = ("parallel",) if multi_core else ("arbitrary",)

    in_arrays = [pats_full, w_emb, pos,
                 sl["wqkv"], sl["bqkv"], sl["wo"], sl["bo"],
                 sl["ln1w"], sl["ln1b"], sl["w1"], sl["b1"], sl["w2"], sl["b2"],
                 sl["ln2w"], sl["ln2b"],
                 params["normw"], params["normb"], whead, bhead]

    def _full(a):
        nd = a.ndim
        return pl.BlockSpec(a.shape, lambda g, _nd=nd: (0,) * _nd)

    in_specs = ([pl.BlockSpec((bb, S, K + 2), lambda g: (g, 0, 0))]
                + [_full(a) for a in in_arrays[1:]])

    kernel = functools.partial(fused_forward_kernel, depth=DEPTH, num_heads=NUM_HEADS)
    out_pad = pl.pallas_call(
        kernel,
        out_shape=jax.ShapeDtypeStruct((B, 1, OUT_LANES), jnp.float32),
        grid=grid,
        in_specs=in_specs,
        out_specs=pl.BlockSpec((bb, 1, OUT_LANES), lambda g: (g, 0, 0)),
        compiler_params=pltpu.CompilerParams(dimension_semantics=dims),
    )(*in_arrays)
    return out_pad[:, 0, :C]


# ----------------------------- pure-JAX reference ---------------------------------
def reference_forward(x, params):
    t, p, _ = PATCH_SIZE
    pats = extract_patches(x, t, p)
    B, N, K = pats.shape
    E, H = EMBED_DIM, NUM_HEADS
    Dh = E // H

    emb = pats @ params["w_patch"] + params["b_patch"]
    h = jnp.concatenate([jnp.broadcast_to(params["cls_token"], (B, 1, E)), emb], axis=1)
    h = h + params["pos_embed"]
    S = N + 1

    for L in params["layers"]:
        qkv = h @ L["wqkv"] + L["bqkv"]
        q = qkv[..., :E].reshape(B, S, H, Dh)
        k = qkv[..., E:2 * E].reshape(B, S, H, Dh)
        v = qkv[..., 2 * E:].reshape(B, S, H, Dh)
        s = jnp.einsum("bqhd,bkhd->bhqk", q, k) / np.sqrt(Dh)
        pattn = jax.nn.softmax(s, axis=-1)
        o = jnp.einsum("bhqk,bkhd->bqhd", pattn, v).reshape(B, S, E)
        attn = o @ L["wo"] + L["bo"]
        h1 = _layernorm(h + attn, L["ln1w"], L["ln1b"])
        ff = jax.nn.gelu(h1 @ L["w1"] + L["b1"], approximate=False) @ L["w2"] + L["b2"]
        h = _layernorm(h1 + ff, L["ln2w"], L["ln2b"])

    cls_final = h[:, 0, :]
    y = _layernorm(cls_final, params["normw"], params["normb"])
    return y @ params["w_head"] + params["b_head"]


# ------------------------------- deterministic init --------------------------------
def init_params(key):
    E, F, C = EMBED_DIM, FFN_DIM, NUM_CLASSES
    t, p, _ = PATCH_SIZE
    K = IN_CHANNELS * t * p * p
    N = (NUM_FRAMES // t) * (IMAGE_SIZE[0] // p) * (IMAGE_SIZE[1] // p)
    S = N + 1

    keys = iter(jax.random.split(key, 8 + 8 * DEPTH))

    def nrm(shape, std=0.1):
        return std * jax.random.normal(next(keys), shape, jnp.float32)

    params = {
        "w_patch": nrm((K, E)),
        "b_patch": jnp.zeros((1, E), jnp.float32),
        "cls_token": jnp.zeros((1, 1, E), jnp.float32),           # PyTorch init: zeros
        "pos_embed": nrm((1, S, E), std=0.02),                    # trunc_normal(std=.02)-ish
        "normw": jnp.ones((1, E), jnp.float32),
        "normb": jnp.zeros((1, E), jnp.float32),
        "w_head": nrm((E, C)),
        "b_head": jnp.zeros((1, C), jnp.float32),
        "layers": [],
    }
    for _ in range(DEPTH):
        params["layers"].append({
            "wqkv": nrm((E, 3 * E)), "bqkv": jnp.zeros((1, 3 * E), jnp.float32),
            "wo": nrm((E, E)),       "bo": jnp.zeros((1, E), jnp.float32),
            "ln1w": jnp.ones((1, E), jnp.float32), "ln1b": jnp.zeros((1, E), jnp.float32),
            "w1": nrm((E, F)), "b1": jnp.zeros((1, F), jnp.float32),
            "w2": nrm((F, E)), "b2": jnp.zeros((1, E), jnp.float32),
            "ln2w": jnp.ones((1, E), jnp.float32), "ln2b": jnp.zeros((1, E), jnp.float32),
        })
    return params


# ----------------------------------------- main ------------------------------------
if __name__ == "__main__":
    root = jax.random.PRNGKey(0)
    kx, kp = jax.random.split(root)
    x = jax.random.normal(kx, (BATCH, IN_CHANNELS, NUM_FRAMES, *IMAGE_SIZE), jnp.float32)
    params = init_params(kp)

    logits = video_transformer_forward(x, params)
    logits = jax.block_until_ready(logits)

    ref = reference_forward(x, params)
    err = float(jnp.max(jnp.abs(logits - ref)))

    assert logits.shape == (BATCH, NUM_CLASSES), logits.shape
    assert np.isfinite(np.asarray(logits)).all()
    assert err < 2e-3, f"mismatch vs pure-JAX reference: max abs err = {err}"
    print("KERNEL_OK")
</pallas_src>

<mosaic_0001>
module attributes {stable_mosaic.version = 11 : i64} {
  func.func @fused_forward_kernel(%arg0: i32, %arg1: memref<2x9x386xf32, #tpu.memory_space<vmem>>, %arg2: memref<386x32xf32, #tpu.memory_space<vmem>>, %arg3: memref<9x32xf32, #tpu.memory_space<vmem>>, %arg4: memref<2x32x96xf32, #tpu.memory_space<vmem>>, %arg5: memref<2x1x96xf32, #tpu.memory_space<vmem>>, %arg6: memref<2x32x32xf32, #tpu.memory_space<vmem>>, %arg7: memref<2x1x32xf32, #tpu.memory_space<vmem>>, %arg8: memref<2x1x32xf32, #tpu.memory_space<vmem>>, %arg9: memref<2x1x32xf32, #tpu.memory_space<vmem>>, %arg10: memref<2x32x128xf32, #tpu.memory_space<vmem>>, %arg11: memref<2x1x128xf32, #tpu.memory_space<vmem>>, %arg12: memref<2x128x32xf32, #tpu.memory_space<vmem>>, %arg13: memref<2x1x32xf32, #tpu.memory_space<vmem>>, %arg14: memref<2x1x32xf32, #tpu.memory_space<vmem>>, %arg15: memref<2x1x32xf32, #tpu.memory_space<vmem>>, %arg16: memref<1x32xf32, #tpu.memory_space<vmem>>, %arg17: memref<1x32xf32, #tpu.memory_space<vmem>>, %arg18: memref<32x128xf32, #tpu.memory_space<vmem>>, %arg19: memref<1x128xf32, #tpu.memory_space<vmem>>, %arg20: memref<2x1x128xf32, #tpu.memory_space<vmem>>) attributes {dimension_semantics = [#tpu.dimension_semantics<arbitrary>], iteration_bounds = array<i64: 1>, scalar_prefetch = 0 : i64, scratch_operands = 0 : i64, tpu.core_type = #tpu.core_type<tc>, window_params = [{transform_indices = @transform_0, window_bounds = array<i64: 2, 9, 386>}, {pipeline_mode = #tpu.pipeline_mode<synchronous>, transform_indices = @transform_1, window_bounds = array<i64: 386, 32>}, {pipeline_mode = #tpu.pipeline_mode<synchronous>, transform_indices = @transform_2, window_bounds = array<i64: 9, 32>}, {pipeline_mode = #tpu.pipeline_mode<synchronous>, transform_indices = @transform_3, window_bounds = array<i64: 2, 32, 96>}, {pipeline_mode = #tpu.pipeline_mode<synchronous>, transform_indices = @transform_4, window_bounds = array<i64: 2, 1, 96>}, {pipeline_mode = #tpu.pipeline_mode<synchronous>, transform_indices = @transform_5, window_bounds = array<i64: 2, 32, 32>}, {pipeline_mode = #tpu.pipeline_mode<synchronous>, transform_indices = @transform_6, window_bounds = array<i64: 2, 1, 32>}, {pipeline_mode = #tpu.pipeline_mode<synchronous>, transform_indices = @transform_7, window_bounds = array<i64: 2, 1, 32>}, {pipeline_mode = #tpu.pipeline_mode<synchronous>, transform_indices = @transform_8, window_bounds = array<i64: 2, 1, 32>}, {pipeline_mode = #tpu.pipeline_mode<synchronous>, transform_indices = @transform_9, window_bounds = array<i64: 2, 32, 128>}, {pipeline_mode = #tpu.pipeline_mode<synchronous>, transform_indices = @transform_10, window_bounds = array<i64: 2, 1, 128>}, {pipeline_mode = #tpu.pipeline_mode<synchronous>, transform_indices = @transform_11, window_bounds = array<i64: 2, 128, 32>}, {pipeline_mode = #tpu.pipeline_mode<synchronous>, transform_indices = @transform_12, window_bounds = array<i64: 2, 1, 32>}, {pipeline_mode = #tpu.pipeline_mode<synchronous>, transform_indices = @transform_13, window_bounds = array<i64: 2, 1, 32>}, {pipeline_mode = #tpu.pipeline_mode<synchronous>, transform_indices = @transform_14, window_bounds = array<i64: 2, 1, 32>}, {pipeline_mode = #tpu.pipeline_mode<synchronous>, transform_indices = @transform_15, window_bounds = array<i64: 1, 32>}, {pipeline_mode = #tpu.pipeline_mode<synchronous>, transform_indices = @transform_16, window_bounds = array<i64: 1, 32>}, {pipeline_mode = #tpu.pipeline_mode<synchronous>, transform_indices = @transform_17, window_bounds = array<i64: 32, 128>}, {pipeline_mode = #tpu.pipeline_mode<synchronous>, transform_indices = @transform_18, window_bounds = array<i64: 1, 128>}, {transform_indices = @transform_19, window_bounds = array<i64: 2, 1, 128>}]} {
    %c0 = arith.constant 0 : index
    %c0_0 = arith.constant 0 : index
    %c0_1 = arith.constant 0 : index
    %0 = vector.load %arg1[%c0, %c0_0, %c0_1] : memref<2x9x386xf32, #tpu.memory_space<vmem>>, vector<1x9x386xf32>
    %1 = vector.shape_cast %0 : vector<1x9x386xf32> to vector<9x386xf32>
    %c0_2 = arith.constant 0 : index
    %c0_3 = arith.constant 0 : index
    %2 = vector.load %arg2[%c0_2, %c0_3] : memref<386x32xf32, #tpu.memory_space<vmem>>, vector<386x32xf32>
    %cst = arith.constant dense<0.000000e+00> : vector<9x32xf32>
    %3 = tpu.matmul %1, %2, %cst {dimension_numbers = #tpu.dot_dimension_numbers<[1], [0], [0], [1], [0, 0, 1, 1], [], []>} : vector<9x386xf32>, vector<386x32xf32>, vector<9x32xf32> -> vector<9x32xf32>
    %c0_4 = arith.constant 0 : index
    %c0_5 = arith.constant 0 : index
    %4 = vector.load %arg3[%c0_4, %c0_5] : memref<9x32xf32, #tpu.memory_space<vmem>>, vector<9x32xf32>
    %5 = arith.addf %3, %4 : vector<9x32xf32>
    %c0_6 = arith.constant 0 : index
    %c0_7 = arith.constant 0 : index
    %c0_8 = arith.constant 0 : index
    %6 = vector.load %arg4[%c0_6, %c0_7, %c0_8] : memref<2x32x96xf32, #tpu.memory_space<vmem>>, vector<1x32x96xf32>
    %7 = vector.shape_cast %6 : vector<1x32x96xf32> to vector<32x96xf32>
    %cst_9 = arith.constant dense<0.000000e+00> : vector<9x96xf32>
    %8 = tpu.matmul %5, %7, %cst_9 {dimension_numbers = #tpu.dot_dimension_numbers<[1], [0], [0], [1], [0, 0, 1, 1], [], []>} : vector<9x32xf32>, vector<32x96xf32>, vector<9x96xf32> -> vector<9x96xf32>
    %c0_10 = arith.constant 0 : index
    %c0_11 = arith.constant 0 : index
    %c0_12 = arith.constant 0 : index
    %9 = vector.load %arg5[%c0_10, %c0_11, %c0_12] : memref<2x1x96xf32, #tpu.memory_space<vmem>>, vector<1x1x96xf32>
    %10 = vector.shape_cast %9 : vector<1x1x96xf32> to vector<1x96xf32>
    %11 = vector.broadcast %10 : vector<1x96xf32> to vector<9x96xf32>
    %12 = arith.addf %8, %11 : vector<9x96xf32>
    %c0_13 = arith.constant 0 : index
    %c0_14 = arith.constant 0 : index
    %c0_15 = arith.constant 0 : index
    %13 = vector.load %arg7[%c0_13, %c0_14, %c0_15] : memref<2x1x32xf32, #tpu.memory_space<vmem>>, vector<1x1x32xf32>
    %14 = vector.shape_cast %13 : vector<1x1x32xf32> to vector<1x32xf32>
    %15 = vector.extract_strided_slice %12 {offsets = [0, 0], sizes = [9, 8], strides = [1, 1]} : vector<9x96xf32> to vector<9x8xf32>
    %16 = vector.extract_strided_slice %12 {offsets = [0, 32], sizes = [9, 8], strides = [1, 1]} : vector<9x96xf32> to vector<9x8xf32>
    %17 = vector.extract_strided_slice %12 {offsets = [0, 64], sizes = [9, 8], strides = [1, 1]} : vector<9x96xf32> to vector<9x8xf32>
    "tpu.trace_start"() <{level = 10 : i32, message = "qd,kd->qk"}> : () -> ()
    %cst_16 = arith.constant dense<0.000000e+00> : vector<9x9xf32>
    %18 = tpu.matmul %15, %16, %cst_16 {dimension_numbers = #tpu.dot_dimension_numbers<[1], [1], [0], [0], [0, 0, 1, 0], [], []>} : vector<9x8xf32>, vector<9x8xf32>, vector<9x9xf32> -> vector<9x9xf32>
    "tpu.trace_stop"() : () -> ()
    %cst_17 = arith.constant 0.353553385 : f32
    %19 = vector.broadcast %cst_17 : f32 to vector<9x9xf32>
    %20 = arith.mulf %18, %19 : vector<9x9xf32>
    %cst_18 = arith.constant dense<0xFF800000> : vector<9xf32>
    %21 = vector.multi_reduction <maximumf>, %20, %cst_18 [1] : vector<9x9xf32> to vector<9xf32>
    %22 = vector.shape_cast %21 : vector<9xf32> to vector<9x1xf32>
    %23 = vector.broadcast %22 : vector<9x1xf32> to vector<9x9xf32>
    %24 = arith.subf %20, %23 : vector<9x9xf32>
    %25 = math.exp %24 : vector<9x9xf32>
    %cst_19 = arith.constant dense<0.000000e+00> : vector<9xf32>
    %26 = vector.multi_reduction <add>, %25, %cst_19 [1] : vector<9x9xf32> to vector<9xf32>
    %27 = vector.shape_cast %26 : vector<9xf32> to vector<9x1xf32>
    %28 = tpu.reciprocal %27 {approx = true} : vector<9x1xf32> -> vector<9x1xf32>
    %29 = vector.broadcast %28 : vector<9x1xf32> to vector<9x9xf32>
    %30 = arith.mulf %25, %29 : vector<9x9xf32>
    %cst_20 = arith.constant dense<0.000000e+00> : vector<9x8xf32>
    %31 = tpu.matmul %30, %17, %cst_20 {dimension_numbers = #tpu.dot_dimension_numbers<[1], [0], [0], [1], [0, 0, 1, 1], [], []>} : vector<9x9xf32>, vector<9x8xf32>, vector<9x8xf32> -> vector<9x8xf32>
    %c0_21 = arith.constant 0 : index
    %c0_22 = arith.constant 0 : index
    %c0_23 = arith.constant 0 : index
    %32 = vector.load %arg6[%c0_21, %c0_22, %c0_23] : memref<2x32x32xf32, #tpu.memory_space<vmem>>, vector<1x32x32xf32>
    %33 = vector.shape_cast %32 : vector<1x32x32xf32> to vector<32x32xf32>
    %34 = vector.extract_strided_slice %33 {offsets = [0, 0], sizes = [8, 32], strides = [1, 1]} : vector<32x32xf32> to vector<8x32xf32>
    %cst_24 = arith.constant dense<0.000000e+00> : vector<9x32xf32>
    %35 = tpu.matmul %31, %34, %cst_24 {dimension_numbers = #tpu.dot_dimension_numbers<[1], [0], [0], [1], [0, 0, 1, 1], [], []>} : vector<9x8xf32>, vector<8x32xf32>, vector<9x32xf32> -> vector<9x32xf32>
    %36 = vector.broadcast %14 : vector<1x32xf32> to vector<9x32xf32>
    %37 = arith.addf %36, %35 : vector<9x32xf32>
    %38 = vector.extract_strided_slice %12 {offsets = [0, 8], sizes = [9, 8], strides = [1, 1]} : vector<9x96xf32> to vector<9x8xf32>
    %39 = vector.extract_strided_slice %12 {offsets = [0, 40], sizes = [9, 8], strides = [1, 1]} : vector<9x96xf32> to vector<9x8xf32>
    %40 = vector.extract_strided_slice %12 {offsets = [0, 72], sizes = [9, 8], strides = [1, 1]} : vector<9x96xf32> to vector<9x8xf32>
    "tpu.trace_start"() <{level = 10 : i32, message = "qd,kd->qk"}> : () -> ()
    %cst_25 = arith.constant dense<0.000000e+00> : vector<9x9xf32>
    %41 = tpu.matmul %38, %39, %cst_25 {dimension_numbers = #tpu.dot_dimension_numbers<[1], [1], [0], [0], [0, 0, 1, 0], [], []>} : vector<9x8xf32>, vector<9x8xf32>, vector<9x9xf32> -> vector<9x9xf32>
    "tpu.trace_stop"() : () -> ()
    %cst_26 = arith.constant 0.353553385 : f32
    %42 = vector.broadcast %cst_26 : f32 to vector<9x9xf32>
    %43 = arith.mulf %41, %42 : vector<9x9xf32>
    %cst_27 = arith.constant dense<0xFF800000> : vector<9xf32>
    %44 = vector.multi_reduction <maximumf>, %43, %cst_27 [1] : vector<9x9xf32> to vector<9xf32>
    %45 = vector.shape_cast %44 : vector<9xf32> to vector<9x1xf32>
    %46 = vector.broadcast %45 : vector<9x1xf32> to vector<9x9xf32>
    %47 = arith.subf %43, %46 : vector<9x9xf32>
    %48 = math.exp %47 : vector<9x9xf32>
    %cst_28 = arith.constant dense<0.000000e+00> : vector<9xf32>
    %49 = vector.multi_reduction <add>, %48, %cst_28 [1] : vector<9x9xf32> to vector<9xf32>
    %50 = vector.shape_cast %49 : vector<9xf32> to vector<9x1xf32>
    %51 = tpu.reciprocal %50 {approx = true} : vector<9x1xf32> -> vector<9x1xf32>
    %52 = vector.broadcast %51 : vector<9x1xf32> to vector<9x9xf32>
    %53 = arith.mulf %48, %52 : vector<9x9xf32>
    %cst_29 = arith.constant dense<0.000000e+00> : vector<9x8xf32>
    %54 = tpu.matmul %53, %40, %cst_29 {dimension_numbers = #tpu.dot_dimension_numbers<[1], [0], [0], [1], [0, 0, 1, 1], [], []>} : vector<9x9xf32>, vector<9x8xf32>, vector<9x8xf32> -> vector<9x8xf32>
    %c0_30 = arith.constant 0 : index
    %c0_31 = arith.constant 0 : index
    %c0_32 = arith.constant 0 : index
    %55 = vector.load %arg6[%c0_30, %c0_31, %c0_32] : memref<2x32x32xf32, #tpu.memory_space<vmem>>, vector<1x32x32xf32>
    %56 = vector.shape_cast %55 : vector<1x32x32xf32> to vector<32x32xf32>
    %57 = vector.extract_strided_slice %56 {offsets = [8, 0], sizes = [8, 32], strides = [1, 1]} : vector<32x32xf32> to vector<8x32xf32>
    %cst_33 = arith.constant dense<0.000000e+00> : vector<9x32xf32>
    %58 = tpu.matmul %54, %57, %cst_33 {dimension_numbers = #tpu.dot_dimension_numbers<[1], [0], [0], [1], [0, 0, 1, 1], [], []>} : vector<9x8xf32>, vector<8x32xf32>, vector<9x32xf32> -> vector<9x32xf32>
    %59 = arith.addf %37, %58 : vector<9x32xf32>
    %60 = vector.extract_strided_slice %12 {offsets = [0, 16], sizes = [9, 8], strides = [1, 1]} : vector<9x96xf32> to vector<9x8xf32>
    %61 = vector.extract_strided_slice %12 {offsets = [0, 48], sizes = [9, 8], strides = [1, 1]} : vector<9x96xf32> to vector<9x8xf32>
    %62 = vector.extract_strided_slice %12 {offsets = [0, 80], sizes = [9, 8], strides = [1, 1]} : vector<9x96xf32> to vector<9x8xf32>
    "tpu.trace_start"() <{level = 10 : i32, message = "qd,kd->qk"}> : () -> ()
    %cst_34 = arith.constant dense<0.000000e+00> : vector<9x9xf32>
    %63 = tpu.matmul %60, %61, %cst_34 {dimension_numbers = #tpu.dot_dimension_numbers<[1], [1], [0], [0], [0, 0, 1, 0], [], []>} : vector<9x8xf32>, vector<9x8xf32>, vector<9x9xf32> -> vector<9x9xf32>
    "tpu.trace_stop"() : () -> ()
    %cst_35 = arith.constant 0.353553385 : f32
    %64 = vector.broadcast %cst_35 : f32 to vector<9x9xf32>
    %65 = arith.mulf %63, %64 : vector<9x9xf32>
    %cst_36 = arith.constant dense<0xFF800000> : vector<9xf32>
    %66 = vector.multi_reduction <maximumf>, %65, %cst_36 [1] : vector<9x9xf32> to vector<9xf32>
    %67 = vector.shape_cast %66 : vector<9xf32> to vector<9x1xf32>
    %68 = vector.broadcast %67 : vector<9x1xf32> to vector<9x9xf32>
    %69 = arith.subf %65, %68 : vector<9x9xf32>
    %70 = math.exp %69 : vector<9x9xf32>
    %cst_37 = arith.constant dense<0.000000e+00> : vector<9xf32>
    %71 = vector.multi_reduction <add>, %70, %cst_37 [1] : vector<9x9xf32> to vector<9xf32>
    %72 = vector.shape_cast %71 : vector<9xf32> to vector<9x1xf32>
    %73 = tpu.reciprocal %72 {approx = true} : vector<9x1xf32> -> vector<9x1xf32>
    %74 = vector.broadcast %73 : vector<9x1xf32> to vector<9x9xf32>
    %75 = arith.mulf %70, %74 : vector<9x9xf32>
    %cst_38 = arith.constant dense<0.000000e+00> : vector<9x8xf32>
    %76 = tpu.matmul %75, %62, %cst_38 {dimension_numbers = #tpu.dot_dimension_numbers<[1], [0], [0], [1], [0, 0, 1, 1], [], []>} : vector<9x9xf32>, vector<9x8xf32>, vector<9x8xf32> -> vector<9x8xf32>
    %c0_39 = arith.constant 0 : index
    %c0_40 = arith.constant 0 : index
    %c0_41 = arith.constant 0 : index
    %77 = vector.load %arg6[%c0_39, %c0_40, %c0_41] : memref<2x32x32xf32, #tpu.memory_space<vmem>>, vector<1x32x32xf32>
    %78 = vector.shape_cast %77 : vector<1x32x32xf32> to vector<32x32xf32>
    %79 = vector.extract_strided_slice %78 {offsets = [16, 0], sizes = [8, 32], strides = [1, 1]} : vector<32x32xf32> to vector<8x32xf32>
    %cst_42 = arith.constant dense<0.000000e+00> : vector<9x32xf32>
    %80 = tpu.matmul %76, %79, %cst_42 {dimension_numbers = #tpu.dot_dimension_numbers<[1], [0], [0], [1], [0, 0, 1, 1], [], []>} : vector<9x8xf32>, vector<8x32xf32>, vector<9x32xf32> -> vector<9x32xf32>
    %81 = arith.addf %59, %80 : vector<9x32xf32>
    %82 = vector.extract_strided_slice %12 {offsets = [0, 24], sizes = [9, 8], strides = [1, 1]} : vector<9x96xf32> to vector<9x8xf32>
    %83 = vector.extract_strided_slice %12 {offsets = [0, 56], sizes = [9, 8], strides = [1, 1]} : vector<9x96xf32> to vector<9x8xf32>
    %84 = vector.extract_strided_slice %12 {offsets = [0, 88], sizes = [9, 8], strides = [1, 1]} : vector<9x96xf32> to vector<9x8xf32>
    "tpu.trace_start"() <{level = 10 : i32, message = "qd,kd->qk"}> : () -> ()
    %cst_43 = arith.constant dense<0.000000e+00> : vector<9x9xf32>
    %85 = tpu.matmul %82, %83, %cst_43 {dimension_numbers = #tpu.dot_dimension_numbers<[1], [1], [0], [0], [0, 0, 1, 0], [], []>} : vector<9x8xf32>, vector<9x8xf32>, vector<9x9xf32> -> vector<9x9xf32>
    "tpu.trace_stop"() : () -> ()
    %cst_44 = arith.constant 0.353553385 : f32
    %86 = vector.broadcast %cst_44 : f32 to vector<9x9xf32>
    %87 = arith.mulf %85, %86 : vector<9x9xf32>
    %cst_45 = arith.constant dense<0xFF800000> : vector<9xf32>
    %88 = vector.multi_reduction <maximumf>, %87, %cst_45 [1] : vector<9x9xf32> to vector<9xf32>
    %89 = vector.shape_cast %88 : vector<9xf32> to vector<9x1xf32>
    %90 = vector.broadcast %89 : vector<9x1xf32> to vector<9x9xf32>
    %91 = arith.subf %87, %90 : vector<9x9xf32>
    %92 = math.exp %91 : vector<9x9xf32>
    %cst_46 = arith.constant dense<0.000000e+00> : vector<9xf32>
    %93 = vector.multi_reduction <add>, %92, %cst_46 [1] : vector<9x9xf32> to vector<9xf32>
    %94 = vector.shape_cast %93 : vector<9xf32> to vector<9x1xf32>
    %95 = tpu.reciprocal %94 {approx = true} : vector<9x1xf32> -> vector<9x1xf32>
    %96 = vector.broadcast %95 : vector<9x1xf32> to vector<9x9xf32>
    %97 = arith.mulf %92, %96 : vector<9x9xf32>
    %cst_47 = arith.constant dense<0.000000e+00> : vector<9x8xf32>
    %98 = tpu.matmul %97, %84, %cst_47 {dimension_numbers = #tpu.dot_dimension_numbers<[1], [0], [0], [1], [0, 0, 1, 1], [], []>} : vector<9x9xf32>, vector<9x8xf32>, vector<9x8xf32> -> vector<9x8xf32>
    %c0_48 = arith.constant 0 : index
    %c0_49 = arith.constant 0 : index
    %c0_50 = arith.constant 0 : index
    %99 = vector.load %arg6[%c0_48, %c0_49, %c0_50] : memref<2x32x32xf32, #tpu.memory_space<vmem>>, vector<1x32x32xf32>
    %100 = vector.shape_cast %99 : vector<1x32x32xf32> to vector<32x32xf32>
    %101 = vector.extract_strided_slice %100 {offsets = [24, 0], sizes = [8, 32], strides = [1, 1]} : vector<32x32xf32> to vector<8x32xf32>
    %cst_51 = arith.constant dense<0.000000e+00> : vector<9x32xf32>
    %102 = tpu.matmul %98, %101, %cst_51 {dimension_numbers = #tpu.dot_dimension_numbers<[1], [0], [0], [1], [0, 0, 1, 1], [], []>} : vector<9x8xf32>, vector<8x32xf32>, vector<9x32xf32> -> vector<9x32xf32>
    %103 = arith.addf %81, %102 : vector<9x32xf32>
    %104 = arith.addf %5, %103 : vector<9x32xf32>
    %c0_52 = arith.constant 0 : index
    %c0_53 = arith.constant 0 : index
    %c0_54 = arith.constant 0 : index
    %105 = vector.load %arg8[%c0_52, %c0_53, %c0_54] : memref<2x1x32xf32, #tpu.memory_space<vmem>>, vector<1x1x32xf32>
    %106 = vector.shape_cast %105 : vector<1x1x32xf32> to vector<1x32xf32>
    %c0_55 = arith.constant 0 : index
    %c0_56 = arith.constant 0 : index
    %c0_57 = arith.constant 0 : index
    %107 = vector.load %arg9[%c0_55, %c0_56, %c0_57] : memref<2x1x32xf32, #tpu.memory_space<vmem>>, vector<1x1x32xf32>
    %108 = vector.shape_cast %107 : vector<1x1x32xf32> to vector<1x32xf32>
    %cst_58 = arith.constant dense<0.000000e+00> : vector<9xf32>
    %109 = vector.multi_reduction <add>, %104, %cst_58 [1] : vector<9x32xf32> to vector<9xf32>
    %110 = vector.shape_cast %109 : vector<9xf32> to vector<9x1xf32>
    %cst_59 = arith.constant 3.200000e+01 : f32
    %111 = vector.broadcast %cst_59 : f32 to vector<9x1xf32>
    %112 = arith.divf %110, %111 : vector<9x1xf32>
    %113 = vector.broadcast %112 : vector<9x1xf32> to vector<9x32xf32>
    %114 = arith.subf %104, %113 : vector<9x32xf32>
    %115 = vector.broadcast %112 : vector<9x1xf32> to vector<9x32xf32>
    %116 = arith.subf %104, %115 : vector<9x32xf32>
    %117 = arith.mulf %114, %116 : vector<9x32xf32>
    %cst_60 = arith.constant dense<0.000000e+00> : vector<9xf32>
    %118 = vector.multi_reduction <add>, %117, %cst_60 [1] : vector<9x32xf32> to vector<9xf32>
    %119 = vector.shape_cast %118 : vector<9xf32> to vector<9x1xf32>
    %cst_61 = arith.constant 3.200000e+01 : f32
    %120 = vector.broadcast %cst_61 : f32 to vector<9x1xf32>
    %121 = arith.divf %119, %120 : vector<9x1xf32>
    %122 = vector.broadcast %112 : vector<9x1xf32> to vector<9x32xf32>
    %123 = arith.subf %104, %122 : vector<9x32xf32>
    %cst_62 = arith.constant 9.99999974E-6 : f32
    %124 = vector.broadcast %cst_62 : f32 to vector<9x1xf32>
    %125 = arith.addf %121, %124 : vector<9x1xf32>
    %126 = math.rsqrt %125 : vector<9x1xf32>
    %127 = vector.broadcast %126 : vector<9x1xf32> to vector<9x32xf32>
    %128 = arith.mulf %123, %127 : vector<9x32xf32>
    %129 = vector.broadcast %106 : vector<1x32xf32> to vector<9x32xf32>
    %130 = arith.mulf %128, %129 : vector<9x32xf32>
    %131 = vector.broadcast %108 : vector<1x32xf32> to vector<9x32xf32>
    %132 = arith.addf %130, %131 : vector<9x32xf32>
    %c0_63 = arith.constant 0 : index
    %c0_64 = arith.constant 0 : index
    %c0_65 = arith.constant 0 : index
    %133 = vector.load %arg10[%c0_63, %c0_64, %c0_65] : memref<2x32x128xf32, #tpu.memory_space<vmem>>, vector<1x32x128xf32>
    %134 = vector.shape_cast %133 : vector<1x32x128xf32> to vector<32x128xf32>
    %cst_66 = arith.constant dense<0.000000e+00> : vector<9x128xf32>
    %135 = tpu.matmul %132, %134, %cst_66 {dimension_numbers = #tpu.dot_dimension_numbers<[1], [0], [0], [1], [0, 0, 1, 1], [], []>} : vector<9x32xf32>, vector<32x128xf32>, vector<9x128xf32> -> vector<9x128xf32>
    %c0_67 = arith.constant 0 : index
    %c0_68 = arith.constant 0 : index
    %c0_69 = arith.constant 0 : index
    %136 = vector.load %arg11[%c0_67, %c0_68, %c0_69] : memref<2x1x128xf32, #tpu.memory_space<vmem>>, vector<1x1x128xf32>
    %137 = vector.shape_cast %136 : vector<1x1x128xf32> to vector<1x128xf32>
    %138 = vector.broadcast %137 : vector<1x128xf32> to vector<9x128xf32>
    %139 = arith.addf %135, %138 : vector<9x128xf32>
    %cst_70 = arith.constant 5.000000e-01 : f32
    %140 = vector.broadcast %cst_70 : f32 to vector<9x128xf32>
    %141 = arith.mulf %140, %139 : vector<9x128xf32>
    %cst_71 = arith.constant 0.707106769 : f32
    %142 = vector.broadcast %cst_71 : f32 to vector<9x128xf32>
    %143 = arith.mulf %139, %142 : vector<9x128xf32>
    %144 = math.absf %143 : vector<9x128xf32>
    %cst_72 = arith.constant 0.327591091 : f32
    %145 = vector.broadcast %cst_72 : f32 to vector<9x128xf32>
    %146 = arith.mulf %145, %144 : vector<9x128xf32>
    %cst_73 = arith.constant 1.000000e+00 : f32
    %147 = vector.broadcast %cst_73 : f32 to vector<9x128xf32>
    %148 = arith.addf %147, %146 : vector<9x128xf32>
    %cst_74 = arith.constant 1.000000e+00 : f32
    %149 = vector.broadcast %cst_74 : f32 to vector<9x128xf32>
    %150 = arith.divf %149, %148 : vector<9x128xf32>
    %cst_75 = arith.constant 1.06140542 : f32
    %151 = vector.broadcast %cst_75 : f32 to vector<9x128xf32>
    %152 = arith.mulf %151, %150 : vector<9x128xf32>
    %cst_76 = arith.constant -1.45315206 : f32
    %153 = vector.broadcast %cst_76 : f32 to vector<9x128xf32>
    %154 = arith.addf %152, %153 : vector<9x128xf32>
    %155 = arith.mulf %154, %150 : vector<9x128xf32>
    %cst_77 = arith.constant 1.42141378 : f32
    %156 = vector.broadcast %cst_77 : f32 to vector<9x128xf32>
    %157 = arith.addf %155, %156 : vector<9x128xf32>
    %158 = arith.mulf %157, %150 : vector<9x128xf32>
    %cst_78 = arith.constant -0.284496725 : f32
    %159 = vector.broadcast %cst_78 : f32 to vector<9x128xf32>
    %160 = arith.addf %158, %159 : vector<9x128xf32>
    %161 = arith.mulf %160, %150 : vector<9x128xf32>
    %cst_79 = arith.constant 0.254829586 : f32
    %162 = vector.broadcast %cst_79 : f32 to vector<9x128xf32>
    %163 = arith.addf %161, %162 : vector<9x128xf32>
    %164 = arith.mulf %163, %150 : vector<9x128xf32>
    %cst_80 = arith.constant 0.000000e+00 : f32
    %165 = vector.broadcast %cst_80 : f32 to vector<9x128xf32>
    %166 = arith.subf %165, %144 : vector<9x128xf32>
    %167 = arith.mulf %166, %144 : vector<9x128xf32>
    %168 = math.exp %167 : vector<9x128xf32>
    %169 = arith.mulf %164, %168 : vector<9x128xf32>
    %cst_81 = arith.constant 1.000000e+00 : f32
    %170 = vector.broadcast %cst_81 : f32 to vector<9x128xf32>
    %171 = arith.subf %170, %169 : vector<9x128xf32>
    %cst_82 = arith.constant 0.000000e+00 : f32
    %172 = vector.broadcast %cst_82 : f32 to vector<9x128xf32>
    %173 = arith.cmpf oge, %143, %172 : vector<9x128xf32>
    %cst_83 = arith.constant 0.000000e+00 : f32
    %174 = vector.broadcast %cst_83 : f32 to vector<9x128xf32>
    %175 = arith.subf %174, %171 : vector<9x128xf32>
    %176 = arith.select %173, %171, %175 : vector<9x128xi1>, vector<9x128xf32>
    %cst_84 = arith.constant 1.000000e+00 : f32
    %177 = vector.broadcast %cst_84 : f32 to vector<9x128xf32>
    %178 = arith.addf %177, %176 : vector<9x128xf32>
    %179 = arith.mulf %141, %178 : vector<9x128xf32>
    %c0_85 = arith.constant 0 : index
    %c0_86 = arith.constant 0 : index
    %c0_87 = arith.constant 0 : index
    %180 = vector.load %arg12[%c0_85, %c0_86, %c0_87] : memref<2x128x32xf32, #tpu.memory_space<vmem>>, vector<1x128x32xf32>
    %181 = vector.shape_cast %180 : vector<1x128x32xf32> to vector<128x32xf32>
    %cst_88 = arith.constant dense<0.000000e+00> : vector<9x32xf32>
    %182 = tpu.matmul %179, %181, %cst_88 {dimension_numbers = #tpu.dot_dimension_numbers<[1], [0], [0], [1], [0, 0, 1, 1], [], []>} : vector<9x128xf32>, vector<128x32xf32>, vector<9x32xf32> -> vector<9x32xf32>
    %c0_89 = arith.constant 0 : index
    %c0_90 = arith.constant 0 : index
    %c0_91 = arith.constant 0 : index
    %183 = vector.load %arg13[%c0_89, %c0_90, %c0_91] : memref<2x1x32xf32, #tpu.memory_space<vmem>>, vector<1x1x32xf32>
    %184 = vector.shape_cast %183 : vector<1x1x32xf32> to vector<1x32xf32>
    %185 = vector.broadcast %184 : vector<1x32xf32> to vector<9x32xf32>
    %186 = arith.addf %182, %185 : vector<9x32xf32>
    %187 = arith.addf %132, %186 : vector<9x32xf32>
    %c0_92 = arith.constant 0 : index
    %c0_93 = arith.constant 0 : index
    %c0_94 = arith.constant 0 : index
    %188 = vector.load %arg14[%c0_92, %c0_93, %c0_94] : memref<2x1x32xf32, #tpu.memory_space<vmem>>, vector<1x1x32xf32>
    %189 = vector.shape_cast %188 : vector<1x1x32xf32> to vector<1x32xf32>
    %c0_95 = arith.constant 0 : index
    %c0_96 = arith.constant 0 : index
    %c0_97 = arith.constant 0 : index
    %190 = vector.load %arg15[%c0_95, %c0_96, %c0_97] : memref<2x1x32xf32, #tpu.memory_space<vmem>>, vector<1x1x32xf32>
    %191 = vector.shape_cast %190 : vector<1x1x32xf32> to vector<1x32xf32>
    %cst_98 = arith.constant dense<0.000000e+00> : vector<9xf32>
    %192 = vector.multi_reduction <add>, %187, %cst_98 [1] : vector<9x32xf32> to vector<9xf32>
    %193 = vector.shape_cast %192 : vector<9xf32> to vector<9x1xf32>
    %cst_99 = arith.constant 3.200000e+01 : f32
    %194 = vector.broadcast %cst_99 : f32 to vector<9x1xf32>
    %195 = arith.divf %193, %194 : vector<9x1xf32>
    %196 = vector.broadcast %195 : vector<9x1xf32> to vector<9x32xf32>
    %197 = arith.subf %187, %196 : vector<9x32xf32>
    %198 = vector.broadcast %195 : vector<9x1xf32> to vector<9x32xf32>
    %199 = arith.subf %187, %198 : vector<9x32xf32>
    %200 = arith.mulf %197, %199 : vector<9x32xf32>
    %cst_100 = arith.constant dense<0.000000e+00> : vector<9xf32>
    %201 = vector.multi_reduction <add>, %200, %cst_100 [1] : vector<9x32xf32> to vector<9xf32>
    %202 = vector.shape_cast %201 : vector<9xf32> to vector<9x1xf32>
    %cst_101 = arith.constant 3.200000e+01 : f32
    %203 = vector.broadcast %cst_101 : f32 to vector<9x1xf32>
    %204 = arith.divf %202, %203 : vector<9x1xf32>
    %205 = vector.broadcast %195 : vector<9x1xf32> to vector<9x32xf32>
    %206 = arith.subf %187, %205 : vector<9x32xf32>
    %cst_102 = arith.constant 9.99999974E-6 : f32
    %207 = vector.broadcast %cst_102 : f32 to vector<9x1xf32>
    %208 = arith.addf %204, %207 : vector<9x1xf32>
    %209 = math.rsqrt %208 : vector<9x1xf32>
    %210 = vector.broadcast %209 : vector<9x1xf32> to vector<9x32xf32>
    %211 = arith.mulf %206, %210 : vector<9x32xf32>
    %212 = vector.broadcast %189 : vector<1x32xf32> to vector<9x32xf32>
    %213 = arith.mulf %211, %212 : vector<9x32xf32>
    %214 = vector.broadcast %191 : vector<1x32xf32> to vector<9x32xf32>
    %215 = arith.addf %213, %214 : vector<9x32xf32>
    %c1 = arith.constant 1 : index
    %c0_103 = arith.constant 0 : index
    %c0_104 = arith.constant 0 : index
    %216 = vector.load %arg4[%c1, %c0_103, %c0_104] : memref<2x32x96xf32, #tpu.memory_space<vmem>>, vector<1x32x96xf32>
    %217 = vector.shape_cast %216 : vector<1x32x96xf32> to vector<32x96xf32>
    %cst_105 = arith.constant dense<0.000000e+00> : vector<9x96xf32>
    %218 = tpu.matmul %215, %217, %cst_105 {dimension_numbers = #tpu.dot_dimension_numbers<[1], [0], [0], [1], [0, 0, 1, 1], [], []>} : vector<9x32xf32>, vector<32x96xf32>, vector<9x96xf32> -> vector<9x96xf32>
    %c1_106 = arith.constant 1 : index
    %c0_107 = arith.constant 0 : index
    %c0_108 = arith.constant 0 : index
    %219 = vector.load %arg5[%c1_106, %c0_107, %c0_108] : memref<2x1x96xf32, #tpu.memory_space<vmem>>, vector<1x1x96xf32>
    %220 = vector.shape_cast %219 : vector<1x1x96xf32> to vector<1x96xf32>
    %221 = vector.broadcast %220 : vector<1x96xf32> to vector<9x96xf32>
    %222 = arith.addf %218, %221 : vector<9x96xf32>
    %c1_109 = arith.constant 1 : index
    %c0_110 = arith.constant 0 : index
    %c0_111 = arith.constant 0 : index
    %223 = vector.load %arg7[%c1_109, %c0_110, %c0_111] : memref<2x1x32xf32, #tpu.memory_space<vmem>>, vector<1x1x32xf32>
    %224 = vector.shape_cast %223 : vector<1x1x32xf32> to vector<1x32xf32>
    %225 = vector.extract_strided_slice %222 {offsets = [0, 0], sizes = [9, 8], strides = [1, 1]} : vector<9x96xf32> to vector<9x8xf32>
    %226 = vector.extract_strided_slice %222 {offsets = [0, 32], sizes = [9, 8], strides = [1, 1]} : vector<9x96xf32> to vector<9x8xf32>
    %227 = vector.extract_strided_slice %222 {offsets = [0, 64], sizes = [9, 8], strides = [1, 1]} : vector<9x96xf32> to vector<9x8xf32>
    "tpu.trace_start"() <{level = 10 : i32, message = "qd,kd->qk"}> : () -> ()
    %cst_112 = arith.constant dense<0.000000e+00> : vector<9x9xf32>
    %228 = tpu.matmul %225, %226, %cst_112 {dimension_numbers = #tpu.dot_dimension_numbers<[1], [1], [0], [0], [0, 0, 1, 0], [], []>} : vector<9x8xf32>, vector<9x8xf32>, vector<9x9xf32> -> vector<9x9xf32>
    "tpu.trace_stop"() : () -> ()
    %cst_113 = arith.constant 0.353553385 : f32
    %229 = vector.broadcast %cst_113 : f32 to vector<9x9xf32>
    %230 = arith.mulf %228, %229 : vector<9x9xf32>
    %cst_114 = arith.constant dense<0xFF800000> : vector<9xf32>
    %231 = vector.multi_reduction <maximumf>, %230, %cst_114 [1] : vector<9x9xf32> to vector<9xf32>
    %232 = vector.shape_cast %231 : vector<9xf32> to vector<9x1xf32>
    %233 = vector.broadcast %232 : vector<9x1xf32> to vector<9x9xf32>
    %234 = arith.subf %230, %233 : vector<9x9xf32>
    %235 = math.exp %234 : vector<9x9xf32>
    %cst_115 = arith.constant dense<0.000000e+00> : vector<9xf32>
    %236 = vector.multi_reduction <add>, %235, %cst_115 [1] : vector<9x9xf32> to vector<9xf32>
    %237 = vector.shape_cast %236 : vector<9xf32> to vector<9x1xf32>
    %238 = tpu.reciprocal %237 {approx = true} : vector<9x1xf32> -> vector<9x1xf32>
    %239 = vector.broadcast %238 : vector<9x1xf32> to vector<9x9xf32>
    %240 = arith.mulf %235, %239 : vector<9x9xf32>
    %cst_116 = arith.constant dense<0.000000e+00> : vector<9x8xf32>
    %241 = tpu.matmul %240, %227, %cst_116 {dimension_numbers = #tpu.dot_dimension_numbers<[1], [0], [0], [1], [0, 0, 1, 1], [], []>} : vector<9x9xf32>, vector<9x8xf32>, vector<9x8xf32> -> vector<9x8xf32>
    %c1_117 = arith.constant 1 : index
    %c0_118 = arith.constant 0 : index
    %c0_119 = arith.constant 0 : index
    %242 = vector.load %arg6[%c1_117, %c0_118, %c0_119] : memref<2x32x32xf32, #tpu.memory_space<vmem>>, vector<1x32x32xf32>
    %243 = vector.shape_cast %242 : vector<1x32x32xf32> to vector<32x32xf32>
    %244 = vector.extract_strided_slice %243 {offsets = [0, 0], sizes = [8, 32], strides = [1, 1]} : vector<32x32xf32> to vector<8x32xf32>
    %cst_120 = arith.constant dense<0.000000e+00> : vector<9x32xf32>
    %245 = tpu.matmul %241, %244, %cst_120 {dimension_numbers = #tpu.dot_dimension_numbers<[1], [0], [0], [1], [0, 0, 1, 1], [], []>} : vector<9x8xf32>, vector<8x32xf32>, vector<9x32xf32> -> vector<9x32xf32>
    %246 = vector.broadcast %224 : vector<1x32xf32> to vector<9x32xf32>
    %247 = arith.addf %246, %245 : vector<9x32xf32>
    %248 = vector.extract_strided_slice %222 {offsets = [0, 8], sizes = [9, 8], strides = [1, 1]} : vector<9x96xf32> to vector<9x8xf32>
    %249 = vector.extract_strided_slice %222 {offsets = [0, 40], sizes = [9, 8], strides = [1, 1]} : vector<9x96xf32> to vector<9x8xf32>
    %250 = vector.extract_strided_slice %222 {offsets = [0, 72], sizes = [9, 8], strides = [1, 1]} : vector<9x96xf32> to vector<9x8xf32>
    "tpu.trace_start"() <{level = 10 : i32, message = "qd,kd->qk"}> : () -> ()
    %cst_121 = arith.constant dense<0.000000e+00> : vector<9x9xf32>
    %251 = tpu.matmul %248, %249, %cst_121 {dimension_numbers = #tpu.dot_dimension_numbers<[1], [1], [0], [0], [0, 0, 1, 0], [], []>} : vector<9x8xf32>, vector<9x8xf32>, vector<9x9xf32> -> vector<9x9xf32>
    "tpu.trace_stop"() : () -> ()
    %cst_122 = arith.constant 0.353553385 : f32
    %252 = vector.broadcast %cst_122 : f32 to vector<9x9xf32>
    %253 = arith.mulf %251, %252 : vector<9x9xf32>
    %cst_123 = arith.constant dense<0xFF800000> : vector<9xf32>
    %254 = vector.multi_reduction <maximumf>, %253, %cst_123 [1] : vector<9x9xf32> to vector<9xf32>
    %255 = vector.shape_cast %254 : vector<9xf32> to vector<9x1xf32>
    %256 = vector.broadcast %255 : vector<9x1xf32> to vector<9x9xf32>
    %257 = arith.subf %253, %256 : vector<9x9xf32>
    %258 = math.exp %257 : vector<9x9xf32>
    %cst_124 = arith.constant dense<0.000000e+00> : vector<9xf32>
    %259 = vector.multi_reduction <add>, %258, %cst_124 [1] : vector<9x9xf32> to vector<9xf32>
    %260 = vector.shape_cast %259 : vector<9xf32> to vector<9x1xf32>
    %261 = tpu.reciprocal %260 {approx = true} : vector<9x1xf32> -> vector<9x1xf32>
    %262 = vector.broadcast %261 : vector<9x1xf32> to vector<9x9xf32>
    %263 = arith.mulf %258, %262 : vector<9x9xf32>
    %cst_125 = arith.constant dense<0.000000e+00> : vector<9x8xf32>
    %264 = tpu.matmul %263, %250, %cst_125 {dimension_numbers = #tpu.dot_dimension_numbers<[1], [0], [0], [1], [0, 0, 1, 1], [], []>} : vector<9x9xf32>, vector<9x8xf32>, vector<9x8xf32> -> vector<9x8xf32>
    %c1_126 = arith.constant 1 : index
    %c0_127 = arith.constant 0 : index
    %c0_128 = arith.constant 0 : index
    %265 = vector.load %arg6[%c1_126, %c0_127, %c0_128] : memref<2x32x32xf32, #tpu.memory_space<vmem>>, vector<1x32x32xf32>
    %266 = vector.shape_cast %265 : vector<1x32x32xf32> to vector<32x32xf32>
    %267 = vector.extract_strided_slice %266 {offsets = [8, 0], sizes = [8, 32], strides = [1, 1]} : vector<32x32xf32> to vector<8x32xf32>
    %cst_129 = arith.constant dense<0.000000e+00> : vector<9x32xf32>
    %268 = tpu.matmul %264, %267, %cst_129 {dimension_numbers = #tpu.dot_dimension_numbers<[1], [0], [0], [1], [0, 0, 1, 1], [], []>} : vector<9x8xf32>, vector<8x32xf32>, vector<9x32xf32> -> vector<9x32xf32>
    %269 = arith.addf %247, %268 : vector<9x32xf32>
    %270 = vector.extract_strided_slice %222 {offsets = [0, 16], sizes = [9, 8], strides = [1, 1]} : vector<9x96xf32> to vector<9x8xf32>
    %271 = vector.extract_strided_slice %222 {offsets = [0, 48], sizes = [9, 8], strides = [1, 1]} : vector<9x96xf32> to vector<9x8xf32>
    %272 = vector.extract_strided_slice %222 {offsets = [0, 80], sizes = [9, 8], strides = [1, 1]} : vector<9x96xf32> to vector<9x8xf32>
    "tpu.trace_start"() <{level = 10 : i32, message = "qd,kd->qk"}> : () -> ()
    %cst_130 = arith.constant dense<0.000000e+00> : vector<9x9xf32>
    %273 = tpu.matmul %270, %271, %cst_130 {dimension_numbers = #tpu.dot_dimension_numbers<[1], [1], [0], [0], [0, 0, 1, 0], [], []>} : vector<9x8xf32>, vector<9x8xf32>, vector<9x9xf32> -> vector<9x9xf32>
    "tpu.trace_stop"() : () -> ()
    %cst_131 = arith.constant 0.353553385 : f32
    %274 = vector.broadcast %cst_131 : f32 to vector<9x9xf32>
    %275 = arith.mulf %273, %274 : vector<9x9xf32>
    %cst_132 = arith.constant dense<0xFF800000> : vector<9xf32>
    %276 = vector.multi_reduction <maximumf>, %275, %cst_132 [1] : vector<9x9xf32> to vector<9xf32>
    %277 = vector.shape_cast %276 : vector<9xf32> to vector<9x1xf32>
    %278 = vector.broadcast %277 : vector<9x1xf32> to vector<9x9xf32>
    %279 = arith.subf %275, %278 : vector<9x9xf32>
    %280 = math.exp %279 : vector<9x9xf32>
    %cst_133 = arith.constant dense<0.000000e+00> : vector<9xf32>
    %281 = vector.multi_reduction <add>, %280, %cst_133 [1] : vector<9x9xf32> to vector<9xf32>
    %282 = vector.shape_cast %281 : vector<9xf32> to vector<9x1xf32>
    %283 = tpu.reciprocal %282 {approx = true} : vector<9x1xf32> -> vector<9x1xf32>
    %284 = vector.broadcast %283 : vector<9x1xf32> to vector<9x9xf32>
    %285 = arith.mulf %280, %284 : vector<9x9xf32>
    %cst_134 = arith.constant dense<0.000000e+00> : vector<9x8xf32>
    %286 = tpu.matmul %285, %272, %cst_134 {dimension_numbers = #tpu.dot_dimension_numbers<[1], [0], [0], [1], [0, 0, 1, 1], [], []>} : vector<9x9xf32>, vector<9x8xf32>, vector<9x8xf32> -> vector<9x8xf32>
    %c1_135 = arith.constant 1 : index
    %c0_136 = arith.constant 0 : index
    %c0_137 = arith.constant 0 : index
    %287 = vector.load %arg6[%c1_135, %c0_136, %c0_137] : memref<2x32x32xf32, #tpu.memory_space<vmem>>, vector<1x32x32xf32>
    %288 = vector.shape_cast %287 : vector<1x32x32xf32> to vector<32x32xf32>
    %289 = vector.extract_strided_slice %288 {offsets = [16, 0], sizes = [8, 32], strides = [1, 1]} : vector<32x32xf32> to vector<8x32xf32>
    %cst_138 = arith.constant dense<0.000000e+00> : vector<9x32xf32>
    %290 = tpu.matmul %286, %289, %cst_138 {dimension_numbers = #tpu.dot_dimension_numbers<[1], [0], [0], [1], [0, 0, 1, 1], [], []>} : vector<9x8xf32>, vector<8x32xf32>, vector<9x32xf32> -> vector<9x32xf32>
    %291 = arith.addf %269, %290 : vector<9x32xf32>
    %292 = vector.extract_strided_slice %222 {offsets = [0, 24], sizes = [9, 8], strides = [1, 1]} : vector<9x96xf32> to vector<9x8xf32>
    %293 = vector.extract_strided_slice %222 {offsets = [0, 56], sizes = [9, 8], strides = [1, 1]} : vector<9x96xf32> to vector<9x8xf32>
    %294 = vector.extract_strided_slice %222 {offsets = [0, 88], sizes = [9, 8], strides = [1, 1]} : vector<9x96xf32> to vector<9x8xf32>
    "tpu.trace_start"() <{level = 10 : i32, message = "qd,kd->qk"}> : () -> ()
    %cst_139 = arith.constant dense<0.000000e+00> : vector<9x9xf32>
    %295 = tpu.matmul %292, %293, %cst_139 {dimension_numbers = #tpu.dot_dimension_numbers<[1], [1], [0], [0], [0, 0, 1, 0], [], []>} : vector<9x8xf32>, vector<9x8xf32>, vector<9x9xf32> -> vector<9x9xf32>
    "tpu.trace_stop"() : () -> ()
    %cst_140 = arith.constant 0.353553385 : f32
    %296 = vector.broadcast %cst_140 : f32 to vector<9x9xf32>
    %297 = arith.mulf %295, %296 : vector<9x9xf32>
    %cst_141 = arith.constant dense<0xFF800000> : vector<9xf32>
    %298 = vector.multi_reduction <maximumf>, %297, %cst_141 [1] : vector<9x9xf32> to vector<9xf32>
    %299 = vector.shape_cast %298 : vector<9xf32> to vector<9x1xf32>
    %300 = vector.broadcast %299 : vector<9x1xf32> to vector<9x9xf32>
    %301 = arith.subf %297, %300 : vector<9x9xf32>
    %302 = math.exp %301 : vector<9x9xf32>
    %cst_142 = arith.constant dense<0.000000e+00> : vector<9xf32>
    %303 = vector.multi_reduction <add>, %302, %cst_142 [1] : vector<9x9xf32> to vector<9xf32>
    %304 = vector.shape_cast %303 : vector<9xf32> to vector<9x1xf32>
    %305 = tpu.reciprocal %304 {approx = true} : vector<9x1xf32> -> vector<9x1xf32>
    %306 = vector.broadcast %305 : vector<9x1xf32> to vector<9x9xf32>
    %307 = arith.mulf %302, %306 : vector<9x9xf32>
    %cst_143 = arith.constant dense<0.000000e+00> : vector<9x8xf32>
    %308 = tpu.matmul %307, %294, %cst_143 {dimension_numbers = #tpu.dot_dimension_numbers<[1], [0], [0], [1], [0, 0, 1, 1], [], []>} : vector<9x9xf32>, vector<9x8xf32>, vector<9x8xf32> -> vector<9x8xf32>
    %c1_144 = arith.constant 1 : index
    %c0_145 = arith.constant 0 : index
    %c0_146 = arith.constant 0 : index
    %309 = vector.load %arg6[%c1_144, %c0_145, %c0_146] : memref<2x32x32xf32, #tpu.memory_space<vmem>>, vector<1x32x32xf32>
    %310 = vector.shape_cast %309 : vector<1x32x32xf32> to vector<32x32xf32>
    %311 = vector.extract_strided_slice %310 {offsets = [24, 0], sizes = [8, 32], strides = [1, 1]} : vector<32x32xf32> to vector<8x32xf32>
    %cst_147 = arith.constant dense<0.000000e+00> : vector<9x32xf32>
    %312 = tpu.matmul %308, %311, %cst_147 {dimension_numbers = #tpu.dot_dimension_numbers<[1], [0], [0], [1], [0, 0, 1, 1], [], []>} : vector<9x8xf32>, vector<8x32xf32>, vector<9x32xf32> -> vector<9x32xf32>
    %313 = arith.addf %291, %312 : vector<9x32xf32>
    %314 = arith.addf %215, %313 : vector<9x32xf32>
    %c1_148 = arith.constant 1 : index
    %c0_149 = arith.constant 0 : index
    %c0_150 = arith.constant 0 : index
    %315 = vector.load %arg8[%c1_148, %c0_149, %c0_150] : memref<2x1x32xf32, #tpu.memory_space<vmem>>, vector<1x1x32xf32>
    %316 = vector.shape_cast %315 : vector<1x1x32xf32> to vector<1x32xf32>
    %c1_151 = arith.constant 1 : index
    %c0_152 = arith.constant 0 : index
    %c0_153 = arith.constant 0 : index
    %317 = vector.load %arg9[%c1_151, %c0_152, %c0_153] : memref<2x1x32xf32, #tpu.memory_space<vmem>>, vector<1x1x32xf32>
    %318 = vector.shape_cast %317 : vector<1x1x32xf32> to vector<1x32xf32>
    %cst_154 = arith.constant dense<0.000000e+00> : vector<9xf32>
    %319 = vector.multi_reduction <add>, %314, %cst_154 [1] : vector<9x32xf32> to vector<9xf32>
    %320 = vector.shape_cast %319 : vector<9xf32> to vector<9x1xf32>
    %cst_155 = arith.constant 3.200000e+01 : f32
    %321 = vector.broadcast %cst_155 : f32 to vector<9x1xf32>
    %322 = arith.divf %320, %321 : vector<9x1xf32>
    %323 = vector.broadcast %322 : vector<9x1xf32> to vector<9x32xf32>
    %324 = arith.subf %314, %323 : vector<9x32xf32>
    %325 = vector.broadcast %322 : vector<9x1xf32> to vector<9x32xf32>
    %326 = arith.subf %314, %325 : vector<9x32xf32>
    %327 = arith.mulf %324, %326 : vector<9x32xf32>
    %cst_156 = arith.constant dense<0.000000e+00> : vector<9xf32>
    %328 = vector.multi_reduction <add>, %327, %cst_156 [1] : vector<9x32xf32> to vector<9xf32>
    %329 = vector.shape_cast %328 : vector<9xf32> to vector<9x1xf32>
    %cst_157 = arith.constant 3.200000e+01 : f32
    %330 = vector.broadcast %cst_157 : f32 to vector<9x1xf32>
    %331 = arith.divf %329, %330 : vector<9x1xf32>
    %332 = vector.broadcast %322 : vector<9x1xf32> to vector<9x32xf32>
    %333 = arith.subf %314, %332 : vector<9x32xf32>
    %cst_158 = arith.constant 9.99999974E-6 : f32
    %334 = vector.broadcast %cst_158 : f32 to vector<9x1xf32>
    %335 = arith.addf %331, %334 : vector<9x1xf32>
    %336 = math.rsqrt %335 : vector<9x1xf32>
    %337 = vector.broadcast %336 : vector<9x1xf32> to vector<9x32xf32>
    %338 = arith.mulf %333, %337 : vector<9x32xf32>
    %339 = vector.broadcast %316 : vector<1x32xf32> to vector<9x32xf32>
    %340 = arith.mulf %338, %339 : vector<9x32xf32>
    %341 = vector.broadcast %318 : vector<1x32xf32> to vector<9x32xf32>
    %342 = arith.addf %340, %341 : vector<9x32xf32>
    %c1_159 = arith.constant 1 : index
    %c0_160 = arith.constant 0 : index
    %c0_161 = arith.constant 0 : index
    %343 = vector.load %arg10[%c1_159, %c0_160, %c0_161] : memref<2x32x128xf32, #tpu.memory_space<vmem>>, vector<1x32x128xf32>
    %344 = vector.shape_cast %343 : vector<1x32x128xf32> to vector<32x128xf32>
    %cst_162 = arith.constant dense<0.000000e+00> : vector<9x128xf32>
    %345 = tpu.matmul %342, %344, %cst_162 {dimension_numbers = #tpu.dot_dimension_numbers<[1], [0], [0], [1], [0, 0, 1, 1], [], []>} : vector<9x32xf32>, vector<32x128xf32>, vector<9x128xf32> -> vector<9x128xf32>
    %c1_163 = arith.constant 1 : index
    %c0_164 = arith.constant 0 : index
    %c0_165 = arith.constant 0 : index
    %346 = vector.load %arg11[%c1_163, %c0_164, %c0_165] : memref<2x1x128xf32, #tpu.memory_space<vmem>>, vector<1x1x128xf32>
    %347 = vector.shape_cast %346 : vector<1x1x128xf32> to vector<1x128xf32>
    %348 = vector.broadcast %347 : vector<1x128xf32> to vector<9x128xf32>
    %349 = arith.addf %345, %348 : vector<9x128xf32>
    %cst_166 = arith.constant 5.000000e-01 : f32
    %350 = vector.broadcast %cst_166 : f32 to vector<9x128xf32>
    %351 = arith.mulf %350, %349 : vector<9x128xf32>
    %cst_167 = arith.constant 0.707106769 : f32
    %352 = vector.broadcast %cst_167 : f32 to vector<9x128xf32>
    %353 = arith.mulf %349, %352 : vector<9x128xf32>
    %354 = math.absf %353 : vector<9x128xf32>
    %cst_168 = arith.constant 0.327591091 : f32
    %355 = vector.broadcast %cst_168 : f32 to vector<9x128xf32>
    %356 = arith.mulf %355, %354 : vector<9x128xf32>
    %cst_169 = arith.constant 1.000000e+00 : f32
    %357 = vector.broadcast %cst_169 : f32 to vector<9x128xf32>
    %358 = arith.addf %357, %356 : vector<9x128xf32>
    %cst_170 = arith.constant 1.000000e+00 : f32
    %359 = vector.broadcast %cst_170 : f32 to vector<9x128xf32>
    %360 = arith.divf %359, %358 : vector<9x128xf32>
    %cst_171 = arith.constant 1.06140542 : f32
    %361 = vector.broadcast %cst_171 : f32 to vector<9x128xf32>
    %362 = arith.mulf %361, %360 : vector<9x128xf32>
    %cst_172 = arith.constant -1.45315206 : f32
    %363 = vector.broadcast %cst_172 : f32 to vector<9x128xf32>
    %364 = arith.addf %362, %363 : vector<9x128xf32>
    %365 = arith.mulf %364, %360 : vector<9x128xf32>
    %cst_173 = arith.constant 1.42141378 : f32
    %366 = vector.broadcast %cst_173 : f32 to vector<9x128xf32>
    %367 = arith.addf %365, %366 : vector<9x128xf32>
    %368 = arith.mulf %367, %360 : vector<9x128xf32>
    %cst_174 = arith.constant -0.284496725 : f32
    %369 = vector.broadcast %cst_174 : f32 to vector<9x128xf32>
    %370 = arith.addf %368, %369 : vector<9x128xf32>
    %371 = arith.mulf %370, %360 : vector<9x128xf32>
    %cst_175 = arith.constant 0.254829586 : f32
    %372 = vector.broadcast %cst_175 : f32 to vector<9x128xf32>
    %373 = arith.addf %371, %372 : vector<9x128xf32>
    %374 = arith.mulf %373, %360 : vector<9x128xf32>
    %cst_176 = arith.constant 0.000000e+00 : f32
    %375 = vector.broadcast %cst_176 : f32 to vector<9x128xf32>
    %376 = arith.subf %375, %354 : vector<9x128xf32>
    %377 = arith.mulf %376, %354 : vector<9x128xf32>
    %378 = math.exp %377 : vector<9x128xf32>
    %379 = arith.mulf %374, %378 : vector<9x128xf32>
    %cst_177 = arith.constant 1.000000e+00 : f32
    %380 = vector.broadcast %cst_177 : f32 to vector<9x128xf32>
    %381 = arith.subf %380, %379 : vector<9x128xf32>
    %cst_178 = arith.constant 0.000000e+00 : f32
    %382 = vector.broadcast %cst_178 : f32 to vector<9x128xf32>
    %383 = arith.cmpf oge, %353, %382 : vector<9x128xf32>
    %cst_179 = arith.constant 0.000000e+00 : f32
    %384 = vector.broadcast %cst_179 : f32 to vector<9x128xf32>
    %385 = arith.subf %384, %381 : vector<9x128xf32>
    %386 = arith.select %383, %381, %385 : vector<9x128xi1>, vector<9x128xf32>
    %cst_180 = arith.constant 1.000000e+00 : f32
    %387 = vector.broadcast %cst_180 : f32 to vector<9x128xf32>
    %388 = arith.addf %387, %386 : vector<9x128xf32>
    %389 = arith.mulf %351, %388 : vector<9x128xf32>
    %c1_181 = arith.constant 1 : index
    %c0_182 = arith.constant 0 : index
    %c0_183 = arith.constant 0 : index
    %390 = vector.load %arg12[%c1_181, %c0_182, %c0_183] : memref<2x128x32xf32, #tpu.memory_space<vmem>>, vector<1x128x32xf32>
    %391 = vector.shape_cast %390 : vector<1x128x32xf32> to vector<128x32xf32>
    %cst_184 = arith.constant dense<0.000000e+00> : vector<9x32xf32>
    %392 = tpu.matmul %389, %391, %cst_184 {dimension_numbers = #tpu.dot_dimension_numbers<[1], [0], [0], [1], [0, 0, 1, 1], [], []>} : vector<9x128xf32>, vector<128x32xf32>, vector<9x32xf32> -> vector<9x32xf32>
    %c1_185 = arith.constant 1 : index
    %c0_186 = arith.constant 0 : index
    %c0_187 = arith.constant 0 : index
    %393 = vector.load %arg13[%c1_185, %c0_186, %c0_187] : memref<2x1x32xf32, #tpu.memory_space<vmem>>, vector<1x1x32xf32>
    %394 = vector.shape_cast %393 : vector<1x1x32xf32> to vector<1x32xf32>
    %395 = vector.broadcast %394 : vector<1x32xf32> to vector<9x32xf32>
    %396 = arith.addf %392, %395 : vector<9x32xf32>
    %397 = arith.addf %342, %396 : vector<9x32xf32>
    %c1_188 = arith.constant 1 : index
    %c0_189 = arith.constant 0 : index
    %c0_190 = arith.constant 0 : index
    %398 = vector.load %arg14[%c1_188, %c0_189, %c0_190] : memref<2x1x32xf32, #tpu.memory_space<vmem>>, vector<1x1x32xf32>
    %399 = vector.shape_cast %398 : vector<1x1x32xf32> to vector<1x32xf32>
    %c1_191 = arith.constant 1 : index
    %c0_192 = arith.constant 0 : index
    %c0_193 = arith.constant 0 : index
    %400 = vector.load %arg15[%c1_191, %c0_192, %c0_193] : memref<2x1x32xf32, #tpu.memory_space<vmem>>, vector<1x1x32xf32>
    %401 = vector.shape_cast %400 : vector<1x1x32xf32> to vector<1x32xf32>
    %cst_194 = arith.constant dense<0.000000e+00> : vector<9xf32>
    %402 = vector.multi_reduction <add>, %397, %cst_194 [1] : vector<9x32xf32> to vector<9xf32>
    %403 = vector.shape_cast %402 : vector<9xf32> to vector<9x1xf32>
    %cst_195 = arith.constant 3.200000e+01 : f32
    %404 = vector.broadcast %cst_195 : f32 to vector<9x1xf32>
    %405 = arith.divf %403, %404 : vector<9x1xf32>
    %406 = vector.broadcast %405 : vector<9x1xf32> to vector<9x32xf32>
    %407 = arith.subf %397, %406 : vector<9x32xf32>
    %408 = vector.broadcast %405 : vector<9x1xf32> to vector<9x32xf32>
    %409 = arith.subf %397, %408 : vector<9x32xf32>
    %410 = arith.mulf %407, %409 : vector<9x32xf32>
    %cst_196 = arith.constant dense<0.000000e+00> : vector<9xf32>
    %411 = vector.multi_reduction <add>, %410, %cst_196 [1] : vector<9x32xf32> to vector<9xf32>
    %412 = vector.shape_cast %411 : vector<9xf32> to vector<9x1xf32>
    %cst_197 = arith.constant 3.200000e+01 : f32
    %413 = vector.broadcast %cst_197 : f32 to vector<9x1xf32>
    %414 = arith.divf %412, %413 : vector<9x1xf32>
    %415 = vector.broadcast %405 : vector<9x1xf32> to vector<9x32xf32>
    %416 = arith.subf %397, %415 : vector<9x32xf32>
    %cst_198 = arith.constant 9.99999974E-6 : f32
    %417 = vector.broadcast %cst_198 : f32 to vector<9x1xf32>
    %418 = arith.addf %414, %417 : vector<9x1xf32>
    %419 = math.rsqrt %418 : vector<9x1xf32>
    %420 = vector.broadcast %419 : vector<9x1xf32> to vector<9x32xf32>
    %421 = arith.mulf %416, %420 : vector<9x32xf32>
    %422 = vector.broadcast %399 : vector<1x32xf32> to vector<9x32xf32>
    %423 = arith.mulf %421, %422 : vector<9x32xf32>
    %424 = vector.broadcast %401 : vector<1x32xf32> to vector<9x32xf32>
    %425 = arith.addf %423, %424 : vector<9x32xf32>
    %426 = vector.extract_strided_slice %425 {offsets = [0, 0], sizes = [1, 32], strides = [1, 1]} : vector<9x32xf32> to vector<1x32xf32>
    %c0_199 = arith.constant 0 : index
    %c0_200 = arith.constant 0 : index
    %427 = vector.load %arg16[%c0_199, %c0_200] : memref<1x32xf32, #tpu.memory_space<vmem>>, vector<1x32xf32>
    %c0_201 = arith.constant 0 : index
    %c0_202 = arith.constant 0 : index
    %428 = vector.load %arg17[%c0_201, %c0_202] : memref<1x32xf32, #tpu.memory_space<vmem>>, vector<1x32xf32>
    %cst_203 = arith.constant dense<0.000000e+00> : vector<1xf32>
    %429 = vector.multi_reduction <add>, %426, %cst_203 [1] : vector<1x32xf32> to vector<1xf32>
    %430 = vector.shape_cast %429 : vector<1xf32> to vector<1x1xf32>
    %cst_204 = arith.constant 3.200000e+01 : f32
    %431 = vector.broadcast %cst_204 : f32 to vector<1x1xf32>
    %432 = arith.divf %430, %431 : vector<1x1xf32>
    %433 = vector.broadcast %432 : vector<1x1xf32> to vector<1x32xf32>
    %434 = arith.subf %426, %433 : vector<1x32xf32>
    %435 = vector.broadcast %432 : vector<1x1xf32> to vector<1x32xf32>
    %436 = arith.subf %426, %435 : vector<1x32xf32>
    %437 = arith.mulf %434, %436 : vector<1x32xf32>
    %cst_205 = arith.constant dense<0.000000e+00> : vector<1xf32>
    %438 = vector.multi_reduction <add>, %437, %cst_205 [1] : vector<1x32xf32> to vector<1xf32>
    %439 = vector.shape_cast %438 : vector<1xf32> to vector<1x1xf32>
    %cst_206 = arith.constant 3.200000e+01 : f32
    %440 = vector.broadcast %cst_206 : f32 to vector<1x1xf32>
    %441 = arith.divf %439, %440 : vector<1x1xf32>
    %442 = vector.broadcast %432 : vector<1x1xf32> to vector<1x32xf32>
    %443 = arith.subf %426, %442 : vector<1x32xf32>
    %cst_207 = arith.constant 9.99999974E-6 : f32
    %444 = vector.broadcast %cst_207 : f32 to vector<1x1xf32>
    %445 = arith.addf %441, %444 : vector<1x1xf32>
    %446 = math.rsqrt %445 : vector<1x1xf32>
    %447 = vector.broadcast %446 : vector<1x1xf32> to vector<1x32xf32>
    %448 = arith.mulf %443, %447 : vector<1x32xf32>
    %449 = arith.mulf %448, %427 : vector<1x32xf32>
    %450 = arith.addf %449, %428 : vector<1x32xf32>
    %c0_208 = arith.constant 0 : index
    %c0_209 = arith.constant 0 : index
    %451 = vector.load %arg18[%c0_208, %c0_209] : memref<32x128xf32, #tpu.memory_space<vmem>>, vector<32x128xf32>
    %cst_210 = arith.constant dense<0.000000e+00> : vector<1x128xf32>
    %452 = tpu.matmul %450, %451, %cst_210 {dimension_numbers = #tpu.dot_dimension_numbers<[1], [0], [0], [1], [0, 0, 1, 1], [], []>} : vector<1x32xf32>, vector<32x128xf32>, vector<1x128xf32> -> vector<1x128xf32>
    %c0_211 = arith.constant 0 : index
    %c0_212 = arith.constant 0 : index
    %453 = vector.load %arg19[%c0_211, %c0_212] : memref<1x128xf32, #tpu.memory_space<vmem>>, vector<1x128xf32>
    %454 = arith.addf %452, %453 : vector<1x128xf32>
    %c0_213 = arith.constant 0 : index
    %c0_214 = arith.constant 0 : index
    %c0_215 = arith.constant 0 : index
    %455 = vector.load %arg20[%c0_213, %c0_214, %c0_215] : memref<2x1x128xf32, #tpu.memory_space<vmem>>, vector<1x1x128xf32>
    %456 = vector.shape_cast %455 : vector<1x1x128xf32> to vector<1x128xf32>
    %457 = vector.shape_cast %454 : vector<1x128xf32> to vector<1x1x128xf32>
    tpu.vector_store %arg20[%c0_213, %c0_214, %c0_215], %457 {strides = array<i32>} : memref<2x1x128xf32, #tpu.memory_space<vmem>>, vector<1x1x128xf32>,
    %c1_216 = arith.constant 1 : index
    %c0_217 = arith.constant 0 : index
    %c0_218 = arith.constant 0 : index
    %458 = vector.load %arg1[%c1_216, %c0_217, %c0_218] : memref<2x9x386xf32, #tpu.memory_space<vmem>>, vector<1x9x386xf32>
    %459 = vector.shape_cast %458 : vector<1x9x386xf32> to vector<9x386xf32>
    %c0_219 = arith.constant 0 : index
    %c0_220 = arith.constant 0 : index
    %460 = vector.load %arg2[%c0_219, %c0_220] : memref<386x32xf32, #tpu.memory_space<vmem>>, vector<386x32xf32>
    %cst_221 = arith.constant dense<0.000000e+00> : vector<9x32xf32>
    %461 = tpu.matmul %459, %460, %cst_221 {dimension_numbers = #tpu.dot_dimension_numbers<[1], [0], [0], [1], [0, 0, 1, 1], [], []>} : vector<9x386xf32>, vector<386x32xf32>, vector<9x32xf32> -> vector<9x32xf32>
    %c0_222 = arith.constant 0 : index
    %c0_223 = arith.constant 0 : index
    %462 = vector.load %arg3[%c0_222, %c0_223] : memref<9x32xf32, #tpu.memory_space<vmem>>, vector<9x32xf32>
    %463 = arith.addf %461, %462 : vector<9x32xf32>
    %c0_224 = arith.constant 0 : index
    %c0_225 = arith.constant 0 : index
    %c0_226 = arith.constant 0 : index
    %464 = vector.load %arg4[%c0_224, %c0_225, %c0_226] : memref<2x32x96xf32, #tpu.memory_space<vmem>>, vector<1x32x96xf32>
    %465 = vector.shape_cast %464 : vector<1x32x96xf32> to vector<32x96xf32>
    %cst_227 = arith.constant dense<0.000000e+00> : vector<9x96xf32>
    %466 = tpu.matmul %463, %465, %cst_227 {dimension_numbers = #tpu.dot_dimension_numbers<[1], [0], [0], [1], [0, 0, 1, 1], [], []>} : vector<9x32xf32>, vector<32x96xf32>, vector<9x96xf32> -> vector<9x96xf32>
    %c0_228 = arith.constant 0 : index
    %c0_229 = arith.constant 0 : index
    %c0_230 = arith.constant 0 : index
    %467 = vector.load %arg5[%c0_228, %c0_229, %c0_230] : memref<2x1x96xf32, #tpu.memory_space<vmem>>, vector<1x1x96xf32>
    %468 = vector.shape_cast %467 : vector<1x1x96xf32> to vector<1x96xf32>
    %469 = vector.broadcast %468 : vector<1x96xf32> to vector<9x96xf32>
    %470 = arith.addf %466, %469 : vector<9x96xf32>
    %c0_231 = arith.constant 0 : index
    %c0_232 = arith.constant 0 : index
    %c0_233 = arith.constant 0 : index
    %471 = vector.load %arg7[%c0_231, %c0_232, %c0_233] : memref<2x1x32xf32, #tpu.memory_space<vmem>>, vector<1x1x32xf32>
    %472 = vector.shape_cast %471 : vector<1x1x32xf32> to vector<1x32xf32>
    %473 = vector.extract_strided_slice %470 {offsets = [0, 0], sizes = [9, 8], strides = [1, 1]} : vector<9x96xf32> to vector<9x8xf32>
    %474 = vector.extract_strided_slice %470 {offsets = [0, 32], sizes = [9, 8], strides = [1, 1]} : vector<9x96xf32> to vector<9x8xf32>
    %475 = vector.extract_strided_slice %470 {offsets = [0, 64], sizes = [9, 8], strides = [1, 1]} : vector<9x96xf32> to vector<9x8xf32>
    "tpu.trace_start"() <{level = 10 : i32, message = "qd,kd->qk"}> : () -> ()
    %cst_234 = arith.constant dense<0.000000e+00> : vector<9x9xf32>
    %476 = tpu.matmul %473, %474, %cst_234 {dimension_numbers = #tpu.dot_dimension_numbers<[1], [1], [0], [0], [0, 0, 1, 0], [], []>} : vector<9x8xf32>, vector<9x8xf32>, vector<9x9xf32> -> vector<9x9xf32>
    "tpu.trace_stop"() : () -> ()
    %cst_235 = arith.constant 0.353553385 : f32
    %477 = vector.broadcast %cst_235 : f32 to vector<9x9xf32>
    %478 = arith.mulf %476, %477 : vector<9x9xf32>
    %cst_236 = arith.constant dense<0xFF800000> : vector<9xf32>
    %479 = vector.multi_reduction <maximumf>, %478, %cst_236 [1] : vector<9x9xf32> to vector<9xf32>
    %480 = vector.shape_cast %479 : vector<9xf32> to vector<9x1xf32>
    %481 = vector.broadcast %480 : vector<9x1xf32> to vector<9x9xf32>
    %482 = arith.subf %478, %481 : vector<9x9xf32>
    %483 = math.exp %482 : vector<9x9xf32>
    %cst_237 = arith.constant dense<0.000000e+00> : vector<9xf32>
    %484 = vector.multi_reduction <add>, %483, %cst_237 [1] : vector<9x9xf32> to vector<9xf32>
    %485 = vector.shape_cast %484 : vector<9xf32> to vector<9x1xf32>
    %486 = tpu.reciprocal %485 {approx = true} : vector<9x1xf32> -> vector<9x1xf32>
    %487 = vector.broadcast %486 : vector<9x1xf32> to vector<9x9xf32>
    %488 = arith.mulf %483, %487 : vector<9x9xf32>
    %cst_238 = arith.constant dense<0.000000e+00> : vector<9x8xf32>
    %489 = tpu.matmul %488, %475, %cst_238 {dimension_numbers = #tpu.dot_dimension_numbers<[1], [0], [0], [1], [0, 0, 1, 1], [], []>} : vector<9x9xf32>, vector<9x8xf32>, vector<9x8xf32> -> vector<9x8xf32>
    %c0_239 = arith.constant 0 : index
    %c0_240 = arith.constant 0 : index
    %c0_241 = arith.constant 0 : index
    %490 = vector.load %arg6[%c0_239, %c0_240, %c0_241] : memref<2x32x32xf32, #tpu.memory_space<vmem>>, vector<1x32x32xf32>
    %491 = vector.shape_cast %490 : vector<1x32x32xf32> to vector<32x32xf32>
    %492 = vector.extract_strided_slice %491 {offsets = [0, 0], sizes = [8, 32], strides = [1, 1]} : vector<32x32xf32> to vector<8x32xf32>
    %cst_242 = arith.constant dense<0.000000e+00> : vector<9x32xf32>
    %493 = tpu.matmul %489, %492, %cst_242 {dimension_numbers = #tpu.dot_dimension_numbers<[1], [0], [0], [1], [0, 0, 1, 1], [], []>} : vector<9x8xf32>, vector<8x32xf32>, vector<9x32xf32> -> vector<9x32xf32>
    %494 = vector.broadcast %472 : vector<1x32xf32> to vector<9x32xf32>
    %495 = arith.addf %494, %493 : vector<9x32xf32>
    %496 = vector.extract_strided_slice %470 {offsets = [0, 8], sizes = [9, 8], strides = [1, 1]} : vector<9x96xf32> to vector<9x8xf32>
    %497 = vector.extract_strided_slice %470 {offsets = [0, 40], sizes = [9, 8], strides = [1, 1]} : vector<9x96xf32> to vector<9x8xf32>
    %498 = vector.extract_strided_slice %470 {offsets = [0, 72], sizes = [9, 8], strides = [1, 1]} : vector<9x96xf32> to vector<9x8xf32>
    "tpu.trace_start"() <{level = 10 : i32, message = "qd,kd->qk"}> : () -> ()
    %cst_243 = arith.constant dense<0.000000e+00> : vector<9x9xf32>
    %499 = tpu.matmul %496, %497, %cst_243 {dimension_numbers = #tpu.dot_dimension_numbers<[1], [1], [0], [0], [0, 0, 1, 0], [], []>} : vector<9x8xf32>, vector<9x8xf32>, vector<9x9xf32> -> vector<9x9xf32>
    "tpu.trace_stop"() : () -> ()
    %cst_244 = arith.constant 0.353553385 : f32
    %500 = vector.broadcast %cst_244 : f32 to vector<9x9xf32>
    %501 = arith.mulf %499, %500 : vector<9x9xf32>
    %cst_245 = arith.constant dense<0xFF800000> : vector<9xf32>
    %502 = vector.multi_reduction <maximumf>, %501, %cst_245 [1] : vector<9x9xf32> to vector<9xf32>
    %503 = vector.shape_cast %502 : vector<9xf32> to vector<9x1xf32>
    %504 = vector.broadcast %503 : vector<9x1xf32> to vector<9x9xf32>
    %505 = arith.subf %501, %504 : vector<9x9xf32>
    %506 = math.exp %505 : vector<9x9xf32>
    %cst_246 = arith.constant dense<0.000000e+00> : vector<9xf32>
    %507 = vector.multi_reduction <add>, %506, %cst_246 [1] : vector<9x9xf32> to vector<9xf32>
    %508 = vector.shape_cast %507 : vector<9xf32> to vector<9x1xf32>
    %509 = tpu.reciprocal %508 {approx = true} : vector<9x1xf32> -> vector<9x1xf32>
    %510 = vector.broadcast %509 : vector<9x1xf32> to vector<9x9xf32>
    %511 = arith.mulf %506, %510 : vector<9x9xf32>
    %cst_247 = arith.constant dense<0.000000e+00> : vector<9x8xf32>
    %512 = tpu.matmul %511, %498, %cst_247 {dimension_numbers = #tpu.dot_dimension_numbers<[1], [0], [0], [1], [0, 0, 1, 1], [], []>} : vector<9x9xf32>, vector<9x8xf32>, vector<9x8xf32> -> vector<9x8xf32>
    %c0_248 = arith.constant 0 : index
    %c0_249 = arith.constant 0 : index
    %c0_250 = arith.constant 0 : index
    %513 = vector.load %arg6[%c0_248, %c0_249, %c0_250] : memref<2x32x32xf32, #tpu.memory_space<vmem>>, vector<1x32x32xf32>
    %514 = vector.shape_cast %513 : vector<1x32x32xf32> to vector<32x32xf32>
    %515 = vector.extract_strided_slice %514 {offsets = [8, 0], sizes = [8, 32], strides = [1, 1]} : vector<32x32xf32> to vector<8x32xf32>
    %cst_251 = arith.constant dense<0.000000e+00> : vector<9x32xf32>
    %516 = tpu.matmul %512, %515, %cst_251 {dimension_numbers = #tpu.dot_dimension_numbers<[1], [0], [0], [1], [0, 0, 1, 1], [], []>} : vector<9x8xf32>, vector<8x32xf32>, vector<9x32xf32> -> vector<9x32xf32>
    %517 = arith.addf %495, %516 : vector<9x32xf32>
    %518 = vector.extract_strided_slice %470 {offsets = [0, 16], sizes = [9, 8], strides = [1, 1]} : vector<9x96xf32> to vector<9x8xf32>
    %519 = vector.extract_strided_slice %470 {offsets = [0, 48], sizes = [9, 8], strides = [1, 1]} : vector<9x96xf32> to vector<9x8xf32>
    %520 = vector.extract_strided_slice %470 {offsets = [0, 80], sizes = [9, 8], strides = [1, 1]} : vector<9x96xf32> to vector<9x8xf32>
    "tpu.trace_start"() <{level = 10 : i32, message = "qd,kd->qk"}> : () -> ()
    %cst_252 = arith.constant dense<0.000000e+00> : vector<9x9xf32>
    %521 = tpu.matmul %518, %519, %cst_252 {dimension_numbers = #tpu.dot_dimension_numbers<[1], [1], [0], [0], [0, 0, 1, 0], [], []>} : vector<9x8xf32>, vector<9x8xf32>, vector<9x9xf32> -> vector<9x9xf32>
    "tpu.trace_stop"() : () -> ()
    %cst_253 = arith.constant 0.353553385 : f32
    %522 = vector.broadcast %cst_253 : f32 to vector<9x9xf32>
    %523 = arith.mulf %521, %522 : vector<9x9xf32>
    %cst_254 = arith.constant dense<0xFF800000> : vector<9xf32>
    %524 = vector.multi_reduction <maximumf>, %523, %cst_254 [1] : vector<9x9xf32> to vector<9xf32>
    %525 = vector.shape_cast %524 : vector<9xf32> to vector<9x1xf32>
    %526 = vector.broadcast %525 : vector<9x1xf32> to vector<9x9xf32>
    %527 = arith.subf %523, %526 : vector<9x9xf32>
    %528 = math.exp %527 : vector<9x9xf32>
    %cst_255 = arith.constant dense<0.000000e+00> : vector<9xf32>
    %529 = vector.multi_reduction <add>, %528, %cst_255 [1] : vector<9x9xf32> to vector<9xf32>
    %530 = vector.shape_cast %529 : vector<9xf32> to vector<9x1xf32>
    %531 = tpu.reciprocal %530 {approx = true} : vector<9x1xf32> -> vector<9x1xf32>
    %532 = vector.broadcast %531 : vector<9x1xf32> to vector<9x9xf32>
    %533 = arith.mulf %528, %532 : vector<9x9xf32>
    %cst_256 = arith.constant dense<0.000000e+00> : vector<9x8xf32>
    %534 = tpu.matmul %533, %520, %cst_256 {dimension_numbers = #tpu.dot_dimension_numbers<[1], [0], [0], [1], [0, 0, 1, 1], [], []>} : vector<9x9xf32>, vector<9x8xf32>, vector<9x8xf32> -> vector<9x8xf32>
    %c0_257 = arith.constant 0 : index
    %c0_258 = arith.constant 0 : index
    %c0_259 = arith.constant 0 : index
    %535 = vector.load %arg6[%c0_257, %c0_258, %c0_259] : memref<2x32x32xf32, #tpu.memory_space<vmem>>, vector<1x32x32xf32>
    %536 = vector.shape_cast %535 : vector<1x32x32xf32> to vector<32x32xf32>
    %537 = vector.extract_strided_slice %536 {offsets = [16, 0], sizes = [8, 32], strides = [1, 1]} : vector<32x32xf32> to vector<8x32xf32>
    %cst_260 = arith.constant dense<0.000000e+00> : vector<9x32xf32>
    %538 = tpu.matmul %534, %537, %cst_260 {dimension_numbers = #tpu.dot_dimension_numbers<[1], [0], [0], [1], [0, 0, 1, 1], [], []>} : vector<9x8xf32>, vector<8x32xf32>, vector<9x32xf32> -> vector<9x32xf32>
    %539 = arith.addf %517, %538 : vector<9x32xf32>
    %540 = vector.extract_strided_slice %470 {offsets = [0, 24], sizes = [9, 8], strides = [1, 1]} : vector<9x96xf32> to vector<9x8xf32>
    %541 = vector.extract_strided_slice %470 {offsets = [0, 56], sizes = [9, 8], strides = [1, 1]} : vector<9x96xf32> to vector<9x8xf32>
    %542 = vector.extract_strided_slice %470 {offsets = [0, 88], sizes = [9, 8], strides = [1, 1]} : vector<9x96xf32> to vector<9x8xf32>
    "tpu.trace_start"() <{level = 10 : i32, message = "qd,kd->qk"}> : () -> ()
    %cst_261 = arith.constant dense<0.000000e+00> : vector<9x9xf32>
    %543 = tpu.matmul %540, %541, %cst_261 {dimension_numbers = #tpu.dot_dimension_numbers<[1], [1], [0], [0], [0, 0, 1, 0], [], []>} : vector<9x8xf32>, vector<9x8xf32>, vector<9x9xf32> -> vector<9x9xf32>
    "tpu.trace_stop"() : () -> ()
    %cst_262 = arith.constant 0.353553385 : f32
    %544 = vector.broadcast %cst_262 : f32 to vector<9x9xf32>
    %545 = arith.mulf %543, %544 : vector<9x9xf32>
    %cst_263 = arith.constant dense<0xFF800000> : vector<9xf32>
    %546 = vector.multi_reduction <maximumf>, %545, %cst_263 [1] : vector<9x9xf32> to vector<9xf32>
    %547 = vector.shape_cast %546 : vector<9xf32> to vector<9x1xf32>
    %548 = vector.broadcast %547 : vector<9x1xf32> to vector<9x9xf32>
    %549 = arith.subf %545, %548 : vector<9x9xf32>
    %550 = math.exp %549 : vector<9x9xf32>
    %cst_264 = arith.constant dense<0.000000e+00> : vector<9xf32>
    %551 = vector.multi_reduction <add>, %550, %cst_264 [1] : vector<9x9xf32> to vector<9xf32>
    %552 = vector.shape_cast %551 : vector<9xf32> to vector<9x1xf32>
    %553 = tpu.reciprocal %552 {approx = true} : vector<9x1xf32> -> vector<9x1xf32>
    %554 = vector.broadcast %553 : vector<9x1xf32> to vector<9x9xf32>
    %555 = arith.mulf %550, %554 : vector<9x9xf32>
    %cst_265 = arith.constant dense<0.000000e+00> : vector<9x8xf32>
    %556 = tpu.matmul %555, %542, %cst_265 {dimension_numbers = #tpu.dot_dimension_numbers<[1], [0], [0], [1], [0, 0, 1, 1], [], []>} : vector<9x9xf32>, vector<9x8xf32>, vector<9x8xf32> -> vector<9x8xf32>
    %c0_266 = arith.constant 0 : index
    %c0_267 = arith.constant 0 : index
    %c0_268 = arith.constant 0 : index
    %557 = vector.load %arg6[%c0_266, %c0_267, %c0_268] : memref<2x32x32xf32, #tpu.memory_space<vmem>>, vector<1x32x32xf32>
    %558 = vector.shape_cast %557 : vector<1x32x32xf32> to vector<32x32xf32>
    %559 = vector.extract_strided_slice %558 {offsets = [24, 0], sizes = [8, 32], strides = [1, 1]} : vector<32x32xf32> to vector<8x32xf32>
    %cst_269 = arith.constant dense<0.000000e+00> : vector<9x32xf32>
    %560 = tpu.matmul %556, %559, %cst_269 {dimension_numbers = #tpu.dot_dimension_numbers<[1], [0], [0], [1], [0, 0, 1, 1], [], []>} : vector<9x8xf32>, vector<8x32xf32>, vector<9x32xf32> -> vector<9x32xf32>
    %561 = arith.addf %539, %560 : vector<9x32xf32>
    %562 = arith.addf %463, %561 : vector<9x32xf32>
    %c0_270 = arith.constant 0 : index
    %c0_271 = arith.constant 0 : index
    %c0_272 = arith.constant 0 : index
    %563 = vector.load %arg8[%c0_270, %c0_271, %c0_272] : memref<2x1x32xf32, #tpu.memory_space<vmem>>, vector<1x1x32xf32>
    %564 = vector.shape_cast %563 : vector<1x1x32xf32> to vector<1x32xf32>
    %c0_273 = arith.constant 0 : index
    %c0_274 = arith.constant 0 : index
    %c0_275 = arith.constant 0 : index
    %565 = vector.load %arg9[%c0_273, %c0_274, %c0_275] : memref<2x1x32xf32, #tpu.memory_space<vmem>>, vector<1x1x32xf32>
    %566 = vector.shape_cast %565 : vector<1x1x32xf32> to vector<1x32xf32>
    %cst_276 = arith.constant dense<0.000000e+00> : vector<9xf32>
    %567 = vector.multi_reduction <add>, %562, %cst_276 [1] : vector<9x32xf32> to vector<9xf32>
    %568 = vector.shape_cast %567 : vector<9xf32> to vector<9x1xf32>
    %cst_277 = arith.constant 3.200000e+01 : f32
    %569 = vector.broadcast %cst_277 : f32 to vector<9x1xf32>
    %570 = arith.divf %568, %569 : vector<9x1xf32>
    %571 = vector.broadcast %570 : vector<9x1xf32> to vector<9x32xf32>
    %572 = arith.subf %562, %571 : vector<9x32xf32>
    %573 = vector.broadcast %570 : vector<9x1xf32> to vector<9x32xf32>
    %574 = arith.subf %562, %573 : vector<9x32xf32>
    %575 = arith.mulf %572, %574 : vector<9x32xf32>
    %cst_278 = arith.constant dense<0.000000e+00> : vector<9xf32>
    %576 = vector.multi_reduction <add>, %575, %cst_278 [1] : vector<9x32xf32> to vector<9xf32>
    %577 = vector.shape_cast %576 : vector<9xf32> to vector<9x1xf32>
    %cst_279 = arith.constant 3.200000e+01 : f32
    %578 = vector.broadcast %cst_279 : f32 to vector<9x1xf32>
    %579 = arith.divf %577, %578 : vector<9x1xf32>
    %580 = vector.broadcast %570 : vector<9x1xf32> to vector<9x32xf32>
    %581 = arith.subf %562, %580 : vector<9x32xf32>
    %cst_280 = arith.constant 9.99999974E-6 : f32
    %582 = vector.broadcast %cst_280 : f32 to vector<9x1xf32>
    %583 = arith.addf %579, %582 : vector<9x1xf32>
    %584 = math.rsqrt %583 : vector<9x1xf32>
    %585 = vector.broadcast %584 : vector<9x1xf32> to vector<9x32xf32>
    %586 = arith.mulf %581, %585 : vector<9x32xf32>
    %587 = vector.broadcast %564 : vector<1x32xf32> to vector<9x32xf32>
    %588 = arith.mulf %586, %587 : vector<9x32xf32>
    %589 = vector.broadcast %566 : vector<1x32xf32> to vector<9x32xf32>
    %590 = arith.addf %588, %589 : vector<9x32xf32>
    %c0_281 = arith.constant 0 : index
    %c0_282 = arith.constant 0 : index
    %c0_283 = arith.constant 0 : index
    %591 = vector.load %arg10[%c0_281, %c0_282, %c0_283] : memref<2x32x128xf32, #tpu.memory_space<vmem>>, vector<1x32x128xf32>
    %592 = vector.shape_cast %591 : vector<1x32x128xf32> to vector<32x128xf32>
    %cst_284 = arith.constant dense<0.000000e+00> : vector<9x128xf32>
    %593 = tpu.matmul %590, %592, %cst_284 {dimension_numbers = #tpu.dot_dimension_numbers<[1], [0], [0], [1], [0, 0, 1, 1], [], []>} : vector<9x32xf32>, vector<32x128xf32>, vector<9x128xf32> -> vector<9x128xf32>
    %c0_285 = arith.constant 0 : index
    %c0_286 = arith.constant 0 : index
    %c0_287 = arith.constant 0 : index
    %594 = vector.load %arg11[%c0_285, %c0_286, %c0_287] : memref<2x1x128xf32, #tpu.memory_space<vmem>>, vector<1x1x128xf32>
    %595 = vector.shape_cast %594 : vector<1x1x128xf32> to vector<1x128xf32>
    %596 = vector.broadcast %595 : vector<1x128xf32> to vector<9x128xf32>
    %597 = arith.addf %593, %596 : vector<9x128xf32>
    %cst_288 = arith.constant 5.000000e-01 : f32
    %598 = vector.broadcast %cst_288 : f32 to vector<9x128xf32>
    %599 = arith.mulf %598, %597 : vector<9x128xf32>
    %cst_289 = arith.constant 0.707106769 : f32
    %600 = vector.broadcast %cst_289 : f32 to vector<9x128xf32>
    %601 = arith.mulf %597, %600 : vector<9x128xf32>
    %602 = math.absf %601 : vector<9x128xf32>
    %cst_290 = arith.constant 0.327591091 : f32
    %603 = vector.broadcast %cst_290 : f32 to vector<9x128xf32>
    %604 = arith.mulf %603, %602 : vector<9x128xf32>
    %cst_291 = arith.constant 1.000000e+00 : f32
    %605 = vector.broadcast %cst_291 : f32 to vector<9x128xf32>
    %606 = arith.addf %605, %604 : vector<9x128xf32>
    %cst_292 = arith.constant 1.000000e+00 : f32
    %607 = vector.broadcast %cst_292 : f32 to vector<9x128xf32>
    %608 = arith.divf %607, %606 : vector<9x128xf32>
    %cst_293 = arith.constant 1.06140542 : f32
    %609 = vector.broadcast %cst_293 : f32 to vector<9x128xf32>
    %610 = arith.mulf %609, %608 : vector<9x128xf32>
    %cst_294 = arith.constant -1.45315206 : f32
    %611 = vector.broadcast %cst_294 : f32 to vector<9x128xf32>
    %612 = arith.addf %610, %611 : vector<9x128xf32>
    %613 = arith.mulf %612, %608 : vector<9x128xf32>
    %cst_295 = arith.constant 1.42141378 : f32
    %614 = vector.broadcast %cst_295 : f32 to vector<9x128xf32>
    %615 = arith.addf %613, %614 : vector<9x128xf32>
    %616 = arith.mulf %615, %608 : vector<9x128xf32>
    %cst_296 = arith.constant -0.284496725 : f32
    %617 = vector.broadcast %cst_296 : f32 to vector<9x128xf32>
    %618 = arith.addf %616, %617 : vector<9x128xf32>
    %619 = arith.mulf %618, %608 : vector<9x128xf32>
    %cst_297 = arith.constant 0.254829586 : f32
    %620 = vector.broadcast %cst_297 : f32 to vector<9x128xf32>
    %621 = arith.addf %619, %620 : vector<9x128xf32>
    %622 = arith.mulf %621, %608 : vector<9x128xf32>
    %cst_298 = arith.constant 0.000000e+00 : f32
    %623 = vector.broadcast %cst_298 : f32 to vector<9x128xf32>
    %624 = arith.subf %623, %602 : vector<9x128xf32>
    %625 = arith.mulf %624, %602 : vector<9x128xf32>
    %626 = math.exp %625 : vector<9x128xf32>
    %627 = arith.mulf %622, %626 : vector<9x128xf32>
    %cst_299 = arith.constant 1.000000e+00 : f32
    %628 = vector.broadcast %cst_299 : f32 to vector<9x128xf32>
    %629 = arith.subf %628, %627 : vector<9x128xf32>
    %cst_300 = arith.constant 0.000000e+00 : f32
    %630 = vector.broadcast %cst_300 : f32 to vector<9x128xf32>
    %631 = arith.cmpf oge, %601, %630 : vector<9x128xf32>
    %cst_301 = arith.constant 0.000000e+00 : f32
    %632 = vector.broadcast %cst_301 : f32 to vector<9x128xf32>
    %633 = arith.subf %632, %629 : vector<9x128xf32>
    %634 = arith.select %631, %629, %633 : vector<9x128xi1>, vector<9x128xf32>
    %cst_302 = arith.constant 1.000000e+00 : f32
    %635 = vector.broadcast %cst_302 : f32 to vector<9x128xf32>
    %636 = arith.addf %635, %634 : vector<9x128xf32>
    %637 = arith.mulf %599, %636 : vector<9x128xf32>
    %c0_303 = arith.constant 0 : index
    %c0_304 = arith.constant 0 : index
    %c0_305 = arith.constant 0 : index
    %638 = vector.load %arg12[%c0_303, %c0_304, %c0_305] : memref<2x128x32xf32, #tpu.memory_space<vmem>>, vector<1x128x32xf32>
    %639 = vector.shape_cast %638 : vector<1x128x32xf32> to vector<128x32xf32>
    %cst_306 = arith.constant dense<0.000000e+00> : vector<9x32xf32>
    %640 = tpu.matmul %637, %639, %cst_306 {dimension_numbers = #tpu.dot_dimension_numbers<[1], [0], [0], [1], [0, 0, 1, 1], [], []>} : vector<9x128xf32>, vector<128x32xf32>, vector<9x32xf32> -> vector<9x32xf32>
    %c0_307 = arith.constant 0 : index
    %c0_308 = arith.constant 0 : index
    %c0_309 = arith.constant 0 : index
    %641 = vector.load %arg13[%c0_307, %c0_308, %c0_309] : memref<2x1x32xf32, #tpu.memory_space<vmem>>, vector<1x1x32xf32>
    %642 = vector.shape_cast %641 : vector<1x1x32xf32> to vector<1x32xf32>
    %643 = vector.broadcast %642 : vector<1x32xf32> to vector<9x32xf32>
    %644 = arith.addf %640, %643 : vector<9x32xf32>
    %645 = arith.addf %590, %644 : vector<9x32xf32>
    %c0_310 = arith.constant 0 : index
    %c0_311 = arith.constant 0 : index
    %c0_312 = arith.constant 0 : index
    %646 = vector.load %arg14[%c0_310, %c0_311, %c0_312] : memref<2x1x32xf32, #tpu.memory_space<vmem>>, vector<1x1x32xf32>
    %647 = vector.shape_cast %646 : vector<1x1x32xf32> to vector<1x32xf32>
    %c0_313 = arith.constant 0 : index
    %c0_314 = arith.constant 0 : index
    %c0_315 = arith.constant 0 : index
    %648 = vector.load %arg15[%c0_313, %c0_314, %c0_315] : memref<2x1x32xf32, #tpu.memory_space<vmem>>, vector<1x1x32xf32>
    %649 = vector.shape_cast %648 : vector<1x1x32xf32> to vector<1x32xf32>
    %cst_316 = arith.constant dense<0.000000e+00> : vector<9xf32>
    %650 = vector.multi_reduction <add>, %645, %cst_316 [1] : vector<9x32xf32> to vector<9xf32>
    %651 = vector.shape_cast %650 : vector<9xf32> to vector<9x1xf32>
    %cst_317 = arith.constant 3.200000e+01 : f32
    %652 = vector.broadcast %cst_317 : f32 to vector<9x1xf32>
    %653 = arith.divf %651, %652 : vector<9x1xf32>
    %654 = vector.broadcast %653 : vector<9x1xf32> to vector<9x32xf32>
    %655 = arith.subf %645, %654 : vector<9x32xf32>
    %656 = vector.broadcast %653 : vector<9x1xf32> to vector<9x32xf32>
    %657 = arith.subf %645, %656 : vector<9x32xf32>
    %658 = arith.mulf %655, %657 : vector<9x32xf32>
    %cst_318 = arith.constant dense<0.000000e+00> : vector<9xf32>
    %659 = vector.multi_reduction <add>, %658, %cst_318 [1] : vector<9x32xf32> to vector<9xf32>
    %660 = vector.shape_cast %659 : vector<9xf32> to vector<9x1xf32>
    %cst_319 = arith.constant 3.200000e+01 : f32
    %661 = vector.broadcast %cst_319 : f32 to vector<9x1xf32>
    %662 = arith.divf %660, %661 : vector<9x1xf32>
    %663 = vector.broadcast %653 : vector<9x1xf32> to vector<9x32xf32>
    %664 = arith.subf %645, %663 : vector<9x32xf32>
    %cst_320 = arith.constant 9.99999974E-6 : f32
    %665 = vector.broadcast %cst_320 : f32 to vector<9x1xf32>
    %666 = arith.addf %662, %665 : vector<9x1xf32>
    %667 = math.rsqrt %666 : vector<9x1xf32>
    %668 = vector.broadcast %667 : vector<9x1xf32> to vector<9x32xf32>
    %669 = arith.mulf %664, %668 : vector<9x32xf32>
    %670 = vector.broadcast %647 : vector<1x32xf32> to vector<9x32xf32>
    %671 = arith.mulf %669, %670 : vector<9x32xf32>
    %672 = vector.broadcast %649 : vector<1x32xf32> to vector<9x32xf32>
    %673 = arith.addf %671, %672 : vector<9x32xf32>
    %c1_321 = arith.constant 1 : index
    %c0_322 = arith.constant 0 : index
    %c0_323 = arith.constant 0 : index
    %674 = vector.load %arg4[%c1_321, %c0_322, %c0_323] : memref<2x32x96xf32, #tpu.memory_space<vmem>>, vector<1x32x96xf32>
    %675 = vector.shape_cast %674 : vector<1x32x96xf32> to vector<32x96xf32>
    %cst_324 = arith.constant dense<0.000000e+00> : vector<9x96xf32>
    %676 = tpu.matmul %673, %675, %cst_324 {dimension_numbers = #tpu.dot_dimension_numbers<[1], [0], [0], [1], [0, 0, 1, 1], [], []>} : vector<9x32xf32>, vector<32x96xf32>, vector<9x96xf32> -> vector<9x96xf32>
    %c1_325 = arith.constant 1 : index
    %c0_326 = arith.constant 0 : index
    %c0_327 = arith.constant 0 : index
    %677 = vector.load %arg5[%c1_325, %c0_326, %c0_327] : memref<2x1x96xf32, #tpu.memory_space<vmem>>, vector<1x1x96xf32>
    %678 = vector.shape_cast %677 : vector<1x1x96xf32> to vector<1x96xf32>
    %679 = vector.broadcast %678 : vector<1x96xf32> to vector<9x96xf32>
    %680 = arith.addf %676, %679 : vector<9x96xf32>
    %c1_328 = arith.constant 1 : index
    %c0_329 = arith.constant 0 : index
    %c0_330 = arith.constant 0 : index
    %681 = vector.load %arg7[%c1_328, %c0_329, %c0_330] : memref<2x1x32xf32, #tpu.memory_space<vmem>>, vector<1x1x32xf32>
    %682 = vector.shape_cast %681 : vector<1x1x32xf32> to vector<1x32xf32>
    %683 = vector.extract_strided_slice %680 {offsets = [0, 0], sizes = [9, 8], strides = [1, 1]} : vector<9x96xf32> to vector<9x8xf32>
    %684 = vector.extract_strided_slice %680 {offsets = [0, 32], sizes = [9, 8], strides = [1, 1]} : vector<9x96xf32> to vector<9x8xf32>
    %685 = vector.extract_strided_slice %680 {offsets = [0, 64], sizes = [9, 8], strides = [1, 1]} : vector<9x96xf32> to vector<9x8xf32>
    "tpu.trace_start"() <{level = 10 : i32, message = "qd,kd->qk"}> : () -> ()
    %cst_331 = arith.constant dense<0.000000e+00> : vector<9x9xf32>
    %686 = tpu.matmul %683, %684, %cst_331 {dimension_numbers = #tpu.dot_dimension_numbers<[1], [1], [0], [0], [0, 0, 1, 0], [], []>} : vector<9x8xf32>, vector<9x8xf32>, vector<9x9xf32> -> vector<9x9xf32>
    "tpu.trace_stop"() : () -> ()
    %cst_332 = arith.constant 0.353553385 : f32
    %687 = vector.broadcast %cst_332 : f32 to vector<9x9xf32>
    %688 = arith.mulf %686, %687 : vector<9x9xf32>
    %cst_333 = arith.constant dense<0xFF800000> : vector<9xf32>
    %689 = vector.multi_reduction <maximumf>, %688, %cst_333 [1] : vector<9x9xf32> to vector<9xf32>
    %690 = vector.shape_cast %689 : vector<9xf32> to vector<9x1xf32>
    %691 = vector.broadcast %690 : vector<9x1xf32> to vector<9x9xf32>
    %692 = arith.subf %688, %691 : vector<9x9xf32>
    %693 = math.exp %692 : vector<9x9xf32>
    %cst_334 = arith.constant dense<0.000000e+00> : vector<9xf32>
    %694 = vector.multi_reduction <add>, %693, %cst_334 [1] : vector<9x9xf32> to vector<9xf32>
    %695 = vector.shape_cast %694 : vector<9xf32> to vector<9x1xf32>
    %696 = tpu.reciprocal %695 {approx = true} : vector<9x1xf32> -> vector<9x1xf32>
    %697 = vector.broadcast %696 : vector<9x1xf32> to vector<9x9xf32>
    %698 = arith.mulf %693, %697 : vector<9x9xf32>
    %cst_335 = arith.constant dense<0.000000e+00> : vector<9x8xf32>
    %699 = tpu.matmul %698, %685, %cst_335 {dimension_numbers = #tpu.dot_dimension_numbers<[1], [0], [0], [1], [0, 0, 1, 1], [], []>} : vector<9x9xf32>, vector<9x8xf32>, vector<9x8xf32> -> vector<9x8xf32>
    %c1_336 = arith.constant 1 : index
    %c0_337 = arith.constant 0 : index
    %c0_338 = arith.constant 0 : index
    %700 = vector.load %arg6[%c1_336, %c0_337, %c0_338] : memref<2x32x32xf32, #tpu.memory_space<vmem>>, vector<1x32x32xf32>
    %701 = vector.shape_cast %700 : vector<1x32x32xf32> to vector<32x32xf32>
    %702 = vector.extract_strided_slice %701 {offsets = [0, 0], sizes = [8, 32], strides = [1, 1]} : vector<32x32xf32> to vector<8x32xf32>
    %cst_339 = arith.constant dense<0.000000e+00> : vector<9x32xf32>
    %703 = tpu.matmul %699, %702, %cst_339 {dimension_numbers = #tpu.dot_dimension_numbers<[1], [0], [0], [1], [0, 0, 1, 1], [], []>} : vector<9x8xf32>, vector<8x32xf32>, vector<9x32xf32> -> vector<9x32xf32>
    %704 = vector.broadcast %682 : vector<1x32xf32> to vector<9x32xf32>
    %705 = arith.addf %704, %703 : vector<9x32xf32>
    %706 = vector.extract_strided_slice %680 {offsets = [0, 8], sizes = [9, 8], strides = [1, 1]} : vector<9x96xf32> to vector<9x8xf32>
    %707 = vector.extract_strided_slice %680 {offsets = [0, 40], sizes = [9, 8], strides = [1, 1]} : vector<9x96xf32> to vector<9x8xf32>
    %708 = vector.extract_strided_slice %680 {offsets = [0, 72], sizes = [9, 8], strides = [1, 1]} : vector<9x96xf32> to vector<9x8xf32>
    "tpu.trace_start"() <{level = 10 : i32, message = "qd,kd->qk"}> : () -> ()
    %cst_340 = arith.constant dense<0.000000e+00> : vector<9x9xf32>
    %709 = tpu.matmul %706, %707, %cst_340 {dimension_numbers = #tpu.dot_dimension_numbers<[1], [1], [0], [0], [0, 0, 1, 0], [], []>} : vector<9x8xf32>, vector<9x8xf32>, vector<9x9xf32> -> vector<9x9xf32>
    "tpu.trace_stop"() : () -> ()
    %cst_341 = arith.constant 0.353553385 : f32
    %710 = vector.broadcast %cst_341 : f32 to vector<9x9xf32>
    %711 = arith.mulf %709, %710 : vector<9x9xf32>
    %cst_342 = arith.constant dense<0xFF800000> : vector<9xf32>
    %712 = vector.multi_reduction <maximumf>, %711, %cst_342 [1] : vector<9x9xf32> to vector<9xf32>
    %713 = vector.shape_cast %712 : vector<9xf32> to vector<9x1xf32>
    %714 = vector.broadcast %713 : vector<9x1xf32> to vector<9x9xf32>
    %715 = arith.subf %711, %714 : vector<9x9xf32>
    %716 = math.exp %715 : vector<9x9xf32>
    %cst_343 = arith.constant dense<0.000000e+00> : vector<9xf32>
    %717 = vector.multi_reduction <add>, %716, %cst_343 [1] : vector<9x9xf32> to vector<9xf32>
    %718 = vector.shape_cast %717 : vector<9xf32> to vector<9x1xf32>
    %719 = tpu.reciprocal %718 {approx = true} : vector<9x1xf32> -> vector<9x1xf32>
    %720 = vector.broadcast %719 : vector<9x1xf32> to vector<9x9xf32>
    %721 = arith.mulf %716, %720 : vector<9x9xf32>
    %cst_344 = arith.constant dense<0.000000e+00> : vector<9x8xf32>
    %722 = tpu.matmul %721, %708, %cst_344 {dimension_numbers = #tpu.dot_dimension_numbers<[1], [0], [0], [1], [0, 0, 1, 1], [], []>} : vector<9x9xf32>, vector<9x8xf32>, vector<9x8xf32> -> vector<9x8xf32>
    %c1_345 = arith.constant 1 : index
    %c0_346 = arith.constant 0 : index
    %c0_347 = arith.constant 0 : index
    %723 = vector.load %arg6[%c1_345, %c0_346, %c0_347] : memref<2x32x32xf32, #tpu.memory_space<vmem>>, vector<1x32x32xf32>
    %724 = vector.shape_cast %723 : vector<1x32x32xf32> to vector<32x32xf32>
    %725 = vector.extract_strided_slice %724 {offsets = [8, 0], sizes = [8, 32], strides = [1, 1]} : vector<32x32xf32> to vector<8x32xf32>
    %cst_348 = arith.constant dense<0.000000e+00> : vector<9x32xf32>
    %726 = tpu.matmul %722, %725, %cst_348 {dimension_numbers = #tpu.dot_dimension_numbers<[1], [0], [0], [1], [0, 0, 1, 1], [], []>} : vector<9x8xf32>, vector<8x32xf32>, vector<9x32xf32> -> vector<9x32xf32>
    %727 = arith.addf %705, %726 : vector<9x32xf32>
    %728 = vector.extract_strided_slice %680 {offsets = [0, 16], sizes = [9, 8], strides = [1, 1]} : vector<9x96xf32> to vector<9x8xf32>
    %729 = vector.extract_strided_slice %680 {offsets = [0, 48], sizes = [9, 8], strides = [1, 1]} : vector<9x96xf32> to vector<9x8xf32>
    %730 = vector.extract_strided_slice %680 {offsets = [0, 80], sizes = [9, 8], strides = [1, 1]} : vector<9x96xf32> to vector<9x8xf32>
    "tpu.trace_start"() <{level = 10 : i32, message = "qd,kd->qk"}> : () -> ()
    %cst_349 = arith.constant dense<0.000000e+00> : vector<9x9xf32>
    %731 = tpu.matmul %728, %729, %cst_349 {dimension_numbers = #tpu.dot_dimension_numbers<[1], [1], [0], [0], [0, 0, 1, 0], [], []>} : vector<9x8xf32>, vector<9x8xf32>, vector<9x9xf32> -> vector<9x9xf32>
    "tpu.trace_stop"() : () -> ()
    %cst_350 = arith.constant 0.353553385 : f32
    %732 = vector.broadcast %cst_350 : f32 to vector<9x9xf32>
    %733 = arith.mulf %731, %732 : vector<9x9xf32>
    %cst_351 = arith.constant dense<0xFF800000> : vector<9xf32>
    %734 = vector.multi_reduction <maximumf>, %733, %cst_351 [1] : vector<9x9xf32> to vector<9xf32>
    %735 = vector.shape_cast %734 : vector<9xf32> to vector<9x1xf32>
    %736 = vector.broadcast %735 : vector<9x1xf32> to vector<9x9xf32>
    %737 = arith.subf %733, %736 : vector<9x9xf32>
    %738 = math.exp %737 : vector<9x9xf32>
    %cst_352 = arith.constant dense<0.000000e+00> : vector<9xf32>
    %739 = vector.multi_reduction <add>, %738, %cst_352 [1] : vector<9x9xf32> to vector<9xf32>
    %740 = vector.shape_cast %739 : vector<9xf32> to vector<9x1xf32>
    %741 = tpu.reciprocal %740 {approx = true} : vector<9x1xf32> -> vector<9x1xf32>
    %742 = vector.broadcast %741 : vector<9x1xf32> to vector<9x9xf32>
    %743 = arith.mulf %738, %742 : vector<9x9xf32>
    %cst_353 = arith.constant dense<0.000000e+00> : vector<9x8xf32>
    %744 = tpu.matmul %743, %730, %cst_353 {dimension_numbers = #tpu.dot_dimension_numbers<[1], [0], [0], [1], [0, 0, 1, 1], [], []>} : vector<9x9xf32>, vector<9x8xf32>, vector<9x8xf32> -> vector<9x8xf32>
    %c1_354 = arith.constant 1 : index
    %c0_355 = arith.constant 0 : index
    %c0_356 = arith.constant 0 : index
    %745 = vector.load %arg6[%c1_354, %c0_355, %c0_356] : memref<2x32x32xf32, #tpu.memory_space<vmem>>, vector<1x32x32xf32>
    %746 = vector.shape_cast %745 : vector<1x32x32xf32> to vector<32x32xf32>
    %747 = vector.extract_strided_slice %746 {offsets = [16, 0], sizes = [8, 32], strides = [1, 1]} : vector<32x32xf32> to vector<8x32xf32>
    %cst_357 = arith.constant dense<0.000000e+00> : vector<9x32xf32>
    %748 = tpu.matmul %744, %747, %cst_357 {dimension_numbers = #tpu.dot_dimension_numbers<[1], [0], [0], [1], [0, 0, 1, 1], [], []>} : vector<9x8xf32>, vector<8x32xf32>, vector<9x32xf32> -> vector<9x32xf32>
    %749 = arith.addf %727, %748 : vector<9x32xf32>
    %750 = vector.extract_strided_slice %680 {offsets = [0, 24], sizes = [9, 8], strides = [1, 1]} : vector<9x96xf32> to vector<9x8xf32>
    %751 = vector.extract_strided_slice %680 {offsets = [0, 56], sizes = [9, 8], strides = [1, 1]} : vector<9x96xf32> to vector<9x8xf32>
    %752 = vector.extract_strided_slice %680 {offsets = [0, 88], sizes = [9, 8], strides = [1, 1]} : vector<9x96xf32> to vector<9x8xf32>
    "tpu.trace_start"() <{level = 10 : i32, message = "qd,kd->qk"}> : () -> ()
    %cst_358 = arith.constant dense<0.000000e+00> : vector<9x9xf32>
    %753 = tpu.matmul %750, %751, %cst_358 {dimension_numbers = #tpu.dot_dimension_numbers<[1], [1], [0], [0], [0, 0, 1, 0], [], []>} : vector<9x8xf32>, vector<9x8xf32>, vector<9x9xf32> -> vector<9x9xf32>
    "tpu.trace_stop"() : () -> ()
    %cst_359 = arith.constant 0.353553385 : f32
    %754 = vector.broadcast %cst_359 : f32 to vector<9x9xf32>
    %755 = arith.mulf %753, %754 : vector<9x9xf32>
    %cst_360 = arith.constant dense<0xFF800000> : vector<9xf32>
    %756 = vector.multi_reduction <maximumf>, %755, %cst_360 [1] : vector<9x9xf32> to vector<9xf32>
    %757 = vector.shape_cast %756 : vector<9xf32> to vector<9x1xf32>
    %758 = vector.broadcast %757 : vector<9x1xf32> to vector<9x9xf32>
    %759 = arith.subf %755, %758 : vector<9x9xf32>
    %760 = math.exp %759 : vector<9x9xf32>
    %cst_361 = arith.constant dense<0.000000e+00> : vector<9xf32>
    %761 = vector.multi_reduction <add>, %760, %cst_361 [1] : vector<9x9xf32> to vector<9xf32>
    %762 = vector.shape_cast %761 : vector<9xf32> to vector<9x1xf32>
    %763 = tpu.reciprocal %762 {approx = true} : vector<9x1xf32> -> vector<9x1xf32>
    %764 = vector.broadcast %763 : vector<9x1xf32> to vector<9x9xf32>
    %765 = arith.mulf %760, %764 : vector<9x9xf32>
    %cst_362 = arith.constant dense<0.000000e+00> : vector<9x8xf32>
    %766 = tpu.matmul %765, %752, %cst_362 {dimension_numbers = #tpu.dot_dimension_numbers<[1], [0], [0], [1], [0, 0, 1, 1], [], []>} : vector<9x9xf32>, vector<9x8xf32>, vector<9x8xf32> -> vector<9x8xf32>
    %c1_363 = arith.constant 1 : index
    %c0_364 = arith.constant 0 : index
    %c0_365 = arith.constant 0 : index
    %767 = vector.load %arg6[%c1_363, %c0_364, %c0_365] : memref<2x32x32xf32, #tpu.memory_space<vmem>>, vector<1x32x32xf32>
    %768 = vector.shape_cast %767 : vector<1x32x32xf32> to vector<32x32xf32>
    %769 = vector.extract_strided_slice %768 {offsets = [24, 0], sizes = [8, 32], strides = [1, 1]} : vector<32x32xf32> to vector<8x32xf32>
    %cst_366 = arith.constant dense<0.000000e+00> : vector<9x32xf32>
    %770 = tpu.matmul %766, %769, %cst_366 {dimension_numbers = #tpu.dot_dimension_numbers<[1], [0], [0], [1], [0, 0, 1, 1], [], []>} : vector<9x8xf32>, vector<8x32xf32>, vector<9x32xf32> -> vector<9x32xf32>
    %771 = arith.addf %749, %770 : vector<9x32xf32>
    %772 = arith.addf %673, %771 : vector<9x32xf32>
    %c1_367 = arith.constant 1 : index
    %c0_368 = arith.constant 0 : index
    %c0_369 = arith.constant 0 : index
    %773 = vector.load %arg8[%c1_367, %c0_368, %c0_369] : memref<2x1x32xf32, #tpu.memory_space<vmem>>, vector<1x1x32xf32>
    %774 = vector.shape_cast %773 : vector<1x1x32xf32> to vector<1x32xf32>
    %c1_370 = arith.constant 1 : index
    %c0_371 = arith.constant 0 : index
    %c0_372 = arith.constant 0 : index
    %775 = vector.load %arg9[%c1_370, %c0_371, %c0_372] : memref<2x1x32xf32, #tpu.memory_space<vmem>>, vector<1x1x32xf32>
    %776 = vector.shape_cast %775 : vector<1x1x32xf32> to vector<1x32xf32>
    %cst_373 = arith.constant dense<0.000000e+00> : vector<9xf32>
    %777 = vector.multi_reduction <add>, %772, %cst_373 [1] : vector<9x32xf32> to vector<9xf32>
    %778 = vector.shape_cast %777 : vector<9xf32> to vector<9x1xf32>
    %cst_374 = arith.constant 3.200000e+01 : f32
    %779 = vector.broadcast %cst_374 : f32 to vector<9x1xf32>
    %780 = arith.divf %778, %779 : vector<9x1xf32>
    %781 = vector.broadcast %780 : vector<9x1xf32> to vector<9x32xf32>
    %782 = arith.subf %772, %781 : vector<9x32xf32>
    %783 = vector.broadcast %780 : vector<9x1xf32> to vector<9x32xf32>
    %784 = arith.subf %772, %783 : vector<9x32xf32>
    %785 = arith.mulf %782, %784 : vector<9x32xf32>
    %cst_375 = arith.constant dense<0.000000e+00> : vector<9xf32>
    %786 = vector.multi_reduction <add>, %785, %cst_375 [1] : vector<9x32xf32> to vector<9xf32>
    %787 = vector.shape_cast %786 : vector<9xf32> to vector<9x1xf32>
    %cst_376 = arith.constant 3.200000e+01 : f32
    %788 = vector.broadcast %cst_376 : f32 to vector<9x1xf32>
    %789 = arith.divf %787, %788 : vector<9x1xf32>
    %790 = vector.broadcast %780 : vector<9x1xf32> to vector<9x32xf32>
    %791 = arith.subf %772, %790 : vector<9x32xf32>
    %cst_377 = arith.constant 9.99999974E-6 : f32
    %792 = vector.broadcast %cst_377 : f32 to vector<9x1xf32>
    %793 = arith.addf %789, %792 : vector<9x1xf32>
    %794 = math.rsqrt %793 : vector<9x1xf32>
    %795 = vector.broadcast %794 : vector<9x1xf32> to vector<9x32xf32>
    %796 = arith.mulf %791, %795 : vector<9x32xf32>
    %797 = vector.broadcast %774 : vector<1x32xf32> to vector<9x32xf32>
    %798 = arith.mulf %796, %797 : vector<9x32xf32>
    %799 = vector.broadcast %776 : vector<1x32xf32> to vector<9x32xf32>
    %800 = arith.addf %798, %799 : vector<9x32xf32>
    %c1_378 = arith.constant 1 : index
    %c0_379 = arith.constant 0 : index
    %c0_380 = arith.constant 0 : index
    %801 = vector.load %arg10[%c1_378, %c0_379, %c0_380] : memref<2x32x128xf32, #tpu.memory_space<vmem>>, vector<1x32x128xf32>
    %802 = vector.shape_cast %801 : vector<1x32x128xf32> to vector<32x128xf32>
    %cst_381 = arith.constant dense<0.000000e+00> : vector<9x128xf32>
    %803 = tpu.matmul %800, %802, %cst_381 {dimension_numbers = #tpu.dot_dimension_numbers<[1], [0], [0], [1], [0, 0, 1, 1], [], []>} : vector<9x32xf32>, vector<32x128xf32>, vector<9x128xf32> -> vector<9x128xf32>
    %c1_382 = arith.constant 1 : index
    %c0_383 = arith.constant 0 : index
    %c0_384 = arith.constant 0 : index
    %804 = vector.load %arg11[%c1_382, %c0_383, %c0_384] : memref<2x1x128xf32, #tpu.memory_space<vmem>>, vector<1x1x128xf32>
    %805 = vector.shape_cast %804 : vector<1x1x128xf32> to vector<1x128xf32>
    %806 = vector.broadcast %805 : vector<1x128xf32> to vector<9x128xf32>
    %807 = arith.addf %803, %806 : vector<9x128xf32>
    %cst_385 = arith.constant 5.000000e-01 : f32
    %808 = vector.broadcast %cst_385 : f32 to vector<9x128xf32>
    %809 = arith.mulf %808, %807 : vector<9x128xf32>
    %cst_386 = arith.constant 0.707106769 : f32
    %810 = vector.broadcast %cst_386 : f32 to vector<9x128xf32>
    %811 = arith.mulf %807, %810 : vector<9x128xf32>
    %812 = math.absf %811 : vector<9x128xf32>
    %cst_387 = arith.constant 0.327591091 : f32
    %813 = vector.broadcast %cst_387 : f32 to vector<9x128xf32>
    %814 = arith.mulf %813, %812 : vector<9x128xf32>
    %cst_388 = arith.constant 1.000000e+00 : f32
    %815 = vector.broadcast %cst_388 : f32 to vector<9x128xf32>
    %816 = arith.addf %815, %814 : vector<9x128xf32>
    %cst_389 = arith.constant 1.000000e+00 : f32
    %817 = vector.broadcast %cst_389 : f32 to vector<9x128xf32>
    %818 = arith.divf %817, %816 : vector<9x128xf32>
    %cst_390 = arith.constant 1.06140542 : f32
    %819 = vector.broadcast %cst_390 : f32 to vector<9x128xf32>
    %820 = arith.mulf %819, %818 : vector<9x128xf32>
    %cst_391 = arith.constant -1.45315206 : f32
    %821 = vector.broadcast %cst_391 : f32 to vector<9x128xf32>
    %822 = arith.addf %820, %821 : vector<9x128xf32>
    %823 = arith.mulf %822, %818 : vector<9x128xf32>
    %cst_392 = arith.constant 1.42141378 : f32
    %824 = vector.broadcast %cst_392 : f32 to vector<9x128xf32>
    %825 = arith.addf %823, %824 : vector<9x128xf32>
    %826 = arith.mulf %825, %818 : vector<9x128xf32>
    %cst_393 = arith.constant -0.284496725 : f32
    %827 = vector.broadcast %cst_393 : f32 to vector<9x128xf32>
    %828 = arith.addf %826, %827 : vector<9x128xf32>
    %829 = arith.mulf %828, %818 : vector<9x128xf32>
    %cst_394 = arith.constant 0.254829586 : f32
    %830 = vector.broadcast %cst_394 : f32 to vector<9x128xf32>
    %831 = arith.addf %829, %830 : vector<9x128xf32>
    %832 = arith.mulf %831, %818 : vector<9x128xf32>
    %cst_395 = arith.constant 0.000000e+00 : f32
    %833 = vector.broadcast %cst_395 : f32 to vector<9x128xf32>
    %834 = arith.subf %833, %812 : vector<9x128xf32>
    %835 = arith.mulf %834, %812 : vector<9x128xf32>
    %836 = math.exp %835 : vector<9x128xf32>
    %837 = arith.mulf %832, %836 : vector<9x128xf32>
    %cst_396 = arith.constant 1.000000e+00 : f32
    %838 = vector.broadcast %cst_396 : f32 to vector<9x128xf32>
    %839 = arith.subf %838, %837 : vector<9x128xf32>
    %cst_397 = arith.constant 0.000000e+00 : f32
    %840 = vector.broadcast %cst_397 : f32 to vector<9x128xf32>
    %841 = arith.cmpf oge, %811, %840 : vector<9x128xf32>
    %cst_398 = arith.constant 0.000000e+00 : f32
    %842 = vector.broadcast %cst_398 : f32 to vector<9x128xf32>
    %843 = arith.subf %842, %839 : vector<9x128xf32>
    %844 = arith.select %841, %839, %843 : vector<9x128xi1>, vector<9x128xf32>
    %cst_399 = arith.constant 1.000000e+00 : f32
    %845 = vector.broadcast %cst_399 : f32 to vector<9x128xf32>
    %846 = arith.addf %845, %844 : vector<9x128xf32>
    %847 = arith.mulf %809, %846 : vector<9x128xf32>
    %c1_400 = arith.constant 1 : index
    %c0_401 = arith.constant 0 : index
    %c0_402 = arith.constant 0 : index
    %848 = vector.load %arg12[%c1_400, %c0_401, %c0_402] : memref<2x128x32xf32, #tpu.memory_space<vmem>>, vector<1x128x32xf32>
    %849 = vector.shape_cast %848 : vector<1x128x32xf32> to vector<128x32xf32>
    %cst_403 = arith.constant dense<0.000000e+00> : vector<9x32xf32>
    %850 = tpu.matmul %847, %849, %cst_403 {dimension_numbers = #tpu.dot_dimension_numbers<[1], [0], [0], [1], [0, 0, 1, 1], [], []>} : vector<9x128xf32>, vector<128x32xf32>, vector<9x32xf32> -> vector<9x32xf32>
    %c1_404 = arith.constant 1 : index
    %c0_405 = arith.constant 0 : index
    %c0_406 = arith.constant 0 : index
    %851 = vector.load %arg13[%c1_404, %c0_405, %c0_406] : memref<2x1x32xf32, #tpu.memory_space<vmem>>, vector<1x1x32xf32>
    %852 = vector.shape_cast %851 : vector<1x1x32xf32> to vector<1x32xf32>
    %853 = vector.broadcast %852 : vector<1x32xf32> to vector<9x32xf32>
    %854 = arith.addf %850, %853 : vector<9x32xf32>
    %855 = arith.addf %800, %854 : vector<9x32xf32>
    %c1_407 = arith.constant 1 : index
    %c0_408 = arith.constant 0 : index
    %c0_409 = arith.constant 0 : index
    %856 = vector.load %arg14[%c1_407, %c0_408, %c0_409] : memref<2x1x32xf32, #tpu.memory_space<vmem>>, vector<1x1x32xf32>
    %857 = vector.shape_cast %856 : vector<1x1x32xf32> to vector<1x32xf32>
    %c1_410 = arith.constant 1 : index
    %c0_411 = arith.constant 0 : index
    %c0_412 = arith.constant 0 : index
    %858 = vector.load %arg15[%c1_410, %c0_411, %c0_412] : memref<2x1x32xf32, #tpu.memory_space<vmem>>, vector<1x1x32xf32>
    %859 = vector.shape_cast %858 : vector<1x1x32xf32> to vector<1x32xf32>
    %cst_413 = arith.constant dense<0.000000e+00> : vector<9xf32>
    %860 = vector.multi_reduction <add>, %855, %cst_413 [1] : vector<9x32xf32> to vector<9xf32>
    %861 = vector.shape_cast %860 : vector<9xf32> to vector<9x1xf32>
    %cst_414 = arith.constant 3.200000e+01 : f32
    %862 = vector.broadcast %cst_414 : f32 to vector<9x1xf32>
    %863 = arith.divf %861, %862 : vector<9x1xf32>
    %864 = vector.broadcast %863 : vector<9x1xf32> to vector<9x32xf32>
    %865 = arith.subf %855, %864 : vector<9x32xf32>
    %866 = vector.broadcast %863 : vector<9x1xf32> to vector<9x32xf32>
    %867 = arith.subf %855, %866 : vector<9x32xf32>
    %868 = arith.mulf %865, %867 : vector<9x32xf32>
    %cst_415 = arith.constant dense<0.000000e+00> : vector<9xf32>
    %869 = vector.multi_reduction <add>, %868, %cst_415 [1] : vector<9x32xf32> to vector<9xf32>
    %870 = vector.shape_cast %869 : vector<9xf32> to vector<9x1xf32>
    %cst_416 = arith.constant 3.200000e+01 : f32
    %871 = vector.broadcast %cst_416 : f32 to vector<9x1xf32>
    %872 = arith.divf %870, %871 : vector<9x1xf32>
    %873 = vector.broadcast %863 : vector<9x1xf32> to vector<9x32xf32>
    %874 = arith.subf %855, %873 : vector<9x32xf32>
    %cst_417 = arith.constant 9.99999974E-6 : f32
    %875 = vector.broadcast %cst_417 : f32 to vector<9x1xf32>
    %876 = arith.addf %872, %875 : vector<9x1xf32>
    %877 = math.rsqrt %876 : vector<9x1xf32>
    %878 = vector.broadcast %877 : vector<9x1xf32> to vector<9x32xf32>
    %879 = arith.mulf %874, %878 : vector<9x32xf32>
    %880 = vector.broadcast %857 : vector<1x32xf32> to vector<9x32xf32>
    %881 = arith.mulf %879, %880 : vector<9x32xf32>
    %882 = vector.broadcast %859 : vector<1x32xf32> to vector<9x32xf32>
    %883 = arith.addf %881, %882 : vector<9x32xf32>
    %884 = vector.extract_strided_slice %883 {offsets = [0, 0], sizes = [1, 32], strides = [1, 1]} : vector<9x32xf32> to vector<1x32xf32>
    %c0_418 = arith.constant 0 : index
    %c0_419 = arith.constant 0 : index
    %885 = vector.load %arg16[%c0_418, %c0_419] : memref<1x32xf32, #tpu.memory_space<vmem>>, vector<1x32xf32>
    %c0_420 = arith.constant 0 : index
    %c0_421 = arith.constant 0 : index
    %886 = vector.load %arg17[%c0_420, %c0_421] : memref<1x32xf32, #tpu.memory_space<vmem>>, vector<1x32xf32>
    %cst_422 = arith.constant dense<0.000000e+00> : vector<1xf32>
    %887 = vector.multi_reduction <add>, %884, %cst_422 [1] : vector<1x32xf32> to vector<1xf32>
    %888 = vector.shape_cast %887 : vector<1xf32> to vector<1x1xf32>
    %cst_423 = arith.constant 3.200000e+01 : f32
    %889 = vector.broadcast %cst_423 : f32 to vector<1x1xf32>
    %890 = arith.divf %888, %889 : vector<1x1xf32>
    %891 = vector.broadcast %890 : vector<1x1xf32> to vector<1x32xf32>
    %892 = arith.subf %884, %891 : vector<1x32xf32>
    %893 = vector.broadcast %890 : vector<1x1xf32> to vector<1x32xf32>
    %894 = arith.subf %884, %893 : vector<1x32xf32>
    %895 = arith.mulf %892, %894 : vector<1x32xf32>
    %cst_424 = arith.constant dense<0.000000e+00> : vector<1xf32>
    %896 = vector.multi_reduction <add>, %895, %cst_424 [1] : vector<1x32xf32> to vector<1xf32>
    %897 = vector.shape_cast %896 : vector<1xf32> to vector<1x1xf32>
    %cst_425 = arith.constant 3.200000e+01 : f32
    %898 = vector.broadcast %cst_425 : f32 to vector<1x1xf32>
    %899 = arith.divf %897, %898 : vector<1x1xf32>
    %900 = vector.broadcast %890 : vector<1x1xf32> to vector<1x32xf32>
    %901 = arith.subf %884, %900 : vector<1x32xf32>
    %cst_426 = arith.constant 9.99999974E-6 : f32
    %902 = vector.broadcast %cst_426 : f32 to vector<1x1xf32>
    %903 = arith.addf %899, %902 : vector<1x1xf32>
    %904 = math.rsqrt %903 : vector<1x1xf32>
    %905 = vector.broadcast %904 : vector<1x1xf32> to vector<1x32xf32>
    %906 = arith.mulf %901, %905 : vector<1x32xf32>
    %907 = arith.mulf %906, %885 : vector<1x32xf32>
    %908 = arith.addf %907, %886 : vector<1x32xf32>
    %c0_427 = arith.constant 0 : index
    %c0_428 = arith.constant 0 : index
    %909 = vector.load %arg18[%c0_427, %c0_428] : memref<32x128xf32, #tpu.memory_space<vmem>>, vector<32x128xf32>
    %cst_429 = arith.constant dense<0.000000e+00> : vector<1x128xf32>
    %910 = tpu.matmul %908, %909, %cst_429 {dimension_numbers = #tpu.dot_dimension_numbers<[1], [0], [0], [1], [0, 0, 1, 1], [], []>} : vector<1x32xf32>, vector<32x128xf32>, vector<1x128xf32> -> vector<1x128xf32>
    %c0_430 = arith.constant 0 : index
    %c0_431 = arith.constant 0 : index
    %911 = vector.load %arg19[%c0_430, %c0_431] : memref<1x128xf32, #tpu.memory_space<vmem>>, vector<1x128xf32>
    %912 = arith.addf %910, %911 : vector<1x128xf32>
    %c1_432 = arith.constant 1 : index
    %c0_433 = arith.constant 0 : index
    %c0_434 = arith.constant 0 : index
    %913 = vector.load %arg20[%c1_432, %c0_433, %c0_434] : memref<2x1x128xf32, #tpu.memory_space<vmem>>, vector<1x1x128xf32>
    %914 = vector.shape_cast %913 : vector<1x1x128xf32> to vector<1x128xf32>
    %915 = vector.shape_cast %912 : vector<1x128xf32> to vector<1x1x128xf32>
    tpu.vector_store %arg20[%c1_432, %c0_433, %c0_434], %915 {strides = array<i32>} : memref<2x1x128xf32, #tpu.memory_space<vmem>>, vector<1x1x128xf32>,
    return
  }
  func.func @transform_0(%arg0: i32) -> (i32, i32, i32) {
    %c0_i32 = arith.constant 0 : i32
    %c0_i32_0 = arith.constant 0 : i32
    %c0_i32_1 = arith.constant 0 : i32
    return %arg0, %c0_i32, %c0_i32_0 : i32, i32, i32
  }
  func.func @transform_1(%arg0: i32) -> (i32, i32) {
    %c0_i32 = arith.constant 0 : i32
    %c0_i32_0 = arith.constant 0 : i32
    %c0_i32_1 = arith.constant 0 : i32
    return %c0_i32, %c0_i32_0 : i32, i32
  }
  func.func @transform_2(%arg0: i32) -> (i32, i32) {
    %c0_i32 = arith.constant 0 : i32
    %c0_i32_0 = arith.constant 0 : i32
    %c0_i32_1 = arith.constant 0 : i32
    return %c0_i32, %c0_i32_0 : i32, i32
  }
  func.func @transform_3(%arg0: i32) -> (i32, i32, i32) {
    %c0_i32 = arith.constant 0 : i32
    %c0_i32_0 = arith.constant 0 : i32
    %c0_i32_1 = arith.constant 0 : i32
    %c0_i32_2 = arith.constant 0 : i32
    return %c0_i32, %c0_i32_0, %c0_i32_1 : i32, i32, i32
  }
  func.func @transform_4(%arg0: i32) -> (i32, i32, i32) {
    %c0_i32 = arith.constant 0 : i32
    %c0_i32_0 = arith.constant 0 : i32
    %c0_i32_1 = arith.constant 0 : i32
    %c0_i32_2 = arith.constant 0 : i32
    return %c0_i32, %c0_i32_0, %c0_i32_1 : i32, i32, i32
  }
  func.func @transform_5(%arg0: i32) -> (i32, i32, i32) {
    %c0_i32 = arith.constant 0 : i32
    %c0_i32_0 = arith.constant 0 : i32
    %c0_i32_1 = arith.constant 0 : i32
    %c0_i32_2 = arith.constant 0 : i32
    return %c0_i32, %c0_i32_0, %c0_i32_1 : i32, i32, i32
  }
  func.func @transform_6(%arg0: i32) -> (i32, i32, i32) {
    %c0_i32 = arith.constant 0 : i32
    %c0_i32_0 = arith.constant 0 : i32
    %c0_i32_1 = arith.constant 0 : i32
    %c0_i32_2 = arith.constant 0 : i32
    return %c0_i32, %c0_i32_0, %c0_i32_1 : i32, i32, i32
  }
  func.func @transform_7(%arg0: i32) -> (i32, i32, i32) {
    %c0_i32 = arith.constant 0 : i32
    %c0_i32_0 = arith.constant 0 : i32
    %c0_i32_1 = arith.constant 0 : i32
    %c0_i32_2 = arith.constant 0 : i32
    return %c0_i32, %c0_i32_0, %c0_i32_1 : i32, i32, i32
  }
  func.func @transform_8(%arg0: i32) -> (i32, i32, i32) {
    %c0_i32 = arith.constant 0 : i32
    %c0_i32_0 = arith.constant 0 : i32
    %c0_i32_1 = arith.constant 0 : i32
    %c0_i32_2 = arith.constant 0 : i32
    return %c0_i32, %c0_i32_0, %c0_i32_1 : i32, i32, i32
  }
  func.func @transform_9(%arg0: i32) -> (i32, i32, i32) {
    %c0_i32 = arith.constant 0 : i32
    %c0_i32_0 = arith.constant 0 : i32
    %c0_i32_1 = arith.constant 0 : i32
    %c0_i32_2 = arith.constant 0 : i32
    return %c0_i32, %c0_i32_0, %c0_i32_1 : i32, i32, i32
  }
  func.func @transform_10(%arg0: i32) -> (i32, i32, i32) {
    %c0_i32 = arith.constant 0 : i32
    %c0_i32_0 = arith.constant 0 : i32
    %c0_i32_1 = arith.constant 0 : i32
    %c0_i32_2 = arith.constant 0 : i32
    return %c0_i32, %c0_i32_0, %c0_i32_1 : i32, i32, i32
  }
  func.func @transform_11(%arg0: i32) -> (i32, i32, i32) {
    %c0_i32 = arith.constant 0 : i32
    %c0_i32_0 = arith.constant 0 : i32
    %c0_i32_1 = arith.constant 0 : i32
    %c0_i32_2 = arith.constant 0 : i32
    return %c0_i32, %c0_i32_0, %c0_i32_1 : i32, i32, i32
  }
  func.func @transform_12(%arg0: i32) -> (i32, i32, i32) {
    %c0_i32 = arith.constant 0 : i32
    %c0_i32_0 = arith.constant 0 : i32
    %c0_i32_1 = arith.constant 0 : i32
    %c0_i32_2 = arith.constant 0 : i32
    return %c0_i32, %c0_i32_0, %c0_i32_1 : i32, i32, i32
  }
  func.func @transform_13(%arg0: i32) -> (i32, i32, i32) {
    %c0_i32 = arith.constant 0 : i32
    %c0_i32_0 = arith.constant 0 : i32
    %c0_i32_1 = arith.constant 0 : i32
    %c0_i32_2 = arith.constant 0 : i32
    return %c0_i32, %c0_i32_0, %c0_i32_1 : i32, i32, i32
  }
  func.func @transform_14(%arg0: i32) -> (i32, i32, i32) {
    %c0_i32 = arith.constant 0 : i32
    %c0_i32_0 = arith.constant 0 : i32
    %c0_i32_1 = arith.constant 0 : i32
    %c0_i32_2 = arith.constant 0 : i32
    return %c0_i32, %c0_i32_0, %c0_i32_1 : i32, i32, i32
  }
  func.func @transform_15(%arg0: i32) -> (i32, i32) {
    %c0_i32 = arith.constant 0 : i32
    %c0_i32_0 = arith.constant 0 : i32
    %c0_i32_1 = arith.constant 0 : i32
    return %c0_i32, %c0_i32_0 : i32, i32
  }
  func.func @transform_16(%arg0: i32) -> (i32, i32) {
    %c0_i32 = arith.constant 0 : i32
    %c0_i32_0 = arith.constant 0 : i32
    %c0_i32_1 = arith.constant 0 : i32
    return %c0_i32, %c0_i32_0 : i32, i32
  }
  func.func @transform_17(%arg0: i32) -> (i32, i32) {
    %c0_i32 = arith.constant 0 : i32
    %c0_i32_0 = arith.constant 0 : i32
    %c0_i32_1 = arith.constant 0 : i32
    return %c0_i32, %c0_i32_0 : i32, i32
  }
  func.func @transform_18(%arg0: i32) -> (i32, i32) {
    %c0_i32 = arith.constant 0 : i32
    %c0_i32_0 = arith.constant 0 : i32
    %c0_i32_1 = arith.constant 0 : i32
    return %c0_i32, %c0_i32_0 : i32, i32
  }
  func.func @transform_19(%arg0: i32) -> (i32, i32, i32) {
    %c0_i32 = arith.constant 0 : i32
    %c0_i32_0 = arith.constant 0 : i32
    %c0_i32_1 = arith.constant 0 : i32
    return %arg0, %c0_i32, %c0_i32_0 : i32, i32, i32
  }
}

</mosaic_0001>

<llo_original>
// kernel: tpu_custom_call.1
$region0: #{tpu_custom_call.1}
  #allocation0 [shape = 'u32[]', space=smem, size = 0x4, offset = 0x4, fixed_abs, tag = 'smem constant byte address 0x4 - core index']
  #allocation1 [shape = 'u32[144,128]{1,0:T(1,128)}', space=vmem, size = 0x12000, scoped, tag = 'internal scratch']
  %s0 = inlined_call_operand.vmem [shape: f32[2,9,386], index: 0, kind: input, shape index: {}]
  %s1 = inlined_call_operand.vmem [shape: f32[386,32], index: 1, kind: input, shape index: {}]
  %s2 = inlined_call_operand.vmem [shape: f32[9,32], index: 2, kind: input, shape index: {}]
  %s3 = inlined_call_operand.vmem [shape: f32[2,32,96], index: 3, kind: input, shape index: {}]
  %s4 = inlined_call_operand.vmem [shape: f32[2,1,96], index: 4, kind: input, shape index: {}]
  %s5 = inlined_call_operand.vmem [shape: f32[2,32,32], index: 5, kind: input, shape index: {}]
  %s6 = inlined_call_operand.vmem [shape: f32[2,1,32], index: 6, kind: input, shape index: {}]
  %s7 = inlined_call_operand.vmem [shape: f32[2,1,32], index: 7, kind: input, shape index: {}]
  %s8 = inlined_call_operand.vmem [shape: f32[2,1,32], index: 8, kind: input, shape index: {}]
  %s9 = inlined_call_operand.vmem [shape: f32[2,32,128], index: 9, kind: input, shape index: {}]
  %s10 = inlined_call_operand.vmem [shape: f32[2,1,128], index: 10, kind: input, shape index: {}]
  %s11 = inlined_call_operand.vmem [shape: f32[2,128,32], index: 11, kind: input, shape index: {}]
  %s12 = inlined_call_operand.vmem [shape: f32[2,1,32], index: 12, kind: input, shape index: {}]
  %s13 = inlined_call_operand.vmem [shape: f32[2,1,32], index: 13, kind: input, shape index: {}]
  %s14 = inlined_call_operand.vmem [shape: f32[2,1,32], index: 14, kind: input, shape index: {}]
  %s15 = inlined_call_operand.vmem [shape: f32[1,32], index: 15, kind: input, shape index: {}]
  %s16 = inlined_call_operand.vmem [shape: f32[1,32], index: 16, kind: input, shape index: {}]
  %s17 = inlined_call_operand.vmem [shape: f32[32,128], index: 17, kind: input, shape index: {}]
  %s18 = inlined_call_operand.vmem [shape: f32[1,128], index: 18, kind: input, shape index: {}]
  %s19 = inlined_call_operand.hbm [shape: f32[2,1,128], index: 19, kind: output, shape index: {}]
  %s20 = sld [smem:[#allocation0]]
  $region86: #{tpu_custom_call.1} parent=0
    _
  %s22 = ssub.s32 1, %s20
  %s23 = scalar_select 0, %s22, %s20
  $region1: #{tpu_custom_call.1} parent=0
    #allocation2 [shape = 'u8[1024]{0}', space=vmem, size = 0x400, scoped, tag = 'output window, operand 0, single buffered']
    #allocation3 [shape = 's32[1]{0}', space=sflag, size = 0x4, scoped, tag = 'scoped memory for tpu_custom_call.1']
    %24 = vsyncpa [#allocation3], 0
    // Predicated region
    $region2: #{tpu_custom_call.1} parent=1 // pred_check
      _
    $region3: #{tpu_custom_call.1} parent=1 // pred_check_branch
      %26 = sbr.rel (0) target = $region5
    $region4: #{tpu_custom_call.1} parent=1 // pred_region
      _
    $region5: #{tpu_custom_call.1} parent=1 // pred_fallthru
      _
    // Predicated region
    $region6: #{tpu_custom_call.1} parent=1 // pred_check
      _
    $region7: #{tpu_custom_call.1} parent=1 // pred_check_branch
      %28 = sbr.rel (0) target = $region9
    $region8: #{tpu_custom_call.1} parent=1 // pred_region
      _
    $region9: #{tpu_custom_call.1} parent=1 // pred_fallthru
      _
    // Predicated region
    $region10: #{tpu_custom_call.1} parent=1 // pred_check
      _
    $region11: #{tpu_custom_call.1} parent=1 // pred_check_branch
      %30 = sbr.rel (0) target = $region13
    $region12: #{tpu_custom_call.1} parent=1 // pred_region
      _
    $region13: #{tpu_custom_call.1} parent=1 // pred_fallthru
      _
    // Predicated region
    $region14: #{tpu_custom_call.1} parent=1 // pred_check
      _
    $region15: #{tpu_custom_call.1} parent=1 // pred_check_branch
      %32 = sbr.rel (0) target = $region17
    $region16: #{tpu_custom_call.1} parent=1 // pred_region
      _
    $region17: #{tpu_custom_call.1} parent=1 // pred_fallthru
      _
    // Predicated region
    $region18: #{tpu_custom_call.1} parent=1 // pred_check
      _
    $region19: #{tpu_custom_call.1} parent=1 // pred_check_branch
      %34 = sbr.rel (0) target = $region21
    $region20: #{tpu_custom_call.1} parent=1 // pred_region
      _
    $region21: #{tpu_custom_call.1} parent=1 // pred_fallthru
      _
    // Predicated region
    $region22: #{tpu_custom_call.1} parent=1 // pred_check
      _
    $region23: #{tpu_custom_call.1} parent=1 // pred_check_branch
      %36 = sbr.rel (0) target = $region25
    $region24: #{tpu_custom_call.1} parent=1 // pred_region
      _
    $region25: #{tpu_custom_call.1} parent=1 // pred_fallthru
      _
    // Predicated region
    $region26: #{tpu_custom_call.1} parent=1 // pred_check
      _
    $region27: #{tpu_custom_call.1} parent=1 // pred_check_branch
      %38 = sbr.rel (0) target = $region29
    $region28: #{tpu_custom_call.1} parent=1 // pred_region
      _
    $region29: #{tpu_custom_call.1} parent=1 // pred_fallthru
      _
    // Predicated region
    $region30: #{tpu_custom_call.1} parent=1 // pred_check
      _
    $region31: #{tpu_custom_call.1} parent=1 // pred_check_branch
      %40 = sbr.rel (0) target = $region33
    $region32: #{tpu_custom_call.1} parent=1 // pred_region
      _
    $region33: #{tpu_custom_call.1} parent=1 // pred_fallthru
      _
    // Predicated region
    $region34: #{tpu_custom_call.1} parent=1 // pred_check
      _
    $region35: #{tpu_custom_call.1} parent=1 // pred_check_branch
      %42 = sbr.rel (0) target = $region37
    $region36: #{tpu_custom_call.1} parent=1 // pred_region
      _
    $region37: #{tpu_custom_call.1} parent=1 // pred_fallthru
      _
    // Predicated region
    $region38: #{tpu_custom_call.1} parent=1 // pred_check
      _
    $region39: #{tpu_custom_call.1} parent=1 // pred_check_branch
      %44 = sbr.rel (0) target = $region41
    $region40: #{tpu_custom_call.1} parent=1 // pred_region
      _
    $region41: #{tpu_custom_call.1} parent=1 // pred_fallthru
      _
    // Predicated region
    $region42: #{tpu_custom_call.1} parent=1 // pred_check
      _
    $region43: #{tpu_custom_call.1} parent=1 // pred_check_branch
      %46 = sbr.rel (0) target = $region45
    $region44: #{tpu_custom_call.1} parent=1 // pred_region
      _
    $region45: #{tpu_custom_call.1} parent=1 // pred_fallthru
      _
    // Predicated region
    $region46: #{tpu_custom_call.1} parent=1 // pred_check
      _
    $region47: #{tpu_custom_call.1} parent=1 // pred_check_branch
      %48 = sbr.rel (0) target = $region49
    $region48: #{tpu_custom_call.1} parent=1 // pred_region
      _
    $region49: #{tpu_custom_call.1} parent=1 // pred_fallthru
      _
    // Predicated region
    $region50: #{tpu_custom_call.1} parent=1 // pred_check
      _
    $region51: #{tpu_custom_call.1} parent=1 // pred_check_branch
      %50 = sbr.rel (0) target = $region53
    $region52: #{tpu_custom_call.1} parent=1 // pred_region
      _
    $region53: #{tpu_custom_call.1} parent=1 // pred_fallthru
      _
    // Predicated region
    $region54: #{tpu_custom_call.1} parent=1 // pred_check
      _
    $region55: #{tpu_custom_call.1} parent=1 // pred_check_branch
      %52 = sbr.rel (0) target = $region57
    $region56: #{tpu_custom_call.1} parent=1 // pred_region
      _
    $region57: #{tpu_custom_call.1} parent=1 // pred_fallthru
      _
    // Predicated region
    $region58: #{tpu_custom_call.1} parent=1 // pred_check
      _
    $region59: #{tpu_custom_call.1} parent=1 // pred_check_branch
      %54 = sbr.rel (0) target = $region61
    $region60: #{tpu_custom_call.1} parent=1 // pred_region
      _
    $region61: #{tpu_custom_call.1} parent=1 // pred_fallthru
      _
    // Predicated region
    $region62: #{tpu_custom_call.1} parent=1 // pred_check
      _
    $region63: #{tpu_custom_call.1} parent=1 // pred_check_branch
      %56 = sbr.rel (0) target = $region65
    $region64: #{tpu_custom_call.1} parent=1 // pred_region
      _
    $region65: #{tpu_custom_call.1} parent=1 // pred_fallthru
      _
    // Predicated region
    $region66: #{tpu_custom_call.1} parent=1 // pred_check
      _
    $region67: #{tpu_custom_call.1} parent=1 // pred_check_branch
      %58 = sbr.rel (0) target = $region69
    $region68: #{tpu_custom_call.1} parent=1 // pred_region
      _
    $region69: #{tpu_custom_call.1} parent=1 // pred_fallthru
      _
    // Predicated region
    $region70: #{tpu_custom_call.1} parent=1 // pred_check
      _
    $region71: #{tpu_custom_call.1} parent=1 // pred_check_branch
      %60 = sbr.rel (0) target = $region73
    $region72: #{tpu_custom_call.1} parent=1 // pred_region
      _
    $region73: #{tpu_custom_call.1} parent=1 // pred_fallthru
      _
    // Predicated region
    $region74: #{tpu_custom_call.1} parent=1 // pred_check
      _
    $region75: #{tpu_custom_call.1} parent=1 // pred_check_branch
      %62 = sbr.rel (0) target = $region77
    $region76: #{tpu_custom_call.1} parent=1 // pred_region
      _
    $region77: #{tpu_custom_call.1} parent=1 // pred_fallthru
      _
    %v63 = vld [vmem:[%s0] sm:$0xff]
    %v64 = vld [vmem:[%s0 + $0x8] sm:$0xff]
    %v65 = vld [vmem:[%s0 + $0x10] sm:$0xff]
    %v66 = vld [vmem:[%s0 + $0x18] sm:$0xff]
    %v67 = vld [vmem:[%s0 + $0x20] sm:$0x1]
    %v68 = vld [vmem:[%s0 + $0x28] sm:$0x1]
    %v69 = vld [vmem:[%s0 + $0x30] sm:$0x1]
    %v70 = vld [vmem:[%s0 + $0x38] sm:$0x1]
    %v71 = vld [vmem:[%s1] sm:$0xff]
    %v72 = vld [vmem:[%s1 + $0x8] sm:$0xff]
    %v73 = vld [vmem:[%s1 + $0x10] sm:$0xff]
    %v74 = vld [vmem:[%s1 + $0x18] sm:$0xff]
    %v75 = vld [vmem:[%s1 + $0x20] sm:$0xff]
    %v76 = vld [vmem:[%s1 + $0x28] sm:$0xff]
    %v77 = vld [vmem:[%s1 + $0x30] sm:$0xff]
    %v78 = vld [vmem:[%s1 + $0x38] sm:$0xff]
    %v79 = vld [vmem:[%s1 + $0x40] sm:$0xff]
    %v80 = vld [vmem:[%s1 + $0x48] sm:$0xff]
    %v81 = vld [vmem:[%s1 + $0x50] sm:$0xff]
    %v82 = vld [vmem:[%s1 + $0x58] sm:$0xff]
    %v83 = vld [vmem:[%s1 + $0x60] sm:$0xff]
    %v84 = vld [vmem:[%s1 + $0x68] sm:$0xff]
    %v85 = vld [vmem:[%s1 + $0x70] sm:$0xff]
    %v86 = vld [vmem:[%s1 + $0x78] sm:$0xff]
    %v87 = vld [vmem:[%s1 + $0x80] sm:$0xff]
    %v88 = vld [vmem:[%s1 + $0x88] sm:$0xff]
    %v89 = vld [vmem:[%s1 + $0x90] sm:$0xff]
    %v90 = vld [vmem:[%s1 + $0x98] sm:$0xff]
    %v91 = vld [vmem:[%s1 + $0xa0] sm:$0xff]
    %v92 = vld [vmem:[%s1 + $0xa8] sm:$0xff]
    %v93 = vld [vmem:[%s1 + $0xb0] sm:$0xff]
    %v94 = vld [vmem:[%s1 + $0xb8] sm:$0xff]
    %v95 = vld [vmem:[%s1 + $0xc0] sm:$0xff]
    %v96 = vld [vmem:[%s1 + $0xc8] sm:$0xff]
    %v97 = vld [vmem:[%s1 + $0xd0] sm:$0xff]
    %v98 = vld [vmem:[%s1 + $0xd8] sm:$0xff]
    %v99 = vld [vmem:[%s1 + $0xe0] sm:$0xff]
    %v100 = vld [vmem:[%s1 + $0xe8] sm:$0xff]
    %v101 = vld [vmem:[%s1 + $0xf0] sm:$0xff]
    %v102 = vld [vmem:[%s1 + $0xf8] sm:$0xff]
    %v103 = vld [vmem:[%s1 + $0x100] sm:$0xff]
    %v104 = vld [vmem:[%s1 + $0x108] sm:$0xff]
    %v105 = vld [vmem:[%s1 + $0x110] sm:$0xff]
    %v106 = vld [vmem:[%s1 + $0x118] sm:$0xff]
    %v107 = vld [vmem:[%s1 + $0x120] sm:$0xff]
    %v108 = vld [vmem:[%s1 + $0x128] sm:$0xff]
    %v109 = vld [vmem:[%s1 + $0x130] sm:$0xff]
    %v110 = vld [vmem:[%s1 + $0x138] sm:$0xff]
    %v111 = vld [vmem:[%s1 + $0x140] sm:$0xff]
    %v112 = vld [vmem:[%s1 + $0x148] sm:$0xff]
    %v113 = vld [vmem:[%s1 + $0x150] sm:$0xff]
    %v114 = vld [vmem:[%s1 + $0x158] sm:$0xff]
    %v115 = vld [vmem:[%s1 + $0x160] sm:$0xff]
    %v116 = vld [vmem:[%s1 + $0x168] sm:$0xff]
    %v117 = vld [vmem:[%s1 + $0x170] sm:$0xff]
    %v118 = vld [vmem:[%s1 + $0x178] sm:$0xff]
    %v119 = vld [vmem:[%s1 + $0x180] sm:$0x3]
    %v120 = vld [vmem:[%s2] sm:$0xff]
    %v121 = vld [vmem:[%s2 + $0x8] sm:$0x1]
    %vm122 = vcmask 15360
    %v124 = vsel %vm122, %v66, 0
    %v127 = vsel %vm122, %v70, 0
    %vm129 = vcmask 1041408
    %v131 = vsel %vm129, %v119, 0
    %133 = vmatprep.subr.mxu0 0.0
    %134 = vmatpush1.msra.mxu0 %v71
    %135 = vmatprep.subr.mxu0 0.0
    %136 = vmatpush1.msra.mxu0 %v72
    %137 = vmatprep.subr.mxu0 0.0
    %138 = vmatpush1.msra.mxu0 %v73
    %139 = vmatprep.subr.mxu0 0.0
    %140 = vmatpush1.msra.mxu0 %v74
    %141 = vmatprep.subr.mxu0 0.0
    %142 = vmatpush1.msra.mxu0 %v75
    %143 = vmatprep.subr.mxu0 0.0
    %144 = vmatpush1.msra.mxu0 %v76
    %145 = vmatprep.subr.mxu0 0.0
    %146 = vmatpush1.msra.mxu0 %v77
    %147 = vmatprep.subr.mxu0 0.0
    %148 = vmatpush1.msra.mxu0 %v78
    %149 = vmatprep.subr.mxu0 0.0
    %150 = vmatpush1.msra.mxu0 %v79
    %151 = vmatprep.subr.mxu0 0.0
    %152 = vmatpush1.msra.mxu0 %v80
    %153 = vmatprep.subr.mxu0 0.0
    %154 = vmatpush1.msra.mxu0 %v81
    %155 = vmatprep.subr.mxu0 0.0
    %156 = vmatpush1.msra.mxu0 %v82
    %157 = vmatprep.subr.mxu0 0.0
    %158 = vmatpush1.msra.mxu0 %v83
    %159 = vmatprep.subr.mxu0 0.0
    %160 = vmatpush1.msra.mxu0 %v84
    %161 = vmatprep.subr.mxu0 0.0
    %162 = vmatpush1.msra.mxu0 %v85
    %163 = vmatprep.subr.mxu0 0.0
    %164 = vmatpush1.msra.mxu0 %v86
    %165 = vmatprep.subr.mxu0 0.0
    %166 = vmatpush1.msra.mxu0 %v87
    %167 = vmatprep.subr.mxu0 0.0
    %168 = vmatpush1.msra.mxu0 %v88
    %169 = vmatprep.subr.mxu0 0.0
    %170 = vmatpush1.msra.mxu0 %v89
    %171 = vmatprep.subr.mxu0 0.0
    %172 = vmatpush1.msra.mxu0 %v90
    %173 = vmatprep.subr.mxu0 0.0
    %174 = vmatpush1.msra.mxu0 %v91
    %175 = vmatprep.subr.mxu0 0.0
    %176 = vmatpush1.msra.mxu0 %v92
    %177 = vmatprep.subr.mxu0 0.0
    %178 = vmatpush1.msra.mxu0 %v93
    %179 = vmatprep.subr.mxu0 0.0
    %180 = vmatpush1.msra.mxu0 %v94
    %181 = vmatprep.subr.mxu0 0.0
    %182 = vmatpush1.msra.mxu0 %v95
    %183 = vmatprep.subr.mxu0 0.0
    %184 = vmatpush1.msra.mxu0 %v96
    %185 = vmatprep.subr.mxu0 0.0
    %186 = vmatpush1.msra.mxu0 %v97
    %187 = vmatprep.subr.mxu0 0.0
    %188 = vmatpush1.msra.mxu0 %v98
    %189 = vmatprep.subr.mxu0 0.0
    %190 = vmatpush1.msra.mxu0 %v99
    %191 = vmatprep.subr.mxu0 0.0
    %192 = vmatpush1.msra.mxu0 %v100
    %193 = vmatprep.subr.mxu0 0.0
    %194 = vmatpush1.msra.mxu0 %v101
    %195 = vmatprep.subr.mxu0 0.0
    %196 = vmatpush1.msra.mxu0 %v102
    %197 = vmatprep.mubr.f32.mxu0 %v64
    %198 = vmatmul.mubr.f32.gmra.mrb[0].mxu0 %v63
    %v199 = vpop.f32.mrb[0].mxu0
    %v200 = vadd.f32 %v120, %v199
    %v201 = vpop.f32.mrb[0].mxu0
    %202 = vmatprep.mubr.f32.mxu0 %v68
    %203 = vmatmul.mubr.f32.gmra.mrb[0].mxu0 %v67
    %v204 = vpop.f32.mrb[0].mxu0
    %v205 = vadd.f32 %v121, %v204
    %v206 = vpop.f32.mrb[0].mxu0
    %207 = vdwg.mxu0
    %208 = vmatprep.subr.mxu0 0.0
    %209 = vmatpush1.msra.mxu0 %v103
    %210 = vmatprep.subr.mxu0 0.0
    %211 = vmatpush1.msra.mxu0 %v104
    %212 = vmatprep.subr.mxu0 0.0
    %213 = vmatpush1.msra.mxu0 %v105
    %214 = vmatprep.subr.mxu0 0.0
    %215 = vmatpush1.msra.mxu0 %v106
    %216 = vmatprep.subr.mxu0 0.0
    %217 = vmatpush1.msra.mxu0 %v107
    %218 = vmatprep.subr.mxu0 0.0
    %219 = vmatpush1.msra.mxu0 %v108
    %220 = vmatprep.subr.mxu0 0.0
    %221 = vmatpush1.msra.mxu0 %v109
    %222 = vmatprep.subr.mxu0 0.0
    %223 = vmatpush1.msra.mxu0 %v110
    %224 = vmatprep.subr.mxu0 0.0
    %225 = vmatpush1.msra.mxu0 %v111
    %226 = vmatprep.subr.mxu0 0.0
    %227 = vmatpush1.msra.mxu0 %v112
    %228 = vmatprep.subr.mxu0 0.0
    %229 = vmatpush1.msra.mxu0 %v113
    %230 = vmatprep.subr.mxu0 0.0
    %231 = vmatpush1.msra.mxu0 %v114
    %232 = vmatprep.subr.mxu0 0.0
    %233 = vmatpush1.msra.mxu0 %v115
    %234 = vmatprep.subr.mxu0 0.0
    %235 = vmatpush1.msra.mxu0 %v116
    %236 = vmatprep.subr.mxu0 0.0
    %237 = vmatpush1.msra.mxu0 %v117
    %238 = vmatprep.subr.mxu0 0.0
    %239 = vmatpush1.msra.mxu0 %v118
    %240 = vmatprep.subr.mxu0 0.0
    %241 = vmatpush1.msra.mxu0 %v131
    %242 = vmatprep.subr.mxu0 0.0
    %243 = vmatpush1.msra.mxu0 0.0
    %244 = vmatprep.subr.mxu0 0.0
    %245 = vmatpush1.msra.mxu0 0.0
    %246 = vmatprep.subr.mxu0 0.0
    %247 = vmatpush1.msra.mxu0 0.0
    %248 = vmatprep.subr.mxu0 0.0
    %249 = vmatpush1.msra.mxu0 0.0
    %250 = vmatprep.subr.mxu0 0.0
    %251 = vmatpush1.msra.mxu0 0.0
    %252 = vmatprep.subr.mxu0 0.0
    %253 = vmatpush1.msra.mxu0 0.0
    %254 = vmatprep.subr.mxu0 0.0
    %255 = vmatpush1.msra.mxu0 0.0
    %256 = vmatprep.subr.mxu0 0.0
    %257 = vmatpush1.msra.mxu0 0.0
    %258 = vmatprep.subr.mxu0 0.0
    %259 = vmatpush1.msra.mxu0 0.0
    %260 = vmatprep.subr.mxu0 0.0
    %261 = vmatpush1.msra.mxu0 0.0
    %262 = vmatprep.subr.mxu0 0.0
    %263 = vmatpush1.msra.mxu0 0.0
    %264 = vmatprep.subr.mxu0 0.0
    %265 = vmatpush1.msra.mxu0 0.0
    %266 = vmatprep.subr.mxu0 0.0
    %267 = vmatpush1.msra.mxu0 0.0
    %268 = vmatprep.subr.mxu0 0.0
    %269 = vmatpush1.msra.mxu0 0.0
    %270 = vmatprep.subr.mxu0 0.0
    %271 = vmatpush1.msra.mxu0 0.0
    %272 = vmatprep.mubr.f32.mxu0 %v124
    %273 = vmatmul.mubr.f32.gmra.mrb[0].mxu0 %v65
    %v274 = vpop.f32.mrb[0].mxu0
    %v275 = vadd.f32 %v200, %v274
    %v276 = vpop.f32.mrb[0].mxu0
    %277 = vmatprep.mubr.f32.mxu0 %v127
    %278 = vmatmul.mubr.f32.gmra.mrb[0].mxu0 %v69
    %v279 = vpop.f32.mrb[0].mxu0
    %v280 = vadd.f32 %v205, %v279
    %v281 = vpop.f32.mrb[0].mxu0
    %282 = vdwg.mxu0
    %v283 = vld [vmem:[%s3] sm:$0xff]
    %v284 = vld [vmem:[%s3 + $0x8] sm:$0xff]
    %v285 = vld [vmem:[%s3 + $0x10] sm:$0xff]
    %v286 = vld [vmem:[%s3 + $0x18] sm:$0xff]
    %v287 = vld [vmem:[%s4] sm:$0x1]
    %v289 = vlaneseq
    %v290 = vshrl.u32 %v289, 7
    %v291 = vsub.s32 0, %v290
    %v292 = vrot.slane %v287, %v291
    %vm294 = vcmask 261120
    %v296 = vsel %vm294, %v275, 0
    %v299 = vsel %vm294, %v280, 0
    %301 = vmatprep.subr.mxu0 0.0
    %302 = vmatpush1.msra.mxu0 %v283
    %303 = vmatprep.subr.mxu0 0.0
    %304 = vmatpush1.msra.mxu0 %v284
    %305 = vmatprep.subr.mxu0 0.0
    %306 = vmatpush1.msra.mxu0 %v285
    %307 = vmatprep.subr.mxu0 0.0
    %308 = vmatpush1.msra.mxu0 %v286
    %309 = vmatprep.subr.mxu0 0.0
    %310 = vmatpush1.msra.mxu0 0.0
    %311 = vmatprep.subr.mxu0 0.0
    %312 = vmatpush1.msra.mxu0 0.0
    %313 = vmatprep.subr.mxu0 0.0
    %314 = vmatpush1.msra.mxu0 0.0
    %315 = vmatprep.subr.mxu0 0.0
    %316 = vmatpush1.msra.mxu0 0.0
    %317 = vmatprep.subr.mxu0 0.0
    %318 = vmatpush1.msra.mxu0 0.0
    %319 = vmatprep.subr.mxu0 0.0
    %320 = vmatpush1.msra.mxu0 0.0
    %321 = vmatprep.subr.mxu0 0.0
    %322 = vmatpush1.msra.mxu0 0.0
    %323 = vmatprep.subr.mxu0 0.0
    %324 = vmatpush1.msra.mxu0 0.0
    %325 = vmatprep.subr.mxu0 0.0
    %326 = vmatpush1.msra.mxu0 0.0
    %327 = vmatprep.subr.mxu0 0.0
    %328 = vmatpush1.msra.mxu0 0.0
    %329 = vmatprep.subr.mxu0 0.0
    %330 = vmatpush1.msra.mxu0 0.0
    %331 = vmatprep.subr.mxu0 0.0
    %332 = vmatpush1.msra.mxu0 0.0
    %333 = vmatprep.subr.mxu0 0.0
    %334 = vmatpush1.msra.mxu0 0.0
    %335 = vmatprep.subr.mxu0 0.0
    %336 = vmatpush1.msra.mxu0 0.0
    %337 = vmatprep.subr.mxu0 0.0
    %338 = vmatpush1.msra.mxu0 0.0
    %339 = vmatprep.subr.mxu0 0.0
    %340 = vmatpush1.msra.mxu0 0.0
    %341 = vmatprep.subr.mxu0 0.0
    %342 = vmatpush1.msra.mxu0 0.0
    %343 = vmatprep.subr.mxu0 0.0
    %344 = vmatpush1.msra.mxu0 0.0
    %345 = vmatprep.subr.mxu0 0.0
    %346 = vmatpush1.msra.mxu0 0.0
    %347 = vmatprep.subr.mxu0 0.0
    %348 = vmatpush1.msra.mxu0 0.0
    %349 = vmatprep.subr.mxu0 0.0
    %350 = vmatpush1.msra.mxu0 0.0
    %351 = vmatprep.subr.mxu0 0.0
    %352 = vmatpush1.msra.mxu0 0.0
    %353 = vmatprep.subr.mxu0 0.0
    %354 = vmatpush1.msra.mxu0 0.0
    %355 = vmatprep.subr.mxu0 0.0
    %356 = vmatpush1.msra.mxu0 0.0
    %357 = vmatprep.subr.mxu0 0.0
    %358 = vmatpush1.msra.mxu0 0.0
    %359 = vmatprep.subr.mxu0 0.0
    %360 = vmatpush1.msra.mxu0 0.0
    %361 = vmatprep.subr.mxu0 0.0
    %362 = vmatpush1.msra.mxu0 0.0
    %363 = vmatprep.subr.mxu0 0.0
    %364 = vmatpush1.msra.mxu0 0.0
    %365 = vmatprep.mubr.f32.mxu0 0.0
    %366 = vmatmul.mubr.f32.gmra.mrb[0].mxu0 %v296
    %v367 = vpop.f32.mrb[0].mxu0
    %v368 = vadd.f32 %v292, %v367
    %v369 = vpop.f32.mrb[0].mxu0
    %370 = vmatprep.mubr.f32.mxu0 0.0
    %371 = vmatmul.mubr.f32.gmra.mrb[0].mxu0 %v299
    %v372 = vpop.f32.mrb[0].mxu0
    %v373 = vadd.f32 %v292, %v372
    %v374 = vpop.f32.mrb[0].mxu0
    %375 = vdwg.mxu0
    %v376 = vld [vmem:[%s6] sm:$0x1]
    %379 = vrot.lane.b32.xlu0 %v368, 96
    %v380 = vpop.permute.xlu0 %379
    %381 = vrot.lane.b32.xlu0 %v373, 96
    %v382 = vpop.permute.xlu0 %381
    %vm383 = vcmask 64512
    %v384 = vsel %vm383, %v368, 0
    %v386 = vsel %vm383, %v373, 0
    %v388 = vsel %vm383, %v380, 0
    %v390 = vsel %vm383, %v382, 0
    %392 = vmatprep.subr.mxu0 0.0
    %393 = vmatpush1.xpose.msra.mxu0 %v388
    %394 = vmatprep.subr.mxu0 0.0
    %395 = vmatpush1.xpose.msra.mxu0 %v390
    %396 = vmatprep.subr.mxu0 0.0
    %397 = vmatpush1.xpose.msra.mxu0 0.0
    %398 = vmatprep.subr.mxu0 0.0
    %399 = vmatpush1.xpose.msra.mxu0 0.0
    %400 = vmatprep.subr.mxu0 0.0
    %401 = vmatpush1.xpose.msra.mxu0 0.0
    %402 = vmatprep.subr.mxu0 0.0
    %403 = vmatpush1.xpose.msra.mxu0 0.0
    %404 = vmatprep.subr.mxu0 0.0
    %405 = vmatpush1.xpose.msra.mxu0 0.0
    %406 = vmatprep.subr.mxu0 0.0
    %407 = vmatpush1.xpose.msra.mxu0 0.0
    %408 = vmatprep.subr.mxu0 0.0
    %409 = vmatpush1.xpose.msra.mxu0 0.0
    %410 = vmatprep.subr.mxu0 0.0
    %411 = vmatpush1.xpose.msra.mxu0 0.0
    %412 = vmatprep.subr.mxu0 0.0
    %413 = vmatpush1.xpose.msra.mxu0 0.0
    %414 = vmatprep.subr.mxu0 0.0
    %415 = vmatpush1.xpose.msra.mxu0 0.0
    %416 = vmatprep.subr.mxu0 0.0
    %417 = vmatpush1.xpose.msra.mxu0 0.0
    %418 = vmatprep.subr.mxu0 0.0
    %419 = vmatpush1.xpose.msra.mxu0 0.0
    %420 = vmatprep.subr.mxu0 0.0
    %421 = vmatpush1.xpose.msra.mxu0 0.0
    %422 = vmatprep.subr.mxu0 0.0
    %423 = vmatpush1.xpose.msra.mxu0 0.0
    %424 = vmatprep.subr.mxu0 0.0
    %425 = vmatpush1.xpose.msra.mxu0 0.0
    %426 = vmatprep.subr.mxu0 0.0
    %427 = vmatpush1.xpose.msra.mxu0 0.0
    %428 = vmatprep.subr.mxu0 0.0
    %429 = vmatpush1.xpose.msra.mxu0 0.0
    %430 = vmatprep.subr.mxu0 0.0
    %431 = vmatpush1.xpose.msra.mxu0 0.0
    %432 = vmatprep.subr.mxu0 0.0
    %433 = vmatpush1.xpose.msra.mxu0 0.0
    %434 = vmatprep.subr.mxu0 0.0
    %435 = vmatpush1.xpose.msra.mxu0 0.0
    %436 = vmatprep.subr.mxu0 0.0
    %437 = vmatpush1.xpose.msra.mxu0 0.0
    %438 = vmatprep.subr.mxu0 0.0
    %439 = vmatpush1.xpose.msra.mxu0 0.0
    %440 = vmatprep.subr.mxu0 0.0
    %441 = vmatpush1.xpose.msra.mxu0 0.0
    %442 = vmatprep.subr.mxu0 0.0
    %443 = vmatpush1.xpose.msra.mxu0 0.0
    %444 = vmatprep.subr.mxu0 0.0
    %445 = vmatpush1.xpose.msra.mxu0 0.0
    %446 = vmatprep.subr.mxu0 0.0
    %447 = vmatpush1.xpose.msra.mxu0 0.0
    %448 = vmatprep.subr.mxu0 0.0
    %449 = vmatpush1.xpose.msra.mxu0 0.0
    %450 = vmatprep.subr.mxu0 0.0
    %451 = vmatpush1.xpose.msra.mxu0 0.0
    %452 = vmatprep.subr.mxu0 0.0
    %453 = vmatpush1.xpose.msra.mxu0 0.0
    %454 = vmatprep.subr.mxu0 0.0
    %455 = vmatpush1.xpose.msra.mxu0 0.0
    %456 = vmatprep.mubr.f32.mxu0 0.0
    %457 = vmatmul.mubr.f32.gmra.mrb[0].mxu0 %v384
    %v458 = vpop.f32.mrb[0].mxu0
    %v459 = vadd.f32 0.0, %v458
    %v460 = vpop.f32.mrb[0].mxu0
    %461 = vmatprep.mubr.f32.mxu0 0.0
    %462 = vmatmul.mubr.f32.gmra.mrb[0].mxu0 %v386
    %v463 = vpop.f32.mrb[0].mxu0
    %v464 = vadd.f32 0.0, %v463
    %v465 = vpop.f32.mrb[0].mxu0
    %466 = vdwg.mxu0
    %v467 = vmul.f32 %v459, 0.35355338
    %v468 = vmul.f32 %v464, 0.35355338
    %vm469 = vcmask 72704
    %v470 = vsel %vm469, %v467, -inf
    %471 = vmax.xlane.f32.xlu0 %v470
    %v472 = vpop.xlane.xlu0 %471
    %vm473 = vcmask 65536
    %v474 = vsel %vm473, %v468, -inf
    %475 = vmax.xlane.f32.xlu0 %v474
    %v476 = vpop.xlane.xlu0 %475
    %v477 = vsub.f32 %v467, %v472
    %v478 = vsub.f32 %v468, %v476
    %v479 = vmul.f32 %v477, 1.442695
    %v480 = vpow.pop %v479
    %v481 = vmul.f32 %v478, 1.442695
    %v482 = vpow.pop %v481
    %v483 = vsel %vm469, %v480, 0.0
    %484 = vadd.xlane.f32.xlu0 %v483
    %v485 = vpop.xlane.xlu0 %484
    %v486 = vsel %vm473, %v482, 0.0
    %487 = vadd.xlane.f32.xlu0 %v486
    %v488 = vpop.xlane.xlu0 %487
    %v489 = vrcp.pop %v485
    %v490 = vrcp.pop %v488
    %v491 = vmul.f32 %v480, %v489
    %v492 = vmul.f32 %v482, %v490
    %493 = vrot.lane.b32.xlu0 %v368, 64
    %v494 = vpop.permute.xlu0 %493
    %495 = vrot.lane.b32.xlu0 %v373, 64
    %v496 = vpop.permute.xlu0 %495
    %v499 = vsel %vm469, %v491, 0
    %v502 = vsel %vm469, %v492, 0
    %vm504 = vcmask 1040384
    %v505 = vsel %vm504, %v496, 0
    %507 = vmatprep.subr.mxu0 0.0
    %508 = vmatpush1.msra.mxu0 %v494
    %509 = vmatprep.subr.mxu0 0.0
    %510 = vmatpush1.msra.mxu0 %v505
    %511 = vmatprep.subr.mxu0 0.0
    %512 = vmatpush1.msra.mxu0 0.0
    %513 = vmatprep.subr.mxu0 0.0
    %514 = vmatpush1.msra.mxu0 0.0
    %515 = vmatprep.subr.mxu0 0.0
    %516 = vmatpush1.msra.mxu0 0.0
    %517 = vmatprep.subr.mxu0 0.0
    %518 = vmatpush1.msra.mxu0 0.0
    %519 = vmatprep.subr.mxu0 0.0
    %520 = vmatpush1.msra.mxu0 0.0
    %521 = vmatprep.subr.mxu0 0.0
    %522 = vmatpush1.msra.mxu0 0.0
    %523 = vmatprep.subr.mxu0 0.0
    %524 = vmatpush1.msra.mxu0 0.0
    %525 = vmatprep.subr.mxu0 0.0
    %526 = vmatpush1.msra.mxu0 0.0
    %527 = vmatprep.subr.mxu0 0.0
    %528 = vmatpush1.msra.mxu0 0.0
    %529 = vmatprep.subr.mxu0 0.0
    %530 = vmatpush1.msra.mxu0 0.0
    %531 = vmatprep.subr.mxu0 0.0
    %532 = vmatpush1.msra.mxu0 0.0
    %533 = vmatprep.subr.mxu0 0.0
    %534 = vmatpush1.msra.mxu0 0.0
    %535 = vmatprep.subr.mxu0 0.0
    %536 = vmatpush1.msra.mxu0 0.0
    %537 = vmatprep.subr.mxu0 0.0
    %538 = vmatpush1.msra.mxu0 0.0
    %539 = vmatprep.subr.mxu0 0.0
    %540 = vmatpush1.msra.mxu0 0.0
    %541 = vmatprep.subr.mxu0 0.0
    %542 = vmatpush1.msra.mxu0 0.0
    %543 = vmatprep.subr.mxu0 0.0
    %544 = vmatpush1.msra.mxu0 0.0
    %545 = vmatprep.subr.mxu0 0.0
    %546 = vmatpush1.msra.mxu0 0.0
    %547 = vmatprep.subr.mxu0 0.0
    %548 = vmatpush1.msra.mxu0 0.0
    %549 = vmatprep.subr.mxu0 0.0
    %550 = vmatpush1.msra.mxu0 0.0
    %551 = vmatprep.subr.mxu0 0.0
    %552 = vmatpush1.msra.mxu0 0.0
    %553 = vmatprep.subr.mxu0 0.0
    %554 = vmatpush1.msra.mxu0 0.0
    %555 = vmatprep.subr.mxu0 0.0
    %556 = vmatpush1.msra.mxu0 0.0
    %557 = vmatprep.subr.mxu0 0.0
    %558 = vmatpush1.msra.mxu0 0.0
    %559 = vmatprep.subr.mxu0 0.0
    %560 = vmatpush1.msra.mxu0 0.0
    %561 = vmatprep.subr.mxu0 0.0
    %562 = vmatpush1.msra.mxu0 0.0
    %563 = vmatprep.subr.mxu0 0.0
    %564 = vmatpush1.msra.mxu0 0.0
    %565 = vmatprep.subr.mxu0 0.0
    %566 = vmatpush1.msra.mxu0 0.0
    %567 = vmatprep.subr.mxu0 0.0
    %568 = vmatpush1.msra.mxu0 0.0
    %569 = vmatprep.subr.mxu0 0.0
    %570 = vmatpush1.msra.mxu0 0.0
    %571 = vmatprep.mubr.f32.mxu0 0.0
    %572 = vmatmul.mubr.f32.gmra.mrb[0].mxu0 %v499
    %v573 = vpop.f32.mrb[0].mxu0
    %v574 = vadd.f32 0.0, %v573
    %v575 = vpop.f32.mrb[0].mxu0
    %576 = vmatprep.mubr.f32.mxu0 0.0
    %577 = vmatmul.mubr.f32.gmra.mrb[0].mxu0 %v502
    %v578 = vpop.f32.mrb[0].mxu0
    %v579 = vadd.f32 0.0, %v578
    %v580 = vpop.f32.mrb[0].mxu0
    %581 = vdwg.mxu0
    %v582 = vld [vmem:[%s5] sm:$0xff]
    %v584 = vsel %vm383, %v574, 0
    %v587 = vsel %vm383, %v579, 0
    %589 = vmatprep.subr.mxu0 0.0
    %590 = vmatpush1.msra.mxu0 %v582
    %591 = vmatprep.subr.mxu0 0.0
    %592 = vmatpush1.msra.mxu0 0.0
    %593 = vmatprep.subr.mxu0 0.0
    %594 = vmatpush1.msra.mxu0 0.0
    %595 = vmatprep.subr.mxu0 0.0
    %596 = vmatpush1.msra.mxu0 0.0
    %597 = vmatprep.subr.mxu0 0.0
    %598 = vmatpush1.msra.mxu0 0.0
    %599 = vmatprep.subr.mxu0 0.0
    %600 = vmatpush1.msra.mxu0 0.0
    %601 = vmatprep.subr.mxu0 0.0
    %602 = vmatpush1.msra.mxu0 0.0
    %603 = vmatprep.subr.mxu0 0.0
    %604 = vmatpush1.msra.mxu0 0.0
    %605 = vmatprep.subr.mxu0 0.0
    %606 = vmatpush1.msra.mxu0 0.0
    %607 = vmatprep.subr.mxu0 0.0
    %608 = vmatpush1.msra.mxu0 0.0
    %609 = vmatprep.subr.mxu0 0.0
    %610 = vmatpush1.msra.mxu0 0.0
    %611 = vmatprep.subr.mxu0 0.0
    %612 = vmatpush1.msra.mxu0 0.0
    %613 = vmatprep.subr.mxu0 0.0
    %614 = vmatpush1.msra.mxu0 0.0
    %615 = vmatprep.subr.mxu0 0.0
    %616 = vmatpush1.msra.mxu0 0.0
    %617 = vmatprep.subr.mxu0 0.0
    %618 = vmatpush1.msra.mxu0 0.0
    %619 = vmatprep.subr.mxu0 0.0
    %620 = vmatpush1.msra.mxu0 0.0
    %621 = vmatprep.subr.mxu0 0.0
    %622 = vmatpush1.msra.mxu0 0.0
    %623 = vmatprep.subr.mxu0 0.0
    %624 = vmatpush1.msra.mxu0 0.0
    %625 = vmatprep.subr.mxu0 0.0
    %626 = vmatpush1.msra.mxu0 0.0
    %627 = vmatprep.subr.mxu0 0.0
    %628 = vmatpush1.msra.mxu0 0.0
    %629 = vmatprep.subr.mxu0 0.0
    %630 = vmatpush1.msra.mxu0 0.0
    %631 = vmatprep.subr.mxu0 0.0
    %632 = vmatpush1.msra.mxu0 0.0
    %633 = vmatprep.subr.mxu0 0.0
    %634 = vmatpush1.msra.mxu0 0.0
    %635 = vmatprep.subr.mxu0 0.0
    %636 = vmatpush1.msra.mxu0 0.0
    %637 = vmatprep.subr.mxu0 0.0
    %638 = vmatpush1.msra.mxu0 0.0
    %639 = vmatprep.subr.mxu0 0.0
    %640 = vmatpush1.msra.mxu0 0.0
    %641 = vmatprep.subr.mxu0 0.0
    %642 = vmatpush1.msra.mxu0 0.0
    %643 = vmatprep.subr.mxu0 0.0
    %644 = vmatpush1.msra.mxu0 0.0
    %645 = vmatprep.subr.mxu0 0.0
    %646 = vmatpush1.msra.mxu0 0.0
    %647 = vmatprep.subr.mxu0 0.0
    %648 = vmatpush1.msra.mxu0 0.0
    %649 = vmatprep.subr.mxu0 0.0
    %650 = vmatpush1.msra.mxu0 0.0
    %651 = vmatprep.subr.mxu0 0.0
    %652 = vmatpush1.msra.mxu0 0.0
    %653 = vmatprep.mubr.f32.mxu0 0.0
    %654 = vmatmul.mubr.f32.gmra.mrb[0].mxu0 %v584
    %v655 = vpop.f32.mrb[0].mxu0
    %v656 = vadd.f32 0.0, %v655
    %v657 = vpop.f32.mrb[0].mxu0
    %658 = vmatprep.mubr.f32.mxu0 0.0
    %659 = vmatmul.mubr.f32.gmra.mrb[0].mxu0 %v587
    %v660 = vpop.f32.mrb[0].mxu0
    %v661 = vadd.f32 0.0, %v660
    %v662 = vpop.f32.mrb[0].mxu0
    %663 = vdwg.mxu0
    %v665 = vlaneseq
    %v666 = vshrl.u32 %v665, 7
    %v667 = vsub.s32 0, %v666
    %v668 = vrot.slane %v376, %v667
    %v670 = vadd.f32 %v668, %v656
    %v671 = vadd.f32 %v668, %v661
    %672 = vrot.lane.b32.xlu0 %v368, 120
    %v673 = vpop.permute.xlu0 %672
    %674 = vrot.lane.b32.xlu0 %v373, 120
    %v675 = vpop.permute.xlu0 %674
    %676 = vrot.lane.b32.xlu0 %v368, 88
    %v677 = vpop.permute.xlu0 %676
    %678 = vrot.lane.b32.xlu0 %v373, 88
    %v679 = vpop.permute.xlu0 %678
    %v680 = vsel %vm383, %v673, 0
    %v682 = vsel %vm383, %v675, 0
    %v684 = vsel %vm383, %v677, 0
    %v686 = vsel %vm383, %v679, 0
    %688 = vmatprep.subr.mxu0 0.0
    %689 = vmatpush1.xpose.msra.mxu0 %v684
    %690 = vmatprep.subr.mxu0 0.0
    %691 = vmatpush1.xpose.msra.mxu0 %v686
    %692 = vmatprep.subr.mxu0 0.0
    %693 = vmatpush1.xpose.msra.mxu0 0.0
    %694 = vmatprep.subr.mxu0 0.0
    %695 = vmatpush1.xpose.msra.mxu0 0.0
    %696 = vmatprep.subr.mxu0 0.0
    %697 = vmatpush1.xpose.msra.mxu0 0.0
    %698 = vmatprep.subr.mxu0 0.0
    %699 = vmatpush1.xpose.msra.mxu0 0.0
    %700 = vmatprep.subr.mxu0 0.0
    %701 = vmatpush1.xpose.msra.mxu0 0.0
    %702 = vmatprep.subr.mxu0 0.0
    %703 = vmatpush1.xpose.msra.mxu0 0.0
    %704 = vmatprep.subr.mxu0 0.0
    %705 = vmatpush1.xpose.msra.mxu0 0.0
    %706 = vmatprep.subr.mxu0 0.0
    %707 = vmatpush1.xpose.msra.mxu0 0.0
    %708 = vmatprep.subr.mxu0 0.0
    %709 = vmatpush1.xpose.msra.mxu0 0.0
    %710 = vmatprep.subr.mxu0 0.0
    %711 = vmatpush1.xpose.msra.mxu0 0.0
    %712 = vmatprep.subr.mxu0 0.0
    %713 = vmatpush1.xpose.msra.mxu0 0.0
    %714 = vmatprep.subr.mxu0 0.0
    %715 = vmatpush1.xpose.msra.mxu0 0.0
    %716 = vmatprep.subr.mxu0 0.0
    %717 = vmatpush1.xpose.msra.mxu0 0.0
    %718 = vmatprep.subr.mxu0 0.0
    %719 = vmatpush1.xpose.msra.mxu0 0.0
    %720 = vmatprep.subr.mxu0 0.0
    %721 = vmatpush1.xpose.msra.mxu0 0.0
    %722 = vmatprep.subr.mxu0 0.0
    %723 = vmatpush1.xpose.msra.mxu0 0.0
    %724 = vmatprep.subr.mxu0 0.0
    %725 = vmatpush1.xpose.msra.mxu0 0.0
    %726 = vmatprep.subr.mxu0 0.0
    %727 = vmatpush1.xpose.msra.mxu0 0.0
    %728 = vmatprep.subr.mxu0 0.0
    %729 = vmatpush1.xpose.msra.mxu0 0.0
    %730 = vmatprep.subr.mxu0 0.0
    %731 = vmatpush1.xpose.msra.mxu0 0.0
    %732 = vmatprep.subr.mxu0 0.0
    %733 = vmatpush1.xpose.msra.mxu0 0.0
    %734 = vmatprep.subr.mxu0 0.0
    %735 = vmatpush1.xpose.msra.mxu0 0.0
    %736 = vmatprep.subr.mxu0 0.0
    %737 = vmatpush1.xpose.msra.mxu0 0.0
    %738 = vmatprep.subr.mxu0 0.0
    %739 = vmatpush1.xpose.msra.mxu0 0.0
    %740 = vmatprep.subr.mxu0 0.0
    %741 = vmatpush1.xpose.msra.mxu0 0.0
    %742 = vmatprep.subr.mxu0 0.0
    %743 = vmatpush1.xpose.msra.mxu0 0.0
    %744 = vmatprep.subr.mxu0 0.0
    %745 = vmatpush1.xpose.msra.mxu0 0.0
    %746 = vmatprep.subr.mxu0 0.0
    %747 = vmatpush1.xpose.msra.mxu0 0.0
    %748 = vmatprep.subr.mxu0 0.0
    %749 = vmatpush1.xpose.msra.mxu0 0.0
    %750 = vmatprep.subr.mxu0 0.0
    %751 = vmatpush1.xpose.msra.mxu0 0.0
    %752 = vmatprep.mubr.f32.mxu0 0.0
    %753 = vmatmul.mubr.f32.gmra.mrb[0].mxu0 %v680
    %v754 = vpop.f32.mrb[0].mxu0
    %v755 = vadd.f32 0.0, %v754
    %v756 = vpop.f32.mrb[0].mxu0
    %757 = vmatprep.mubr.f32.mxu0 0.0
    %758 = vmatmul.mubr.f32.gmra.mrb[0].mxu0 %v682
    %v759 = vpop.f32.mrb[0].mxu0
    %v760 = vadd.f32 0.0, %v759
    %v761 = vpop.f32.mrb[0].mxu0
    %762 = vdwg.mxu0
    %v763 = vmul.f32 %v755, 0.35355338
    %v764 = vmul.f32 %v760, 0.35355338
    %v765 = vsel %vm469, %v763, -inf
    %766 = vmax.xlane.f32.xlu0 %v765
    %v767 = vpop.xlane.xlu0 %766
    %v768 = vsel %vm473, %v764, -inf
    %769 = vmax.xlane.f32.xlu0 %v768
    %v770 = vpop.xlane.xlu0 %769
    %v771 = vsub.f32 %v763, %v767
    %v772 = vsub.f32 %v764, %v770
    %v773 = vmul.f32 %v771, 1.442695
    %v774 = vpow.pop %v773
    %v775 = vmul.f32 %v772, 1.442695
    %v776 = vpow.pop %v775
    %v777 = vsel %vm469, %v774, 0.0
    %778 = vadd.xlane.f32.xlu0 %v777
    %v779 = vpop.xlane.xlu0 %778
    %v780 = vsel %vm473, %v776, 0.0
    %781 = vadd.xlane.f32.xlu0 %v780
    %v782 = vpop.xlane.xlu0 %781
    %v783 = vrcp.pop %v779
    %v784 = vrcp.pop %v782
    %v785 = vmul.f32 %v774, %v783
    %v786 = vmul.f32 %v776, %v784
    %787 = vrot.lane.b32.xlu0 %v368, 56
    %v788 = vpop.permute.xlu0 %787
    %789 = vrot.lane.b32.xlu0 %v373, 56
    %v790 = vpop.permute.xlu0 %789
    %v793 = vsel %vm469, %v785, 0
    %v796 = vsel %vm469, %v786, 0
    %v798 = vsel %vm504, %v790, 0
    %800 = vmatprep.subr.mxu0 0.0
    %801 = vmatpush1.msra.mxu0 %v788
    %802 = vmatprep.subr.mxu0 0.0
    %803 = vmatpush1.msra.mxu0 %v798
    %804 = vmatprep.subr.mxu0 0.0
    %805 = vmatpush1.msra.mxu0 0.0
    %806 = vmatprep.subr.mxu0 0.0
    %807 = vmatpush1.msra.mxu0 0.0
    %808 = vmatprep.subr.mxu0 0.0
    %809 = vmatpush1.msra.mxu0 0.0
    %810 = vmatprep.subr.mxu0 0.0
    %811 = vmatpush1.msra.mxu0 0.0
    %812 = vmatprep.subr.mxu0 0.0
    %813 = vmatpush1.msra.mxu0 0.0
    %814 = vmatprep.subr.mxu0 0.0
    %815 = vmatpush1.msra.mxu0 0.0
    %816 = vmatprep.subr.mxu0 0.0
    %817 = vmatpush1.msra.mxu0 0.0
    %818 = vmatprep.subr.mxu0 0.0
    %819 = vmatpush1.msra.mxu0 0.0
    %820 = vmatprep.subr.mxu0 0.0
    %821 = vmatpush1.msra.mxu0 0.0
    %822 = vmatprep.subr.mxu0 0.0
    %823 = vmatpush1.msra.mxu0 0.0
    %824 = vmatprep.subr.mxu0 0.0
    %825 = vmatpush1.msra.mxu0 0.0
    %826 = vmatprep.subr.mxu0 0.0
    %827 = vmatpush1.msra.mxu0 0.0
    %828 = vmatprep.subr.mxu0 0.0
    %829 = vmatpush1.msra.mxu0 0.0
    %830 = vmatprep.subr.mxu0 0.0
    %831 = vmatpush1.msra.mxu0 0.0
    %832 = vmatprep.subr.mxu0 0.0
    %833 = vmatpush1.msra.mxu0 0.0
    %834 = vmatprep.subr.mxu0 0.0
    %835 = vmatpush1.msra.mxu0 0.0
    %836 = vmatprep.subr.mxu0 0.0
    %837 = vmatpush1.msra.mxu0 0.0
    %838 = vmatprep.subr.mxu0 0.0
    %839 = vmatpush1.msra.mxu0 0.0
    %840 = vmatprep.subr.mxu0 0.0
    %841 = vmatpush1.msra.mxu0 0.0
    %842 = vmatprep.subr.mxu0 0.0
    %843 = vmatpush1.msra.mxu0 0.0
    %844 = vmatprep.subr.mxu0 0.0
    %845 = vmatpush1.msra.mxu0 0.0
    %846 = vmatprep.subr.mxu0 0.0
    %847 = vmatpush1.msra.mxu0 0.0
    %848 = vmatprep.subr.mxu0 0.0
    %849 = vmatpush1.msra.mxu0 0.0
    %850 = vmatprep.subr.mxu0 0.0
    %851 = vmatpush1.msra.mxu0 0.0
    %852 = vmatprep.subr.mxu0 0.0
    %853 = vmatpush1.msra.mxu0 0.0
    %854 = vmatprep.subr.mxu0 0.0
    %855 = vmatpush1.msra.mxu0 0.0
    %856 = vmatprep.subr.mxu0 0.0
    %857 = vmatpush1.msra.mxu0 0.0
    %858 = vmatprep.subr.mxu0 0.0
    %859 = vmatpush1.msra.mxu0 0.0
    %860 = vmatprep.subr.mxu0 0.0
    %861 = vmatpush1.msra.mxu0 0.0
    %862 = vmatprep.subr.mxu0 0.0
    %863 = vmatpush1.msra.mxu0 0.0
    %864 = vmatprep.mubr.f32.mxu0 0.0
    %865 = vmatmul.mubr.f32.gmra.mrb[0].mxu0 %v793
    %v866 = vpop.f32.mrb[0].mxu0
    %v867 = vadd.f32 0.0, %v866
    %v868 = vpop.f32.mrb[0].mxu0
    %869 = vmatprep.mubr.f32.mxu0 0.0
    %870 = vmatmul.mubr.f32.gmra.mrb[0].mxu0 %v796
    %v871 = vpop.f32.mrb[0].mxu0
    %v872 = vadd.f32 0.0, %v871
    %v873 = vpop.f32.mrb[0].mxu0
    %874 = vdwg.mxu0
    %v875 = vld [vmem:[%s5 + $0x8] sm:$0xff]
    %v877 = vsel %vm383, %v867, 0
    %v880 = vsel %vm383, %v872, 0
    %882 = vmatprep.subr.mxu0 0.0
    %883 = vmatpush1.msra.mxu0 %v875
    %884 = vmatprep.subr.mxu0 0.0
    %885 = vmatpush1.msra.mxu0 0.0
    %886 = vmatprep.subr.mxu0 0.0
    %887 = vmatpush1.msra.mxu0 0.0
    %888 = vmatprep.subr.mxu0 0.0
    %889 = vmatpush1.msra.mxu0 0.0
    %890 = vmatprep.subr.mxu0 0.0
    %891 = vmatpush1.msra.mxu0 0.0
    %892 = vmatprep.subr.mxu0 0.0
    %893 = vmatpush1.msra.mxu0 0.0
    %894 = vmatprep.subr.mxu0 0.0
    %895 = vmatpush1.msra.mxu0 0.0
    %896 = vmatprep.subr.mxu0 0.0
    %897 = vmatpush1.msra.mxu0 0.0
    %898 = vmatprep.subr.mxu0 0.0
    %899 = vmatpush1.msra.mxu0 0.0
    %900 = vmatprep.subr.mxu0 0.0
    %901 = vmatpush1.msra.mxu0 0.0
    %902 = vmatprep.subr.mxu0 0.0
    %903 = vmatpush1.msra.mxu0 0.0
    %904 = vmatprep.subr.mxu0 0.0
    %905 = vmatpush1.msra.mxu0 0.0
    %906 = vmatprep.subr.mxu0 0.0
    %907 = vmatpush1.msra.mxu0 0.0
    %908 = vmatprep.subr.mxu0 0.0
    %909 = vmatpush1.msra.mxu0 0.0
    %910 = vmatprep.subr.mxu0 0.0
    %911 = vmatpush1.msra.mxu0 0.0
    %912 = vmatprep.subr.mxu0 0.0
    %913 = vmatpush1.msra.mxu0 0.0
    %914 = vmatprep.subr.mxu0 0.0
    %915 = vmatpush1.msra.mxu0 0.0
    %916 = vmatprep.subr.mxu0 0.0
    %917 = vmatpush1.msra.mxu0 0.0
    %918 = vmatprep.subr.mxu0 0.0
    %919 = vmatpush1.msra.mxu0 0.0
    %920 = vmatprep.subr.mxu0 0.0
    %921 = vmatpush1.msra.mxu0 0.0
    %922 = vmatprep.subr.mxu0 0.0
    %923 = vmatpush1.msra.mxu0 0.0
    %924 = vmatprep.subr.mxu0 0.0
    %925 = vmatpush1.msra.mxu0 0.0
    %926 = vmatprep.subr.mxu0 0.0
    %927 = vmatpush1.msra.mxu0 0.0
    %928 = vmatprep.subr.mxu0 0.0
    %929 = vmatpush1.msra.mxu0 0.0
    %930 = vmatprep.subr.mxu0 0.0
    %931 = vmatpush1.msra.mxu0 0.0
    %932 = vmatprep.subr.mxu0 0.0
    %933 = vmatpush1.msra.mxu0 0.0
    %934 = vmatprep.subr.mxu0 0.0
    %935 = vmatpush1.msra.mxu0 0.0
    %936 = vmatprep.subr.mxu0 0.0
    %937 = vmatpush1.msra.mxu0 0.0
    %938 = vmatprep.subr.mxu0 0.0
    %939 = vmatpush1.msra.mxu0 0.0
    %940 = vmatprep.subr.mxu0 0.0
    %941 = vmatpush1.msra.mxu0 0.0
    %942 = vmatprep.subr.mxu0 0.0
    %943 = vmatpush1.msra.mxu0 0.0
    %944 = vmatprep.subr.mxu0 0.0
    %945 = vmatpush1.msra.mxu0 0.0
    %946 = vmatprep.mubr.f32.mxu0 0.0
    %947 = vmatmul.mubr.f32.gmra.mrb[0].mxu0 %v877
    %v948 = vpop.f32.mrb[0].mxu0
    %v949 = vadd.f32 0.0, %v948
    %v950 = vpop.f32.mrb[0].mxu0
    %951 = vmatprep.mubr.f32.mxu0 0.0
    %952 = vmatmul.mubr.f32.gmra.mrb[0].mxu0 %v880
    %v953 = vpop.f32.mrb[0].mxu0
    %v954 = vadd.f32 0.0, %v953
    %v955 = vpop.f32.mrb[0].mxu0
    %956 = vdwg.mxu0
    %v957 = vadd.f32 %v670, %v949
    %v958 = vadd.f32 %v671, %v954
    %959 = vrot.lane.b32.xlu0 %v368, 112
    %v960 = vpop.permute.xlu0 %959
    %961 = vrot.lane.b32.xlu0 %v373, 112
    %v962 = vpop.permute.xlu0 %961
    %963 = vrot.lane.b32.xlu0 %v368, 80
    %v964 = vpop.permute.xlu0 %963
    %965 = vrot.lane.b32.xlu0 %v373, 80
    %v966 = vpop.permute.xlu0 %965
    %v967 = vsel %vm383, %v960, 0
    %v969 = vsel %vm383, %v962, 0
    %v971 = vsel %vm383, %v964, 0
    %v973 = vsel %vm383, %v966, 0
    %975 = vmatprep.subr.mxu0 0.0
    %976 = vmatpush1.xpose.msra.mxu0 %v971
    %977 = vmatprep.subr.mxu0 0.0
    %978 = vmatpush1.xpose.msra.mxu0 %v973
    %979 = vmatprep.subr.mxu0 0.0
    %980 = vmatpush1.xpose.msra.mxu0 0.0
    %981 = vmatprep.subr.mxu0 0.0
    %982 = vmatpush1.xpose.msra.mxu0 0.0
    %983 = vmatprep.subr.mxu0 0.0
    %984 = vmatpush1.xpose.msra.mxu0 0.0
    %985 = vmatprep.subr.mxu0 0.0
    %986 = vmatpush1.xpose.msra.mxu0 0.0
    %987 = vmatprep.subr.mxu0 0.0
    %988 = vmatpush1.xpose.msra.mxu0 0.0
    %989 = vmatprep.subr.mxu0 0.0
    %990 = vmatpush1.xpose.msra.mxu0 0.0
    %991 = vmatprep.subr.mxu0 0.0
    %992 = vmatpush1.xpose.msra.mxu0 0.0
    %993 = vmatprep.subr.mxu0 0.0
    %994 = vmatpush1.xpose.msra.mxu0 0.0
    %995 = vmatprep.subr.mxu0 0.0
    %996 = vmatpush1.xpose.msra.mxu0 0.0
    %997 = vmatprep.subr.mxu0 0.0
    %998 = vmatpush1.xpose.msra.mxu0 0.0
    %999 = vmatprep.subr.mxu0 0.0
    %1000 = vmatpush1.xpose.msra.mxu0 0.0
    %1001 = vmatprep.subr.mxu0 0.0
    %1002 = vmatpush1.xpose.msra.mxu0 0.0
    %1003 = vmatprep.subr.mxu0 0.0
    %1004 = vmatpush1.xpose.msra.mxu0 0.0
    %1005 = vmatprep.subr.mxu0 0.0
    %1006 = vmatpush1.xpose.msra.mxu0 0.0
    %1007 = vmatprep.subr.mxu0 0.0
    %1008 = vmatpush1.xpose.msra.mxu0 0.0
    %1009 = vmatprep.subr.mxu0 0.0
    %1010 = vmatpush1.xpose.msra.mxu0 0.0
    %1011 = vmatprep.subr.mxu0 0.0
    %1012 = vmatpush1.xpose.msra.mxu0 0.0
    %1013 = vmatprep.subr.mxu0 0.0
    %1014 = vmatpush1.xpose.msra.mxu0 0.0
    %1015 = vmatprep.subr.mxu0 0.0
    %1016 = vmatpush1.xpose.msra.mxu0 0.0
    %1017 = vmatprep.subr.mxu0 0.0
    %1018 = vmatpush1.xpose.msra.mxu0 0.0
    %1019 = vmatprep.subr.mxu0 0.0
    %1020 = vmatpush1.xpose.msra.mxu0 0.0
    %1021 = vmatprep.subr.mxu0 0.0
    %1022 = vmatpush1.xpose.msra.mxu0 0.0
    %1023 = vmatprep.subr.mxu0 0.0
    %1024 = vmatpush1.xpose.msra.mxu0 0.0
    %1025 = vmatprep.subr.mxu0 0.0
    %1026 = vmatpush1.xpose.msra.mxu0 0.0
    %1027 = vmatprep.subr.mxu0 0.0
    %1028 = vmatpush1.xpose.msra.mxu0 0.0
    %1029 = vmatprep.subr.mxu0 0.0
    %1030 = vmatpush1.xpose.msra.mxu0 0.0
    %1031 = vmatprep.subr.mxu0 0.0
    %1032 = vmatpush1.xpose.msra.mxu0 0.0
    %1033 = vmatprep.subr.mxu0 0.0
    %1034 = vmatpush1.xpose.msra.mxu0 0.0
    %1035 = vmatprep.subr.mxu0 0.0
    %1036 = vmatpush1.xpose.msra.mxu0 0.0
    %1037 = vmatprep.subr.mxu0 0.0
    %1038 = vmatpush1.xpose.msra.mxu0 0.0
    %1039 = vmatprep.mubr.f32.mxu0 0.0
    %1040 = vmatmul.mubr.f32.gmra.mrb[0].mxu0 %v967
    %v1041 = vpop.f32.mrb[0].mxu0
    %v1042 = vadd.f32 0.0, %v1041
    %v1043 = vpop.f32.mrb[0].mxu0
    %1044 = vmatprep.mubr.f32.mxu0 0.0
    %1045 = vmatmul.mubr.f32.gmra.mrb[0].mxu0 %v969
    %v1046 = vpop.f32.mrb[0].mxu0
    %v1047 = vadd.f32 0.0, %v1046
    %v1048 = vpop.f32.mrb[0].mxu0
    %1049 = vdwg.mxu0
    %v1050 = vmul.f32 %v1042, 0.35355338
    %v1051 = vmul.f32 %v1047, 0.35355338
    %v1052 = vsel %vm469, %v1050, -inf
    %1053 = vmax.xlane.f32.xlu0 %v1052
    %v1054 = vpop.xlane.xlu0 %1053
    %v1055 = vsel %vm473, %v1051, -inf
    %1056 = vmax.xlane.f32.xlu0 %v1055
    %v1057 = vpop.xlane.xlu0 %1056
    %v1058 = vsub.f32 %v1050, %v1054
    %v1059 = vsub.f32 %v1051, %v1057
    %v1060 = vmul.f32 %v1058, 1.442695
    %v1061 = vpow.pop %v1060
    %v1062 = vmul.f32 %v1059, 1.442695
    %v1063 = vpow.pop %v1062
    %v1064 = vsel %vm469, %v1061, 0.0
    %1065 = vadd.xlane.f32.xlu0 %v1064
    %v1066 = vpop.xlane.xlu0 %1065
    %v1067 = vsel %vm473, %v1063, 0.0
    %1068 = vadd.xlane.f32.xlu0 %v1067
    %v1069 = vpop.xlane.xlu0 %1068
    %v1070 = vrcp.pop %v1066
    %v1071 = vrcp.pop %v1069
    %v1072 = vmul.f32 %v1061, %v1070
    %v1073 = vmul.f32 %v1063, %v1071
    %1074 = vrot.lane.b32.xlu0 %v368, 48
    %v1075 = vpop.permute.xlu0 %1074
    %1076 = vrot.lane.b32.xlu0 %v373, 48
    %v1077 = vpop.permute.xlu0 %1076
    %v1080 = vsel %vm469, %v1072, 0
    %v1083 = vsel %vm469, %v1073, 0
    %v1085 = vsel %vm504, %v1077, 0
    %1087 = vmatprep.subr.mxu0 0.0
    %1088 = vmatpush1.msra.mxu0 %v1075
    %1089 = vmatprep.subr.mxu0 0.0
    %1090 = vmatpush1.msra.mxu0 %v1085
    %1091 = vmatprep.subr.mxu0 0.0
    %1092 = vmatpush1.msra.mxu0 0.0
    %1093 = vmatprep.subr.mxu0 0.0
    %1094 = vmatpush1.msra.mxu0 0.0
    %1095 = vmatprep.subr.mxu0 0.0
    %1096 = vmatpush1.msra.mxu0 0.0
    %1097 = vmatprep.subr.mxu0 0.0
    %1098 = vmatpush1.msra.mxu0 0.0
    %1099 = vmatprep.subr.mxu0 0.0
    %1100 = vmatpush1.msra.mxu0 0.0
    %1101 = vmatprep.subr.mxu0 0.0
    %1102 = vmatpush1.msra.mxu0 0.0
    %1103 = vmatprep.subr.mxu0 0.0
    %1104 = vmatpush1.msra.mxu0 0.0
    %1105 = vmatprep.subr.mxu0 0.0
    %1106 = vmatpush1.msra.mxu0 0.0
    %1107 = vmatprep.subr.mxu0 0.0
    %1108 = vmatpush1.msra.mxu0 0.0
    %1109 = vmatprep.subr.mxu0 0.0
    %1110 = vmatpush1.msra.mxu0 0.0
    %1111 = vmatprep.subr.mxu0 0.0
    %1112 = vmatpush1.msra.mxu0 0.0
    %1113 = vmatprep.subr.mxu0 0.0
    %1114 = vmatpush1.msra.mxu0 0.0
    %1115 = vmatprep.subr.mxu0 0.0
    %1116 = vmatpush1.msra.mxu0 0.0
    %1117 = vmatprep.subr.mxu0 0.0
    %1118 = vmatpush1.msra.mxu0 0.0
    %1119 = vmatprep.subr.mxu0 0.0
    %1120 = vmatpush1.msra.mxu0 0.0
    %1121 = vmatprep.subr.mxu0 0.0
    %1122 = vmatpush1.msra.mxu0 0.0
    %1123 = vmatprep.subr.mxu0 0.0
    %1124 = vmatpush1.msra.mxu0 0.0
    %1125 = vmatprep.subr.mxu0 0.0
    %1126 = vmatpush1.msra.mxu0 0.0
    %1127 = vmatprep.subr.mxu0 0.0
    %1128 = vmatpush1.msra.mxu0 0.0
    %1129 = vmatprep.subr.mxu0 0.0
    %1130 = vmatpush1.msra.mxu0 0.0
    %1131 = vmatprep.subr.mxu0 0.0
    %1132 = vmatpush1.msra.mxu0 0.0
    %1133 = vmatprep.subr.mxu0 0.0
    %1134 = vmatpush1.msra.mxu0 0.0
    %1135 = vmatprep.subr.mxu0 0.0
    %1136 = vmatpush1.msra.mxu0 0.0
    %1137 = vmatprep.subr.mxu0 0.0
    %1138 = vmatpush1.msra.mxu0 0.0
    %1139 = vmatprep.subr.mxu0 0.0
    %1140 = vmatpush1.msra.mxu0 0.0
    %1141 = vmatprep.subr.mxu0 0.0
    %1142 = vmatpush1.msra.mxu0 0.0
    %1143 = vmatprep.subr.mxu0 0.0
    %1144 = vmatpush1.msra.mxu0 0.0
    %1145 = vmatprep.subr.mxu0 0.0
    %1146 = vmatpush1.msra.mxu0 0.0
    %1147 = vmatprep.subr.mxu0 0.0
    %1148 = vmatpush1.msra.mxu0 0.0
    %1149 = vmatprep.subr.mxu0 0.0
    %1150 = vmatpush1.msra.mxu0 0.0
    %1151 = vmatprep.mubr.f32.mxu0 0.0
    %1152 = vmatmul.mubr.f32.gmra.mrb[0].mxu0 %v1080
    %v1153 = vpop.f32.mrb[0].mxu0
    %v1154 = vadd.f32 0.0, %v1153
    %v1155 = vpop.f32.mrb[0].mxu0
    %1156 = vmatprep.mubr.f32.mxu0 0.0
    %1157 = vmatmul.mubr.f32.gmra.mrb[0].mxu0 %v1083
    %v1158 = vpop.f32.mrb[0].mxu0
    %v1159 = vadd.f32 0.0, %v1158
    %v1160 = vpop.f32.mrb[0].mxu0
    %1161 = vdwg.mxu0
    %v1162 = vld [vmem:[%s5 + $0x10] sm:$0xff]
    %v1164 = vsel %vm383, %v1154, 0
    %v1167 = vsel %vm383, %v1159, 0
    %1169 = vmatprep.subr.mxu0 0.0
    %1170 = vmatpush1.msra.mxu0 %v1162
    %1171 = vmatprep.subr.mxu0 0.0
    %1172 = vmatpush1.msra.mxu0 0.0
    %1173 = vmatprep.subr.mxu0 0.0
    %1174 = vmatpush1.msra.mxu0 0.0
    %1175 = vmatprep.subr.mxu0 0.0
    %1176 = vmatpush1.msra.mxu0 0.0
    %1177 = vmatprep.subr.mxu0 0.0
    %1178 = vmatpush1.msra.mxu0 0.0
    %1179 = vmatprep.subr.mxu0 0.0
    %1180 = vmatpush1.msra.mxu0 0.0
    %1181 = vmatprep.subr.mxu0 0.0
    %1182 = vmatpush1.msra.mxu0 0.0
    %1183 = vmatprep.subr.mxu0 0.0
    %1184 = vmatpush1.msra.mxu0 0.0
    %1185 = vmatprep.subr.mxu0 0.0
    %1186 = vmatpush1.msra.mxu0 0.0
    %1187 = vmatprep.subr.mxu0 0.0
    %1188 = vmatpush1.msra.mxu0 0.0
    %1189 = vmatprep.subr.mxu0 0.0
    %1190 = vmatpush1.msra.mxu0 0.0
    %1191 = vmatprep.subr.mxu0 0.0
    %1192 = vmatpush1.msra.mxu0 0.0
    %1193 = vmatprep.subr.mxu0 0.0
    %1194 = vmatpush1.msra.mxu0 0.0
    %1195 = vmatprep.subr.mxu0 0.0
    %1196 = vmatpush1.msra.mxu0 0.0
    %1197 = vmatprep.subr.mxu0 0.0
    %1198 = vmatpush1.msra.mxu0 0.0
    %1199 = vmatprep.subr.mxu0 0.0
    %1200 = vmatpush1.msra.mxu0 0.0
    %1201 = vmatprep.subr.mxu0 0.0
    %1202 = vmatpush1.msra.mxu0 0.0
    %1203 = vmatprep.subr.mxu0 0.0
    %1204 = vmatpush1.msra.mxu0 0.0
    %1205 = vmatprep.subr.mxu0 0.0
    %1206 = vmatpush1.msra.mxu0 0.0
    %1207 = vmatprep.subr.mxu0 0.0
    %1208 = vmatpush1.msra.mxu0 0.0
    %1209 = vmatprep.subr.mxu0 0.0
    %1210 = vmatpush1.msra.mxu0 0.0
    %1211 = vmatprep.subr.mxu0 0.0
    %1212 = vmatpush1.msra.mxu0 0.0
    %1213 = vmatprep.subr.mxu0 0.0
    %1214 = vmatpush1.msra.mxu0 0.0
    %1215 = vmatprep.subr.mxu0 0.0
    %1216 = vmatpush1.msra.mxu0 0.0
    %1217 = vmatprep.subr.mxu0 0.0
    %1218 = vmatpush1.msra.mxu0 0.0
    %1219 = vmatprep.subr.mxu0 0.0
    %1220 = vmatpush1.msra.mxu0 0.0
    %1221 = vmatprep.subr.mxu0 0.0
    %1222 = vmatpush1.msra.mxu0 0.0
    %1223 = vmatprep.subr.mxu0 0.0
    %1224 = vmatpush1.msra.mxu0 0.0
    %1225 = vmatprep.subr.mxu0 0.0
    %1226 = vmatpush1.msra.mxu0 0.0
    %1227 = vmatprep.subr.mxu0 0.0
    %1228 = vmatpush1.msra.mxu0 0.0
    %1229 = vmatprep.subr.mxu0 0.0
    %1230 = vmatpush1.msra.mxu0 0.0
    %1231 = vmatprep.subr.mxu0 0.0
    %1232 = vmatpush1.msra.mxu0 0.0
    %1233 = vmatprep.mubr.f32.mxu0 0.0
    %1234 = vmatmul.mubr.f32.gmra.mrb[0].mxu0 %v1164
    %v1235 = vpop.f32.mrb[0].mxu0
    %v1236 = vadd.f32 0.0, %v1235
    %v1237 = vpop.f32.mrb[0].mxu0
    %1238 = vmatprep.mubr.f32.mxu0 0.0
    %1239 = vmatmul.mubr.f32.gmra.mrb[0].mxu0 %v1167
    %v1240 = vpop.f32.mrb[0].mxu0
    %v1241 = vadd.f32 0.0, %v1240
    %v1242 = vpop.f32.mrb[0].mxu0
    %1243 = vdwg.mxu0
    %v1244 = vadd.f32 %v957, %v1236
    %v1245 = vadd.f32 %v958, %v1241
    %1246 = vrot.lane.b32.xlu0 %v368, 104
    %v1247 = vpop.permute.xlu0 %1246
    %1248 = vrot.lane.b32.xlu0 %v373, 104
    %v1249 = vpop.permute.xlu0 %1248
    %1250 = vrot.lane.b32.xlu0 %v368, 72
    %v1251 = vpop.permute.xlu0 %1250
    %1252 = vrot.lane.b32.xlu0 %v373, 72
    %v1253 = vpop.permute.xlu0 %1252
    %v1254 = vsel %vm383, %v1247, 0
    %v1256 = vsel %vm383, %v1249, 0
    %v1258 = vsel %vm383, %v1251, 0
    %v1260 = vsel %vm383, %v1253, 0
    %1262 = vmatprep.subr.mxu0 0.0
    %1263 = vmatpush1.xpose.msra.mxu0 %v1258
    %1264 = vmatprep.subr.mxu0 0.0
    %1265 = vmatpush1.xpose.msra.mxu0 %v1260
    %1266 = vmatprep.subr.mxu0 0.0
    %1267 = vmatpush1.xpose.msra.mxu0 0.0
    %1268 = vmatprep.subr.mxu0 0.0
    %1269 = vmatpush1.xpose.msra.mxu0 0.0
    %1270 = vmatprep.subr.mxu0 0.0
    %1271 = vmatpush1.xpose.msra.mxu0 0.0
    %1272 = vmatprep.subr.mxu0 0.0
    %1273 = vmatpush1.xpose.msra.mxu0 0.0
    %1274 = vmatprep.subr.mxu0 0.0
    %1275 = vmatpush1.xpose.msra.mxu0 0.0
    %1276 = vmatprep.subr.mxu0 0.0
    %1277 = vmatpush1.xpose.msra.mxu0 0.0
    %1278 = vmatprep.subr.mxu0 0.0
    %1279 = vmatpush1.xpose.msra.mxu0 0.0
    %1280 = vmatprep.subr.mxu0 0.0
    %1281 = vmatpush1.xpose.msra.mxu0 0.0
    %1282 = vmatprep.subr.mxu0 0.0
    %1283 = vmatpush1.xpose.msra.mxu0 0.0
    %1284 = vmatprep.subr.mxu0 0.0
    %1285 = vmatpush1.xpose.msra.mxu0 0.0
    %1286 = vmatprep.subr.mxu0 0.0
    %1287 = vmatpush1.xpose.msra.mxu0 0.0
    %1288 = vmatprep.subr.mxu0 0.0
    %1289 = vmatpush1.xpose.msra.mxu0 0.0
    %1290 = vmatprep.subr.mxu0 0.0
    %1291 = vmatpush1.xpose.msra.mxu0 0.0
    %1292 = vmatprep.subr.mxu0 0.0
    %1293 = vmatpush1.xpose.msra.mxu0 0.0
    %1294 = vmatprep.subr.mxu0 0.0
    %1295 = vmatpush1.xpose.msra.mxu0 0.0
    %1296 = vmatprep.subr.mxu0 0.0
    %1297 = vmatpush1.xpose.msra.mxu0 0.0
    %1298 = vmatprep.subr.mxu0 0.0
    %1299 = vmatpush1.xpose.msra.mxu0 0.0
    %1300 = vmatprep.subr.mxu0 0.0
    %1301 = vmatpush1.xpose.msra.mxu0 0.0
    %1302 = vmatprep.subr.mxu0 0.0
    %1303 = vmatpush1.xpose.msra.mxu0 0.0
    %1304 = vmatprep.subr.mxu0 0.0
    %1305 = vmatpush1.xpose.msra.mxu0 0.0
    %1306 = vmatprep.subr.mxu0 0.0
    %1307 = vmatpush1.xpose.msra.mxu0 0.0
    %1308 = vmatprep.subr.mxu0 0.0
    %1309 = vmatpush1.xpose.msra.mxu0 0.0
    %1310 = vmatprep.subr.mxu0 0.0
    %1311 = vmatpush1.xpose.msra.mxu0 0.0
    %1312 = vmatprep.subr.mxu0 0.0
    %1313 = vmatpush1.xpose.msra.mxu0 0.0
    %1314 = vmatprep.subr.mxu0 0.0
    %1315 = vmatpush1.xpose.msra.mxu0 0.0
    %1316 = vmatprep.subr.mxu0 0.0
    %1317 = vmatpush1.xpose.msra.mxu0 0.0
    %1318 = vmatprep.subr.mxu0 0.0
    %1319 = vmatpush1.xpose.msra.mxu0 0.0
    %1320 = vmatprep.subr.mxu0 0.0
    %1321 = vmatpush1.xpose.msra.mxu0 0.0
    %1322 = vmatprep.subr.mxu0 0.0
    %1323 = vmatpush1.xpose.msra.mxu0 0.0
    %1324 = vmatprep.subr.mxu0 0.0
    %1325 = vmatpush1.xpose.msra.mxu0 0.0
    %1326 = vmatprep.mubr.f32.mxu0 0.0
    %1327 = vmatmul.mubr.f32.gmra.mrb[0].mxu0 %v1254
    %v1328 = vpop.f32.mrb[0].mxu0
    %v1329 = vadd.f32 0.0, %v1328
    %v1330 = vpop.f32.mrb[0].mxu0
    %1331 = vmatprep.mubr.f32.mxu0 0.0
    %1332 = vmatmul.mubr.f32.gmra.mrb[0].mxu0 %v1256
    %v1333 = vpop.f32.mrb[0].mxu0
    %v1334 = vadd.f32 0.0, %v1333
    %v1335 = vpop.f32.mrb[0].mxu0
    %1336 = vdwg.mxu0
    %v1337 = vmul.f32 %v1329, 0.35355338
    %v1338 = vmul.f32 %v1334, 0.35355338
    %v1339 = vsel %vm469, %v1337, -inf
    %1340 = vmax.xlane.f32.xlu0 %v1339
    %v1341 = vpop.xlane.xlu0 %1340
    %v1342 = vsel %vm473, %v1338, -inf
    %1343 = vmax.xlane.f32.xlu0 %v1342
    %v1344 = vpop.xlane.xlu0 %1343
    %v1345 = vsub.f32 %v1337, %v1341
    %v1346 = vsub.f32 %v1338, %v1344
    %v1347 = vmul.f32 %v1345, 1.442695
    %v1348 = vpow.pop %v1347
    %v1349 = vmul.f32 %v1346, 1.442695
    %v1350 = vpow.pop %v1349
    %v1351 = vsel %vm469, %v1348, 0.0
    %1352 = vadd.xlane.f32.xlu0 %v1351
    %v1353 = vpop.xlane.xlu0 %1352
    %v1354 = vsel %vm473, %v1350, 0.0
    %1355 = vadd.xlane.f32.xlu0 %v1354
    %v1356 = vpop.xlane.xlu0 %1355
    %v1357 = vrcp.pop %v1353
    %v1358 = vrcp.pop %v1356
    %v1359 = vmul.f32 %v1348, %v1357
    %v1360 = vmul.f32 %v1350, %v1358
    %1361 = vrot.lane.b32.xlu0 %v368, 40
    %v1362 = vpop.permute.xlu0 %1361
    %1363 = vrot.lane.b32.xlu0 %v373, 40
    %v1364 = vpop.permute.xlu0 %1363
    %v1367 = vsel %vm469, %v1359, 0
    %v1370 = vsel %vm469, %v1360, 0
    %v1372 = vsel %vm504, %v1364, 0
    %1374 = vmatprep.subr.mxu0 0.0
    %1375 = vmatpush1.msra.mxu0 %v1362
    %1376 = vmatprep.subr.mxu0 0.0
    %1377 = vmatpush1.msra.mxu0 %v1372
    %1378 = vmatprep.subr.mxu0 0.0
    %1379 = vmatpush1.msra.mxu0 0.0
    %1380 = vmatprep.subr.mxu0 0.0
    %1381 = vmatpush1.msra.mxu0 0.0
    %1382 = vmatprep.subr.mxu0 0.0
    %1383 = vmatpush1.msra.mxu0 0.0
    %1384 = vmatprep.subr.mxu0 0.0
    %1385 = vmatpush1.msra.mxu0 0.0
    %1386 = vmatprep.subr.mxu0 0.0
    %1387 = vmatpush1.msra.mxu0 0.0
    %1388 = vmatprep.subr.mxu0 0.0
    %1389 = vmatpush1.msra.mxu0 0.0
    %1390 = vmatprep.subr.mxu0 0.0
    %1391 = vmatpush1.msra.mxu0 0.0
    %1392 = vmatprep.subr.mxu0 0.0
    %1393 = vmatpush1.msra.mxu0 0.0
    %1394 = vmatprep.subr.mxu0 0.0
    %1395 = vmatpush1.msra.mxu0 0.0
    %1396 = vmatprep.subr.mxu0 0.0
    %1397 = vmatpush1.msra.mxu0 0.0
    %1398 = vmatprep.subr.mxu0 0.0
    %1399 = vmatpush1.msra.mxu0 0.0
    %1400 = vmatprep.subr.mxu0 0.0
    %1401 = vmatpush1.msra.mxu0 0.0
    %1402 = vmatprep.subr.mxu0 0.0
    %1403 = vmatpush1.msra.mxu0 0.0
    %1404 = vmatprep.subr.mxu0 0.0
    %1405 = vmatpush1.msra.mxu0 0.0
    %1406 = vmatprep.subr.mxu0 0.0
    %1407 = vmatpush1.msra.mxu0 0.0
    %1408 = vmatprep.subr.mxu0 0.0
    %1409 = vmatpush1.msra.mxu0 0.0
    %1410 = vmatprep.subr.mxu0 0.0
    %1411 = vmatpush1.msra.mxu0 0.0
    %1412 = vmatprep.subr.mxu0 0.0
    %1413 = vmatpush1.msra.mxu0 0.0
    %1414 = vmatprep.subr.mxu0 0.0
    %1415 = vmatpush1.msra.mxu0 0.0
    %1416 = vmatprep.subr.mxu0 0.0
    %1417 = vmatpush1.msra.mxu0 0.0
    %1418 = vmatprep.subr.mxu0 0.0
    %1419 = vmatpush1.msra.mxu0 0.0
    %1420 = vmatprep.subr.mxu0 0.0
    %1421 = vmatpush1.msra.mxu0 0.0
    %1422 = vmatprep.subr.mxu0 0.0
    %1423 = vmatpush1.msra.mxu0 0.0
    %1424 = vmatprep.subr.mxu0 0.0
    %1425 = vmatpush1.msra.mxu0 0.0
    %1426 = vmatprep.subr.mxu0 0.0
    %1427 = vmatpush1.msra.mxu0 0.0
    %1428 = vmatprep.subr.mxu0 0.0
    %1429 = vmatpush1.msra.mxu0 0.0
    %1430 = vmatprep.subr.mxu0 0.0
    %1431 = vmatpush1.msra.mxu0 0.0
    %1432 = vmatprep.subr.mxu0 0.0
    %1433 = vmatpush1.msra.mxu0 0.0
    %1434 = vmatprep.subr.mxu0 0.0
    %1435 = vmatpush1.msra.mxu0 0.0
    %1436 = vmatprep.subr.mxu0 0.0
    %1437 = vmatpush1.msra.mxu0 0.0
    %1438 = vmatprep.mubr.f32.mxu0 0.0
    %1439 = vmatmul.mubr.f32.gmra.mrb[0].mxu0 %v1367
    %v1440 = vpop.f32.mrb[0].mxu0
    %v1441 = vadd.f32 0.0, %v1440
    %v1442 = vpop.f32.mrb[0].mxu0
    %1443 = vmatprep.mubr.f32.mxu0 0.0
    %1444 = vmatmul.mubr.f32.gmra.mrb[0].mxu0 %v1370
    %v1445 = vpop.f32.mrb[0].mxu0
    %v1446 = vadd.f32 0.0, %v1445
    %v1447 = vpop.f32.mrb[0].mxu0
    %1448 = vdwg.mxu0
    %v1449 = vld [vmem:[%s5 + $0x18] sm:$0xff]
    %v1451 = vsel %vm383, %v1441, 0
    %v1454 = vsel %vm383, %v1446, 0
    %1456 = vmatprep.subr.mxu0 0.0
    %1457 = vmatpush1.msra.mxu0 %v1449
    %1458 = vmatprep.subr.mxu0 0.0
    %1459 = vmatpush1.msra.mxu0 0.0
    %1460 = vmatprep.subr.mxu0 0.0
    %1461 = vmatpush1.msra.mxu0 0.0
    %1462 = vmatprep.subr.mxu0 0.0
    %1463 = vmatpush1.msra.mxu0 0.0
    %1464 = vmatprep.subr.mxu0 0.0
    %1465 = vmatpush1.msra.mxu0 0.0
    %1466 = vmatprep.subr.mxu0 0.0
    %1467 = vmatpush1.msra.mxu0 0.0
    %1468 = vmatprep.subr.mxu0 0.0
    %1469 = vmatpush1.msra.mxu0 0.0
    %1470 = vmatprep.subr.mxu0 0.0
    %1471 = vmatpush1.msra.mxu0 0.0
    %1472 = vmatprep.subr.mxu0 0.0
    %1473 = vmatpush1.msra.mxu0 0.0
    %1474 = vmatprep.subr.mxu0 0.0
    %1475 = vmatpush1.msra.mxu0 0.0
    %1476 = vmatprep.subr.mxu0 0.0
    %1477 = vmatpush1.msra.mxu0 0.0
    %1478 = vmatprep.subr.mxu0 0.0
    %1479 = vmatpush1.msra.mxu0 0.0
    %1480 = vmatprep.subr.mxu0 0.0
    %1481 = vmatpush1.msra.mxu0 0.0
    %1482 = vmatprep.subr.mxu0 0.0
    %1483 = vmatpush1.msra.mxu0 0.0
    %1484 = vmatprep.subr.mxu0 0.0
    %1485 = vmatpush1.msra.mxu0 0.0
    %1486 = vmatprep.subr.mxu0 0.0
    %1487 = vmatpush1.msra.mxu0 0.0
    %1488 = vmatprep.subr.mxu0 0.0
    %1489 = vmatpush1.msra.mxu0 0.0
    %1490 = vmatprep.subr.mxu0 0.0
    %1491 = vmatpush1.msra.mxu0 0.0
    %1492 = vmatprep.subr.mxu0 0.0
    %1493 = vmatpush1.msra.mxu0 0.0
    %1494 = vmatprep.subr.mxu0 0.0
    %1495 = vmatpush1.msra.mxu0 0.0
    %1496 = vmatprep.subr.mxu0 0.0
    %1497 = vmatpush1.msra.mxu0 0.0
    %1498 = vmatprep.subr.mxu0 0.0
    %1499 = vmatpush1.msra.mxu0 0.0
    %1500 = vmatprep.subr.mxu0 0.0
    %1501 = vmatpush1.msra.mxu0 0.0
    %1502 = vmatprep.subr.mxu0 0.0
    %1503 = vmatpush1.msra.mxu0 0.0
    %1504 = vmatprep.subr.mxu0 0.0
    %1505 = vmatpush1.msra.mxu0 0.0
    %1506 = vmatprep.subr.mxu0 0.0
    %1507 = vmatpush1.msra.mxu0 0.0
    %1508 = vmatprep.subr.mxu0 0.0
    %1509 = vmatpush1.msra.mxu0 0.0
    %1510 = vmatprep.subr.mxu0 0.0
    %1511 = vmatpush1.msra.mxu0 0.0
    %1512 = vmatprep.subr.mxu0 0.0
    %1513 = vmatpush1.msra.mxu0 0.0
    %1514 = vmatprep.subr.mxu0 0.0
    %1515 = vmatpush1.msra.mxu0 0.0
    %1516 = vmatprep.subr.mxu0 0.0
    %1517 = vmatpush1.msra.mxu0 0.0
    %1518 = vmatprep.subr.mxu0 0.0
    %1519 = vmatpush1.msra.mxu0 0.0
    %1520 = vmatprep.mubr.f32.mxu0 0.0
    %1521 = vmatmul.mubr.f32.gmra.mrb[0].mxu0 %v1451
    %v1522 = vpop.f32.mrb[0].mxu0
    %v1523 = vadd.f32 0.0, %v1522
    %v1524 = vpop.f32.mrb[0].mxu0
    %1525 = vmatprep.mubr.f32.mxu0 0.0
    %1526 = vmatmul.mubr.f32.gmra.mrb[0].mxu0 %v1454
    %v1527 = vpop.f32.mrb[0].mxu0
    %v1528 = vadd.f32 0.0, %v1527
    %v1529 = vpop.f32.mrb[0].mxu0
    %1530 = vdwg.mxu0
    %v1531 = vadd.f32 %v1244, %v1523
    %v1532 = vadd.f32 %v1245, %v1528
    %v1533 = vadd.f32 %v275, %v1531
    %v1534 = vadd.f32 %v280, %v1532
    %v1535 = vld [vmem:[%s7] sm:$0x1]
    %v1536 = vld [vmem:[%s8] sm:$0x1]
    %v1537 = vsel %vm294, %v1533, 0.0
    %1538 = vadd.xlane.f32.xlu0 %v1537
    %v1539 = vpop.xlane.xlu0 %1538
    %vm1540 = vcmask 253952
    %v1541 = vsel %vm1540, %v1534, 0.0
    %1542 = vadd.xlane.f32.xlu0 %v1541
    %v1543 = vpop.xlane.xlu0 %1542
    %v1544 = vrcp.pop 32.0
    %v1545 = vmul.f32 %v1539, %v1544
    %v1546 = vmul.f32 %v1543, %v1544
    %v1547 = vsub.f32 %v1533, %v1545
    %v1548 = vsub.f32 %v1534, %v1546
    %v1549 = vmul.f32 %v1547, %v1547
    %v1550 = vmul.f32 %v1548, %v1548
    %v1551 = vsel %vm294, %v1549, 0.0
    %1552 = vadd.xlane.f32.xlu0 %v1551
    %v1553 = vpop.xlane.xlu0 %1552
    %v1554 = vsel %vm1540, %v1550, 0.0
    %1555 = vadd.xlane.f32.xlu0 %v1554
    %v1556 = vpop.xlane.xlu0 %1555
    %v1557 = vmul.f32 %v1553, %v1544
    %v1558 = vmul.f32 %v1556, %v1544
    %v1559 = vadd.f32 %v1557, 1e-05
    %v1560 = vadd.f32 %v1558, 1e-05
    %v1561 = vrsqrt.pop %v1559
    %v1562 = vrsqrt.pop %v1560
    %v1563 = vmul.f32 %v1547, %v1561
    %v1564 = vmul.f32 %v1548, %v1562
    %v1566 = vlaneseq
    %v1567 = vshrl.u32 %v1566, 7
    %v1568 = vsub.s32 0, %v1567
    %v1569 = vrot.slane %v1535, %v1568
    %v1571 = vmul.f32 %v1563, %v1569
    %v1572 = vmul.f32 %v1564, %v1569
    %v1574 = vlaneseq
    %v1575 = vshrl.u32 %v1574, 7
    %v1576 = vsub.s32 0, %v1575
    %v1577 = vrot.slane %v1536, %v1576
    %v1579 = vadd.f32 %v1571, %v1577
    %v1580 = vadd.f32 %v1572, %v1577
    %v1581 = vld [vmem:[%s9] sm:$0xff]
    %v1582 = vld [vmem:[%s9 + $0x8] sm:$0xff]
    %v1583 = vld [vmem:[%s9 + $0x10] sm:$0xff]
    %v1584 = vld [vmem:[%s9 + $0x18] sm:$0xff]
    %v1585 = vld [vmem:[%s10] sm:$0x1]
    %v1587 = vlaneseq
    %v1588 = vshrl.u32 %v1587, 7
    %v1589 = vsub.s32 0, %v1588
    %v1590 = vrot.slane %v1585, %v1589
    %v1593 = vsel %vm294, %v1579, 0
    %v1596 = vsel %vm294, %v1580, 0
    %1598 = vmatprep.subr.mxu0 0.0
    %1599 = vmatpush1.msra.mxu0 %v1581
    %1600 = vmatprep.subr.mxu0 0.0
    %1601 = vmatpush1.msra.mxu0 %v1582
    %1602 = vmatprep.subr.mxu0 0.0
    %1603 = vmatpush1.msra.mxu0 %v1583
    %1604 = vmatprep.subr.mxu0 0.0
    %1605 = vmatpush1.msra.mxu0 %v1584
    %1606 = vmatprep.subr.mxu0 0.0
    %1607 = vmatpush1.msra.mxu0 0.0
    %1608 = vmatprep.subr.mxu0 0.0
    %1609 = vmatpush1.msra.mxu0 0.0
    %1610 = vmatprep.subr.mxu0 0.0
    %1611 = vmatpush1.msra.mxu0 0.0
    %1612 = vmatprep.subr.mxu0 0.0
    %1613 = vmatpush1.msra.mxu0 0.0
    %1614 = vmatprep.subr.mxu0 0.0
    %1615 = vmatpush1.msra.mxu0 0.0
    %1616 = vmatprep.subr.mxu0 0.0
    %1617 = vmatpush1.msra.mxu0 0.0
    %1618 = vmatprep.subr.mxu0 0.0
    %1619 = vmatpush1.msra.mxu0 0.0
    %1620 = vmatprep.subr.mxu0 0.0
    %1621 = vmatpush1.msra.mxu0 0.0
    %1622 = vmatprep.subr.mxu0 0.0
    %1623 = vmatpush1.msra.mxu0 0.0
    %1624 = vmatprep.subr.mxu0 0.0
    %1625 = vmatpush1.msra.mxu0 0.0
    %1626 = vmatprep.subr.mxu0 0.0
    %1627 = vmatpush1.msra.mxu0 0.0
    %1628 = vmatprep.subr.mxu0 0.0
    %1629 = vmatpush1.msra.mxu0 0.0
    %1630 = vmatprep.subr.mxu0 0.0
    %1631 = vmatpush1.msra.mxu0 0.0
    %1632 = vmatprep.subr.mxu0 0.0
    %1633 = vmatpush1.msra.mxu0 0.0
    %1634 = vmatprep.subr.mxu0 0.0
    %1635 = vmatpush1.msra.mxu0 0.0
    %1636 = vmatprep.subr.mxu0 0.0
    %1637 = vmatpush1.msra.mxu0 0.0
    %1638 = vmatprep.subr.mxu0 0.0
    %1639 = vmatpush1.msra.mxu0 0.0
    %1640 = vmatprep.subr.mxu0 0.0
    %1641 = vmatpush1.msra.mxu0 0.0
    %1642 = vmatprep.subr.mxu0 0.0
    %1643 = vmatpush1.msra.mxu0 0.0
    %1644 = vmatprep.subr.mxu0 0.0
    %1645 = vmatpush1.msra.mxu0 0.0
    %1646 = vmatprep.subr.mxu0 0.0
    %1647 = vmatpush1.msra.mxu0 0.0
    %1648 = vmatprep.subr.mxu0 0.0
    %1649 = vmatpush1.msra.mxu0 0.0
    %1650 = vmatprep.subr.mxu0 0.0
    %1651 = vmatpush1.msra.mxu0 0.0
    %1652 = vmatprep.subr.mxu0 0.0
    %1653 = vmatpush1.msra.mxu0 0.0
    %1654 = vmatprep.subr.mxu0 0.0
    %1655 = vmatpush1.msra.mxu0 0.0
    %1656 = vmatprep.subr.mxu0 0.0
    %1657 = vmatpush1.msra.mxu0 0.0
    %1658 = vmatprep.subr.mxu0 0.0
    %1659 = vmatpush1.msra.mxu0 0.0
    %1660 = vmatprep.subr.mxu0 0.0
    %1661 = vmatpush1.msra.mxu0 0.0
    %1662 = vmatprep.mubr.f32.mxu0 0.0
    %1663 = vmatmul.mubr.f32.gmra.mrb[0].mxu0 %v1593
    %v1664 = vpop.f32.mrb[0].mxu0
    %v1665 = vadd.f32 %v1590, %v1664
    %v1666 = vpop.f32.mrb[0].mxu0
    %1667 = vmatprep.mubr.f32.mxu0 0.0
    %1668 = vmatmul.mubr.f32.gmra.mrb[0].mxu0 %v1596
    %v1669 = vpop.f32.mrb[0].mxu0
    %v1670 = vadd.f32 %v1590, %v1669
    %v1671 = vpop.f32.mrb[0].mxu0
    %1672 = vdwg.mxu0
    %v1673 = vmul.f32 %v1665, 0.5
    %v1674 = vmul.f32 %v1670, 0.5
    %v1675 = vmul.f32 %v1665, 0.70710677
    %v1676 = vmul.f32 %v1670, 0.70710677
    %v1677 = vand.u32 2147483647, %v1675
    %v1678 = vand.u32 2147483647, %v1676
    %v1679 = vmul.f32 %v1677, 0.3275911
    %v1680 = vmul.f32 %v1678, 0.3275911
    %v1681 = vadd.f32 %v1679, 1.0
    %v1682 = vadd.f32 %v1680, 1.0
    %v1683 = vrcp.pop %v1681
    %v1684 = vmul.f32 1.0, %v1683
    %v1685 = vrcp.pop %v1682
    %v1686 = vmul.f32 1.0, %v1685
    %v1687 = vmul.f32 %v1684, 1.0614054
    %v1688 = vmul.f32 %v1686, 1.0614054
    %v1689 = vadd.f32 %v1687, -1.4531521
    %v1690 = vadd.f32 %v1688, -1.4531521
    %v1691 = vmul.f32 %v1689, %v1684
    %v1692 = vmul.f32 %v1690, %v1686
    %v1693 = vadd.f32 %v1691, 1.4214138
    %v1694 = vadd.f32 %v1692, 1.4214138
    %v1695 = vmul.f32 %v1693, %v1684
    %v1696 = vmul.f32 %v1694, %v1686
    %v1697 = vadd.f32 %v1695, -0.28449672
    %v1698 = vadd.f32 %v1696, -0.28449672
    %v1699 = vmul.f32 %v1697, %v1684
    %v1700 = vmul.f32 %v1698, %v1686
    %v1701 = vadd.f32 %v1699, 0.2548296
    %v1702 = vadd.f32 %v1700, 0.2548296
    %v1703 = vmul.f32 %v1701, %v1684
    %v1704 = vmul.f32 %v1702, %v1686
    %v1705 = vsub.f32 0.0, %v1677
    %v1706 = vsub.f32 0.0, %v1678
    %v1707 = vmul.f32 %v1705, %v1677
    %v1708 = vmul.f32 %v1706, %v1678
    %v1709 = vmul.f32 %v1707, 1.442695
    %v1710 = vpow.pop %v1709
    %v1711 = vmul.f32 %v1708, 1.442695
    %v1712 = vpow.pop %v1711
    %v1713 = vmul.f32 %v1703, %v1710
    %v1714 = vmul.f32 %v1704, %v1712
    %v1715 = vsub.f32 1.0, %v1713
    %v1716 = vsub.f32 1.0, %v1714
    %vm1717 = vcmp.ge.f32.partialorder %v1675, 0.0
    %vm1718 = vcmp.ge.f32.partialorder %v1676, 0.0
    %v1719 = vsub.f32 0.0, %v1715
    %v1720 = vsub.f32 0.0, %v1716
    %v1721 = vsel %vm1717, %v1715, %v1719
    %v1722 = vsel %vm1718, %v1716, %v1720
    %v1723 = vadd.f32 %v1721, 1.0
    %v1724 = vadd.f32 %v1722, 1.0
    %v1725 = vmul.f32 %v1673, %v1723
    %v1726 = vmul.f32 %v1674, %v1724
    %v1727 = vld [vmem:[%s11] sm:$0xff]
    %v1728 = vld [vmem:[%s11 + $0x8] sm:$0xff]
    %v1729 = vld [vmem:[%s11 + $0x10] sm:$0xff]
    %v1730 = vld [vmem:[%s11 + $0x18] sm:$0xff]
    %v1731 = vld [vmem:[%s11 + $0x20] sm:$0xff]
    %v1732 = vld [vmem:[%s11 + $0x28] sm:$0xff]
    %v1733 = vld [vmem:[%s11 + $0x30] sm:$0xff]
    %v1734 = vld [vmem:[%s11 + $0x38] sm:$0xff]
    %v1735 = vld [vmem:[%s11 + $0x40] sm:$0xff]
    %v1736 = vld [vmem:[%s11 + $0x48] sm:$0xff]
    %v1737 = vld [vmem:[%s11 + $0x50] sm:$0xff]
    %v1738 = vld [vmem:[%s11 + $0x58] sm:$0xff]
    %v1739 = vld [vmem:[%s11 + $0x60] sm:$0xff]
    %v1740 = vld [vmem:[%s11 + $0x68] sm:$0xff]
    %v1741 = vld [vmem:[%s11 + $0x70] sm:$0xff]
    %v1742 = vld [vmem:[%s11 + $0x78] sm:$0xff]
    %v1743 = vld [vmem:[%s12] sm:$0x1]
    %v1745 = vlaneseq
    %v1746 = vshrl.u32 %v1745, 7
    %v1747 = vsub.s32 0, %v1746
    %v1748 = vrot.slane %v1743, %v1747
    %1750 = vmatprep.subr.mxu0 0.0
    %1751 = vmatpush1.msra.mxu0 %v1727
    %1752 = vmatprep.subr.mxu0 0.0
    %1753 = vmatpush1.msra.mxu0 %v1728
    %1754 = vmatprep.subr.mxu0 0.0
    %1755 = vmatpush1.msra.mxu0 %v1729
    %1756 = vmatprep.subr.mxu0 0.0
    %1757 = vmatpush1.msra.mxu0 %v1730
    %1758 = vmatprep.subr.mxu0 0.0
    %1759 = vmatpush1.msra.mxu0 %v1731
    %1760 = vmatprep.subr.mxu0 0.0
    %1761 = vmatpush1.msra.mxu0 %v1732
    %1762 = vmatprep.subr.mxu0 0.0
    %1763 = vmatpush1.msra.mxu0 %v1733
    %1764 = vmatprep.subr.mxu0 0.0
    %1765 = vmatpush1.msra.mxu0 %v1734
    %1766 = vmatprep.subr.mxu0 0.0
    %1767 = vmatpush1.msra.mxu0 %v1735
    %1768 = vmatprep.subr.mxu0 0.0
    %1769 = vmatpush1.msra.mxu0 %v1736
    %1770 = vmatprep.subr.mxu0 0.0
    %1771 = vmatpush1.msra.mxu0 %v1737
    %1772 = vmatprep.subr.mxu0 0.0
    %1773 = vmatpush1.msra.mxu0 %v1738
    %1774 = vmatprep.subr.mxu0 0.0
    %1775 = vmatpush1.msra.mxu0 %v1739
    %1776 = vmatprep.subr.mxu0 0.0
    %1777 = vmatpush1.msra.mxu0 %v1740
    %1778 = vmatprep.subr.mxu0 0.0
    %1779 = vmatpush1.msra.mxu0 %v1741
    %1780 = vmatprep.subr.mxu0 0.0
    %1781 = vmatpush1.msra.mxu0 %v1742
    %1782 = vmatprep.subr.mxu0 0.0
    %1783 = vmatpush1.msra.mxu0 0.0
    %1784 = vmatprep.subr.mxu0 0.0
    %1785 = vmatpush1.msra.mxu0 0.0
    %1786 = vmatprep.subr.mxu0 0.0
    %1787 = vmatpush1.msra.mxu0 0.0
    %1788 = vmatprep.subr.mxu0 0.0
    %1789 = vmatpush1.msra.mxu0 0.0
    %1790 = vmatprep.subr.mxu0 0.0
    %1791 = vmatpush1.msra.mxu0 0.0
    %1792 = vmatprep.subr.mxu0 0.0
    %1793 = vmatpush1.msra.mxu0 0.0
    %1794 = vmatprep.subr.mxu0 0.0
    %1795 = vmatpush1.msra.mxu0 0.0
    %1796 = vmatprep.subr.mxu0 0.0
    %1797 = vmatpush1.msra.mxu0 0.0
    %1798 = vmatprep.subr.mxu0 0.0
    %1799 = vmatpush1.msra.mxu0 0.0
    %1800 = vmatprep.subr.mxu0 0.0
    %1801 = vmatpush1.msra.mxu0 0.0
    %1802 = vmatprep.subr.mxu0 0.0
    %1803 = vmatpush1.msra.mxu0 0.0
    %1804 = vmatprep.subr.mxu0 0.0
    %1805 = vmatpush1.msra.mxu0 0.0
    %1806 = vmatprep.subr.mxu0 0.0
    %1807 = vmatpush1.msra.mxu0 0.0
    %1808 = vmatprep.subr.mxu0 0.0
    %1809 = vmatpush1.msra.mxu0 0.0
    %1810 = vmatprep.subr.mxu0 0.0
    %1811 = vmatpush1.msra.mxu0 0.0
    %1812 = vmatprep.subr.mxu0 0.0
    %1813 = vmatpush1.msra.mxu0 0.0
    %1814 = vmatprep.mubr.f32.mxu0 0.0
    %1815 = vmatmul.mubr.f32.gmra.mrb[0].mxu0 %v1725
    %v1816 = vpop.f32.mrb[0].mxu0
    %v1817 = vadd.f32 %v1748, %v1816
    %v1818 = vpop.f32.mrb[0].mxu0
    %1819 = vmatprep.mubr.f32.mxu0 0.0
    %1820 = vmatmul.mubr.f32.gmra.mrb[0].mxu0 %v1726
    %v1821 = vpop.f32.mrb[0].mxu0
    %v1822 = vadd.f32 %v1748, %v1821
    %v1823 = vpop.f32.mrb[0].mxu0
    %1824 = vdwg.mxu0
    %v1825 = vadd.f32 %v1579, %v1817
    %v1826 = vadd.f32 %v1580, %v1822
    %v1827 = vld [vmem:[%s13] sm:$0x1]
    %v1828 = vld [vmem:[%s14] sm:$0x1]
    %v1829 = vsel %vm294, %v1825, 0.0
    %1830 = vadd.xlane.f32.xlu0 %v1829
    %v1831 = vpop.xlane.xlu0 %1830
    %v1832 = vsel %vm1540, %v1826, 0.0
    %1833 = vadd.xlane.f32.xlu0 %v1832
    %v1834 = vpop.xlane.xlu0 %1833
    %v1835 = vmul.f32 %v1831, %v1544
    %v1836 = vmul.f32 %v1834, %v1544
    %v1837 = vsub.f32 %v1825, %v1835
    %v1838 = vsub.f32 %v1826, %v1836
    %v1839 = vmul.f32 %v1837, %v1837
    %v1840 = vmul.f32 %v1838, %v1838
    %v1841 = vsel %vm294, %v1839, 0.0
    %1842 = vadd.xlane.f32.xlu0 %v1841
    %v1843 = vpop.xlane.xlu0 %1842
    %v1844 = vsel %vm1540, %v1840, 0.0
    %1845 = vadd.xlane.f32.xlu0 %v1844
    %v1846 = vpop.xlane.xlu0 %1845
    %v1847 = vmul.f32 %v1843, %v1544
    %v1848 = vmul.f32 %v1846, %v1544
    %v1849 = vadd.f32 %v1847, 1e-05
    %v1850 = vadd.f32 %v1848, 1e-05
    %v1851 = vrsqrt.pop %v1849
    %v1852 = vrsqrt.pop %v1850
    %v1853 = vmul.f32 %v1837, %v1851
    %v1854 = vmul.f32 %v1838, %v1852
    %v1856 = vlaneseq
    %v1857 = vshrl.u32 %v1856, 7
    %v1858 = vsub.s32 0, %v1857
    %v1859 = vrot.slane %v1827, %v1858
    %v1861 = vmul.f32 %v1853, %v1859
    %v1862 = vmul.f32 %v1854, %v1859
    %v1864 = vlaneseq
    %v1865 = vshrl.u32 %v1864, 7
    %v1866 = vsub.s32 0, %v1865
    %v1867 = vrot.slane %v1828, %v1866
    %v1869 = vadd.f32 %v1861, %v1867
    %v1870 = vadd.f32 %v1862, %v1867
    %s1871 = scalar_lea.vmem %s3, 32
    %v1872 = vld [vmem:[%s1871] sm:$0xff]
    %v1873 = vld [vmem:[%s1871 + $0x8] sm:$0xff]
    %v1874 = vld [vmem:[%s1871 + $0x10] sm:$0xff]
    %v1875 = vld [vmem:[%s1871 + $0x18] sm:$0xff]
    %s1876 = scalar_lea.vmem %s4, 1
    %v1877 = vld [vmem:[%s1876] sm:$0x1]
    %v1879 = vlaneseq
    %v1880 = vshrl.u32 %v1879, 7
    %v1881 = vsub.s32 0, %v1880
    %v1882 = vrot.slane %v1877, %v1881
    %v1885 = vsel %vm294, %v1869, 0
    %v1888 = vsel %vm294, %v1870, 0
    %1890 = vmatprep.subr.mxu0 0.0
    %1891 = vmatpush1.msra.mxu0 %v1872
    %1892 = vmatprep.subr.mxu0 0.0
    %1893 = vmatpush1.msra.mxu0 %v1873
    %1894 = vmatprep.subr.mxu0 0.0
    %1895 = vmatpush1.msra.mxu0 %v1874
    %1896 = vmatprep.subr.mxu0 0.0
    %1897 = vmatpush1.msra.mxu0 %v1875
    %1898 = vmatprep.subr.mxu0 0.0
    %1899 = vmatpush1.msra.mxu0 0.0
    %1900 = vmatprep.subr.mxu0 0.0
    %1901 = vmatpush1.msra.mxu0 0.0
    %1902 = vmatprep.subr.mxu0 0.0
    %1903 = vmatpush1.msra.mxu0 0.0
    %1904 = vmatprep.subr.mxu0 0.0
    %1905 = vmatpush1.msra.mxu0 0.0
    %1906 = vmatprep.subr.mxu0 0.0
    %1907 = vmatpush1.msra.mxu0 0.0
    %1908 = vmatprep.subr.mxu0 0.0
    %1909 = vmatpush1.msra.mxu0 0.0
    %1910 = vmatprep.subr.mxu0 0.0
    %1911 = vmatpush1.msra.mxu0 0.0
    %1912 = vmatprep.subr.mxu0 0.0
    %1913 = vmatpush1.msra.mxu0 0.0
    %1914 = vmatprep.subr.mxu0 0.0
    %1915 = vmatpush1.msra.mxu0 0.0
    %1916 = vmatprep.subr.mxu0 0.0
    %1917 = vmatpush1.msra.mxu0 0.0
    %1918 = vmatprep.subr.mxu0 0.0
    %1919 = vmatpush1.msra.mxu0 0.0
    %1920 = vmatprep.subr.mxu0 0.0
    %1921 = vmatpush1.msra.mxu0 0.0
    %1922 = vmatprep.subr.mxu0 0.0
    %1923 = vmatpush1.msra.mxu0 0.0
    %1924 = vmatprep.subr.mxu0 0.0
    %1925 = vmatpush1.msra.mxu0 0.0
    %1926 = vmatprep.subr.mxu0 0.0
    %1927 = vmatpush1.msra.mxu0 0.0
    %1928 = vmatprep.subr.mxu0 0.0
    %1929 = vmatpush1.msra.mxu0 0.0
    %1930 = vmatprep.subr.mxu0 0.0
    %1931 = vmatpush1.msra.mxu0 0.0
    %1932 = vmatprep.subr.mxu0 0.0
    %1933 = vmatpush1.msra.mxu0 0.0
    %1934 = vmatprep.subr.mxu0 0.0
    %1935 = vmatpush1.msra.mxu0 0.0
    %1936 = vmatprep.subr.mxu0 0.0
    %1937 = vmatpush1.msra.mxu0 0.0
    %1938 = vmatprep.subr.mxu0 0.0
    %1939 = vmatpush1.msra.mxu0 0.0
    %1940 = vmatprep.subr.mxu0 0.0
    %1941 = vmatpush1.msra.mxu0 0.0
    %1942 = vmatprep.subr.mxu0 0.0
    %1943 = vmatpush1.msra.mxu0 0.0
    %1944 = vmatprep.subr.mxu0 0.0
    %1945 = vmatpush1.msra.mxu0 0.0
    %1946 = vmatprep.subr.mxu0 0.0
    %1947 = vmatpush1.msra.mxu0 0.0
    %1948 = vmatprep.subr.mxu0 0.0
    %1949 = vmatpush1.msra.mxu0 0.0
    %1950 = vmatprep.subr.mxu0 0.0
    %1951 = vmatpush1.msra.mxu0 0.0
    %1952 = vmatprep.subr.mxu0 0.0
    %1953 = vmatpush1.msra.mxu0 0.0
    %1954 = vmatprep.mubr.f32.mxu0 0.0
    %1955 = vmatmul.mubr.f32.gmra.mrb[0].mxu0 %v1885
    %v1956 = vpop.f32.mrb[0].mxu0
    %v1957 = vadd.f32 %v1882, %v1956
    %v1958 = vpop.f32.mrb[0].mxu0
    %1959 = vmatprep.mubr.f32.mxu0 0.0
    %1960 = vmatmul.mubr.f32.gmra.mrb[0].mxu0 %v1888
    %v1961 = vpop.f32.mrb[0].mxu0
    %v1962 = vadd.f32 %v1882, %v1961
    %v1963 = vpop.f32.mrb[0].mxu0
    %1964 = vdwg.mxu0
    %s1965 = scalar_lea.vmem %s6, 1
    %v1966 = vld [vmem:[%s1965] sm:$0x1]
    %1969 = vrot.lane.b32.xlu0 %v1957, 96
    %v1970 = vpop.permute.xlu0 %1969
    %1971 = vrot.lane.b32.xlu0 %v1962, 96
    %v1972 = vpop.permute.xlu0 %1971
    %v1973 = vsel %vm383, %v1957, 0
    %v1975 = vsel %vm383, %v1962, 0
    %v1977 = vsel %vm383, %v1970, 0
    %v1979 = vsel %vm383, %v1972, 0
    %1981 = vmatprep.subr.mxu0 0.0
    %1982 = vmatpush1.xpose.msra.mxu0 %v1977
    %1983 = vmatprep.subr.mxu0 0.0
    %1984 = vmatpush1.xpose.msra.mxu0 %v1979
    %1985 = vmatprep.subr.mxu0 0.0
    %1986 = vmatpush1.xpose.msra.mxu0 0.0
    %1987 = vmatprep.subr.mxu0 0.0
    %1988 = vmatpush1.xpose.msra.mxu0 0.0
    %1989 = vmatprep.subr.mxu0 0.0
    %1990 = vmatpush1.xpose.msra.mxu0 0.0
    %1991 = vmatprep.subr.mxu0 0.0
    %1992 = vmatpush1.xpose.msra.mxu0 0.0
    %1993 = vmatprep.subr.mxu0 0.0
    %1994 = vmatpush1.xpose.msra.mxu0 0.0
    %1995 = vmatprep.subr.mxu0 0.0
    %1996 = vmatpush1.xpose.msra.mxu0 0.0
    %1997 = vmatprep.subr.mxu0 0.0
    %1998 = vmatpush1.xpose.msra.mxu0 0.0
    %1999 = vmatprep.subr.mxu0 0.0
    %2000 = vmatpush1.xpose.msra.mxu0 0.0
    %2001 = vmatprep.subr.mxu0 0.0
    %2002 = vmatpush1.xpose.msra.mxu0 0.0
    %2003 = vmatprep.subr.mxu0 0.0
    %2004 = vmatpush1.xpose.msra.mxu0 0.0
    %2005 = vmatprep.subr.mxu0 0.0
    %2006 = vmatpush1.xpose.msra.mxu0 0.0
    %2007 = vmatprep.subr.mxu0 0.0
    %2008 = vmatpush1.xpose.msra.mxu0 0.0
    %2009 = vmatprep.subr.mxu0 0.0
    %2010 = vmatpush1.xpose.msra.mxu0 0.0
    %2011 = vmatprep.subr.mxu0 0.0
    %2012 = vmatpush1.xpose.msra.mxu0 0.0
    %2013 = vmatprep.subr.mxu0 0.0
    %2014 = vmatpush1.xpose.msra.mxu0 0.0
    %2015 = vmatprep.subr.mxu0 0.0
    %2016 = vmatpush1.xpose.msra.mxu0 0.0
    %2017 = vmatprep.subr.mxu0 0.0
    %2018 = vmatpush1.xpose.msra.mxu0 0.0
    %2019 = vmatprep.subr.mxu0 0.0
    %2020 = vmatpush1.xpose.msra.mxu0 0.0
    %2021 = vmatprep.subr.mxu0 0.0
    %2022 = vmatpush1.xpose.msra.mxu0 0.0
    %2023 = vmatprep.subr.mxu0 0.0
    %2024 = vmatpush1.xpose.msra.mxu0 0.0
    %2025 = vmatprep.subr.mxu0 0.0
    %2026 = vmatpush1.xpose.msra.mxu0 0.0
    %2027 = vmatprep.subr.mxu0 0.0
    %2028 = vmatpush1.xpose.msra.mxu0 0.0
    %2029 = vmatprep.subr.mxu0 0.0
    %2030 = vmatpush1.xpose.msra.mxu0 0.0
    %2031 = vmatprep.subr.mxu0 0.0
    %2032 = vmatpush1.xpose.msra.mxu0 0.0
    %2033 = vmatprep.subr.mxu0 0.0
    %2034 = vmatpush1.xpose.msra.mxu0 0.0
    %2035 = vmatprep.subr.mxu0 0.0
    %2036 = vmatpush1.xpose.msra.mxu0 0.0
    %2037 = vmatprep.subr.mxu0 0.0
    %2038 = vmatpush1.xpose.msra.mxu0 0.0
    %2039 = vmatprep.subr.mxu0 0.0
    %2040 = vmatpush1.xpose.msra.mxu0 0.0
    %2041 = vmatprep.subr.mxu0 0.0
    %2042 = vmatpush1.xpose.msra.mxu0 0.0
    %2043 = vmatprep.subr.mxu0 0.0
    %2044 = vmatpush1.xpose.msra.mxu0 0.0
    %2045 = vmatprep.mubr.f32.mxu0 0.0
    %2046 = vmatmul.mubr.f32.gmra.mrb[0].mxu0 %v1973
    %v2047 = vpop.f32.mrb[0].mxu0
    %v2048 = vadd.f32 0.0, %v2047
    %v2049 = vpop.f32.mrb[0].mxu0
    %2050 = vmatprep.mubr.f32.mxu0 0.0
    %2051 = vmatmul.mubr.f32.gmra.mrb[0].mxu0 %v1975
    %v2052 = vpop.f32.mrb[0].mxu0
    %v2053 = vadd.f32 0.0, %v2052
    %v2054 = vpop.f32.mrb[0].mxu0
    %2055 = vdwg.mxu0
    %v2056 = vmul.f32 %v2048, 0.35355338
    %v2057 = vmul.f32 %v2053, 0.35355338
    %v2058 = vsel %vm469, %v2056, -inf
    %2059 = vmax.xlane.f32.xlu0 %v2058
    %v2060 = vpop.xlane.xlu0 %2059
    %v2061 = vsel %vm473, %v2057, -inf
    %2062 = vmax.xlane.f32.xlu0 %v2061
    %v2063 = vpop.xlane.xlu0 %2062
    %v2064 = vsub.f32 %v2056, %v2060
    %v2065 = vsub.f32 %v2057, %v2063
    %v2066 = vmul.f32 %v2064, 1.442695
    %v2067 = vpow.pop %v2066
    %v2068 = vmul.f32 %v2065, 1.442695
    %v2069 = vpow.pop %v2068
    %v2070 = vsel %vm469, %v2067, 0.0
    %2071 = vadd.xlane.f32.xlu0 %v2070
    %v2072 = vpop.xlane.xlu0 %2071
    %v2073 = vsel %vm473, %v2069, 0.0
    %2074 = vadd.xlane.f32.xlu0 %v2073
    %v2075 = vpop.xlane.xlu0 %2074
    %v2076 = vrcp.pop %v2072
    %v2077 = vrcp.pop %v2075
    %v2078 = vmul.f32 %v2067, %v2076
    %v2079 = vmul.f32 %v2069, %v2077
    %2080 = vrot.lane.b32.xlu0 %v1957, 64
    %v2081 = vpop.permute.xlu0 %2080
    %2082 = vrot.lane.b32.xlu0 %v1962, 64
    %v2083 = vpop.permute.xlu0 %2082
    %v2086 = vsel %vm469, %v2078, 0
    %v2089 = vsel %vm469, %v2079, 0
    %v2091 = vsel %vm504, %v2083, 0
    %2093 = vmatprep.subr.mxu0 0.0
    %2094 = vmatpush1.msra.mxu0 %v2081
    %2095 = vmatprep.subr.mxu0 0.0
    %2096 = vmatpush1.msra.mxu0 %v2091
    %2097 = vmatprep.subr.mxu0 0.0
    %2098 = vmatpush1.msra.mxu0 0.0
    %2099 = vmatprep.subr.mxu0 0.0
    %2100 = vmatpush1.msra.mxu0 0.0
    %2101 = vmatprep.subr.mxu0 0.0
    %2102 = vmatpush1.msra.mxu0 0.0
    %2103 = vmatprep.subr.mxu0 0.0
    %2104 = vmatpush1.msra.mxu0 0.0
    %2105 = vmatprep.subr.mxu0 0.0
    %2106 = vmatpush1.msra.mxu0 0.0
    %2107 = vmatprep.subr.mxu0 0.0
    %2108 = vmatpush1.msra.mxu0 0.0
    %2109 = vmatprep.subr.mxu0 0.0
    %2110 = vmatpush1.msra.mxu0 0.0
    %2111 = vmatprep.subr.mxu0 0.0
    %2112 = vmatpush1.msra.mxu0 0.0
    %2113 = vmatprep.subr.mxu0 0.0
    %2114 = vmatpush1.msra.mxu0 0.0
    %2115 = vmatprep.subr.mxu0 0.0
    %2116 = vmatpush1.msra.mxu0 0.0
    %2117 = vmatprep.subr.mxu0 0.0
    %2118 = vmatpush1.msra.mxu0 0.0
    %2119 = vmatprep.subr.mxu0 0.0
    %2120 = vmatpush1.msra.mxu0 0.0
    %2121 = vmatprep.subr.mxu0 0.0
    %2122 = vmatpush1.msra.mxu0 0.0
    %2123 = vmatprep.subr.mxu0 0.0
    %2124 = vmatpush1.msra.mxu0 0.0
    %2125 = vmatprep.subr.mxu0 0.0
    %2126 = vmatpush1.msra.mxu0 0.0
    %2127 = vmatprep.subr.mxu0 0.0
    %2128 = vmatpush1.msra.mxu0 0.0
    %2129 = vmatprep.subr.mxu0 0.0
    %2130 = vmatpush1.msra.mxu0 0.0
    %2131 = vmatprep.subr.mxu0 0.0
    %2132 = vmatpush1.msra.mxu0 0.0
    %2133 = vmatprep.subr.mxu0 0.0
    %2134 = vmatpush1.msra.mxu0 0.0
    %2135 = vmatprep.subr.mxu0 0.0
    %2136 = vmatpush1.msra.mxu0 0.0
    %2137 = vmatprep.subr.mxu0 0.0
    %2138 = vmatpush1.msra.mxu0 0.0
    %2139 = vmatprep.subr.mxu0 0.0
    %2140 = vmatpush1.msra.mxu0 0.0
    %2141 = vmatprep.subr.mxu0 0.0
    %2142 = vmatpush1.msra.mxu0 0.0
    %2143 = vmatprep.subr.mxu0 0.0
    %2144 = vmatpush1.msra.mxu0 0.0
    %2145 = vmatprep.subr.mxu0 0.0
    %2146 = vmatpush1.msra.mxu0 0.0
    %2147 = vmatprep.subr.mxu0 0.0
    %2148 = vmatpush1.msra.mxu0 0.0
    %2149 = vmatprep.subr.mxu0 0.0
    %2150 = vmatpush1.msra.mxu0 0.0
    %2151 = vmatprep.subr.mxu0 0.0
    %2152 = vmatpush1.msra.mxu0 0.0
    %2153 = vmatprep.subr.mxu0 0.0
    %2154 = vmatpush1.msra.mxu0 0.0
    %2155 = vmatprep.subr.mxu0 0.0
    %2156 = vmatpush1.msra.mxu0 0.0
    %2157 = vmatprep.mubr.f32.mxu0 0.0
    %2158 = vmatmul.mubr.f32.gmra.mrb[0].mxu0 %v2086
    %v2159 = vpop.f32.mrb[0].mxu0
    %v2160 = vadd.f32 0.0, %v2159
    %v2161 = vpop.f32.mrb[0].mxu0
    %2162 = vmatprep.mubr.f32.mxu0 0.0
    %2163 = vmatmul.mubr.f32.gmra.mrb[0].mxu0 %v2089
    %v2164 = vpop.f32.mrb[0].mxu0
    %v2165 = vadd.f32 0.0, %v2164
    %v2166 = vpop.f32.mrb[0].mxu0
    %2167 = vdwg.mxu0
    %s2168 = scalar_lea.vmem %s5, 32
    %v2169 = vld [vmem:[%s2168] sm:$0xff]
    %v2171 = vsel %vm383, %v2160, 0
    %v2174 = vsel %vm383, %v2165, 0
    %2176 = vmatprep.subr.mxu0 0.0
    %2177 = vmatpush1.msra.mxu0 %v2169
    %2178 = vmatprep.subr.mxu0 0.0
    %2179 = vmatpush1.msra.mxu0 0.0
    %2180 = vmatprep.subr.mxu0 0.0
    %2181 = vmatpush1.msra.mxu0 0.0
    %2182 = vmatprep.subr.mxu0 0.0
    %2183 = vmatpush1.msra.mxu0 0.0
    %2184 = vmatprep.subr.mxu0 0.0
    %2185 = vmatpush1.msra.mxu0 0.0
    %2186 = vmatprep.subr.mxu0 0.0
    %2187 = vmatpush1.msra.mxu0 0.0
    %2188 = vmatprep.subr.mxu0 0.0
    %2189 = vmatpush1.msra.mxu0 0.0
    %2190 = vmatprep.subr.mxu0 0.0
    %2191 = vmatpush1.msra.mxu0 0.0
    %2192 = vmatprep.subr.mxu0 0.0
    %2193 = vmatpush1.msra.mxu0 0.0
    %2194 = vmatprep.subr.mxu0 0.0
    %2195 = vmatpush1.msra.mxu0 0.0
    %2196 = vmatprep.subr.mxu0 0.0
    %2197 = vmatpush1.msra.mxu0 0.0
    %2198 = vmatprep.subr.mxu0 0.0
    %2199 = vmatpush1.msra.mxu0 0.0
    %2200 = vmatprep.subr.mxu0 0.0
    %2201 = vmatpush1.msra.mxu0 0.0
    %2202 = vmatprep.subr.mxu0 0.0
    %2203 = vmatpush1.msra.mxu0 0.0
    %2204 = vmatprep.subr.mxu0 0.0
    %2205 = vmatpush1.msra.mxu0 0.0
    %2206 = vmatprep.subr.mxu0 0.0
    %2207 = vmatpush1.msra.mxu0 0.0
    %2208 = vmatprep.subr.mxu0 0.0
    %2209 = vmatpush1.msra.mxu0 0.0
    %2210 = vmatprep.subr.mxu0 0.0
    %2211 = vmatpush1.msra.mxu0 0.0
    %2212 = vmatprep.subr.mxu0 0.0
    %2213 = vmatpush1.msra.mxu0 0.0
    %2214 = vmatprep.subr.mxu0 0.0
    %2215 = vmatpush1.msra.mxu0 0.0
    %2216 = vmatprep.subr.mxu0 0.0
    %2217 = vmatpush1.msra.mxu0 0.0
    %2218 = vmatprep.subr.mxu0 0.0
    %2219 = vmatpush1.msra.mxu0 0.0
    %2220 = vmatprep.subr.mxu0 0.0
    %2221 = vmatpush1.msra.mxu0 0.0
    %2222 = vmatprep.subr.mxu0 0.0
    %2223 = vmatpush1.msra.mxu0 0.0
    %2224 = vmatprep.subr.mxu0 0.0
    %2225 = vmatpush1.msra.mxu0 0.0
    %2226 = vmatprep.subr.mxu0 0.0
    %2227 = vmatpush1.msra.mxu0 0.0
    %2228 = vmatprep.subr.mxu0 0.0
    %2229 = vmatpush1.msra.mxu0 0.0
    %2230 = vmatprep.subr.mxu0 0.0
    %2231 = vmatpush1.msra.mxu0 0.0
    %2232 = vmatprep.subr.mxu0 0.0
    %2233 = vmatpush1.msra.mxu0 0.0
    %2234 = vmatprep.subr.mxu0 0.0
    %2235 = vmatpush1.msra.mxu0 0.0
    %2236 = vmatprep.subr.mxu0 0.0
    %2237 = vmatpush1.msra.mxu0 0.0
    %2238 = vmatprep.subr.mxu0 0.0
    %2239 = vmatpush1.msra.mxu0 0.0
    %2240 = vmatprep.mubr.f32.mxu0 0.0
    %2241 = vmatmul.mubr.f32.gmra.mrb[0].mxu0 %v2171
    %v2242 = vpop.f32.mrb[0].mxu0
    %v2243 = vadd.f32 0.0, %v2242
    %v2244 = vpop.f32.mrb[0].mxu0
    %2245 = vmatprep.mubr.f32.mxu0 0.0
    %2246 = vmatmul.mubr.f32.gmra.mrb[0].mxu0 %v2174
    %v2247 = vpop.f32.mrb[0].mxu0
    %v2248 = vadd.f32 0.0, %v2247
    %v2249 = vpop.f32.mrb[0].mxu0
    %2250 = vdwg.mxu0
    %v2252 = vlaneseq
    %v2253 = vshrl.u32 %v2252, 7
    %v2254 = vsub.s32 0, %v2253
    %v2255 = vrot.slane %v1966, %v2254
    %v2257 = vadd.f32 %v2255, %v2243
    %v2258 = vadd.f32 %v2255, %v2248
    %2259 = vrot.lane.b32.xlu0 %v1957, 120
    %v2260 = vpop.permute.xlu0 %2259
    %2261 = vrot.lane.b32.xlu0 %v1962, 120
    %v2262 = vpop.permute.xlu0 %2261
    %2263 = vrot.lane.b32.xlu0 %v1957, 88
    %v2264 = vpop.permute.xlu0 %2263
    %2265 = vrot.lane.b32.xlu0 %v1962, 88
    %v2266 = vpop.permute.xlu0 %2265
    %v2267 = vsel %vm383, %v2260, 0
    %v2269 = vsel %vm383, %v2262, 0
    %v2271 = vsel %vm383, %v2264, 0
    %v2273 = vsel %vm383, %v2266, 0
    %2275 = vmatprep.subr.mxu0 0.0
    %2276 = vmatpush1.xpose.msra.mxu0 %v2271
    %2277 = vmatprep.subr.mxu0 0.0
    %2278 = vmatpush1.xpose.msra.mxu0 %v2273
    %2279 = vmatprep.subr.mxu0 0.0
    %2280 = vmatpush1.xpose.msra.mxu0 0.0
    %2281 = vmatprep.subr.mxu0 0.0
    %2282 = vmatpush1.xpose.msra.mxu0 0.0
    %2283 = vmatprep.subr.mxu0 0.0
    %2284 = vmatpush1.xpose.msra.mxu0 0.0
    %2285 = vmatprep.subr.mxu0 0.0
    %2286 = vmatpush1.xpose.msra.mxu0 0.0
    %2287 = vmatprep.subr.mxu0 0.0
    %2288 = vmatpush1.xpose.msra.mxu0 0.0
    %2289 = vmatprep.subr.mxu0 0.0
    %2290 = vmatpush1.xpose.msra.mxu0 0.0
    %2291 = vmatprep.subr.mxu0 0.0
    %2292 = vmatpush1.xpose.msra.mxu0 0.0
    %2293 = vmatprep.subr.mxu0 0.0
    %2294 = vmatpush1.xpose.msra.mxu0 0.0
    %2295 = vmatprep.subr.mxu0 0.0
    %2296 = vmatpush1.xpose.msra.mxu0 0.0
    %2297 = vmatprep.subr.mxu0 0.0
    %2298 = vmatpush1.xpose.msra.mxu0 0.0
    %2299 = vmatprep.subr.mxu0 0.0
    %2300 = vmatpush1.xpose.msra.mxu0 0.0
    %2301 = vmatprep.subr.mxu0 0.0
    %2302 = vmatpush1.xpose.msra.mxu0 0.0
    %2303 = vmatprep.subr.mxu0 0.0
    %2304 = vmatpush1.xpose.msra.mxu0 0.0
    %2305 = vmatprep.subr.mxu0 0.0
    %2306 = vmatpush1.xpose.msra.mxu0 0.0
    %2307 = vmatprep.subr.mxu0 0.0
    %2308 = vmatpush1.xpose.msra.mxu0 0.0
    %2309 = vmatprep.subr.mxu0 0.0
    %2310 = vmatpush1.xpose.msra.mxu0 0.0
    %2311 = vmatprep.subr.mxu0 0.0
    %2312 = vmatpush1.xpose.msra.mxu0 0.0
    %2313 = vmatprep.subr.mxu0 0.0
    %2314 = vmatpush1.xpose.msra.mxu0 0.0
    %2315 = vmatprep.subr.mxu0 0.0
    %2316 = vmatpush1.xpose.msra.mxu0 0.0
    %2317 = vmatprep.subr.mxu0 0.0
    %2318 = vmatpush1.xpose.msra.mxu0 0.0
    %2319 = vmatprep.subr.mxu0 0.0
    %2320 = vmatpush1.xpose.msra.mxu0 0.0
    %2321 = vmatprep.subr.mxu0 0.0
    %2322 = vmatpush1.xpose.msra.mxu0 0.0
    %2323 = vmatprep.subr.mxu0 0.0
    %2324 = vmatpush1.xpose.msra.mxu0 0.0
    %2325 = vmatprep.subr.mxu0 0.0
    %2326 = vmatpush1.xpose.msra.mxu0 0.0
    %2327 = vmatprep.subr.mxu0 0.0
    %2328 = vmatpush1.xpose.msra.mxu0 0.0
    %2329 = vmatprep.subr.mxu0 0.0
    %2330 = vmatpush1.xpose.msra.mxu0 0.0
    %2331 = vmatprep.subr.mxu0 0.0
    %2332 = vmatpush1.xpose.msra.mxu0 0.0
    %2333 = vmatprep.subr.mxu0 0.0
    %2334 = vmatpush1.xpose.msra.mxu0 0.0
    %2335 = vmatprep.subr.mxu0 0.0
    %2336 = vmatpush1.xpose.msra.mxu0 0.0
    %2337 = vmatprep.subr.mxu0 0.0
    %2338 = vmatpush1.xpose.msra.mxu0 0.0
    %2339 = vmatprep.mubr.f32.mxu0 0.0
    %2340 = vmatmul.mubr.f32.gmra.mrb[0].mxu0 %v2267
    %v2341 = vpop.f32.mrb[0].mxu0
    %v2342 = vadd.f32 0.0, %v2341
    %v2343 = vpop.f32.mrb[0].mxu0
    %2344 = vmatprep.mubr.f32.mxu0 0.0
    %2345 = vmatmul.mubr.f32.gmra.mrb[0].mxu0 %v2269
    %v2346 = vpop.f32.mrb[0].mxu0
    %v2347 = vadd.f32 0.0, %v2346
    %v2348 = vpop.f32.mrb[0].mxu0
    %2349 = vdwg.mxu0
    %v2350 = vmul.f32 %v2342, 0.35355338
    %v2351 = vmul.f32 %v2347, 0.35355338
    %v2352 = vsel %vm469, %v2350, -inf
    %2353 = vmax.xlane.f32.xlu0 %v2352
    %v2354 = vpop.xlane.xlu0 %2353
    %v2355 = vsel %vm473, %v2351, -inf
    %2356 = vmax.xlane.f32.xlu0 %v2355
    %v2357 = vpop.xlane.xlu0 %2356
    %v2358 = vsub.f32 %v2350, %v2354
    %v2359 = vsub.f32 %v2351, %v2357
    %v2360 = vmul.f32 %v2358, 1.442695
    %v2361 = vpow.pop %v2360
    %v2362 = vmul.f32 %v2359, 1.442695
    %v2363 = vpow.pop %v2362
    %v2364 = vsel %vm469, %v2361, 0.0
    %2365 = vadd.xlane.f32.xlu0 %v2364
    %v2366 = vpop.xlane.xlu0 %2365
    %v2367 = vsel %vm473, %v2363, 0.0
    %2368 = vadd.xlane.f32.xlu0 %v2367
    %v2369 = vpop.xlane.xlu0 %2368
    %v2370 = vrcp.pop %v2366
    %v2371 = vrcp.pop %v2369
    %v2372 = vmul.f32 %v2361, %v2370
    %v2373 = vmul.f32 %v2363, %v2371
    %2374 = vrot.lane.b32.xlu0 %v1957, 56
    %v2375 = vpop.permute.xlu0 %2374
    %2376 = vrot.lane.b32.xlu0 %v1962, 56
    %v2377 = vpop.permute.xlu0 %2376
    %v2380 = vsel %vm469, %v2372, 0
    %v2383 = vsel %vm469, %v2373, 0
    %v2385 = vsel %vm504, %v2377, 0
    %2387 = vmatprep.subr.mxu0 0.0
    %2388 = vmatpush1.msra.mxu0 %v2375
    %2389 = vmatprep.subr.mxu0 0.0
    %2390 = vmatpush1.msra.mxu0 %v2385
    %2391 = vmatprep.subr.mxu0 0.0
    %2392 = vmatpush1.msra.mxu0 0.0
    %2393 = vmatprep.subr.mxu0 0.0
    %2394 = vmatpush1.msra.mxu0 0.0
    %2395 = vmatprep.subr.mxu0 0.0
    %2396 = vmatpush1.msra.mxu0 0.0
    %2397 = vmatprep.subr.mxu0 0.0
    %2398 = vmatpush1.msra.mxu0 0.0
    %2399 = vmatprep.subr.mxu0 0.0
    %2400 = vmatpush1.msra.mxu0 0.0
    %2401 = vmatprep.subr.mxu0 0.0
    %2402 = vmatpush1.msra.mxu0 0.0
    %2403 = vmatprep.subr.mxu0 0.0
    %2404 = vmatpush1.msra.mxu0 0.0
    %2405 = vmatprep.subr.mxu0 0.0
    %2406 = vmatpush1.msra.mxu0 0.0
    %2407 = vmatprep.subr.mxu0 0.0
    %2408 = vmatpush1.msra.mxu0 0.0
    %2409 = vmatprep.subr.mxu0 0.0
    %2410 = vmatpush1.msra.mxu0 0.0
    %2411 = vmatprep.subr.mxu0 0.0
    %2412 = vmatpush1.msra.mxu0 0.0
    %2413 = vmatprep.subr.mxu0 0.0
    %2414 = vmatpush1.msra.mxu0 0.0
    %2415 = vmatprep.subr.mxu0 0.0
    %2416 = vmatpush1.msra.mxu0 0.0
    %2417 = vmatprep.subr.mxu0 0.0
    %2418 = vmatpush1.msra.mxu0 0.0
    %2419 = vmatprep.subr.mxu0 0.0
    %2420 = vmatpush1.msra.mxu0 0.0
    %2421 = vmatprep.subr.mxu0 0.0
    %2422 = vmatpush1.msra.mxu0 0.0
    %2423 = vmatprep.subr.mxu0 0.0
    %2424 = vmatpush1.msra.mxu0 0.0
    %2425 = vmatprep.subr.mxu0 0.0
    %2426 = vmatpush1.msra.mxu0 0.0
    %2427 = vmatprep.subr.mxu0 0.0
    %2428 = vmatpush1.msra.mxu0 0.0
    %2429 = vmatprep.subr.mxu0 0.0
    %2430 = vmatpush1.msra.mxu0 0.0
    %2431 = vmatprep.subr.mxu0 0.0
    %2432 = vmatpush1.msra.mxu0 0.0
    %2433 = vmatprep.subr.mxu0 0.0
    %2434 = vmatpush1.msra.mxu0 0.0
    %2435 = vmatprep.subr.mxu0 0.0
    %2436 = vmatpush1.msra.mxu0 0.0
    %2437 = vmatprep.subr.mxu0 0.0
    %2438 = vmatpush1.msra.mxu0 0.0
    %2439 = vmatprep.subr.mxu0 0.0
    %2440 = vmatpush1.msra.mxu0 0.0
    %2441 = vmatprep.subr.mxu0 0.0
    %2442 = vmatpush1.msra.mxu0 0.0
    %2443 = vmatprep.subr.mxu0 0.0
    %2444 = vmatpush1.msra.mxu0 0.0
    %2445 = vmatprep.subr.mxu0 0.0
    %2446 = vmatpush1.msra.mxu0 0.0
    %2447 = vmatprep.subr.mxu0 0.0
    %2448 = vmatpush1.msra.mxu0 0.0
    %2449 = vmatprep.subr.mxu0 0.0
    %2450 = vmatpush1.msra.mxu0 0.0
    %2451 = vmatprep.mubr.f32.mxu0 0.0
    %2452 = vmatmul.mubr.f32.gmra.mrb[0].mxu0 %v2380
    %v2453 = vpop.f32.mrb[0].mxu0
    %v2454 = vadd.f32 0.0, %v2453
    %v2455 = vpop.f32.mrb[0].mxu0
    %2456 = vmatprep.mubr.f32.mxu0 0.0
    %2457 = vmatmul.mubr.f32.gmra.mrb[0].mxu0 %v2383
    %v2458 = vpop.f32.mrb[0].mxu0
    %v2459 = vadd.f32 0.0, %v2458
    %v2460 = vpop.f32.mrb[0].mxu0
    %2461 = vdwg.mxu0
    %v2462 = vld [vmem:[%s2168 + $0x8] sm:$0xff]
    %v2464 = vsel %vm383, %v2454, 0
    %v2467 = vsel %vm383, %v2459, 0
    %2469 = vmatprep.subr.mxu0 0.0
    %2470 = vmatpush1.msra.mxu0 %v2462
    %2471 = vmatprep.subr.mxu0 0.0
    %2472 = vmatpush1.msra.mxu0 0.0
    %2473 = vmatprep.subr.mxu0 0.0
    %2474 = vmatpush1.msra.mxu0 0.0
    %2475 = vmatprep.subr.mxu0 0.0
    %2476 = vmatpush1.msra.mxu0 0.0
    %2477 = vmatprep.subr.mxu0 0.0
    %2478 = vmatpush1.msra.mxu0 0.0
    %2479 = vmatprep.subr.mxu0 0.0
    %2480 = vmatpush1.msra.mxu0 0.0
    %2481 = vmatprep.subr.mxu0 0.0
    %2482 = vmatpush1.msra.mxu0 0.0
    %2483 = vmatprep.subr.mxu0 0.0
    %2484 = vmatpush1.msra.mxu0 0.0
    %2485 = vmatprep.subr.mxu0 0.0
    %2486 = vmatpush1.msra.mxu0 0.0
    %2487 = vmatprep.subr.mxu0 0.0
    %2488 = vmatpush1.msra.mxu0 0.0
    %2489 = vmatprep.subr.mxu0 0.0
    %2490 = vmatpush1.msra.mxu0 0.0
    %2491 = vmatprep.subr.mxu0 0.0
    %2492 = vmatpush1.msra.mxu0 0.0
    %2493 = vmatprep.subr.mxu0 0.0
    %2494 = vmatpush1.msra.mxu0 0.0
    %2495 = vmatprep.subr.mxu0 0.0
    %2496 = vmatpush1.msra.mxu0 0.0
    %2497 = vmatprep.subr.mxu0 0.0
    %2498 = vmatpush1.msra.mxu0 0.0
    %2499 = vmatprep.subr.mxu0 0.0
    %2500 = vmatpush1.msra.mxu0 0.0
    %2501 = vmatprep.subr.mxu0 0.0
    %2502 = vmatpush1.msra.mxu0 0.0
    %2503 = vmatprep.subr.mxu0 0.0
    %2504 = vmatpush1.msra.mxu0 0.0
    %2505 = vmatprep.subr.mxu0 0.0
    %2506 = vmatpush1.msra.mxu0 0.0
    %2507 = vmatprep.subr.mxu0 0.0
    %2508 = vmatpush1.msra.mxu0 0.0
    %2509 = vmatprep.subr.mxu0 0.0
    %2510 = vmatpush1.msra.mxu0 0.0
    %2511 = vmatprep.subr.mxu0 0.0
    %2512 = vmatpush1.msra.mxu0 0.0
    %2513 = vmatprep.subr.mxu0 0.0
    %2514 = vmatpush1.msra.mxu0 0.0
    %2515 = vmatprep.subr.mxu0 0.0
    %2516 = vmatpush1.msra.mxu0 0.0
    %2517 = vmatprep.subr.mxu0 0.0
    %2518 = vmatpush1.msra.mxu0 0.0
    %2519 = vmatprep.subr.mxu0 0.0
    %2520 = vmatpush1.msra.mxu0 0.0
    %2521 = vmatprep.subr.mxu0 0.0
    %2522 = vmatpush1.msra.mxu0 0.0
    %2523 = vmatprep.subr.mxu0 0.0
    %2524 = vmatpush1.msra.mxu0 0.0
    %2525 = vmatprep.subr.mxu0 0.0
    %2526 = vmatpush1.msra.mxu0 0.0
    %2527 = vmatprep.subr.mxu0 0.0
    %2528 = vmatpush1.msra.mxu0 0.0
    %2529 = vmatprep.subr.mxu0 0.0
    %2530 = vmatpush1.msra.mxu0 0.0
    %2531 = vmatprep.subr.mxu0 0.0
    %2532 = vmatpush1.msra.mxu0 0.0
    %2533 = vmatprep.mubr.f32.mxu0 0.0
    %2534 = vmatmul.mubr.f32.gmra.mrb[0].mxu0 %v2464
    %v2535 = vpop.f32.mrb[0].mxu0
    %v2536 = vadd.f32 0.0, %v2535
    %v2537 = vpop.f32.mrb[0].mxu0
    %2538 = vmatprep.mubr.f32.mxu0 0.0
    %2539 = vmatmul.mubr.f32.gmra.mrb[0].mxu0 %v2467
    %v2540 = vpop.f32.mrb[0].mxu0
    %v2541 = vadd.f32 0.0, %v2540
    %v2542 = vpop.f32.mrb[0].mxu0
    %2543 = vdwg.mxu0
    %v2544 = vadd.f32 %v2257, %v2536
    %v2545 = vadd.f32 %v2258, %v2541
    %2546 = vrot.lane.b32.xlu0 %v1957, 112
    %v2547 = vpop.permute.xlu0 %2546
    %2548 = vrot.lane.b32.xlu0 %v1962, 112
    %v2549 = vpop.permute.xlu0 %2548
    %2550 = vrot.lane.b32.xlu0 %v1957, 80
    %v2551 = vpop.permute.xlu0 %2550
    %2552 = vrot.lane.b32.xlu0 %v1962, 80
    %v2553 = vpop.permute.xlu0 %2552
    %v2554 = vsel %vm383, %v2547, 0
    %v2556 = vsel %vm383, %v2549, 0
    %v2558 = vsel %vm383, %v2551, 0
    %v2560 = vsel %vm383, %v2553, 0
    %2562 = vmatprep.subr.mxu0 0.0
    %2563 = vmatpush1.xpose.msra.mxu0 %v2558
    %2564 = vmatprep.subr.mxu0 0.0
    %2565 = vmatpush1.xpose.msra.mxu0 %v2560
    %2566 = vmatprep.subr.mxu0 0.0
    %2567 = vmatpush1.xpose.msra.mxu0 0.0
    %2568 = vmatprep.subr.mxu0 0.0
    %2569 = vmatpush1.xpose.msra.mxu0 0.0
    %2570 = vmatprep.subr.mxu0 0.0
    %2571 = vmatpush1.xpose.msra.mxu0 0.0
    %2572 = vmatprep.subr.mxu0 0.0
    %2573 = vmatpush1.xpose.msra.mxu0 0.0
    %2574 = vmatprep.subr.mxu0 0.0
    %2575 = vmatpush1.xpose.msra.mxu0 0.0
    %2576 = vmatprep.subr.mxu0 0.0
    %2577 = vmatpush1.xpose.msra.mxu0 0.0
    %2578 = vmatprep.subr.mxu0 0.0
    %2579 = vmatpush1.xpose.msra.mxu0 0.0
    %2580 = vmatprep.subr.mxu0 0.0
    %2581 = vmatpush1.xpose.msra.mxu0 0.0
    %2582 = vmatprep.subr.mxu0 0.0
    %2583 = vmatpush1.xpose.msra.mxu0 0.0
    %2584 = vmatprep.subr.mxu0 0.0
    %2585 = vmatpush1.xpose.msra.mxu0 0.0
    %2586 = vmatprep.subr.mxu0 0.0
    %2587 = vmatpush1.xpose.msra.mxu0 0.0
    %2588 = vmatprep.subr.mxu0 0.0
    %2589 = vmatpush1.xpose.msra.mxu0 0.0
    %2590 = vmatprep.subr.mxu0 0.0
    %2591 = vmatpush1.xpose.msra.mxu0 0.0
    %2592 = vmatprep.subr.mxu0 0.0
    %2593 = vmatpush1.xpose.msra.mxu0 0.0
    %2594 = vmatprep.subr.mxu0 0.0
    %2595 = vmatpush1.xpose.msra.mxu0 0.0
    %2596 = vmatprep.subr.mxu0 0.0
    %2597 = vmatpush1.xpose.msra.mxu0 0.0
    %2598 = vmatprep.subr.mxu0 0.0
    %2599 = vmatpush1.xpose.msra.mxu0 0.0
    %2600 = vmatprep.subr.mxu0 0.0
    %2601 = vmatpush1.xpose.msra.mxu0 0.0
    %2602 = vmatprep.subr.mxu0 0.0
    %2603 = vmatpush1.xpose.msra.mxu0 0.0
    %2604 = vmatprep.subr.mxu0 0.0
    %2605 = vmatpush1.xpose.msra.mxu0 0.0
    %2606 = vmatprep.subr.mxu0 0.0
    %2607 = vmatpush1.xpose.msra.mxu0 0.0
    %2608 = vmatprep.subr.mxu0 0.0
    %2609 = vmatpush1.xpose.msra.mxu0 0.0
    %2610 = vmatprep.subr.mxu0 0.0
    %2611 = vmatpush1.xpose.msra.mxu0 0.0
    %2612 = vmatprep.subr.mxu0 0.0
    %2613 = vmatpush1.xpose.msra.mxu0 0.0
    %2614 = vmatprep.subr.mxu0 0.0
    %2615 = vmatpush1.xpose.msra.mxu0 0.0
    %2616 = vmatprep.subr.mxu0 0.0
    %2617 = vmatpush1.xpose.msra.mxu0 0.0
    %2618 = vmatprep.subr.mxu0 0.0
    %2619 = vmatpush1.xpose.msra.mxu0 0.0
    %2620 = vmatprep.subr.mxu0 0.0
    %2621 = vmatpush1.xpose.msra.mxu0 0.0
    %2622 = vmatprep.subr.mxu0 0.0
    %2623 = vmatpush1.xpose.msra.mxu0 0.0
    %2624 = vmatprep.subr.mxu0 0.0
    %2625 = vmatpush1.xpose.msra.mxu0 0.0
    %2626 = vmatprep.mubr.f32.mxu0 0.0
    %2627 = vmatmul.mubr.f32.gmra.mrb[0].mxu0 %v2554
    %v2628 = vpop.f32.mrb[0].mxu0
    %v2629 = vadd.f32 0.0, %v2628
    %v2630 = vpop.f32.mrb[0].mxu0
    %2631 = vmatprep.mubr.f32.mxu0 0.0
    %2632 = vmatmul.mubr.f32.gmra.mrb[0].mxu0 %v2556
    %v2633 = vpop.f32.mrb[0].mxu0
    %v2634 = vadd.f32 0.0, %v2633
    %v2635 = vpop.f32.mrb[0].mxu0
    %2636 = vdwg.mxu0
    %v2637 = vmul.f32 %v2629, 0.35355338
    %v2638 = vmul.f32 %v2634, 0.35355338
    %v2639 = vsel %vm469, %v2637, -inf
    %2640 = vmax.xlane.f32.xlu0 %v2639
    %v2641 = vpop.xlane.xlu0 %2640
    %v2642 = vsel %vm473, %v2638, -inf
    %2643 = vmax.xlane.f32.xlu0 %v2642
    %v2644 = vpop.xlane.xlu0 %2643
    %v2645 = vsub.f32 %v2637, %v2641
    %v2646 = vsub.f32 %v2638, %v2644
    %v2647 = vmul.f32 %v2645, 1.442695
    %v2648 = vpow.pop %v2647
    %v2649 = vmul.f32 %v2646, 1.442695
    %v2650 = vpow.pop %v2649
    %v2651 = vsel %vm469, %v2648, 0.0
    %2652 = vadd.xlane.f32.xlu0 %v2651
    %v2653 = vpop.xlane.xlu0 %2652
    %v2654 = vsel %vm473, %v2650, 0.0
    %2655 = vadd.xlane.f32.xlu0 %v2654
    %v2656 = vpop.xlane.xlu0 %2655
    %v2657 = vrcp.pop %v2653
    %v2658 = vrcp.pop %v2656
    %v2659 = vmul.f32 %v2648, %v2657
    %v2660 = vmul.f32 %v2650, %v2658
    %2661 = vrot.lane.b32.xlu0 %v1957, 48
    %v2662 = vpop.permute.xlu0 %2661
    %2663 = vrot.lane.b32.xlu0 %v1962, 48
    %v2664 = vpop.permute.xlu0 %2663
    %v2667 = vsel %vm469, %v2659, 0
    %v2670 = vsel %vm469, %v2660, 0
    %v2672 = vsel %vm504, %v2664, 0
    %2674 = vmatprep.subr.mxu0 0.0
    %2675 = vmatpush1.msra.mxu0 %v2662
    %2676 = vmatprep.subr.mxu0 0.0
    %2677 = vmatpush1.msra.mxu0 %v2672
    %2678 = vmatprep.subr.mxu0 0.0
    %2679 = vmatpush1.msra.mxu0 0.0
    %2680 = vmatprep.subr.mxu0 0.0
    %2681 = vmatpush1.msra.mxu0 0.0
    %2682 = vmatprep.subr.mxu0 0.0
    %2683 = vmatpush1.msra.mxu0 0.0
    %2684 = vmatprep.subr.mxu0 0.0
    %2685 = vmatpush1.msra.mxu0 0.0
    %2686 = vmatprep.subr.mxu0 0.0
    %2687 = vmatpush1.msra.mxu0 0.0
    %2688 = vmatprep.subr.mxu0 0.0
    %2689 = vmatpush1.msra.mxu0 0.0
    %2690 = vmatprep.subr.mxu0 0.0
    %2691 = vmatpush1.msra.mxu0 0.0
    %2692 = vmatprep.subr.mxu0 0.0
    %2693 = vmatpush1.msra.mxu0 0.0
    %2694 = vmatprep.subr.mxu0 0.0
    %2695 = vmatpush1.msra.mxu0 0.0
    %2696 = vmatprep.subr.mxu0 0.0
    %2697 = vmatpush1.msra.mxu0 0.0
    %2698 = vmatprep.subr.mxu0 0.0
    %2699 = vmatpush1.msra.mxu0 0.0
    %2700 = vmatprep.subr.mxu0 0.0
    %2701 = vmatpush1.msra.mxu0 0.0
    %2702 = vmatprep.subr.mxu0 0.0
    %2703 = vmatpush1.msra.mxu0 0.0
    %2704 = vmatprep.subr.mxu0 0.0
    %2705 = vmatpush1.msra.mxu0 0.0
    %2706 = vmatprep.subr.mxu0 0.0
    %2707 = vmatpush1.msra.mxu0 0.0
    %2708 = vmatprep.subr.mxu0 0.0
    %2709 = vmatpush1.msra.mxu0 0.0
    %2710 = vmatprep.subr.mxu0 0.0
    %2711 = vmatpush1.msra.mxu0 0.0
    %2712 = vmatprep.subr.mxu0 0.0
    %2713 = vmatpush1.msra.mxu0 0.0
    %2714 = vmatprep.subr.mxu0 0.0
    %2715 = vmatpush1.msra.mxu0 0.0
    %2716 = vmatprep.subr.mxu0 0.0
    %2717 = vmatpush1.msra.mxu0 0.0
    %2718 = vmatprep.subr.mxu0 0.0
    %2719 = vmatpush1.msra.mxu0 0.0
    %2720 = vmatprep.subr.mxu0 0.0
    %2721 = vmatpush1.msra.mxu0 0.0
    %2722 = vmatprep.subr.mxu0 0.0
    %2723 = vmatpush1.msra.mxu0 0.0
    %2724 = vmatprep.subr.mxu0 0.0
    %2725 = vmatpush1.msra.mxu0 0.0
    %2726 = vmatprep.subr.mxu0 0.0
    %2727 = vmatpush1.msra.mxu0 0.0
    %2728 = vmatprep.subr.mxu0 0.0
    %2729 = vmatpush1.msra.mxu0 0.0
    %2730 = vmatprep.subr.mxu0 0.0
    %2731 = vmatpush1.msra.mxu0 0.0
    %2732 = vmatprep.subr.mxu0 0.0
    %2733 = vmatpush1.msra.mxu0 0.0
    %2734 = vmatprep.subr.mxu0 0.0
    %2735 = vmatpush1.msra.mxu0 0.0
    %2736 = vmatprep.subr.mxu0 0.0
    %2737 = vmatpush1.msra.mxu0 0.0
    %2738 = vmatprep.mubr.f32.mxu0 0.0
    %2739 = vmatmul.mubr.f32.gmra.mrb[0].mxu0 %v2667
    %v2740 = vpop.f32.mrb[0].mxu0
    %v2741 = vadd.f32 0.0, %v2740
    %v2742 = vpop.f32.mrb[0].mxu0
    %2743 = vmatprep.mubr.f32.mxu0 0.0
    %2744 = vmatmul.mubr.f32.gmra.mrb[0].mxu0 %v2670
    %v2745 = vpop.f32.mrb[0].mxu0
    %v2746 = vadd.f32 0.0, %v2745
    %v2747 = vpop.f32.mrb[0].mxu0
    %2748 = vdwg.mxu0
    %v2749 = vld [vmem:[%s2168 + $0x10] sm:$0xff]
    %v2751 = vsel %vm383, %v2741, 0
    %v2754 = vsel %vm383, %v2746, 0
    %2756 = vmatprep.subr.mxu0 0.0
    %2757 = vmatpush1.msra.mxu0 %v2749
    %2758 = vmatprep.subr.mxu0 0.0
    %2759 = vmatpush1.msra.mxu0 0.0
    %2760 = vmatprep.subr.mxu0 0.0
    %2761 = vmatpush1.msra.mxu0 0.0
    %2762 = vmatprep.subr.mxu0 0.0
    %2763 = vmatpush1.msra.mxu0 0.0
    %2764 = vmatprep.subr.mxu0 0.0
    %2765 = vmatpush1.msra.mxu0 0.0
    %2766 = vmatprep.subr.mxu0 0.0
    %2767 = vmatpush1.msra.mxu0 0.0
    %2768 = vmatprep.subr.mxu0 0.0
    %2769 = vmatpush1.msra.mxu0 0.0
    %2770 = vmatprep.subr.mxu0 0.0
    %2771 = vmatpush1.msra.mxu0 0.0
    %2772 = vmatprep.subr.mxu0 0.0
    %2773 = vmatpush1.msra.mxu0 0.0
    %2774 = vmatprep.subr.mxu0 0.0
    %2775 = vmatpush1.msra.mxu0 0.0
    %2776 = vmatprep.subr.mxu0 0.0
    %2777 = vmatpush1.msra.mxu0 0.0
    %2778 = vmatprep.subr.mxu0 0.0
    %2779 = vmatpush1.msra.mxu0 0.0
    %2780 = vmatprep.subr.mxu0 0.0
    %2781 = vmatpush1.msra.mxu0 0.0
    %2782 = vmatprep.subr.mxu0 0.0
    %2783 = vmatpush1.msra.mxu0 0.0
    %2784 = vmatprep.subr.mxu0 0.0
    %2785 = vmatpush1.msra.mxu0 0.0
    %2786 = vmatprep.subr.mxu0 0.0
    %2787 = vmatpush1.msra.mxu0 0.0
    %2788 = vmatprep.subr.mxu0 0.0
    %2789 = vmatpush1.msra.mxu0 0.0
    %2790 = vmatprep.subr.mxu0 0.0
    %2791 = vmatpush1.msra.mxu0 0.0
    %2792 = vmatprep.subr.mxu0 0.0
    %2793 = vmatpush1.msra.mxu0 0.0
    %2794 = vmatprep.subr.mxu0 0.0
    %2795 = vmatpush1.msra.mxu0 0.0
    %2796 = vmatprep.subr.mxu0 0.0
    %2797 = vmatpush1.msra.mxu0 0.0
    %2798 = vmatprep.subr.mxu0 0.0
    %2799 = vmatpush1.msra.mxu0 0.0
    %2800 = vmatprep.subr.mxu0 0.0
    %2801 = vmatpush1.msra.mxu0 0.0
    %2802 = vmatprep.subr.mxu0 0.0
    %2803 = vmatpush1.msra.mxu0 0.0
    %2804 = vmatprep.subr.mxu0 0.0
    %2805 = vmatpush1.msra.mxu0 0.0
    %2806 = vmatprep.subr.mxu0 0.0
    %2807 = vmatpush1.msra.mxu0 0.0
    %2808 = vmatprep.subr.mxu0 0.0
    %2809 = vmatpush1.msra.mxu0 0.0
    %2810 = vmatprep.subr.mxu0 0.0
    %2811 = vmatpush1.msra.mxu0 0.0
    %2812 = vmatprep.subr.mxu0 0.0
    %2813 = vmatpush1.msra.mxu0 0.0
    %2814 = vmatprep.subr.mxu0 0.0
    %2815 = vmatpush1.msra.mxu0 0.0
    %2816 = vmatprep.subr.mxu0 0.0
    %2817 = vmatpush1.msra.mxu0 0.0
    %2818 = vmatprep.subr.mxu0 0.0
    %2819 = vmatpush1.msra.mxu0 0.0
    %2820 = vmatprep.mubr.f32.mxu0 0.0
    %2821 = vmatmul.mubr.f32.gmra.mrb[0].mxu0 %v2751
    %v2822 = vpop.f32.mrb[0].mxu0
    %v2823 = vadd.f32 0.0, %v2822
    %v2824 = vpop.f32.mrb[0].mxu0
    %2825 = vmatprep.mubr.f32.mxu0 0.0
    %2826 = vmatmul.mubr.f32.gmra.mrb[0].mxu0 %v2754
    %v2827 = vpop.f32.mrb[0].mxu0
    %v2828 = vadd.f32 0.0, %v2827
    %v2829 = vpop.f32.mrb[0].mxu0
    %2830 = vdwg.mxu0
    %v2831 = vadd.f32 %v2544, %v2823
    %v2832 = vadd.f32 %v2545, %v2828
    %2833 = vrot.lane.b32.xlu0 %v1957, 104
    %v2834 = vpop.permute.xlu0 %2833
    %2835 = vrot.lane.b32.xlu0 %v1962, 104
    %v2836 = vpop.permute.xlu0 %2835
    %2837 = vrot.lane.b32.xlu0 %v1957, 72
    %v2838 = vpop.permute.xlu0 %2837
    %2839 = vrot.lane.b32.xlu0 %v1962, 72
    %v2840 = vpop.permute.xlu0 %2839
    %v2841 = vsel %vm383, %v2834, 0
    %v2843 = vsel %vm383, %v2836, 0
    %v2845 = vsel %vm383, %v2838, 0
    %v2847 = vsel %vm383, %v2840, 0
    %2849 = vmatprep.subr.mxu0 0.0
    %2850 = vmatpush1.xpose.msra.mxu0 %v2845
    %2851 = vmatprep.subr.mxu0 0.0
    %2852 = vmatpush1.xpose.msra.mxu0 %v2847
    %2853 = vmatprep.subr.mxu0 0.0
    %2854 = vmatpush1.xpose.msra.mxu0 0.0
    %2855 = vmatprep.subr.mxu0 0.0
    %2856 = vmatpush1.xpose.msra.mxu0 0.0
    %2857 = vmatprep.subr.mxu0 0.0
    %2858 = vmatpush1.xpose.msra.mxu0 0.0
    %2859 = vmatprep.subr.mxu0 0.0
    %2860 = vmatpush1.xpose.msra.mxu0 0.0
    %2861 = vmatprep.subr.mxu0 0.0
    %2862 = vmatpush1.xpose.msra.mxu0 0.0
    %2863 = vmatprep.subr.mxu0 0.0
    %2864 = vmatpush1.xpose.msra.mxu0 0.0
    %2865 = vmatprep.subr.mxu0 0.0
    %2866 = vmatpush1.xpose.msra.mxu0 0.0
    %2867 = vmatprep.subr.mxu0 0.0
    %2868 = vmatpush1.xpose.msra.mxu0 0.0
    %2869 = vmatprep.subr.mxu0 0.0
    %2870 = vmatpush1.xpose.msra.mxu0 0.0
    %2871 = vmatprep.subr.mxu0 0.0
    %2872 = vmatpush1.xpose.msra.mxu0 0.0
    %2873 = vmatprep.subr.mxu0 0.0
    %2874 = vmatpush1.xpose.msra.mxu0 0.0
    %2875 = vmatprep.subr.mxu0 0.0
    %2876 = vmatpush1.xpose.msra.mxu0 0.0
    %2877 = vmatprep.subr.mxu0 0.0
    %2878 = vmatpush1.xpose.msra.mxu0 0.0
    %2879 = vmatprep.subr.mxu0 0.0
    %2880 = vmatpush1.xpose.msra.mxu0 0.0
    %2881 = vmatprep.subr.mxu0 0.0
    %2882 = vmatpush1.xpose.msra.mxu0 0.0
    %2883 = vmatprep.subr.mxu0 0.0
    %2884 = vmatpush1.xpose.msra.mxu0 0.0
    %2885 = vmatprep.subr.mxu0 0.0
    %2886 = vmatpush1.xpose.msra.mxu0 0.0
    %2887 = vmatprep.subr.mxu0 0.0
    %2888 = vmatpush1.xpose.msra.mxu0 0.0
    %2889 = vmatprep.subr.mxu0 0.0
    %2890 = vmatpush1.xpose.msra.mxu0 0.0
    %2891 = vmatprep.subr.mxu0 0.0
    %2892 = vmatpush1.xpose.msra.mxu0 0.0
    %2893 = vmatprep.subr.mxu0 0.0
    %2894 = vmatpush1.xpose.msra.mxu0 0.0
    %2895 = vmatprep.subr.mxu0 0.0
    %2896 = vmatpush1.xpose.msra.mxu0 0.0
    %2897 = vmatprep.subr.mxu0 0.0
    %2898 = vmatpush1.xpose.msra.mxu0 0.0
    %2899 = vmatprep.subr.mxu0 0.0
    %2900 = vmatpush1.xpose.msra.mxu0 0.0
    %2901 = vmatprep.subr.mxu0 0.0
    %2902 = vmatpush1.xpose.msra.mxu0 0.0
    %2903 = vmatprep.subr.mxu0 0.0
    %2904 = vmatpush1.xpose.msra.mxu0 0.0
    %2905 = vmatprep.subr.mxu0 0.0
    %2906 = vmatpush1.xpose.msra.mxu0 0.0
    %2907 = vmatprep.subr.mxu0 0.0
    %2908 = vmatpush1.xpose.msra.mxu0 0.0
    %2909 = vmatprep.subr.mxu0 0.0
    %2910 = vmatpush1.xpose.msra.mxu0 0.0
    %2911 = vmatprep.subr.mxu0 0.0
    %2912 = vmatpush1.xpose.msra.mxu0 0.0
    %2913 = vmatprep.mubr.f32.mxu0 0.0
    %2914 = vmatmul.mubr.f32.gmra.mrb[0].mxu0 %v2841
    %v2915 = vpop.f32.mrb[0].mxu0
    %v2916 = vadd.f32 0.0, %v2915
    %v2917 = vpop.f32.mrb[0].mxu0
    %2918 = vmatprep.mubr.f32.mxu0 0.0
    %2919 = vmatmul.mubr.f32.gmra.mrb[0].mxu0 %v2843
    %v2920 = vpop.f32.mrb[0].mxu0
    %v2921 = vadd.f32 0.0, %v2920
    %v2922 = vpop.f32.mrb[0].mxu0
    %2923 = vdwg.mxu0
    %v2924 = vmul.f32 %v2916, 0.35355338
    %v2925 = vmul.f32 %v2921, 0.35355338
    %v2926 = vsel %vm469, %v2924, -inf
    %2927 = vmax.xlane.f32.xlu0 %v2926
    %v2928 = vpop.xlane.xlu0 %2927
    %v2929 = vsel %vm473, %v2925, -inf
    %2930 = vmax.xlane.f32.xlu0 %v2929
    %v2931 = vpop.xlane.xlu0 %2930
    %v2932 = vsub.f32 %v2924, %v2928
    %v2933 = vsub.f32 %v2925, %v2931
    %v2934 = vmul.f32 %v2932, 1.442695
    %v2935 = vpow.pop %v2934
    %v2936 = vmul.f32 %v2933, 1.442695
    %v2937 = vpow.pop %v2936
    %v2938 = vsel %vm469, %v2935, 0.0
    %2939 = vadd.xlane.f32.xlu0 %v2938
    %v2940 = vpop.xlane.xlu0 %2939
    %v2941 = vsel %vm473, %v2937, 0.0
    %2942 = vadd.xlane.f32.xlu0 %v2941
    %v2943 = vpop.xlane.xlu0 %2942
    %v2944 = vrcp.pop %v2940
    %v2945 = vrcp.pop %v2943
    %v2946 = vmul.f32 %v2935, %v2944
    %v2947 = vmul.f32 %v2937, %v2945
    %2948 = vrot.lane.b32.xlu0 %v1957, 40
    %v2949 = vpop.permute.xlu0 %2948
    %2950 = vrot.lane.b32.xlu0 %v1962, 40
    %v2951 = vpop.permute.xlu0 %2950
    %v2954 = vsel %vm469, %v2946, 0
    %v2957 = vsel %vm469, %v2947, 0
    %v2959 = vsel %vm504, %v2951, 0
    %2961 = vmatprep.subr.mxu0 0.0
    %2962 = vmatpush1.msra.mxu0 %v2949
    %2963 = vmatprep.subr.mxu0 0.0
    %2964 = vmatpush1.msra.mxu0 %v2959
    %2965 = vmatprep.subr.mxu0 0.0
    %2966 = vmatpush1.msra.mxu0 0.0
    %2967 = vmatprep.subr.mxu0 0.0
    %2968 = vmatpush1.msra.mxu0 0.0
    %2969 = vmatprep.subr.mxu0 0.0
    %2970 = vmatpush1.msra.mxu0 0.0
    %2971 = vmatprep.subr.mxu0 0.0
    %2972 = vmatpush1.msra.mxu0 0.0
    %2973 = vmatprep.subr.mxu0 0.0
    %2974 = vmatpush1.msra.mxu0 0.0
    %2975 = vmatprep.subr.mxu0 0.0
    %2976 = vmatpush1.msra.mxu0 0.0
    %2977 = vmatprep.subr.mxu0 0.0
    %2978 = vmatpush1.msra.mxu0 0.0
    %2979 = vmatprep.subr.mxu0 0.0
    %2980 = vmatpush1.msra.mxu0 0.0
    %2981 = vmatprep.subr.mxu0 0.0
    %2982 = vmatpush1.msra.mxu0 0.0
    %2983 = vmatprep.subr.mxu0 0.0
    %2984 = vmatpush1.msra.mxu0 0.0
    %2985 = vmatprep.subr.mxu0 0.0
    %2986 = vmatpush1.msra.mxu0 0.0
    %2987 = vmatprep.subr.mxu0 0.0
    %2988 = vmatpush1.msra.mxu0 0.0
    %2989 = vmatprep.subr.mxu0 0.0
    %2990 = vmatpush1.msra.mxu0 0.0
    %2991 = vmatprep.subr.mxu0 0.0
    %2992 = vmatpush1.msra.mxu0 0.0
    %2993 = vmatprep.subr.mxu0 0.0
    %2994 = vmatpush1.msra.mxu0 0.0
    %2995 = vmatprep.subr.mxu0 0.0
    %2996 = vmatpush1.msra.mxu0 0.0
    %2997 = vmatprep.subr.mxu0 0.0
    %2998 = vmatpush1.msra.mxu0 0.0
    %2999 = vmatprep.subr.mxu0 0.0
    %3000 = vmatpush1.msra.mxu0 0.0
    %3001 = vmatprep.subr.mxu0 0.0
    %3002 = vmatpush1.msra.mxu0 0.0
    %3003 = vmatprep.subr.mxu0 0.0
    %3004 = vmatpush1.msra.mxu0 0.0
    %3005 = vmatprep.subr.mxu0 0.0
    %3006 = vmatpush1.msra.mxu0 0.0
    %3007 = vmatprep.subr.mxu0 0.0
    %3008 = vmatpush1.msra.mxu0 0.0
    %3009 = vmatprep.subr.mxu0 0.0
    %3010 = vmatpush1.msra.mxu0 0.0
    %3011 = vmatprep.subr.mxu0 0.0
    %3012 = vmatpush1.msra.mxu0 0.0
    %3013 = vmatprep.subr.mxu0 0.0
    %3014 = vmatpush1.msra.mxu0 0.0
    %3015 = vmatprep.subr.mxu0 0.0
    %3016 = vmatpush1.msra.mxu0 0.0
    %3017 = vmatprep.subr.mxu0 0.0
    %3018 = vmatpush1.msra.mxu0 0.0
    %3019 = vmatprep.subr.mxu0 0.0
    %3020 = vmatpush1.msra.mxu0 0.0
    %3021 = vmatprep.subr.mxu0 0.0
    %3022 = vmatpush1.msra.mxu0 0.0
    %3023 = vmatprep.subr.mxu0 0.0
    %3024 = vmatpush1.msra.mxu0 0.0
    %3025 = vmatprep.mubr.f32.mxu0 0.0
    %3026 = vmatmul.mubr.f32.gmra.mrb[0].mxu0 %v2954
    %v3027 = vpop.f32.mrb[0].mxu0
    %v3028 = vadd.f32 0.0, %v3027
    %v3029 = vpop.f32.mrb[0].mxu0
    %3030 = vmatprep.mubr.f32.mxu0 0.0
    %3031 = vmatmul.mubr.f32.gmra.mrb[0].mxu0 %v2957
    %v3032 = vpop.f32.mrb[0].mxu0
    %v3033 = vadd.f32 0.0, %v3032
    %v3034 = vpop.f32.mrb[0].mxu0
    %3035 = vdwg.mxu0
    %v3036 = vld [vmem:[%s2168 + $0x18] sm:$0xff]
    %v3038 = vsel %vm383, %v3028, 0
    %v3041 = vsel %vm383, %v3033, 0
    %3043 = vmatprep.subr.mxu0 0.0
    %3044 = vmatpush1.msra.mxu0 %v3036
    %3045 = vmatprep.subr.mxu0 0.0
    %3046 = vmatpush1.msra.mxu0 0.0
    %3047 = vmatprep.subr.mxu0 0.0
    %3048 = vmatpush1.msra.mxu0 0.0
    %3049 = vmatprep.subr.mxu0 0.0
    %3050 = vmatpush1.msra.mxu0 0.0
    %3051 = vmatprep.subr.mxu0 0.0
    %3052 = vmatpush1.msra.mxu0 0.0
    %3053 = vmatprep.subr.mxu0 0.0
    %3054 = vmatpush1.msra.mxu0 0.0
    %3055 = vmatprep.subr.mxu0 0.0
    %3056 = vmatpush1.msra.mxu0 0.0
    %3057 = vmatprep.subr.mxu0 0.0
    %3058 = vmatpush1.msra.mxu0 0.0
    %3059 = vmatprep.subr.mxu0 0.0
    %3060 = vmatpush1.msra.mxu0 0.0
    %3061 = vmatprep.subr.mxu0 0.0
    %3062 = vmatpush1.msra.mxu0 0.0
    %3063 = vmatprep.subr.mxu0 0.0
    %3064 = vmatpush1.msra.mxu0 0.0
    %3065 = vmatprep.subr.mxu0 0.0
    %3066 = vmatpush1.msra.mxu0 0.0
    %3067 = vmatprep.subr.mxu0 0.0
    %3068 = vmatpush1.msra.mxu0 0.0
    %3069 = vmatprep.subr.mxu0 0.0
    %3070 = vmatpush1.msra.mxu0 0.0
    %3071 = vmatprep.subr.mxu0 0.0
    %3072 = vmatpush1.msra.mxu0 0.0
    %3073 = vmatprep.subr.mxu0 0.0
    %3074 = vmatpush1.msra.mxu0 0.0
    %3075 = vmatprep.subr.mxu0 0.0
    %3076 = vmatpush1.msra.mxu0 0.0
    %3077 = vmatprep.subr.mxu0 0.0
    %3078 = vmatpush1.msra.mxu0 0.0
    %3079 = vmatprep.subr.mxu0 0.0
    %3080 = vmatpush1.msra.mxu0 0.0
    %3081 = vmatprep.subr.mxu0 0.0
    %3082 = vmatpush1.msra.mxu0 0.0
    %3083 = vmatprep.subr.mxu0 0.0
    %3084 = vmatpush1.msra.mxu0 0.0
    %3085 = vmatprep.subr.mxu0 0.0
    %3086 = vmatpush1.msra.mxu0 0.0
    %3087 = vmatprep.subr.mxu0 0.0
    %3088 = vmatpush1.msra.mxu0 0.0
    %3089 = vmatprep.subr.mxu0 0.0
    %3090 = vmatpush1.msra.mxu0 0.0
    %3091 = vmatprep.subr.mxu0 0.0
    %3092 = vmatpush1.msra.mxu0 0.0
    %3093 = vmatprep.subr.mxu0 0.0
    %3094 = vmatpush1.msra.mxu0 0.0
    %3095 = vmatprep.subr.mxu0 0.0
    %3096 = vmatpush1.msra.mxu0 0.0
    %3097 = vmatprep.subr.mxu0 0.0
    %3098 = vmatpush1.msra.mxu0 0.0
    %3099 = vmatprep.subr.mxu0 0.0
    %3100 = vmatpush1.msra.mxu0 0.0
    %3101 = vmatprep.subr.mxu0 0.0
    %3102 = vmatpush1.msra.mxu0 0.0
    %3103 = vmatprep.subr.mxu0 0.0
    %3104 = vmatpush1.msra.mxu0 0.0
    %3105 = vmatprep.subr.mxu0 0.0
    %3106 = vmatpush1.msra.mxu0 0.0
    %3107 = vmatprep.mubr.f32.mxu0 0.0
    %3108 = vmatmul.mubr.f32.gmra.mrb[0].mxu0 %v3038
    %v3109 = vpop.f32.mrb[0].mxu0
    %v3110 = vadd.f32 0.0, %v3109
    %v3111 = vpop.f32.mrb[0].mxu0
    %3112 = vmatprep.mubr.f32.mxu0 0.0
    %3113 = vmatmul.mubr.f32.gmra.mrb[0].mxu0 %v3041
    %v3114 = vpop.f32.mrb[0].mxu0
    %v3115 = vadd.f32 0.0, %v3114
    %v3116 = vpop.f32.mrb[0].mxu0
    %3117 = vdwg.mxu0
    %v3118 = vadd.f32 %v2831, %v3110
    %v3119 = vadd.f32 %v2832, %v3115
    %v3120 = vadd.f32 %v1869, %v3118
    %v3121 = vadd.f32 %v1870, %v3119
    %s3122 = scalar_lea.vmem %s7, 1
    %v3123 = vld [vmem:[%s3122] sm:$0x1]
    %s3124 = scalar_lea.vmem %s8, 1
    %v3125 = vld [vmem:[%s3124] sm:$0x1]
    %v3126 = vsel %vm294, %v3120, 0.0
    %3127 = vadd.xlane.f32.xlu0 %v3126
    %v3128 = vpop.xlane.xlu0 %3127
    %v3129 = vsel %vm1540, %v3121, 0.0
    %3130 = vadd.xlane.f32.xlu0 %v3129
    %v3131 = vpop.xlane.xlu0 %3130
    %v3132 = vmul.f32 %v3128, %v1544
    %v3133 = vmul.f32 %v3131, %v1544
    %v3134 = vsub.f32 %v3120, %v3132
    %v3135 = vsub.f32 %v3121, %v3133
    %v3136 = vmul.f32 %v3134, %v3134
    %v3137 = vmul.f32 %v3135, %v3135
    %v3138 = vsel %vm294, %v3136, 0.0
    %3139 = vadd.xlane.f32.xlu0 %v3138
    %v3140 = vpop.xlane.xlu0 %3139
    %v3141 = vsel %vm1540, %v3137, 0.0
    %3142 = vadd.xlane.f32.xlu0 %v3141
    %v3143 = vpop.xlane.xlu0 %3142
    %v3144 = vmul.f32 %v3140, %v1544
    %v3145 = vmul.f32 %v3143, %v1544
    %v3146 = vadd.f32 %v3144, 1e-05
    %v3147 = vadd.f32 %v3145, 1e-05
    %v3148 = vrsqrt.pop %v3146
    %v3149 = vrsqrt.pop %v3147
    %v3150 = vmul.f32 %v3134, %v3148
    %v3151 = vmul.f32 %v3135, %v3149
    %v3153 = vlaneseq
    %v3154 = vshrl.u32 %v3153, 7
    %v3155 = vsub.s32 0, %v3154
    %v3156 = vrot.slane %v3123, %v3155
    %v3158 = vmul.f32 %v3150, %v3156
    %v3159 = vmul.f32 %v3151, %v3156
    %v3161 = vlaneseq
    %v3162 = vshrl.u32 %v3161, 7
    %v3163 = vsub.s32 0, %v3162
    %v3164 = vrot.slane %v3125, %v3163
    %v3166 = vadd.f32 %v3158, %v3164
    %v3167 = vadd.f32 %v3159, %v3164
    %s3168 = scalar_lea.vmem %s9, 32
    %v3169 = vld [vmem:[%s3168] sm:$0xff]
    %v3170 = vld [vmem:[%s3168 + $0x8] sm:$0xff]
    %v3171 = vld [vmem:[%s3168 + $0x10] sm:$0xff]
    %v3172 = vld [vmem:[%s3168 + $0x18] sm:$0xff]
    %s3173 = scalar_lea.vmem %s10, 1
    %v3174 = vld [vmem:[%s3173] sm:$0x1]
    %v3176 = vlaneseq
    %v3177 = vshrl.u32 %v3176, 7
    %v3178 = vsub.s32 0, %v3177
    %v3179 = vrot.slane %v3174, %v3178
    %v3182 = vsel %vm294, %v3166, 0
    %v3185 = vsel %vm294, %v3167, 0
    %3187 = vmatprep.subr.mxu0 0.0
    %3188 = vmatpush1.msra.mxu0 %v3169
    %3189 = vmatprep.subr.mxu0 0.0
    %3190 = vmatpush1.msra.mxu0 %v3170
    %3191 = vmatprep.subr.mxu0 0.0
    %3192 = vmatpush1.msra.mxu0 %v3171
    %3193 = vmatprep.subr.mxu0 0.0
    %3194 = vmatpush1.msra.mxu0 %v3172
    %3195 = vmatprep.subr.mxu0 0.0
    %3196 = vmatpush1.msra.mxu0 0.0
    %3197 = vmatprep.subr.mxu0 0.0
    %3198 = vmatpush1.msra.mxu0 0.0
    %3199 = vmatprep.subr.mxu0 0.0
    %3200 = vmatpush1.msra.mxu0 0.0
    %3201 = vmatprep.subr.mxu0 0.0
    %3202 = vmatpush1.msra.mxu0 0.0
    %3203 = vmatprep.subr.mxu0 0.0
    %3204 = vmatpush1.msra.mxu0 0.0
    %3205 = vmatprep.subr.mxu0 0.0
    %3206 = vmatpush1.msra.mxu0 0.0
    %3207 = vmatprep.subr.mxu0 0.0
    %3208 = vmatpush1.msra.mxu0 0.0
    %3209 = vmatprep.subr.mxu0 0.0
    %3210 = vmatpush1.msra.mxu0 0.0
    %3211 = vmatprep.subr.mxu0 0.0
    %3212 = vmatpush1.msra.mxu0 0.0
    %3213 = vmatprep.subr.mxu0 0.0
    %3214 = vmatpush1.msra.mxu0 0.0
    %3215 = vmatprep.subr.mxu0 0.0
    %3216 = vmatpush1.msra.mxu0 0.0
    %3217 = vmatprep.subr.mxu0 0.0
    %3218 = vmatpush1.msra.mxu0 0.0
    %3219 = vmatprep.subr.mxu0 0.0
    %3220 = vmatpush1.msra.mxu0 0.0
    %3221 = vmatprep.subr.mxu0 0.0
    %3222 = vmatpush1.msra.mxu0 0.0
    %3223 = vmatprep.subr.mxu0 0.0
    %3224 = vmatpush1.msra.mxu0 0.0
    %3225 = vmatprep.subr.mxu0 0.0
    %3226 = vmatpush1.msra.mxu0 0.0
    %3227 = vmatprep.subr.mxu0 0.0
    %3228 = vmatpush1.msra.mxu0 0.0
    %3229 = vmatprep.subr.mxu0 0.0
    %3230 = vmatpush1.msra.mxu0 0.0
    %3231 = vmatprep.subr.mxu0 0.0
    %3232 = vmatpush1.msra.mxu0 0.0
    %3233 = vmatprep.subr.mxu0 0.0
    %3234 = vmatpush1.msra.mxu0 0.0
    %3235 = vmatprep.subr.mxu0 0.0
    %3236 = vmatpush1.msra.mxu0 0.0
    %3237 = vmatprep.subr.mxu0 0.0
    %3238 = vmatpush1.msra.mxu0 0.0
    %3239 = vmatprep.subr.mxu0 0.0
    %3240 = vmatpush1.msra.mxu0 0.0
    %3241 = vmatprep.subr.mxu0 0.0
    %3242 = vmatpush1.msra.mxu0 0.0
    %3243 = vmatprep.subr.mxu0 0.0
    %3244 = vmatpush1.msra.mxu0 0.0
    %3245 = vmatprep.subr.mxu0 0.0
    %3246 = vmatpush1.msra.mxu0 0.0
    %3247 = vmatprep.subr.mxu0 0.0
    %3248 = vmatpush1.msra.mxu0 0.0
    %3249 = vmatprep.subr.mxu0 0.0
    %3250 = vmatpush1.msra.mxu0 0.0
    %3251 = vmatprep.mubr.f32.mxu0 0.0
    %3252 = vmatmul.mubr.f32.gmra.mrb[0].mxu0 %v3182
    %v3253 = vpop.f32.mrb[0].mxu0
    %v3254 = vadd.f32 %v3179, %v3253
    %v3255 = vpop.f32.mrb[0].mxu0
    %3256 = vmatprep.mubr.f32.mxu0 0.0
    %3257 = vmatmul.mubr.f32.gmra.mrb[0].mxu0 %v3185
    %v3258 = vpop.f32.mrb[0].mxu0
    %v3259 = vadd.f32 %v3179, %v3258
    %v3260 = vpop.f32.mrb[0].mxu0
    %3261 = vdwg.mxu0
    %v3262 = vmul.f32 %v3254, 0.5
    %v3263 = vmul.f32 %v3259, 0.5
    %v3264 = vmul.f32 %v3254, 0.70710677
    %v3265 = vmul.f32 %v3259, 0.70710677
    %v3266 = vand.u32 2147483647, %v3264
    %v3267 = vand.u32 2147483647, %v3265
    %v3268 = vmul.f32 %v3266, 0.3275911
    %v3269 = vmul.f32 %v3267, 0.3275911
    %v3270 = vadd.f32 %v3268, 1.0
    %v3271 = vadd.f32 %v3269, 1.0
    %v3272 = vrcp.pop %v3270
    %v3273 = vmul.f32 1.0, %v3272
    %v3274 = vrcp.pop %v3271
    %v3275 = vmul.f32 1.0, %v3274
    %v3276 = vmul.f32 %v3273, 1.0614054
    %v3277 = vmul.f32 %v3275, 1.0614054
    %v3278 = vadd.f32 %v3276, -1.4531521
    %v3279 = vadd.f32 %v3277, -1.4531521
    %v3280 = vmul.f32 %v3278, %v3273
    %v3281 = vmul.f32 %v3279, %v3275
    %v3282 = vadd.f32 %v3280, 1.4214138
    %v3283 = vadd.f32 %v3281, 1.4214138
    %v3284 = vmul.f32 %v3282, %v3273
    %v3285 = vmul.f32 %v3283, %v3275
    %v3286 = vadd.f32 %v3284, -0.28449672
    %v3287 = vadd.f32 %v3285, -0.28449672
    %v3288 = vmul.f32 %v3286, %v3273
    %v3289 = vmul.f32 %v3287, %v3275
    %v3290 = vadd.f32 %v3288, 0.2548296
    %v3291 = vadd.f32 %v3289, 0.2548296
    %v3292 = vmul.f32 %v3290, %v3273
    %v3293 = vmul.f32 %v3291, %v3275
    %v3294 = vsub.f32 0.0, %v3266
    %v3295 = vsub.f32 0.0, %v3267
    %v3296 = vmul.f32 %v3294, %v3266
    %v3297 = vmul.f32 %v3295, %v3267
    %v3298 = vmul.f32 %v3296, 1.442695
    %v3299 = vpow.pop %v3298
    %v3300 = vmul.f32 %v3297, 1.442695
    %v3301 = vpow.pop %v3300
    %v3302 = vmul.f32 %v3292, %v3299
    %v3303 = vmul.f32 %v3293, %v3301
    %v3304 = vsub.f32 1.0, %v3302
    %v3305 = vsub.f32 1.0, %v3303
    %vm3306 = vcmp.ge.f32.partialorder %v3264, 0.0
    %vm3307 = vcmp.ge.f32.partialorder %v3265, 0.0
    %v3308 = vsub.f32 0.0, %v3304
    %v3309 = vsub.f32 0.0, %v3305
    %v3310 = vsel %vm3306, %v3304, %v3308
    %v3311 = vsel %vm3307, %v3305, %v3309
    %v3312 = vadd.f32 %v3310, 1.0
    %v3313 = vadd.f32 %v3311, 1.0
    %v3314 = vmul.f32 %v3262, %v3312
    %v3315 = vmul.f32 %v3263, %v3313
    %s3316 = scalar_lea.vmem %s11, 128
    %v3317 = vld [vmem:[%s3316] sm:$0xff]
    %v3318 = vld [vmem:[%s3316 + $0x8] sm:$0xff]
    %v3319 = vld [vmem:[%s3316 + $0x10] sm:$0xff]
    %v3320 = vld [vmem:[%s3316 + $0x18] sm:$0xff]
    %v3321 = vld [vmem:[%s3316 + $0x20] sm:$0xff]
    %v3322 = vld [vmem:[%s3316 + $0x28] sm:$0xff]
    %v3323 = vld [vmem:[%s3316 + $0x30] sm:$0xff]
    %v3324 = vld [vmem:[%s3316 + $0x38] sm:$0xff]
    %v3325 = vld [vmem:[%s3316 + $0x40] sm:$0xff]
    %v3326 = vld [vmem:[%s3316 + $0x48] sm:$0xff]
    %v3327 = vld [vmem:[%s3316 + $0x50] sm:$0xff]
    %v3328 = vld [vmem:[%s3316 + $0x58] sm:$0xff]
    %v3329 = vld [vmem:[%s3316 + $0x60] sm:$0xff]
    %v3330 = vld [vmem:[%s3316 + $0x68] sm:$0xff]
    %v3331 = vld [vmem:[%s3316 + $0x70] sm:$0xff]
    %v3332 = vld [vmem:[%s3316 + $0x78] sm:$0xff]
    %s3333 = scalar_lea.vmem %s12, 1
    %v3334 = vld [vmem:[%s3333] sm:$0x1]
    %v3336 = vlaneseq
    %v3337 = vshrl.u32 %v3336, 7
    %v3338 = vsub.s32 0, %v3337
    %v3339 = vrot.slane %v3334, %v3338
    %3341 = vmatprep.subr.mxu0 0.0
    %3342 = vmatpush1.msra.mxu0 %v3317
    %3343 = vmatprep.subr.mxu0 0.0
    %3344 = vmatpush1.msra.mxu0 %v3318
    %3345 = vmatprep.subr.mxu0 0.0
    %3346 = vmatpush1.msra.mxu0 %v3319
    %3347 = vmatprep.subr.mxu0 0.0
    %3348 = vmatpush1.msra.mxu0 %v3320
    %3349 = vmatprep.subr.mxu0 0.0
    %3350 = vmatpush1.msra.mxu0 %v3321
    %3351 = vmatprep.subr.mxu0 0.0
    %3352 = vmatpush1.msra.mxu0 %v3322
    %3353 = vmatprep.subr.mxu0 0.0
    %3354 = vmatpush1.msra.mxu0 %v3323
    %3355 = vmatprep.subr.mxu0 0.0
    %3356 = vmatpush1.msra.mxu0 %v3324
    %3357 = vmatprep.subr.mxu0 0.0
    %3358 = vmatpush1.msra.mxu0 %v3325
    %3359 = vmatprep.subr.mxu0 0.0
    %3360 = vmatpush1.msra.mxu0 %v3326
    %3361 = vmatprep.subr.mxu0 0.0
    %3362 = vmatpush1.msra.mxu0 %v3327
    %3363 = vmatprep.subr.mxu0 0.0
    %3364 = vmatpush1.msra.mxu0 %v3328
    %3365 = vmatprep.subr.mxu0 0.0
    %3366 = vmatpush1.msra.mxu0 %v3329
    %3367 = vmatprep.subr.mxu0 0.0
    %3368 = vmatpush1.msra.mxu0 %v3330
    %3369 = vmatprep.subr.mxu0 0.0
    %3370 = vmatpush1.msra.mxu0 %v3331
    %3371 = vmatprep.subr.mxu0 0.0
    %3372 = vmatpush1.msra.mxu0 %v3332
    %3373 = vmatprep.subr.mxu0 0.0
    %3374 = vmatpush1.msra.mxu0 0.0
    %3375 = vmatprep.subr.mxu0 0.0
    %3376 = vmatpush1.msra.mxu0 0.0
    %3377 = vmatprep.subr.mxu0 0.0
    %3378 = vmatpush1.msra.mxu0 0.0
    %3379 = vmatprep.subr.mxu0 0.0
    %3380 = vmatpush1.msra.mxu0 0.0
    %3381 = vmatprep.subr.mxu0 0.0
    %3382 = vmatpush1.msra.mxu0 0.0
    %3383 = vmatprep.subr.mxu0 0.0
    %3384 = vmatpush1.msra.mxu0 0.0
    %3385 = vmatprep.subr.mxu0 0.0
    %3386 = vmatpush1.msra.mxu0 0.0
    %3387 = vmatprep.subr.mxu0 0.0
    %3388 = vmatpush1.msra.mxu0 0.0
    %3389 = vmatprep.subr.mxu0 0.0
    %3390 = vmatpush1.msra.mxu0 0.0
    %3391 = vmatprep.subr.mxu0 0.0
    %3392 = vmatpush1.msra.mxu0 0.0
    %3393 = vmatprep.subr.mxu0 0.0
    %3394 = vmatpush1.msra.mxu0 0.0
    %3395 = vmatprep.subr.mxu0 0.0
    %3396 = vmatpush1.msra.mxu0 0.0
    %3397 = vmatprep.subr.mxu0 0.0
    %3398 = vmatpush1.msra.mxu0 0.0
    %3399 = vmatprep.subr.mxu0 0.0
    %3400 = vmatpush1.msra.mxu0 0.0
    %3401 = vmatprep.subr.mxu0 0.0
    %3402 = vmatpush1.msra.mxu0 0.0
    %3403 = vmatprep.subr.mxu0 0.0
    %3404 = vmatpush1.msra.mxu0 0.0
    %3405 = vmatprep.mubr.f32.mxu0 0.0
    %3406 = vmatmul.mubr.f32.gmra.mrb[0].mxu0 %v3314
    %v3407 = vpop.f32.mrb[0].mxu0
    %v3408 = vadd.f32 %v3339, %v3407
    %v3409 = vpop.f32.mrb[0].mxu0
    %3410 = vmatprep.mubr.f32.mxu0 0.0
    %3411 = vmatmul.mubr.f32.gmra.mrb[0].mxu0 %v3315
    %v3412 = vpop.f32.mrb[0].mxu0
    %v3413 = vpop.f32.mrb[0].mxu0
    %3414 = vdwg.mxu0
    %v3415 = vadd.f32 %v3166, %v3408
    %s3416 = scalar_lea.vmem %s13, 1
    %v3417 = vld [vmem:[%s3416] sm:$0x1]
    %s3418 = scalar_lea.vmem %s14, 1
    %v3419 = vld [vmem:[%s3418] sm:$0x1]
    %v3420 = vsel %vm294, %v3415, 0.0
    %3421 = vadd.xlane.f32.xlu0 %v3420
    %v3422 = vpop.xlane.xlu0 %3421
    %v3423 = vmul.f32 %v3422, %v1544
    %v3424 = vsub.f32 %v3415, %v3423
    %v3425 = vmul.f32 %v3424, %v3424
    %v3426 = vsel %vm294, %v3425, 0.0
    %3427 = vadd.xlane.f32.xlu0 %v3426
    %v3428 = vpop.xlane.xlu0 %3427
    %v3429 = vmul.f32 %v3428, %v1544
    %v3430 = vadd.f32 %v3429, 1e-05
    %v3431 = vrsqrt.pop %v3430
    %v3432 = vmul.f32 %v3424, %v3431
    %v3434 = vlaneseq
    %v3435 = vshrl.u32 %v3434, 7
    %v3436 = vsub.s32 0, %v3435
    %v3437 = vrot.slane %v3417, %v3436
    %v3439 = vmul.f32 %v3432, %v3437
    %v3441 = vlaneseq
    %v3442 = vshrl.u32 %v3441, 7
    %v3443 = vsub.s32 0, %v3442
    %v3444 = vrot.slane %v3419, %v3443
    %v3446 = vadd.f32 %v3439, %v3444
    %v3447 = vld [vmem:[%s15] sm:$0x1]
    %v3448 = vld [vmem:[%s16] sm:$0x1]
    %v3449 = vsel %vm1540, %v3446, 0.0
    %3450 = vadd.xlane.f32.xlu0 %v3449
    %v3451 = vpop.xlane.xlu0 %3450
    %v3452 = vmul.f32 %v3451, %v1544
    %v3453 = vsub.f32 %v3446, %v3452
    %v3454 = vmul.f32 %v3453, %v3453
    %v3455 = vsel %vm1540, %v3454, 0.0
    %3456 = vadd.xlane.f32.xlu0 %v3455
    %v3457 = vpop.xlane.xlu0 %3456
    %v3458 = vmul.f32 %v3457, %v1544
    %v3459 = vadd.f32 %v3458, 1e-05
    %v3460 = vrsqrt.pop %v3459
    %v3461 = vmul.f32 %v3453, %v3460
    %v3462 = vmul.f32 %v3461, %v3447
    %v3463 = vadd.f32 %v3462, %v3448
    %v3464 = vld [vmem:[%s17] sm:$0xff]
    %v3465 = vld [vmem:[%s17 + $0x8] sm:$0xff]
    %v3466 = vld [vmem:[%s17 + $0x10] sm:$0xff]
    %v3467 = vld [vmem:[%s17 + $0x18] sm:$0xff]
    %v3468 = vld [vmem:[%s18] sm:$0x1]
    %v3470 = vsel %vm294, %v3463, 0
    %3472 = vmatprep.subr.mxu0 0.0
    %3473 = vmatpush1.msra.mxu0 %v3464
    %3474 = vmatprep.subr.mxu0 0.0
    %3475 = vmatpush1.msra.mxu0 %v3465
    %3476 = vmatprep.subr.mxu0 0.0
    %3477 = vmatpush1.msra.mxu0 %v3466
    %3478 = vmatprep.subr.mxu0 0.0
    %3479 = vmatpush1.msra.mxu0 %v3467
    %3480 = vmatprep.subr.mxu0 0.0
    %3481 = vmatpush1.msra.mxu0 0.0
    %3482 = vmatprep.subr.mxu0 0.0
    %3483 = vmatpush1.msra.mxu0 0.0
    %3484 = vmatprep.subr.mxu0 0.0
    %3485 = vmatpush1.msra.mxu0 0.0
    %3486 = vmatprep.subr.mxu0 0.0
    %3487 = vmatpush1.msra.mxu0 0.0
    %3488 = vmatprep.subr.mxu0 0.0
    %3489 = vmatpush1.msra.mxu0 0.0
    %3490 = vmatprep.subr.mxu0 0.0
    %3491 = vmatpush1.msra.mxu0 0.0
    %3492 = vmatprep.subr.mxu0 0.0
    %3493 = vmatpush1.msra.mxu0 0.0
    %3494 = vmatprep.subr.mxu0 0.0
    %3495 = vmatpush1.msra.mxu0 0.0
    %3496 = vmatprep.subr.mxu0 0.0
    %3497 = vmatpush1.msra.mxu0 0.0
    %3498 = vmatprep.subr.mxu0 0.0
    %3499 = vmatpush1.msra.mxu0 0.0
    %3500 = vmatprep.subr.mxu0 0.0
    %3501 = vmatpush1.msra.mxu0 0.0
    %3502 = vmatprep.subr.mxu0 0.0
    %3503 = vmatpush1.msra.mxu0 0.0
    %3504 = vmatprep.subr.mxu0 0.0
    %3505 = vmatpush1.msra.mxu0 0.0
    %3506 = vmatprep.subr.mxu0 0.0
    %3507 = vmatpush1.msra.mxu0 0.0
    %3508 = vmatprep.subr.mxu0 0.0
    %3509 = vmatpush1.msra.mxu0 0.0
    %3510 = vmatprep.subr.mxu0 0.0
    %3511 = vmatpush1.msra.mxu0 0.0
    %3512 = vmatprep.subr.mxu0 0.0
    %3513 = vmatpush1.msra.mxu0 0.0
    %3514 = vmatprep.subr.mxu0 0.0
    %3515 = vmatpush1.msra.mxu0 0.0
    %3516 = vmatprep.subr.mxu0 0.0
    %3517 = vmatpush1.msra.mxu0 0.0
    %3518 = vmatprep.subr.mxu0 0.0
    %3519 = vmatpush1.msra.mxu0 0.0
    %3520 = vmatprep.subr.mxu0 0.0
    %3521 = vmatpush1.msra.mxu0 0.0
    %3522 = vmatprep.subr.mxu0 0.0
    %3523 = vmatpush1.msra.mxu0 0.0
    %3524 = vmatprep.subr.mxu0 0.0
    %3525 = vmatpush1.msra.mxu0 0.0
    %3526 = vmatprep.subr.mxu0 0.0
    %3527 = vmatpush1.msra.mxu0 0.0
    %3528 = vmatprep.subr.mxu0 0.0
    %3529 = vmatpush1.msra.mxu0 0.0
    %3530 = vmatprep.subr.mxu0 0.0
    %3531 = vmatpush1.msra.mxu0 0.0
    %3532 = vmatprep.subr.mxu0 0.0
    %3533 = vmatpush1.msra.mxu0 0.0
    %3534 = vmatprep.subr.mxu0 0.0
    %3535 = vmatpush1.msra.mxu0 0.0
    %3536 = vmatprep.mubr.f32.mxu0 0.0
    %3537 = vmatmul.mubr.f32.gmra.mrb[0].mxu0 %v3470
    %v3538 = vpop.f32.mrb[0].mxu0
    %v3539 = vadd.f32 %v3468, %v3538
    %v3540 = vpop.f32.mrb[0].mxu0
    %3541 = vdwg.mxu0
    %3542 = vst [vmem:[#allocation2] sm:$0x1] %v3539
    %s3543 = scalar_lea.vmem %s0, 64
    %v3544 = vld [vmem:[%s3543] sm:$0xff]
    %v3545 = vld [vmem:[%s3543 + $0x8] sm:$0xff]
    %v3546 = vld [vmem:[%s3543 + $0x10] sm:$0xff]
    %v3547 = vld [vmem:[%s3543 + $0x18] sm:$0xff]
    %v3548 = vld [vmem:[%s3543 + $0x20] sm:$0x1]
    %v3549 = vld [vmem:[%s3543 + $0x28] sm:$0x1]
    %v3550 = vld [vmem:[%s3543 + $0x30] sm:$0x1]
    %v3551 = vld [vmem:[%s3543 + $0x38] sm:$0x1]
    %v3552 = vld [vmem:[%s1] sm:$0xff]
    %v3553 = vld [vmem:[%s1 + $0x8] sm:$0xff]
    %v3554 = vld [vmem:[%s1 + $0x10] sm:$0xff]
    %v3555 = vld [vmem:[%s1 + $0x18] sm:$0xff]
    %v3556 = vld [vmem:[%s1 + $0x20] sm:$0xff]
    %v3557 = vld [vmem:[%s1 + $0x28] sm:$0xff]
    %v3558 = vld [vmem:[%s1 + $0x30] sm:$0xff]
    %v3559 = vld [vmem:[%s1 + $0x38] sm:$0xff]
    %v3560 = vld [vmem:[%s1 + $0x40] sm:$0xff]
    %v3561 = vld [vmem:[%s1 + $0x48] sm:$0xff]
    %v3562 = vld [vmem:[%s1 + $0x50] sm:$0xff]
    %v3563 = vld [vmem:[%s1 + $0x58] sm:$0xff]
    %v3564 = vld [vmem:[%s1 + $0x60] sm:$0xff]
    %v3565 = vld [vmem:[%s1 + $0x68] sm:$0xff]
    %v3566 = vld [vmem:[%s1 + $0x70] sm:$0xff]
    %v3567 = vld [vmem:[%s1 + $0x78] sm:$0xff]
    %v3568 = vld [vmem:[%s1 + $0x80] sm:$0xff]
    %v3569 = vld [vmem:[%s1 + $0x88] sm:$0xff]
    %v3570 = vld [vmem:[%s1 + $0x90] sm:$0xff]
    %v3571 = vld [vmem:[%s1 + $0x98] sm:$0xff]
    %v3572 = vld [vmem:[%s1 + $0xa0] sm:$0xff]
    %v3573 = vld [vmem:[%s1 + $0xa8] sm:$0xff]
    %v3574 = vld [vmem:[%s1 + $0xb0] sm:$0xff]
    %v3575 = vld [vmem:[%s1 + $0xb8] sm:$0xff]
    %v3576 = vld [vmem:[%s1 + $0xc0] sm:$0xff]
    %v3577 = vld [vmem:[%s1 + $0xc8] sm:$0xff]
    %v3578 = vld [vmem:[%s1 + $0xd0] sm:$0xff]
    %v3579 = vld [vmem:[%s1 + $0xd8] sm:$0xff]
    %v3580 = vld [vmem:[%s1 + $0xe0] sm:$0xff]
    %v3581 = vld [vmem:[%s1 + $0xe8] sm:$0xff]
    %v3582 = vld [vmem:[%s1 + $0xf0] sm:$0xff]
    %v3583 = vld [vmem:[%s1 + $0xf8] sm:$0xff]
    %v3584 = vld [vmem:[%s1 + $0x100] sm:$0xff]
    %v3585 = vld [vmem:[%s1 + $0x108] sm:$0xff]
    %v3586 = vld [vmem:[%s1 + $0x110] sm:$0xff]
    %v3587 = vld [vmem:[%s1 + $0x118] sm:$0xff]
    %v3588 = vld [vmem:[%s1 + $0x120] sm:$0xff]
    %v3589 = vld [vmem:[%s1 + $0x128] sm:$0xff]
    %v3590 = vld [vmem:[%s1 + $0x130] sm:$0xff]
    %v3591 = vld [vmem:[%s1 + $0x138] sm:$0xff]
    %v3592 = vld [vmem:[%s1 + $0x140] sm:$0xff]
    %v3593 = vld [vmem:[%s1 + $0x148] sm:$0xff]
    %v3594 = vld [vmem:[%s1 + $0x150] sm:$0xff]
    %v3595 = vld [vmem:[%s1 + $0x158] sm:$0xff]
    %v3596 = vld [vmem:[%s1 + $0x160] sm:$0xff]
    %v3597 = vld [vmem:[%s1 + $0x168] sm:$0xff]
    %v3598 = vld [vmem:[%s1 + $0x170] sm:$0xff]
    %v3599 = vld [vmem:[%s1 + $0x178] sm:$0xff]
    %v3600 = vld [vmem:[%s1 + $0x180] sm:$0x3]
    %v3601 = vld [vmem:[%s2] sm:$0xff]
    %v3602 = vld [vmem:[%s2 + $0x8] sm:$0x1]
    %v3604 = vsel %vm122, %v3547, 0
    %v3607 = vsel %vm122, %v3551, 0
    %v3610 = vsel %vm129, %v3600, 0
    %3612 = vmatprep.subr.mxu0 0.0
    %3613 = vmatpush1.msra.mxu0 %v3552
    %3614 = vmatprep.subr.mxu0 0.0
    %3615 = vmatpush1.msra.mxu0 %v3553
    %3616 = vmatprep.subr.mxu0 0.0
    %3617 = vmatpush1.msra.mxu0 %v3554
    %3618 = vmatprep.subr.mxu0 0.0
    %3619 = vmatpush1.msra.mxu0 %v3555
    %3620 = vmatprep.subr.mxu0 0.0
    %3621 = vmatpush1.msra.mxu0 %v3556
    %3622 = vmatprep.subr.mxu0 0.0
    %3623 = vmatpush1.msra.mxu0 %v3557
    %3624 = vmatprep.subr.mxu0 0.0
    %3625 = vmatpush1.msra.mxu0 %v3558
    %3626 = vmatprep.subr.mxu0 0.0
    %3627 = vmatpush1.msra.mxu0 %v3559
    %3628 = vmatprep.subr.mxu0 0.0
    %3629 = vmatpush1.msra.mxu0 %v3560
    %3630 = vmatprep.subr.mxu0 0.0
    %3631 = vmatpush1.msra.mxu0 %v3561
    %3632 = vmatprep.subr.mxu0 0.0
    %3633 = vmatpush1.msra.mxu0 %v3562
    %3634 = vmatprep.subr.mxu0 0.0
    %3635 = vmatpush1.msra.mxu0 %v3563
    %3636 = vmatprep.subr.mxu0 0.0
    %3637 = vmatpush1.msra.mxu0 %v3564
    %3638 = vmatprep.subr.mxu0 0.0
    %3639 = vmatpush1.msra.mxu0 %v3565
    %3640 = vmatprep.subr.mxu0 0.0
    %3641 = vmatpush1.msra.mxu0 %v3566
    %3642 = vmatprep.subr.mxu0 0.0
    %3643 = vmatpush1.msra.mxu0 %v3567
    %3644 = vmatprep.subr.mxu0 0.0
    %3645 = vmatpush1.msra.mxu0 %v3568
    %3646 = vmatprep.subr.mxu0 0.0
    %3647 = vmatpush1.msra.mxu0 %v3569
    %3648 = vmatprep.subr.mxu0 0.0
    %3649 = vmatpush1.msra.mxu0 %v3570
    %3650 = vmatprep.subr.mxu0 0.0
    %3651 = vmatpush1.msra.mxu0 %v3571
    %3652 = vmatprep.subr.mxu0 0.0
    %3653 = vmatpush1.msra.mxu0 %v3572
    %3654 = vmatprep.subr.mxu0 0.0
    %3655 = vmatpush1.msra.mxu0 %v3573
    %3656 = vmatprep.subr.mxu0 0.0
    %3657 = vmatpush1.msra.mxu0 %v3574
    %3658 = vmatprep.subr.mxu0 0.0
    %3659 = vmatpush1.msra.mxu0 %v3575
    %3660 = vmatprep.subr.mxu0 0.0
    %3661 = vmatpush1.msra.mxu0 %v3576
    %3662 = vmatprep.subr.mxu0 0.0
    %3663 = vmatpush1.msra.mxu0 %v3577
    %3664 = vmatprep.subr.mxu0 0.0
    %3665 = vmatpush1.msra.mxu0 %v3578
    %3666 = vmatprep.subr.mxu0 0.0
    %3667 = vmatpush1.msra.mxu0 %v3579
    %3668 = vmatprep.subr.mxu0 0.0
    %3669 = vmatpush1.msra.mxu0 %v3580
    %3670 = vmatprep.subr.mxu0 0.0
    %3671 = vmatpush1.msra.mxu0 %v3581
    %3672 = vmatprep.subr.mxu0 0.0
    %3673 = vmatpush1.msra.mxu0 %v3582
    %3674 = vmatprep.subr.mxu0 0.0
    %3675 = vmatpush1.msra.mxu0 %v3583
    %3676 = vmatprep.mubr.f32.mxu0 %v3545
    %3677 = vmatmul.mubr.f32.gmra.mrb[0].mxu0 %v3544
    %v3678 = vpop.f32.mrb[0].mxu0
    %v3679 = vadd.f32 %v3601, %v3678
    %v3680 = vpop.f32.mrb[0].mxu0
    %3681 = vmatprep.mubr.f32.mxu0 %v3549
    %3682 = vmatmul.mubr.f32.gmra.mrb[0].mxu0 %v3548
    %v3683 = vpop.f32.mrb[0].mxu0
    %v3684 = vadd.f32 %v3602, %v3683
    %v3685 = vpop.f32.mrb[0].mxu0
    %3686 = vdwg.mxu0
    %3687 = vmatprep.subr.mxu0 0.0
    %3688 = vmatpush1.msra.mxu0 %v3584
    %3689 = vmatprep.subr.mxu0 0.0
    %3690 = vmatpush1.msra.mxu0 %v3585
    %3691 = vmatprep.subr.mxu0 0.0
    %3692 = vmatpush1.msra.mxu0 %v3586
    %3693 = vmatprep.subr.mxu0 0.0
    %3694 = vmatpush1.msra.mxu0 %v3587
    %3695 = vmatprep.subr.mxu0 0.0
    %3696 = vmatpush1.msra.mxu0 %v3588
    %3697 = vmatprep.subr.mxu0 0.0
    %3698 = vmatpush1.msra.mxu0 %v3589
    %3699 = vmatprep.subr.mxu0 0.0
    %3700 = vmatpush1.msra.mxu0 %v3590
    %3701 = vmatprep.subr.mxu0 0.0
    %3702 = vmatpush1.msra.mxu0 %v3591
    %3703 = vmatprep.subr.mxu0 0.0
    %3704 = vmatpush1.msra.mxu0 %v3592
    %3705 = vmatprep.subr.mxu0 0.0
    %3706 = vmatpush1.msra.mxu0 %v3593
    %3707 = vmatprep.subr.mxu0 0.0
    %3708 = vmatpush1.msra.mxu0 %v3594
    %3709 = vmatprep.subr.mxu0 0.0
    %3710 = vmatpush1.msra.mxu0 %v3595
    %3711 = vmatprep.subr.mxu0 0.0
    %3712 = vmatpush1.msra.mxu0 %v3596
    %3713 = vmatprep.subr.mxu0 0.0
    %3714 = vmatpush1.msra.mxu0 %v3597
    %3715 = vmatprep.subr.mxu0 0.0
    %3716 = vmatpush1.msra.mxu0 %v3598
    %3717 = vmatprep.subr.mxu0 0.0
    %3718 = vmatpush1.msra.mxu0 %v3599
    %3719 = vmatprep.subr.mxu0 0.0
    %3720 = vmatpush1.msra.mxu0 %v3610
    %3721 = vmatprep.subr.mxu0 0.0
    %3722 = vmatpush1.msra.mxu0 0.0
    %3723 = vmatprep.subr.mxu0 0.0
    %3724 = vmatpush1.msra.mxu0 0.0
    %3725 = vmatprep.subr.mxu0 0.0
    %3726 = vmatpush1.msra.mxu0 0.0
    %3727 = vmatprep.subr.mxu0 0.0
    %3728 = vmatpush1.msra.mxu0 0.0
    %3729 = vmatprep.subr.mxu0 0.0
    %3730 = vmatpush1.msra.mxu0 0.0
    %3731 = vmatprep.subr.mxu0 0.0
    %3732 = vmatpush1.msra.mxu0 0.0
    %3733 = vmatprep.subr.mxu0 0.0
    %3734 = vmatpush1.msra.mxu0 0.0
    %3735 = vmatprep.subr.mxu0 0.0
    %3736 = vmatpush1.msra.mxu0 0.0
    %3737 = vmatprep.subr.mxu0 0.0
    %3738 = vmatpush1.msra.mxu0 0.0
    %3739 = vmatprep.subr.mxu0 0.0
    %3740 = vmatpush1.msra.mxu0 0.0
    %3741 = vmatprep.subr.mxu0 0.0
    %3742 = vmatpush1.msra.mxu0 0.0
    %3743 = vmatprep.subr.mxu0 0.0
    %3744 = vmatpush1.msra.mxu0 0.0
    %3745 = vmatprep.subr.mxu0 0.0
    %3746 = vmatpush1.msra.mxu0 0.0
    %3747 = vmatprep.subr.mxu0 0.0
    %3748 = vmatpush1.msra.mxu0 0.0
    %3749 = vmatprep.subr.mxu0 0.0
    %3750 = vmatpush1.msra.mxu0 0.0
    %3751 = vmatprep.mubr.f32.mxu0 %v3604
    %3752 = vmatmul.mubr.f32.gmra.mrb[0].mxu0 %v3546
    %v3753 = vpop.f32.mrb[0].mxu0
    %v3754 = vadd.f32 %v3679, %v3753
    %v3755 = vpop.f32.mrb[0].mxu0
    %3756 = vmatprep.mubr.f32.mxu0 %v3607
    %3757 = vmatmul.mubr.f32.gmra.mrb[0].mxu0 %v3550
    %v3758 = vpop.f32.mrb[0].mxu0
    %v3759 = vadd.f32 %v3684, %v3758
    %v3760 = vpop.f32.mrb[0].mxu0
    %3761 = vdwg.mxu0
    %v3762 = vld [vmem:[%s3] sm:$0xff]
    %v3763 = vld [vmem:[%s3 + $0x8] sm:$0xff]
    %v3764 = vld [vmem:[%s3 + $0x10] sm:$0xff]
    %v3765 = vld [vmem:[%s3 + $0x18] sm:$0xff]
    %v3766 = vld [vmem:[%s4] sm:$0x1]
    %v3768 = vlaneseq
    %v3769 = vshrl.u32 %v3768, 7
    %v3770 = vsub.s32 0, %v3769
    %v3771 = vrot.slane %v3766, %v3770
    %v3774 = vsel %vm294, %v3754, 0
    %v3777 = vsel %vm294, %v3759, 0
    %3779 = vmatprep.subr.mxu0 0.0
    %3780 = vmatpush1.msra.mxu0 %v3762
    %3781 = vmatprep.subr.mxu0 0.0
    %3782 = vmatpush1.msra.mxu0 %v3763
    %3783 = vmatprep.subr.mxu0 0.0
    %3784 = vmatpush1.msra.mxu0 %v3764
    %3785 = vmatprep.subr.mxu0 0.0
    %3786 = vmatpush1.msra.mxu0 %v3765
    %3787 = vmatprep.subr.mxu0 0.0
    %3788 = vmatpush1.msra.mxu0 0.0
    %3789 = vmatprep.subr.mxu0 0.0
    %3790 = vmatpush1.msra.mxu0 0.0
    %3791 = vmatprep.subr.mxu0 0.0
    %3792 = vmatpush1.msra.mxu0 0.0
    %3793 = vmatprep.subr.mxu0 0.0
    %3794 = vmatpush1.msra.mxu0 0.0
    %3795 = vmatprep.subr.mxu0 0.0
    %3796 = vmatpush1.msra.mxu0 0.0
    %3797 = vmatprep.subr.mxu0 0.0
    %3798 = vmatpush1.msra.mxu0 0.0
    %3799 = vmatprep.subr.mxu0 0.0
    %3800 = vmatpush1.msra.mxu0 0.0
    %3801 = vmatprep.subr.mxu0 0.0
    %3802 = vmatpush1.msra.mxu0 0.0
    %3803 = vmatprep.subr.mxu0 0.0
    %3804 = vmatpush1.msra.mxu0 0.0
    %3805 = vmatprep.subr.mxu0 0.0
    %3806 = vmatpush1.msra.mxu0 0.0
    %3807 = vmatprep.subr.mxu0 0.0
    %3808 = vmatpush1.msra.mxu0 0.0
    %3809 = vmatprep.subr.mxu0 0.0
    %3810 = vmatpush1.msra.mxu0 0.0
    %3811 = vmatprep.subr.mxu0 0.0
    %3812 = vmatpush1.msra.mxu0 0.0
    %3813 = vmatprep.subr.mxu0 0.0
    %3814 = vmatpush1.msra.mxu0 0.0
    %3815 = vmatprep.subr.mxu0 0.0
    %3816 = vmatpush1.msra.mxu0 0.0
    %3817 = vmatprep.subr.mxu0 0.0
    %3818 = vmatpush1.msra.mxu0 0.0
    %3819 = vmatprep.subr.mxu0 0.0
    %3820 = vmatpush1.msra.mxu0 0.0
    %3821 = vmatprep.subr.mxu0 0.0
    %3822 = vmatpush1.msra.mxu0 0.0
    %3823 = vmatprep.subr.mxu0 0.0
    %3824 = vmatpush1.msra.mxu0 0.0
    %3825 = vmatprep.subr.mxu0 0.0
    %3826 = vmatpush1.msra.mxu0 0.0
    %3827 = vmatprep.subr.mxu0 0.0
    %3828 = vmatpush1.msra.mxu0 0.0
    %3829 = vmatprep.subr.mxu0 0.0
    %3830 = vmatpush1.msra.mxu0 0.0
    %3831 = vmatprep.subr.mxu0 0.0
    %3832 = vmatpush1.msra.mxu0 0.0
    %3833 = vmatprep.subr.mxu0 0.0
    %3834 = vmatpush1.msra.mxu0 0.0
    %3835 = vmatprep.subr.mxu0 0.0
    %3836 = vmatpush1.msra.mxu0 0.0
    %3837 = vmatprep.subr.mxu0 0.0
    %3838 = vmatpush1.msra.mxu0 0.0
    %3839 = vmatprep.subr.mxu0 0.0
    %3840 = vmatpush1.msra.mxu0 0.0
    %3841 = vmatprep.subr.mxu0 0.0
    %3842 = vmatpush1.msra.mxu0 0.0
    %3843 = vmatprep.mubr.f32.mxu0 0.0
    %3844 = vmatmul.mubr.f32.gmra.mrb[0].mxu0 %v3774
    %v3845 = vpop.f32.mrb[0].mxu0
    %v3846 = vadd.f32 %v3771, %v3845
    %v3847 = vpop.f32.mrb[0].mxu0
    %3848 = vmatprep.mubr.f32.mxu0 0.0
    %3849 = vmatmul.mubr.f32.gmra.mrb[0].mxu0 %v3777
    %v3850 = vpop.f32.mrb[0].mxu0
    %v3851 = vadd.f32 %v3771, %v3850
    %v3852 = vpop.f32.mrb[0].mxu0
    %3853 = vdwg.mxu0
    %v3854 = vld [vmem:[%s6] sm:$0x1]
    %3857 = vrot.lane.b32.xlu0 %v3846, 96
    %v3858 = vpop.permute.xlu0 %3857
    %3859 = vrot.lane.b32.xlu0 %v3851, 96
    %v3860 = vpop.permute.xlu0 %3859
    %v3861 = vsel %vm383, %v3846, 0
    %v3863 = vsel %vm383, %v3851, 0
    %v3865 = vsel %vm383, %v3858, 0
    %v3867 = vsel %vm383, %v3860, 0
    %3869 = vmatprep.subr.mxu0 0.0
    %3870 = vmatpush1.xpose.msra.mxu0 %v3865
    %3871 = vmatprep.subr.mxu0 0.0
    %3872 = vmatpush1.xpose.msra.mxu0 %v3867
    %3873 = vmatprep.subr.mxu0 0.0
    %3874 = vmatpush1.xpose.msra.mxu0 0.0
    %3875 = vmatprep.subr.mxu0 0.0
    %3876 = vmatpush1.xpose.msra.mxu0 0.0
    %3877 = vmatprep.subr.mxu0 0.0
    %3878 = vmatpush1.xpose.msra.mxu0 0.0
    %3879 = vmatprep.subr.mxu0 0.0
    %3880 = vmatpush1.xpose.msra.mxu0 0.0
    %3881 = vmatprep.subr.mxu0 0.0
    %3882 = vmatpush1.xpose.msra.mxu0 0.0
    %3883 = vmatprep.subr.mxu0 0.0
    %3884 = vmatpush1.xpose.msra.mxu0 0.0
    %3885 = vmatprep.subr.mxu0 0.0
    %3886 = vmatpush1.xpose.msra.mxu0 0.0
    %3887 = vmatprep.subr.mxu0 0.0
    %3888 = vmatpush1.xpose.msra.mxu0 0.0
    %3889 = vmatprep.subr.mxu0 0.0
    %3890 = vmatpush1.xpose.msra.mxu0 0.0
    %3891 = vmatprep.subr.mxu0 0.0
    %3892 = vmatpush1.xpose.msra.mxu0 0.0
    %3893 = vmatprep.subr.mxu0 0.0
    %3894 = vmatpush1.xpose.msra.mxu0 0.0
    %3895 = vmatprep.subr.mxu0 0.0
    %3896 = vmatpush1.xpose.msra.mxu0 0.0
    %3897 = vmatprep.subr.mxu0 0.0
    %3898 = vmatpush1.xpose.msra.mxu0 0.0
    %3899 = vmatprep.subr.mxu0 0.0
    %3900 = vmatpush1.xpose.msra.mxu0 0.0
    %3901 = vmatprep.subr.mxu0 0.0
    %3902 = vmatpush1.xpose.msra.mxu0 0.0
    %3903 = vmatprep.subr.mxu0 0.0
    %3904 = vmatpush1.xpose.msra.mxu0 0.0
    %3905 = vmatprep.subr.mxu0 0.0
    %3906 = vmatpush1.xpose.msra.mxu0 0.0
    %3907 = vmatprep.subr.mxu0 0.0
    %3908 = vmatpush1.xpose.msra.mxu0 0.0
    %3909 = vmatprep.subr.mxu0 0.0
    %3910 = vmatpush1.xpose.msra.mxu0 0.0
    %3911 = vmatprep.subr.mxu0 0.0
    %3912 = vmatpush1.xpose.msra.mxu0 0.0
    %3913 = vmatprep.subr.mxu0 0.0
    %3914 = vmatpush1.xpose.msra.mxu0 0.0
    %3915 = vmatprep.subr.mxu0 0.0
    %3916 = vmatpush1.xpose.msra.mxu0 0.0
    %3917 = vmatprep.subr.mxu0 0.0
    %3918 = vmatpush1.xpose.msra.mxu0 0.0
    %3919 = vmatprep.subr.mxu0 0.0
    %3920 = vmatpush1.xpose.msra.mxu0 0.0
    %3921 = vmatprep.subr.mxu0 0.0
    %3922 = vmatpush1.xpose.msra.mxu0 0.0
    %3923 = vmatprep.subr.mxu0 0.0
    %3924 = vmatpush1.xpose.msra.mxu0 0.0
    %3925 = vmatprep.subr.mxu0 0.0
    %3926 = vmatpush1.xpose.msra.mxu0 0.0
    %3927 = vmatprep.subr.mxu0 0.0
    %3928 = vmatpush1.xpose.msra.mxu0 0.0
    %3929 = vmatprep.subr.mxu0 0.0
    %3930 = vmatpush1.xpose.msra.mxu0 0.0
    %3931 = vmatprep.subr.mxu0 0.0
    %3932 = vmatpush1.xpose.msra.mxu0 0.0
    %3933 = vmatprep.mubr.f32.mxu0 0.0
    %3934 = vmatmul.mubr.f32.gmra.mrb[0].mxu0 %v3861
    %v3935 = vpop.f32.mrb[0].mxu0
    %v3936 = vadd.f32 0.0, %v3935
    %v3937 = vpop.f32.mrb[0].mxu0
    %3938 = vmatprep.mubr.f32.mxu0 0.0
    %3939 = vmatmul.mubr.f32.gmra.mrb[0].mxu0 %v3863
    %v3940 = vpop.f32.mrb[0].mxu0
    %v3941 = vadd.f32 0.0, %v3940
    %v3942 = vpop.f32.mrb[0].mxu0
    %3943 = vdwg.mxu0
    %v3944 = vmul.f32 %v3936, 0.35355338
    %v3945 = vmul.f32 %v3941, 0.35355338
    %v3946 = vsel %vm469, %v3944, -inf
    %3947 = vmax.xlane.f32.xlu0 %v3946
    %v3948 = vpop.xlane.xlu0 %3947
    %v3949 = vsel %vm473, %v3945, -inf
    %3950 = vmax.xlane.f32.xlu0 %v3949
    %v3951 = vpop.xlane.xlu0 %3950
    %v3952 = vsub.f32 %v3944, %v3948
    %v3953 = vsub.f32 %v3945, %v3951
    %v3954 = vmul.f32 %v3952, 1.442695
    %v3955 = vpow.pop %v3954
    %v3956 = vmul.f32 %v3953, 1.442695
    %v3957 = vpow.pop %v3956
    %v3958 = vsel %vm469, %v3955, 0.0
    %3959 = vadd.xlane.f32.xlu0 %v3958
    %v3960 = vpop.xlane.xlu0 %3959
    %v3961 = vsel %vm473, %v3957, 0.0
    %3962 = vadd.xlane.f32.xlu0 %v3961
    %v3963 = vpop.xlane.xlu0 %3962
    %v3964 = vrcp.pop %v3960
    %v3965 = vrcp.pop %v3963
    %v3966 = vmul.f32 %v3955, %v3964
    %v3967 = vmul.f32 %v3957, %v3965
    %3968 = vrot.lane.b32.xlu0 %v3846, 64
    %v3969 = vpop.permute.xlu0 %3968
    %3970 = vrot.lane.b32.xlu0 %v3851, 64
    %v3971 = vpop.permute.xlu0 %3970
    %v3974 = vsel %vm469, %v3966, 0
    %v3977 = vsel %vm469, %v3967, 0
    %v3979 = vsel %vm504, %v3971, 0
    %3981 = vmatprep.subr.mxu0 0.0
    %3982 = vmatpush1.msra.mxu0 %v3969
    %3983 = vmatprep.subr.mxu0 0.0
    %3984 = vmatpush1.msra.mxu0 %v3979
    %3985 = vmatprep.subr.mxu0 0.0
    %3986 = vmatpush1.msra.mxu0 0.0
    %3987 = vmatprep.subr.mxu0 0.0
    %3988 = vmatpush1.msra.mxu0 0.0
    %3989 = vmatprep.subr.mxu0 0.0
    %3990 = vmatpush1.msra.mxu0 0.0
    %3991 = vmatprep.subr.mxu0 0.0
    %3992 = vmatpush1.msra.mxu0 0.0
    %3993 = vmatprep.subr.mxu0 0.0
    %3994 = vmatpush1.msra.mxu0 0.0
    %3995 = vmatprep.subr.mxu0 0.0
    %3996 = vmatpush1.msra.mxu0 0.0
    %3997 = vmatprep.subr.mxu0 0.0
    %3998 = vmatpush1.msra.mxu0 0.0
    %3999 = vmatprep.subr.mxu0 0.0
    %4000 = vmatpush1.msra.mxu0 0.0
    %4001 = vmatprep.subr.mxu0 0.0
    %4002 = vmatpush1.msra.mxu0 0.0
    %4003 = vmatprep.subr.mxu0 0.0
    %4004 = vmatpush1.msra.mxu0 0.0
    %4005 = vmatprep.subr.mxu0 0.0
    %4006 = vmatpush1.msra.mxu0 0.0
    %4007 = vmatprep.subr.mxu0 0.0
    %4008 = vmatpush1.msra.mxu0 0.0
    %4009 = vmatprep.subr.mxu0 0.0
    %4010 = vmatpush1.msra.mxu0 0.0
    %4011 = vmatprep.subr.mxu0 0.0
    %4012 = vmatpush1.msra.mxu0 0.0
    %4013 = vmatprep.subr.mxu0 0.0
    %4014 = vmatpush1.msra.mxu0 0.0
    %4015 = vmatprep.subr.mxu0 0.0
    %4016 = vmatpush1.msra.mxu0 0.0
    %4017 = vmatprep.subr.mxu0 0.0
    %4018 = vmatpush1.msra.mxu0 0.0
    %4019 = vmatprep.subr.mxu0 0.0
    %4020 = vmatpush1.msra.mxu0 0.0
    %4021 = vmatprep.subr.mxu0 0.0
    %4022 = vmatpush1.msra.mxu0 0.0
    %4023 = vmatprep.subr.mxu0 0.0
    %4024 = vmatpush1.msra.mxu0 0.0
    %4025 = vmatprep.subr.mxu0 0.0
    %4026 = vmatpush1.msra.mxu0 0.0
    %4027 = vmatprep.subr.mxu0 0.0
    %4028 = vmatpush1.msra.mxu0 0.0
    %4029 = vmatprep.subr.mxu0 0.0
    %4030 = vmatpush1.msra.mxu0 0.0
    %4031 = vmatprep.subr.mxu0 0.0
    %4032 = vmatpush1.msra.mxu0 0.0
    %4033 = vmatprep.subr.mxu0 0.0
    %4034 = vmatpush1.msra.mxu0 0.0
    %4035 = vmatprep.subr.mxu0 0.0
    %4036 = vmatpush1.msra.mxu0 0.0
    %4037 = vmatprep.subr.mxu0 0.0
    %4038 = vmatpush1.msra.mxu0 0.0
    %4039 = vmatprep.subr.mxu0 0.0
    %4040 = vmatpush1.msra.mxu0 0.0
    %4041 = vmatprep.subr.mxu0 0.0
    %4042 = vmatpush1.msra.mxu0 0.0
    %4043 = vmatprep.subr.mxu0 0.0
    %4044 = vmatpush1.msra.mxu0 0.0
    %4045 = vmatprep.mubr.f32.mxu0 0.0
    %4046 = vmatmul.mubr.f32.gmra.mrb[0].mxu0 %v3974
    %v4047 = vpop.f32.mrb[0].mxu0
    %v4048 = vadd.f32 0.0, %v4047
    %v4049 = vpop.f32.mrb[0].mxu0
    %4050 = vmatprep.mubr.f32.mxu0 0.0
    %4051 = vmatmul.mubr.f32.gmra.mrb[0].mxu0 %v3977
    %v4052 = vpop.f32.mrb[0].mxu0
    %v4053 = vadd.f32 0.0, %v4052
    %v4054 = vpop.f32.mrb[0].mxu0
    %4055 = vdwg.mxu0
    %v4056 = vld [vmem:[%s5] sm:$0xff]
    %v4058 = vsel %vm383, %v4048, 0
    %v4061 = vsel %vm383, %v4053, 0
    %4063 = vmatprep.subr.mxu0 0.0
    %4064 = vmatpush1.msra.mxu0 %v4056
    %4065 = vmatprep.subr.mxu0 0.0
    %4066 = vmatpush1.msra.mxu0 0.0
    %4067 = vmatprep.subr.mxu0 0.0
    %4068 = vmatpush1.msra.mxu0 0.0
    %4069 = vmatprep.subr.mxu0 0.0
    %4070 = vmatpush1.msra.mxu0 0.0
    %4071 = vmatprep.subr.mxu0 0.0
    %4072 = vmatpush1.msra.mxu0 0.0
    %4073 = vmatprep.subr.mxu0 0.0
    %4074 = vmatpush1.msra.mxu0 0.0
    %4075 = vmatprep.subr.mxu0 0.0
    %4076 = vmatpush1.msra.mxu0 0.0
    %4077 = vmatprep.subr.mxu0 0.0
    %4078 = vmatpush1.msra.mxu0 0.0
    %4079 = vmatprep.subr.mxu0 0.0
    %4080 = vmatpush1.msra.mxu0 0.0
    %4081 = vmatprep.subr.mxu0 0.0
    %4082 = vmatpush1.msra.mxu0 0.0
    %4083 = vmatprep.subr.mxu0 0.0
    %4084 = vmatpush1.msra.mxu0 0.0
    %4085 = vmatprep.subr.mxu0 0.0
    %4086 = vmatpush1.msra.mxu0 0.0
    %4087 = vmatprep.subr.mxu0 0.0
    %4088 = vmatpush1.msra.mxu0 0.0
    %4089 = vmatprep.subr.mxu0 0.0
    %4090 = vmatpush1.msra.mxu0 0.0
    %4091 = vmatprep.subr.mxu0 0.0
    %4092 = vmatpush1.msra.mxu0 0.0
    %4093 = vmatprep.subr.mxu0 0.0
    %4094 = vmatpush1.msra.mxu0 0.0
    %4095 = vmatprep.subr.mxu0 0.0
    %4096 = vmatpush1.msra.mxu0 0.0
    %4097 = vmatprep.subr.mxu0 0.0
    %4098 = vmatpush1.msra.mxu0 0.0
    %4099 = vmatprep.subr.mxu0 0.0
    %4100 = vmatpush1.msra.mxu0 0.0
    %4101 = vmatprep.subr.mxu0 0.0
    %4102 = vmatpush1.msra.mxu0 0.0
    %4103 = vmatprep.subr.mxu0 0.0
    %4104 = vmatpush1.msra.mxu0 0.0
    %4105 = vmatprep.subr.mxu0 0.0
    %4106 = vmatpush1.msra.mxu0 0.0
    %4107 = vmatprep.subr.mxu0 0.0
    %4108 = vmatpush1.msra.mxu0 0.0
    %4109 = vmatprep.subr.mxu0 0.0
    %4110 = vmatpush1.msra.mxu0 0.0
    %4111 = vmatprep.subr.mxu0 0.0
    %4112 = vmatpush1.msra.mxu0 0.0
    %4113 = vmatprep.subr.mxu0 0.0
    %4114 = vmatpush1.msra.mxu0 0.0
    %4115 = vmatprep.subr.mxu0 0.0
    %4116 = vmatpush1.msra.mxu0 0.0
    %4117 = vmatprep.subr.mxu0 0.0
    %4118 = vmatpush1.msra.mxu0 0.0
    %4119 = vmatprep.subr.mxu0 0.0
    %4120 = vmatpush1.msra.mxu0 0.0
    %4121 = vmatprep.subr.mxu0 0.0
    %4122 = vmatpush1.msra.mxu0 0.0
    %4123 = vmatprep.subr.mxu0 0.0
    %4124 = vmatpush1.msra.mxu0 0.0
    %4125 = vmatprep.subr.mxu0 0.0
    %4126 = vmatpush1.msra.mxu0 0.0
    %4127 = vmatprep.mubr.f32.mxu0 0.0
    %4128 = vmatmul.mubr.f32.gmra.mrb[0].mxu0 %v4058
    %v4129 = vpop.f32.mrb[0].mxu0
    %v4130 = vadd.f32 0.0, %v4129
    %v4131 = vpop.f32.mrb[0].mxu0
    %4132 = vmatprep.mubr.f32.mxu0 0.0
    %4133 = vmatmul.mubr.f32.gmra.mrb[0].mxu0 %v4061
    %v4134 = vpop.f32.mrb[0].mxu0
    %v4135 = vadd.f32 0.0, %v4134
    %v4136 = vpop.f32.mrb[0].mxu0
    %4137 = vdwg.mxu0
    %v4139 = vlaneseq
    %v4140 = vshrl.u32 %v4139, 7
    %v4141 = vsub.s32 0, %v4140
    %v4142 = vrot.slane %v3854, %v4141
    %v4144 = vadd.f32 %v4142, %v4130
    %v4145 = vadd.f32 %v4142, %v4135
    %4146 = vrot.lane.b32.xlu0 %v3846, 120
    %v4147 = vpop.permute.xlu0 %4146
    %4148 = vrot.lane.b32.xlu0 %v3851, 120
    %v4149 = vpop.permute.xlu0 %4148
    %4150 = vrot.lane.b32.xlu0 %v3846, 88
    %v4151 = vpop.permute.xlu0 %4150
    %4152 = vrot.lane.b32.xlu0 %v3851, 88
    %v4153 = vpop.permute.xlu0 %4152
    %v4154 = vsel %vm383, %v4147, 0
    %v4156 = vsel %vm383, %v4149, 0
    %v4158 = vsel %vm383, %v4151, 0
    %v4160 = vsel %vm383, %v4153, 0
    %4162 = vmatprep.subr.mxu0 0.0
    %4163 = vmatpush1.xpose.msra.mxu0 %v4158
    %4164 = vmatprep.subr.mxu0 0.0
    %4165 = vmatpush1.xpose.msra.mxu0 %v4160
    %4166 = vmatprep.subr.mxu0 0.0
    %4167 = vmatpush1.xpose.msra.mxu0 0.0
    %4168 = vmatprep.subr.mxu0 0.0
    %4169 = vmatpush1.xpose.msra.mxu0 0.0
    %4170 = vmatprep.subr.mxu0 0.0
    %4171 = vmatpush1.xpose.msra.mxu0 0.0
    %4172 = vmatprep.subr.mxu0 0.0
    %4173 = vmatpush1.xpose.msra.mxu0 0.0
    %4174 = vmatprep.subr.mxu0 0.0
    %4175 = vmatpush1.xpose.msra.mxu0 0.0
    %4176 = vmatprep.subr.mxu0 0.0
    %4177 = vmatpush1.xpose.msra.mxu0 0.0
    %4178 = vmatprep.subr.mxu0 0.0
    %4179 = vmatpush1.xpose.msra.mxu0 0.0
    %4180 = vmatprep.subr.mxu0 0.0
    %4181 = vmatpush1.xpose.msra.mxu0 0.0
    %4182 = vmatprep.subr.mxu0 0.0
    %4183 = vmatpush1.xpose.msra.mxu0 0.0
    %4184 = vmatprep.subr.mxu0 0.0
    %4185 = vmatpush1.xpose.msra.mxu0 0.0
    %4186 = vmatprep.subr.mxu0 0.0
    %4187 = vmatpush1.xpose.msra.mxu0 0.0
    %4188 = vmatprep.subr.mxu0 0.0
    %4189 = vmatpush1.xpose.msra.mxu0 0.0
    %4190 = vmatprep.subr.mxu0 0.0
    %4191 = vmatpush1.xpose.msra.mxu0 0.0
    %4192 = vmatprep.subr.mxu0 0.0
    %4193 = vmatpush1.xpose.msra.mxu0 0.0
    %4194 = vmatprep.subr.mxu0 0.0
    %4195 = vmatpush1.xpose.msra.mxu0 0.0
    %4196 = vmatprep.subr.mxu0 0.0
    %4197 = vmatpush1.xpose.msra.mxu0 0.0
    %4198 = vmatprep.subr.mxu0 0.0
    %4199 = vmatpush1.xpose.msra.mxu0 0.0
    %4200 = vmatprep.subr.mxu0 0.0
    %4201 = vmatpush1.xpose.msra.mxu0 0.0
    %4202 = vmatprep.subr.mxu0 0.0
    %4203 = vmatpush1.xpose.msra.mxu0 0.0
    %4204 = vmatprep.subr.mxu0 0.0
    %4205 = vmatpush1.xpose.msra.mxu0 0.0
    %4206 = vmatprep.subr.mxu0 0.0
    %4207 = vmatpush1.xpose.msra.mxu0 0.0
    %4208 = vmatprep.subr.mxu0 0.0
    %4209 = vmatpush1.xpose.msra.mxu0 0.0
    %4210 = vmatprep.subr.mxu0 0.0
    %4211 = vmatpush1.xpose.msra.mxu0 0.0
    %4212 = vmatprep.subr.mxu0 0.0
    %4213 = vmatpush1.xpose.msra.mxu0 0.0
    %4214 = vmatprep.subr.mxu0 0.0
    %4215 = vmatpush1.xpose.msra.mxu0 0.0
    %4216 = vmatprep.subr.mxu0 0.0
    %4217 = vmatpush1.xpose.msra.mxu0 0.0
    %4218 = vmatprep.subr.mxu0 0.0
    %4219 = vmatpush1.xpose.msra.mxu0 0.0
    %4220 = vmatprep.subr.mxu0 0.0
    %4221 = vmatpush1.xpose.msra.mxu0 0.0
    %4222 = vmatprep.subr.mxu0 0.0
    %4223 = vmatpush1.xpose.msra.mxu0 0.0
    %4224 = vmatprep.subr.mxu0 0.0
    %4225 = vmatpush1.xpose.msra.mxu0 0.0
    %4226 = vmatprep.mubr.f32.mxu0 0.0
    %4227 = vmatmul.mubr.f32.gmra.mrb[0].mxu0 %v4154
    %v4228 = vpop.f32.mrb[0].mxu0
    %v4229 = vadd.f32 0.0, %v4228
    %v4230 = vpop.f32.mrb[0].mxu0
    %4231 = vmatprep.mubr.f32.mxu0 0.0
    %4232 = vmatmul.mubr.f32.gmra.mrb[0].mxu0 %v4156
    %v4233 = vpop.f32.mrb[0].mxu0
    %v4234 = vadd.f32 0.0, %v4233
    %v4235 = vpop.f32.mrb[0].mxu0
    %4236 = vdwg.mxu0
    %v4237 = vmul.f32 %v4229, 0.35355338
    %v4238 = vmul.f32 %v4234, 0.35355338
    %v4239 = vsel %vm469, %v4237, -inf
    %4240 = vmax.xlane.f32.xlu0 %v4239
    %v4241 = vpop.xlane.xlu0 %4240
    %v4242 = vsel %vm473, %v4238, -inf
    %4243 = vmax.xlane.f32.xlu0 %v4242
    %v4244 = vpop.xlane.xlu0 %4243
    %v4245 = vsub.f32 %v4237, %v4241
    %v4246 = vsub.f32 %v4238, %v4244
    %v4247 = vmul.f32 %v4245, 1.442695
    %v4248 = vpow.pop %v4247
    %v4249 = vmul.f32 %v4246, 1.442695
    %v4250 = vpow.pop %v4249
    %v4251 = vsel %vm469, %v4248, 0.0
    %4252 = vadd.xlane.f32.xlu0 %v4251
    %v4253 = vpop.xlane.xlu0 %4252
    %v4254 = vsel %vm473, %v4250, 0.0
    %4255 = vadd.xlane.f32.xlu0 %v4254
    %v4256 = vpop.xlane.xlu0 %4255
    %v4257 = vrcp.pop %v4253
    %v4258 = vrcp.pop %v4256
    %v4259 = vmul.f32 %v4248, %v4257
    %v4260 = vmul.f32 %v4250, %v4258
    %4261 = vrot.lane.b32.xlu0 %v3846, 56
    %v4262 = vpop.permute.xlu0 %4261
    %4263 = vrot.lane.b32.xlu0 %v3851, 56
    %v4264 = vpop.permute.xlu0 %4263
    %v4267 = vsel %vm469, %v4259, 0
    %v4270 = vsel %vm469, %v4260, 0
    %v4272 = vsel %vm504, %v4264, 0
    %4274 = vmatprep.subr.mxu0 0.0
    %4275 = vmatpush1.msra.mxu0 %v4262
    %4276 = vmatprep.subr.mxu0 0.0
    %4277 = vmatpush1.msra.mxu0 %v4272
    %4278 = vmatprep.subr.mxu0 0.0
    %4279 = vmatpush1.msra.mxu0 0.0
    %4280 = vmatprep.subr.mxu0 0.0
    %4281 = vmatpush1.msra.mxu0 0.0
    %4282 = vmatprep.subr.mxu0 0.0
    %4283 = vmatpush1.msra.mxu0 0.0
    %4284 = vmatprep.subr.mxu0 0.0
    %4285 = vmatpush1.msra.mxu0 0.0
    %4286 = vmatprep.subr.mxu0 0.0
    %4287 = vmatpush1.msra.mxu0 0.0
    %4288 = vmatprep.subr.mxu0 0.0
    %4289 = vmatpush1.msra.mxu0 0.0
    %4290 = vmatprep.subr.mxu0 0.0
    %4291 = vmatpush1.msra.mxu0 0.0
    %4292 = vmatprep.subr.mxu0 0.0
    %4293 = vmatpush1.msra.mxu0 0.0
    %4294 = vmatprep.subr.mxu0 0.0
    %4295 = vmatpush1.msra.mxu0 0.0
    %4296 = vmatprep.subr.mxu0 0.0
    %4297 = vmatpush1.msra.mxu0 0.0
    %4298 = vmatprep.subr.mxu0 0.0
    %4299 = vmatpush1.msra.mxu0 0.0
    %4300 = vmatprep.subr.mxu0 0.0
    %4301 = vmatpush1.msra.mxu0 0.0
    %4302 = vmatprep.subr.mxu0 0.0
    %4303 = vmatpush1.msra.mxu0 0.0
    %4304 = vmatprep.subr.mxu0 0.0
    %4305 = vmatpush1.msra.mxu0 0.0
    %4306 = vmatprep.subr.mxu0 0.0
    %4307 = vmatpush1.msra.mxu0 0.0
    %4308 = vmatprep.subr.mxu0 0.0
    %4309 = vmatpush1.msra.mxu0 0.0
    %4310 = vmatprep.subr.mxu0 0.0
    %4311 = vmatpush1.msra.mxu0 0.0
    %4312 = vmatprep.subr.mxu0 0.0
    %4313 = vmatpush1.msra.mxu0 0.0
    %4314 = vmatprep.subr.mxu0 0.0
    %4315 = vmatpush1.msra.mxu0 0.0
    %4316 = vmatprep.subr.mxu0 0.0
    %4317 = vmatpush1.msra.mxu0 0.0
    %4318 = vmatprep.subr.mxu0 0.0
    %4319 = vmatpush1.msra.mxu0 0.0
    %4320 = vmatprep.subr.mxu0 0.0
    %4321 = vmatpush1.msra.mxu0 0.0
    %4322 = vmatprep.subr.mxu0 0.0
    %4323 = vmatpush1.msra.mxu0 0.0
    %4324 = vmatprep.subr.mxu0 0.0
    %4325 = vmatpush1.msra.mxu0 0.0
    %4326 = vmatprep.subr.mxu0 0.0
    %4327 = vmatpush1.msra.mxu0 0.0
    %4328 = vmatprep.subr.mxu0 0.0
    %4329 = vmatpush1.msra.mxu0 0.0
    %4330 = vmatprep.subr.mxu0 0.0
    %4331 = vmatpush1.msra.mxu0 0.0
    %4332 = vmatprep.subr.mxu0 0.0
    %4333 = vmatpush1.msra.mxu0 0.0
    %4334 = vmatprep.subr.mxu0 0.0
    %4335 = vmatpush1.msra.mxu0 0.0
    %4336 = vmatprep.subr.mxu0 0.0
    %4337 = vmatpush1.msra.mxu0 0.0
    %4338 = vmatprep.mubr.f32.mxu0 0.0
    %4339 = vmatmul.mubr.f32.gmra.mrb[0].mxu0 %v4267
    %v4340 = vpop.f32.mrb[0].mxu0
    %v4341 = vadd.f32 0.0, %v4340
    %v4342 = vpop.f32.mrb[0].mxu0
    %4343 = vmatprep.mubr.f32.mxu0 0.0
    %4344 = vmatmul.mubr.f32.gmra.mrb[0].mxu0 %v4270
    %v4345 = vpop.f32.mrb[0].mxu0
    %v4346 = vadd.f32 0.0, %v4345
    %v4347 = vpop.f32.mrb[0].mxu0
    %4348 = vdwg.mxu0
    %v4349 = vld [vmem:[%s5 + $0x8] sm:$0xff]
    %v4351 = vsel %vm383, %v4341, 0
    %v4354 = vsel %vm383, %v4346, 0
    %4356 = vmatprep.subr.mxu0 0.0
    %4357 = vmatpush1.msra.mxu0 %v4349
    %4358 = vmatprep.subr.mxu0 0.0
    %4359 = vmatpush1.msra.mxu0 0.0
    %4360 = vmatprep.subr.mxu0 0.0
    %4361 = vmatpush1.msra.mxu0 0.0
    %4362 = vmatprep.subr.mxu0 0.0
    %4363 = vmatpush1.msra.mxu0 0.0
    %4364 = vmatprep.subr.mxu0 0.0
    %4365 = vmatpush1.msra.mxu0 0.0
    %4366 = vmatprep.subr.mxu0 0.0
    %4367 = vmatpush1.msra.mxu0 0.0
    %4368 = vmatprep.subr.mxu0 0.0
    %4369 = vmatpush1.msra.mxu0 0.0
    %4370 = vmatprep.subr.mxu0 0.0
    %4371 = vmatpush1.msra.mxu0 0.0
    %4372 = vmatprep.subr.mxu0 0.0
    %4373 = vmatpush1.msra.mxu0 0.0
    %4374 = vmatprep.subr.mxu0 0.0
    %4375 = vmatpush1.msra.mxu0 0.0
    %4376 = vmatprep.subr.mxu0 0.0
    %4377 = vmatpush1.msra.mxu0 0.0
    %4378 = vmatprep.subr.mxu0 0.0
    %4379 = vmatpush1.msra.mxu0 0.0
    %4380 = vmatprep.subr.mxu0 0.0
    %4381 = vmatpush1.msra.mxu0 0.0
    %4382 = vmatprep.subr.mxu0 0.0
    %4383 = vmatpush1.msra.mxu0 0.0
    %4384 = vmatprep.subr.mxu0 0.0
    %4385 = vmatpush1.msra.mxu0 0.0
    %4386 = vmatprep.subr.mxu0 0.0
    %4387 = vmatpush1.msra.mxu0 0.0
    %4388 = vmatprep.subr.mxu0 0.0
    %4389 = vmatpush1.msra.mxu0 0.0
    %4390 = vmatprep.subr.mxu0 0.0
    %4391 = vmatpush1.msra.mxu0 0.0
    %4392 = vmatprep.subr.mxu0 0.0
    %4393 = vmatpush1.msra.mxu0 0.0
    %4394 = vmatprep.subr.mxu0 0.0
    %4395 = vmatpush1.msra.mxu0 0.0
    %4396 = vmatprep.subr.mxu0 0.0
    %4397 = vmatpush1.msra.mxu0 0.0
    %4398 = vmatprep.subr.mxu0 0.0
    %4399 = vmatpush1.msra.mxu0 0.0
    %4400 = vmatprep.subr.mxu0 0.0
    %4401 = vmatpush1.msra.mxu0 0.0
    %4402 = vmatprep.subr.mxu0 0.0
    %4403 = vmatpush1.msra.mxu0 0.0
    %4404 = vmatprep.subr.mxu0 0.0
    %4405 = vmatpush1.msra.mxu0 0.0
    %4406 = vmatprep.subr.mxu0 0.0
    %4407 = vmatpush1.msra.mxu0 0.0
    %4408 = vmatprep.subr.mxu0 0.0
    %4409 = vmatpush1.msra.mxu0 0.0
    %4410 = vmatprep.subr.mxu0 0.0
    %4411 = vmatpush1.msra.mxu0 0.0
    %4412 = vmatprep.subr.mxu0 0.0
    %4413 = vmatpush1.msra.mxu0 0.0
    %4414 = vmatprep.subr.mxu0 0.0
    %4415 = vmatpush1.msra.mxu0 0.0
    %4416 = vmatprep.subr.mxu0 0.0
    %4417 = vmatpush1.msra.mxu0 0.0
    %4418 = vmatprep.subr.mxu0 0.0
    %4419 = vmatpush1.msra.mxu0 0.0
    %4420 = vmatprep.mubr.f32.mxu0 0.0
    %4421 = vmatmul.mubr.f32.gmra.mrb[0].mxu0 %v4351
    %v4422 = vpop.f32.mrb[0].mxu0
    %v4423 = vadd.f32 0.0, %v4422
    %v4424 = vpop.f32.mrb[0].mxu0
    %4425 = vmatprep.mubr.f32.mxu0 0.0
    %4426 = vmatmul.mubr.f32.gmra.mrb[0].mxu0 %v4354
    %v4427 = vpop.f32.mrb[0].mxu0
    %v4428 = vadd.f32 0.0, %v4427
    %v4429 = vpop.f32.mrb[0].mxu0
    %4430 = vdwg.mxu0
    %v4431 = vadd.f32 %v4144, %v4423
    %v4432 = vadd.f32 %v4145, %v4428
    %4433 = vrot.lane.b32.xlu0 %v3846, 112
    %v4434 = vpop.permute.xlu0 %4433
    %4435 = vrot.lane.b32.xlu0 %v3851, 112
    %v4436 = vpop.permute.xlu0 %4435
    %4437 = vrot.lane.b32.xlu0 %v3846, 80
    %v4438 = vpop.permute.xlu0 %4437
    %4439 = vrot.lane.b32.xlu0 %v3851, 80
    %v4440 = vpop.permute.xlu0 %4439
    %v4441 = vsel %vm383, %v4434, 0
    %v4443 = vsel %vm383, %v4436, 0
    %v4445 = vsel %vm383, %v4438, 0
    %v4447 = vsel %vm383, %v4440, 0
    %4449 = vmatprep.subr.mxu0 0.0
    %4450 = vmatpush1.xpose.msra.mxu0 %v4445
    %4451 = vmatprep.subr.mxu0 0.0
    %4452 = vmatpush1.xpose.msra.mxu0 %v4447
    %4453 = vmatprep.subr.mxu0 0.0
    %4454 = vmatpush1.xpose.msra.mxu0 0.0
    %4455 = vmatprep.subr.mxu0 0.0
    %4456 = vmatpush1.xpose.msra.mxu0 0.0
    %4457 = vmatprep.subr.mxu0 0.0
    %4458 = vmatpush1.xpose.msra.mxu0 0.0
    %4459 = vmatprep.subr.mxu0 0.0
    %4460 = vmatpush1.xpose.msra.mxu0 0.0
    %4461 = vmatprep.subr.mxu0 0.0
    %4462 = vmatpush1.xpose.msra.mxu0 0.0
    %4463 = vmatprep.subr.mxu0 0.0
    %4464 = vmatpush1.xpose.msra.mxu0 0.0
    %4465 = vmatprep.subr.mxu0 0.0
    %4466 = vmatpush1.xpose.msra.mxu0 0.0
    %4467 = vmatprep.subr.mxu0 0.0
    %4468 = vmatpush1.xpose.msra.mxu0 0.0
    %4469 = vmatprep.subr.mxu0 0.0
    %4470 = vmatpush1.xpose.msra.mxu0 0.0
    %4471 = vmatprep.subr.mxu0 0.0
    %4472 = vmatpush1.xpose.msra.mxu0 0.0
    %4473 = vmatprep.subr.mxu0 0.0
    %4474 = vmatpush1.xpose.msra.mxu0 0.0
    %4475 = vmatprep.subr.mxu0 0.0
    %4476 = vmatpush1.xpose.msra.mxu0 0.0
    %4477 = vmatprep.subr.mxu0 0.0
    %4478 = vmatpush1.xpose.msra.mxu0 0.0
    %4479 = vmatprep.subr.mxu0 0.0
    %4480 = vmatpush1.xpose.msra.mxu0 0.0
    %4481 = vmatprep.subr.mxu0 0.0
    %4482 = vmatpush1.xpose.msra.mxu0 0.0
    %4483 = vmatprep.subr.mxu0 0.0
    %4484 = vmatpush1.xpose.msra.mxu0 0.0
    %4485 = vmatprep.subr.mxu0 0.0
    %4486 = vmatpush1.xpose.msra.mxu0 0.0
    %4487 = vmatprep.subr.mxu0 0.0
    %4488 = vmatpush1.xpose.msra.mxu0 0.0
    %4489 = vmatprep.subr.mxu0 0.0
    %4490 = vmatpush1.xpose.msra.mxu0 0.0
    %4491 = vmatprep.subr.mxu0 0.0
    %4492 = vmatpush1.xpose.msra.mxu0 0.0
    %4493 = vmatprep.subr.mxu0 0.0
    %4494 = vmatpush1.xpose.msra.mxu0 0.0
    %4495 = vmatprep.subr.mxu0 0.0
    %4496 = vmatpush1.xpose.msra.mxu0 0.0
    %4497 = vmatprep.subr.mxu0 0.0
    %4498 = vmatpush1.xpose.msra.mxu0 0.0
    %4499 = vmatprep.subr.mxu0 0.0
    %4500 = vmatpush1.xpose.msra.mxu0 0.0
    %4501 = vmatprep.subr.mxu0 0.0
    %4502 = vmatpush1.xpose.msra.mxu0 0.0
    %4503 = vmatprep.subr.mxu0 0.0
    %4504 = vmatpush1.xpose.msra.mxu0 0.0
    %4505 = vmatprep.subr.mxu0 0.0
    %4506 = vmatpush1.xpose.msra.mxu0 0.0
    %4507 = vmatprep.subr.mxu0 0.0
    %4508 = vmatpush1.xpose.msra.mxu0 0.0
    %4509 = vmatprep.subr.mxu0 0.0
    %4510 = vmatpush1.xpose.msra.mxu0 0.0
    %4511 = vmatprep.subr.mxu0 0.0
    %4512 = vmatpush1.xpose.msra.mxu0 0.0
    %4513 = vmatprep.mubr.f32.mxu0 0.0
    %4514 = vmatmul.mubr.f32.gmra.mrb[0].mxu0 %v4441
    %v4515 = vpop.f32.mrb[0].mxu0
    %v4516 = vadd.f32 0.0, %v4515
    %v4517 = vpop.f32.mrb[0].mxu0
    %4518 = vmatprep.mubr.f32.mxu0 0.0
    %4519 = vmatmul.mubr.f32.gmra.mrb[0].mxu0 %v4443
    %v4520 = vpop.f32.mrb[0].mxu0
    %v4521 = vadd.f32 0.0, %v4520
    %v4522 = vpop.f32.mrb[0].mxu0
    %4523 = vdwg.mxu0
    %v4524 = vmul.f32 %v4516, 0.35355338
    %v4525 = vmul.f32 %v4521, 0.35355338
    %v4526 = vsel %vm469, %v4524, -inf
    %4527 = vmax.xlane.f32.xlu0 %v4526
    %v4528 = vpop.xlane.xlu0 %4527
    %v4529 = vsel %vm473, %v4525, -inf
    %4530 = vmax.xlane.f32.xlu0 %v4529
    %v4531 = vpop.xlane.xlu0 %4530
    %v4532 = vsub.f32 %v4524, %v4528
    %v4533 = vsub.f32 %v4525, %v4531
    %v4534 = vmul.f32 %v4532, 1.442695
    %v4535 = vpow.pop %v4534
    %v4536 = vmul.f32 %v4533, 1.442695
    %v4537 = vpow.pop %v4536
    %v4538 = vsel %vm469, %v4535, 0.0
    %4539 = vadd.xlane.f32.xlu0 %v4538
    %v4540 = vpop.xlane.xlu0 %4539
    %v4541 = vsel %vm473, %v4537, 0.0
    %4542 = vadd.xlane.f32.xlu0 %v4541
    %v4543 = vpop.xlane.xlu0 %4542
    %v4544 = vrcp.pop %v4540
    %v4545 = vrcp.pop %v4543
    %v4546 = vmul.f32 %v4535, %v4544
    %v4547 = vmul.f32 %v4537, %v4545
    %4548 = vrot.lane.b32.xlu0 %v3846, 48
    %v4549 = vpop.permute.xlu0 %4548
    %4550 = vrot.lane.b32.xlu0 %v3851, 48
    %v4551 = vpop.permute.xlu0 %4550
    %v4554 = vsel %vm469, %v4546, 0
    %v4557 = vsel %vm469, %v4547, 0
    %v4559 = vsel %vm504, %v4551, 0
    %4561 = vmatprep.subr.mxu0 0.0
    %4562 = vmatpush1.msra.mxu0 %v4549
    %4563 = vmatprep.subr.mxu0 0.0
    %4564 = vmatpush1.msra.mxu0 %v4559
    %4565 = vmatprep.subr.mxu0 0.0
    %4566 = vmatpush1.msra.mxu0 0.0
    %4567 = vmatprep.subr.mxu0 0.0
    %4568 = vmatpush1.msra.mxu0 0.0
    %4569 = vmatprep.subr.mxu0 0.0
    %4570 = vmatpush1.msra.mxu0 0.0
    %4571 = vmatprep.subr.mxu0 0.0
    %4572 = vmatpush1.msra.mxu0 0.0
    %4573 = vmatprep.subr.mxu0 0.0
    %4574 = vmatpush1.msra.mxu0 0.0
    %4575 = vmatprep.subr.mxu0 0.0
    %4576 = vmatpush1.msra.mxu0 0.0
    %4577 = vmatprep.subr.mxu0 0.0
    %4578 = vmatpush1.msra.mxu0 0.0
    %4579 = vmatprep.subr.mxu0 0.0
    %4580 = vmatpush1.msra.mxu0 0.0
    %4581 = vmatprep.subr.mxu0 0.0
    %4582 = vmatpush1.msra.mxu0 0.0
    %4583 = vmatprep.subr.mxu0 0.0
    %4584 = vmatpush1.msra.mxu0 0.0
    %4585 = vmatprep.subr.mxu0 0.0
    %4586 = vmatpush1.msra.mxu0 0.0
    %4587 = vmatprep.subr.mxu0 0.0
    %4588 = vmatpush1.msra.mxu0 0.0
    %4589 = vmatprep.subr.mxu0 0.0
    %4590 = vmatpush1.msra.mxu0 0.0
    %4591 = vmatprep.subr.mxu0 0.0
    %4592 = vmatpush1.msra.mxu0 0.0
    %4593 = vmatprep.subr.mxu0 0.0
    %4594 = vmatpush1.msra.mxu0 0.0
    %4595 = vmatprep.subr.mxu0 0.0
    %4596 = vmatpush1.msra.mxu0 0.0
    %4597 = vmatprep.subr.mxu0 0.0
    %4598 = vmatpush1.msra.mxu0 0.0
    %4599 = vmatprep.subr.mxu0 0.0
    %4600 = vmatpush1.msra.mxu0 0.0
    %4601 = vmatprep.subr.mxu0 0.0
    %4602 = vmatpush1.msra.mxu0 0.0
    %4603 = vmatprep.subr.mxu0 0.0
    %4604 = vmatpush1.msra.mxu0 0.0
    %4605 = vmatprep.subr.mxu0 0.0
    %4606 = vmatpush1.msra.mxu0 0.0
    %4607 = vmatprep.subr.mxu0 0.0
    %4608 = vmatpush1.msra.mxu0 0.0
    %4609 = vmatprep.subr.mxu0 0.0
    %4610 = vmatpush1.msra.mxu0 0.0
    %4611 = vmatprep.subr.mxu0 0.0
    %4612 = vmatpush1.msra.mxu0 0.0
    %4613 = vmatprep.subr.mxu0 0.0
    %4614 = vmatpush1.msra.mxu0 0.0
    %4615 = vmatprep.subr.mxu0 0.0
    %4616 = vmatpush1.msra.mxu0 0.0
    %4617 = vmatprep.subr.mxu0 0.0
    %4618 = vmatpush1.msra.mxu0 0.0
    %4619 = vmatprep.subr.mxu0 0.0
    %4620 = vmatpush1.msra.mxu0 0.0
    %4621 = vmatprep.subr.mxu0 0.0
    %4622 = vmatpush1.msra.mxu0 0.0
    %4623 = vmatprep.subr.mxu0 0.0
    %4624 = vmatpush1.msra.mxu0 0.0
    %4625 = vmatprep.mubr.f32.mxu0 0.0
    %4626 = vmatmul.mubr.f32.gmra.mrb[0].mxu0 %v4554
    %v4627 = vpop.f32.mrb[0].mxu0
    %v4628 = vadd.f32 0.0, %v4627
    %v4629 = vpop.f32.mrb[0].mxu0
    %4630 = vmatprep.mubr.f32.mxu0 0.0
    %4631 = vmatmul.mubr.f32.gmra.mrb[0].mxu0 %v4557
    %v4632 = vpop.f32.mrb[0].mxu0
    %v4633 = vadd.f32 0.0, %v4632
    %v4634 = vpop.f32.mrb[0].mxu0
    %4635 = vdwg.mxu0
    %v4636 = vld [vmem:[%s5 + $0x10] sm:$0xff]
    %v4638 = vsel %vm383, %v4628, 0
    %v4641 = vsel %vm383, %v4633, 0
    %4643 = vmatprep.subr.mxu0 0.0
    %4644 = vmatpush1.msra.mxu0 %v4636
    %4645 = vmatprep.subr.mxu0 0.0
    %4646 = vmatpush1.msra.mxu0 0.0
    %4647 = vmatprep.subr.mxu0 0.0
    %4648 = vmatpush1.msra.mxu0 0.0
    %4649 = vmatprep.subr.mxu0 0.0
    %4650 = vmatpush1.msra.mxu0 0.0
    %4651 = vmatprep.subr.mxu0 0.0
    %4652 = vmatpush1.msra.mxu0 0.0
    %4653 = vmatprep.subr.mxu0 0.0
    %4654 = vmatpush1.msra.mxu0 0.0
    %4655 = vmatprep.subr.mxu0 0.0
    %4656 = vmatpush1.msra.mxu0 0.0
    %4657 = vmatprep.subr.mxu0 0.0
    %4658 = vmatpush1.msra.mxu0 0.0
    %4659 = vmatprep.subr.mxu0 0.0
    %4660 = vmatpush1.msra.mxu0 0.0
    %4661 = vmatprep.subr.mxu0 0.0
    %4662 = vmatpush1.msra.mxu0 0.0
    %4663 = vmatprep.subr.mxu0 0.0
    %4664 = vmatpush1.msra.mxu0 0.0
    %4665 = vmatprep.subr.mxu0 0.0
    %4666 = vmatpush1.msra.mxu0 0.0
    %4667 = vmatprep.subr.mxu0 0.0
    %4668 = vmatpush1.msra.mxu0 0.0
    %4669 = vmatprep.subr.mxu0 0.0
    %4670 = vmatpush1.msra.mxu0 0.0
    %4671 = vmatprep.subr.mxu0 0.0
    %4672 = vmatpush1.msra.mxu0 0.0
    %4673 = vmatprep.subr.mxu0 0.0
    %4674 = vmatpush1.msra.mxu0 0.0
    %4675 = vmatprep.subr.mxu0 0.0
    %4676 = vmatpush1.msra.mxu0 0.0
    %4677 = vmatprep.subr.mxu0 0.0
    %4678 = vmatpush1.msra.mxu0 0.0
    %4679 = vmatprep.subr.mxu0 0.0
    %4680 = vmatpush1.msra.mxu0 0.0
    %4681 = vmatprep.subr.mxu0 0.0
    %4682 = vmatpush1.msra.mxu0 0.0
    %4683 = vmatprep.subr.mxu0 0.0
    %4684 = vmatpush1.msra.mxu0 0.0
    %4685 = vmatprep.subr.mxu0 0.0
    %4686 = vmatpush1.msra.mxu0 0.0
    %4687 = vmatprep.subr.mxu0 0.0
    %4688 = vmatpush1.msra.mxu0 0.0
    %4689 = vmatprep.subr.mxu0 0.0
    %4690 = vmatpush1.msra.mxu0 0.0
    %4691 = vmatprep.subr.mxu0 0.0
    %4692 = vmatpush1.msra.mxu0 0.0
    %4693 = vmatprep.subr.mxu0 0.0
    %4694 = vmatpush1.msra.mxu0 0.0
    %4695 = vmatprep.subr.mxu0 0.0
    %4696 = vmatpush1.msra.mxu0 0.0
    %4697 = vmatprep.subr.mxu0 0.0
    %4698 = vmatpush1.msra.mxu0 0.0
    %4699 = vmatprep.subr.mxu0 0.0
    %4700 = vmatpush1.msra.mxu0 0.0
    %4701 = vmatprep.subr.mxu0 0.0
    %4702 = vmatpush1.msra.mxu0 0.0
    %4703 = vmatprep.subr.mxu0 0.0
    %4704 = vmatpush1.msra.mxu0 0.0
    %4705 = vmatprep.subr.mxu0 0.0
    %4706 = vmatpush1.msra.mxu0 0.0
    %4707 = vmatprep.mubr.f32.mxu0 0.0
    %4708 = vmatmul.mubr.f32.gmra.mrb[0].mxu0 %v4638
    %v4709 = vpop.f32.mrb[0].mxu0
    %v4710 = vadd.f32 0.0, %v4709
    %v4711 = vpop.f32.mrb[0].mxu0
    %4712 = vmatprep.mubr.f32.mxu0 0.0
    %4713 = vmatmul.mubr.f32.gmra.mrb[0].mxu0 %v4641
    %v4714 = vpop.f32.mrb[0].mxu0
    %v4715 = vadd.f32 0.0, %v4714
    %v4716 = vpop.f32.mrb[0].mxu0
    %4717 = vdwg.mxu0
    %v4718 = vadd.f32 %v4431, %v4710
    %v4719 = vadd.f32 %v4432, %v4715
    %4720 = vrot.lane.b32.xlu0 %v3846, 104
    %v4721 = vpop.permute.xlu0 %4720
    %4722 = vrot.lane.b32.xlu0 %v3851, 104
    %v4723 = vpop.permute.xlu0 %4722
    %4724 = vrot.lane.b32.xlu0 %v3846, 72
    %v4725 = vpop.permute.xlu0 %4724
    %4726 = vrot.lane.b32.xlu0 %v3851, 72
    %v4727 = vpop.permute.xlu0 %4726
    %v4728 = vsel %vm383, %v4721, 0
    %v4730 = vsel %vm383, %v4723, 0
    %v4732 = vsel %vm383, %v4725, 0
    %v4734 = vsel %vm383, %v4727, 0
    %4736 = vmatprep.subr.mxu0 0.0
    %4737 = vmatpush1.xpose.msra.mxu0 %v4732
    %4738 = vmatprep.subr.mxu0 0.0
    %4739 = vmatpush1.xpose.msra.mxu0 %v4734
    %4740 = vmatprep.subr.mxu0 0.0
    %4741 = vmatpush1.xpose.msra.mxu0 0.0
    %4742 = vmatprep.subr.mxu0 0.0
    %4743 = vmatpush1.xpose.msra.mxu0 0.0
    %4744 = vmatprep.subr.mxu0 0.0
    %4745 = vmatpush1.xpose.msra.mxu0 0.0
    %4746 = vmatprep.subr.mxu0 0.0
    %4747 = vmatpush1.xpose.msra.mxu0 0.0
    %4748 = vmatprep.subr.mxu0 0.0
    %4749 = vmatpush1.xpose.msra.mxu0 0.0
    %4750 = vmatprep.subr.mxu0 0.0
    %4751 = vmatpush1.xpose.msra.mxu0 0.0
    %4752 = vmatprep.subr.mxu0 0.0
    %4753 = vmatpush1.xpose.msra.mxu0 0.0
    %4754 = vmatprep.subr.mxu0 0.0
    %4755 = vmatpush1.xpose.msra.mxu0 0.0
    %4756 = vmatprep.subr.mxu0 0.0
    %4757 = vmatpush1.xpose.msra.mxu0 0.0
    %4758 = vmatprep.subr.mxu0 0.0
    %4759 = vmatpush1.xpose.msra.mxu0 0.0
    %4760 = vmatprep.subr.mxu0 0.0
    %4761 = vmatpush1.xpose.msra.mxu0 0.0
    %4762 = vmatprep.subr.mxu0 0.0
    %4763 = vmatpush1.xpose.msra.mxu0 0.0
    %4764 = vmatprep.subr.mxu0 0.0
    %4765 = vmatpush1.xpose.msra.mxu0 0.0
    %4766 = vmatprep.subr.mxu0 0.0
    %4767 = vmatpush1.xpose.msra.mxu0 0.0
    %4768 = vmatprep.subr.mxu0 0.0
    %4769 = vmatpush1.xpose.msra.mxu0 0.0
    %4770 = vmatprep.subr.mxu0 0.0
    %4771 = vmatpush1.xpose.msra.mxu0 0.0
    %4772 = vmatprep.subr.mxu0 0.0
    %4773 = vmatpush1.xpose.msra.mxu0 0.0
    %4774 = vmatprep.subr.mxu0 0.0
    %4775 = vmatpush1.xpose.msra.mxu0 0.0
    %4776 = vmatprep.subr.mxu0 0.0
    %4777 = vmatpush1.xpose.msra.mxu0 0.0
    %4778 = vmatprep.subr.mxu0 0.0
    %4779 = vmatpush1.xpose.msra.mxu0 0.0
    %4780 = vmatprep.subr.mxu0 0.0
    %4781 = vmatpush1.xpose.msra.mxu0 0.0
    %4782 = vmatprep.subr.mxu0 0.0
    %4783 = vmatpush1.xpose.msra.mxu0 0.0
    %4784 = vmatprep.subr.mxu0 0.0
    %4785 = vmatpush1.xpose.msra.mxu0 0.0
    %4786 = vmatprep.subr.mxu0 0.0
    %4787 = vmatpush1.xpose.msra.mxu0 0.0
    %4788 = vmatprep.subr.mxu0 0.0
    %4789 = vmatpush1.xpose.msra.mxu0 0.0
    %4790 = vmatprep.subr.mxu0 0.0
    %4791 = vmatpush1.xpose.msra.mxu0 0.0
    %4792 = vmatprep.subr.mxu0 0.0
    %4793 = vmatpush1.xpose.msra.mxu0 0.0
    %4794 = vmatprep.subr.mxu0 0.0
    %4795 = vmatpush1.xpose.msra.mxu0 0.0
    %4796 = vmatprep.subr.mxu0 0.0
    %4797 = vmatpush1.xpose.msra.mxu0 0.0
    %4798 = vmatprep.subr.mxu0 0.0
    %4799 = vmatpush1.xpose.msra.mxu0 0.0
    %4800 = vmatprep.mubr.f32.mxu0 0.0
    %4801 = vmatmul.mubr.f32.gmra.mrb[0].mxu0 %v4728
    %v4802 = vpop.f32.mrb[0].mxu0
    %v4803 = vadd.f32 0.0, %v4802
    %v4804 = vpop.f32.mrb[0].mxu0
    %4805 = vmatprep.mubr.f32.mxu0 0.0
    %4806 = vmatmul.mubr.f32.gmra.mrb[0].mxu0 %v4730
    %v4807 = vpop.f32.mrb[0].mxu0
    %v4808 = vadd.f32 0.0, %v4807
    %v4809 = vpop.f32.mrb[0].mxu0
    %4810 = vdwg.mxu0
    %v4811 = vmul.f32 %v4803, 0.35355338
    %v4812 = vmul.f32 %v4808, 0.35355338
    %v4813 = vsel %vm469, %v4811, -inf
    %4814 = vmax.xlane.f32.xlu0 %v4813
    %v4815 = vpop.xlane.xlu0 %4814
    %v4816 = vsel %vm473, %v4812, -inf
    %4817 = vmax.xlane.f32.xlu0 %v4816
    %v4818 = vpop.xlane.xlu0 %4817
    %v4819 = vsub.f32 %v4811, %v4815
    %v4820 = vsub.f32 %v4812, %v4818
    %v4821 = vmul.f32 %v4819, 1.442695
    %v4822 = vpow.pop %v4821
    %v4823 = vmul.f32 %v4820, 1.442695
    %v4824 = vpow.pop %v4823
    %v4825 = vsel %vm469, %v4822, 0.0
    %4826 = vadd.xlane.f32.xlu0 %v4825
    %v4827 = vpop.xlane.xlu0 %4826
    %v4828 = vsel %vm473, %v4824, 0.0
    %4829 = vadd.xlane.f32.xlu0 %v4828
    %v4830 = vpop.xlane.xlu0 %4829
    %v4831 = vrcp.pop %v4827
    %v4832 = vrcp.pop %v4830
    %v4833 = vmul.f32 %v4822, %v4831
    %v4834 = vmul.f32 %v4824, %v4832
    %4835 = vrot.lane.b32.xlu0 %v3846, 40
    %v4836 = vpop.permute.xlu0 %4835
    %4837 = vrot.lane.b32.xlu0 %v3851, 40
    %v4838 = vpop.permute.xlu0 %4837
    %v4841 = vsel %vm469, %v4833, 0
    %v4844 = vsel %vm469, %v4834, 0
    %v4846 = vsel %vm504, %v4838, 0
    %4848 = vmatprep.subr.mxu0 0.0
    %4849 = vmatpush1.msra.mxu0 %v4836
    %4850 = vmatprep.subr.mxu0 0.0
    %4851 = vmatpush1.msra.mxu0 %v4846
    %4852 = vmatprep.subr.mxu0 0.0
    %4853 = vmatpush1.msra.mxu0 0.0
    %4854 = vmatprep.subr.mxu0 0.0
    %4855 = vmatpush1.msra.mxu0 0.0
    %4856 = vmatprep.subr.mxu0 0.0
    %4857 = vmatpush1.msra.mxu0 0.0
    %4858 = vmatprep.subr.mxu0 0.0
    %4859 = vmatpush1.msra.mxu0 0.0
    %4860 = vmatprep.subr.mxu0 0.0
    %4861 = vmatpush1.msra.mxu0 0.0
    %4862 = vmatprep.subr.mxu0 0.0
    %4863 = vmatpush1.msra.mxu0 0.0
    %4864 = vmatprep.subr.mxu0 0.0
    %4865 = vmatpush1.msra.mxu0 0.0
    %4866 = vmatprep.subr.mxu0 0.0
    %4867 = vmatpush1.msra.mxu0 0.0
    %4868 = vmatprep.subr.mxu0 0.0
    %4869 = vmatpush1.msra.mxu0 0.0
    %4870 = vmatprep.subr.mxu0 0.0
    %4871 = vmatpush1.msra.mxu0 0.0
    %4872 = vmatprep.subr.mxu0 0.0
    %4873 = vmatpush1.msra.mxu0 0.0
    %4874 = vmatprep.subr.mxu0 0.0
    %4875 = vmatpush1.msra.mxu0 0.0
    %4876 = vmatprep.subr.mxu0 0.0
    %4877 = vmatpush1.msra.mxu0 0.0
    %4878 = vmatprep.subr.mxu0 0.0
    %4879 = vmatpush1.msra.mxu0 0.0
    %4880 = vmatprep.subr.mxu0 0.0
    %4881 = vmatpush1.msra.mxu0 0.0
    %4882 = vmatprep.subr.mxu0 0.0
    %4883 = vmatpush1.msra.mxu0 0.0
    %4884 = vmatprep.subr.mxu0 0.0
    %4885 = vmatpush1.msra.mxu0 0.0
    %4886 = vmatprep.subr.mxu0 0.0
    %4887 = vmatpush1.msra.mxu0 0.0
    %4888 = vmatprep.subr.mxu0 0.0
    %4889 = vmatpush1.msra.mxu0 0.0
    %4890 = vmatprep.subr.mxu0 0.0
    %4891 = vmatpush1.msra.mxu0 0.0
    %4892 = vmatprep.subr.mxu0 0.0
    %4893 = vmatpush1.msra.mxu0 0.0
    %4894 = vmatprep.subr.mxu0 0.0
    %4895 = vmatpush1.msra.mxu0 0.0
    %4896 = vmatprep.subr.mxu0 0.0
    %4897 = vmatpush1.msra.mxu0 0.0
    %4898 = vmatprep.subr.mxu0 0.0
    %4899 = vmatpush1.msra.mxu0 0.0
    %4900 = vmatprep.subr.mxu0 0.0
    %4901 = vmatpush1.msra.mxu0 0.0
    %4902 = vmatprep.subr.mxu0 0.0
    %4903 = vmatpush1.msra.mxu0 0.0
    %4904 = vmatprep.subr.mxu0 0.0
    %4905 = vmatpush1.msra.mxu0 0.0
    %4906 = vmatprep.subr.mxu0 0.0
    %4907 = vmatpush1.msra.mxu0 0.0
    %4908 = vmatprep.subr.mxu0 0.0
    %4909 = vmatpush1.msra.mxu0 0.0
    %4910 = vmatprep.subr.mxu0 0.0
    %4911 = vmatpush1.msra.mxu0 0.0
    %4912 = vmatprep.mubr.f32.mxu0 0.0
    %4913 = vmatmul.mubr.f32.gmra.mrb[0].mxu0 %v4841
    %v4914 = vpop.f32.mrb[0].mxu0
    %v4915 = vadd.f32 0.0, %v4914
    %v4916 = vpop.f32.mrb[0].mxu0
    %4917 = vmatprep.mubr.f32.mxu0 0.0
    %4918 = vmatmul.mubr.f32.gmra.mrb[0].mxu0 %v4844
    %v4919 = vpop.f32.mrb[0].mxu0
    %v4920 = vadd.f32 0.0, %v4919
    %v4921 = vpop.f32.mrb[0].mxu0
    %4922 = vdwg.mxu0
    %v4923 = vld [vmem:[%s5 + $0x18] sm:$0xff]
    %v4925 = vsel %vm383, %v4915, 0
    %v4928 = vsel %vm383, %v4920, 0
    %4930 = vmatprep.subr.mxu0 0.0
    %4931 = vmatpush1.msra.mxu0 %v4923
    %4932 = vmatprep.subr.mxu0 0.0
    %4933 = vmatpush1.msra.mxu0 0.0
    %4934 = vmatprep.subr.mxu0 0.0
    %4935 = vmatpush1.msra.mxu0 0.0
    %4936 = vmatprep.subr.mxu0 0.0
    %4937 = vmatpush1.msra.mxu0 0.0
    %4938 = vmatprep.subr.mxu0 0.0
    %4939 = vmatpush1.msra.mxu0 0.0
    %4940 = vmatprep.subr.mxu0 0.0
    %4941 = vmatpush1.msra.mxu0 0.0
    %4942 = vmatprep.subr.mxu0 0.0
    %4943 = vmatpush1.msra.mxu0 0.0
    %4944 = vmatprep.subr.mxu0 0.0
    %4945 = vmatpush1.msra.mxu0 0.0
    %4946 = vmatprep.subr.mxu0 0.0
    %4947 = vmatpush1.msra.mxu0 0.0
    %4948 = vmatprep.subr.mxu0 0.0
    %4949 = vmatpush1.msra.mxu0 0.0
    %4950 = vmatprep.subr.mxu0 0.0
    %4951 = vmatpush1.msra.mxu0 0.0
    %4952 = vmatprep.subr.mxu0 0.0
    %4953 = vmatpush1.msra.mxu0 0.0
    %4954 = vmatprep.subr.mxu0 0.0
    %4955 = vmatpush1.msra.mxu0 0.0
    %4956 = vmatprep.subr.mxu0 0.0
    %4957 = vmatpush1.msra.mxu0 0.0
    %4958 = vmatprep.subr.mxu0 0.0
    %4959 = vmatpush1.msra.mxu0 0.0
    %4960 = vmatprep.subr.mxu0 0.0
    %4961 = vmatpush1.msra.mxu0 0.0
    %4962 = vmatprep.subr.mxu0 0.0
    %4963 = vmatpush1.msra.mxu0 0.0
    %4964 = vmatprep.subr.mxu0 0.0
    %4965 = vmatpush1.msra.mxu0 0.0
    %4966 = vmatprep.subr.mxu0 0.0
    %4967 = vmatpush1.msra.mxu0 0.0
    %4968 = vmatprep.subr.mxu0 0.0
    %4969 = vmatpush1.msra.mxu0 0.0
    %4970 = vmatprep.subr.mxu0 0.0
    %4971 = vmatpush1.msra.mxu0 0.0
    %4972 = vmatprep.subr.mxu0 0.0
    %4973 = vmatpush1.msra.mxu0 0.0
    %4974 = vmatprep.subr.mxu0 0.0
    %4975 = vmatpush1.msra.mxu0 0.0
    %4976 = vmatprep.subr.mxu0 0.0
    %4977 = vmatpush1.msra.mxu0 0.0
    %4978 = vmatprep.subr.mxu0 0.0
    %4979 = vmatpush1.msra.mxu0 0.0
    %4980 = vmatprep.subr.mxu0 0.0
    %4981 = vmatpush1.msra.mxu0 0.0
    %4982 = vmatprep.subr.mxu0 0.0
    %4983 = vmatpush1.msra.mxu0 0.0
    %4984 = vmatprep.subr.mxu0 0.0
    %4985 = vmatpush1.msra.mxu0 0.0
    %4986 = vmatprep.subr.mxu0 0.0
    %4987 = vmatpush1.msra.mxu0 0.0
    %4988 = vmatprep.subr.mxu0 0.0
    %4989 = vmatpush1.msra.mxu0 0.0
    %4990 = vmatprep.subr.mxu0 0.0
    %4991 = vmatpush1.msra.mxu0 0.0
    %4992 = vmatprep.subr.mxu0 0.0
    %4993 = vmatpush1.msra.mxu0 0.0
    %4994 = vmatprep.mubr.f32.mxu0 0.0
    %4995 = vmatmul.mubr.f32.gmra.mrb[0].mxu0 %v4925
    %v4996 = vpop.f32.mrb[0].mxu0
    %v4997 = vadd.f32 0.0, %v4996
    %v4998 = vpop.f32.mrb[0].mxu0
    %4999 = vmatprep.mubr.f32.mxu0 0.0
    %5000 = vmatmul.mubr.f32.gmra.mrb[0].mxu0 %v4928
    %v5001 = vpop.f32.mrb[0].mxu0
    %v5002 = vadd.f32 0.0, %v5001
    %v5003 = vpop.f32.mrb[0].mxu0
    %5004 = vdwg.mxu0
    %v5005 = vadd.f32 %v4718, %v4997
    %v5006 = vadd.f32 %v4719, %v5002
    %v5007 = vadd.f32 %v3754, %v5005
    %v5008 = vadd.f32 %v3759, %v5006
    %v5009 = vld [vmem:[%s7] sm:$0x1]
    %v5010 = vld [vmem:[%s8] sm:$0x1]
    %v5011 = vsel %vm294, %v5007, 0.0
    %5012 = vadd.xlane.f32.xlu0 %v5011
    %v5013 = vpop.xlane.xlu0 %5012
    %v5014 = vsel %vm1540, %v5008, 0.0
    %5015 = vadd.xlane.f32.xlu0 %v5014
    %v5016 = vpop.xlane.xlu0 %5015
    %v5017 = vmul.f32 %v5013, %v1544
    %v5018 = vmul.f32 %v5016, %v1544
    %v5019 = vsub.f32 %v5007, %v5017
    %v5020 = vsub.f32 %v5008, %v5018
    %v5021 = vmul.f32 %v5019, %v5019
    %v5022 = vmul.f32 %v5020, %v5020
    %v5023 = vsel %vm294, %v5021, 0.0
    %5024 = vadd.xlane.f32.xlu0 %v5023
    %v5025 = vpop.xlane.xlu0 %5024
    %v5026 = vsel %vm1540, %v5022, 0.0
    %5027 = vadd.xlane.f32.xlu0 %v5026
    %v5028 = vpop.xlane.xlu0 %5027
    %v5029 = vmul.f32 %v5025, %v1544
    %v5030 = vmul.f32 %v5028, %v1544
    %v5031 = vadd.f32 %v5029, 1e-05
    %v5032 = vadd.f32 %v5030, 1e-05
    %v5033 = vrsqrt.pop %v5031
    %v5034 = vrsqrt.pop %v5032
    %v5035 = vmul.f32 %v5019, %v5033
    %v5036 = vmul.f32 %v5020, %v5034
    %v5038 = vlaneseq
    %v5039 = vshrl.u32 %v5038, 7
    %v5040 = vsub.s32 0, %v5039
    %v5041 = vrot.slane %v5009, %v5040
    %v5043 = vmul.f32 %v5035, %v5041
    %v5044 = vmul.f32 %v5036, %v5041
    %v5046 = vlaneseq
    %v5047 = vshrl.u32 %v5046, 7
    %v5048 = vsub.s32 0, %v5047
    %v5049 = vrot.slane %v5010, %v5048
    %v5051 = vadd.f32 %v5043, %v5049
    %v5052 = vadd.f32 %v5044, %v5049
    %v5053 = vld [vmem:[%s9] sm:$0xff]
    %v5054 = vld [vmem:[%s9 + $0x8] sm:$0xff]
    %v5055 = vld [vmem:[%s9 + $0x10] sm:$0xff]
    %v5056 = vld [vmem:[%s9 + $0x18] sm:$0xff]
    %v5057 = vld [vmem:[%s10] sm:$0x1]
    %v5059 = vlaneseq
    %v5060 = vshrl.u32 %v5059, 7
    %v5061 = vsub.s32 0, %v5060
    %v5062 = vrot.slane %v5057, %v5061
    %v5065 = vsel %vm294, %v5051, 0
    %v5068 = vsel %vm294, %v5052, 0
    %5070 = vmatprep.subr.mxu0 0.0
    %5071 = vmatpush1.msra.mxu0 %v5053
    %5072 = vmatprep.subr.mxu0 0.0
    %5073 = vmatpush1.msra.mxu0 %v5054
    %5074 = vmatprep.subr.mxu0 0.0
    %5075 = vmatpush1.msra.mxu0 %v5055
    %5076 = vmatprep.subr.mxu0 0.0
    %5077 = vmatpush1.msra.mxu0 %v5056
    %5078 = vmatprep.subr.mxu0 0.0
    %5079 = vmatpush1.msra.mxu0 0.0
    %5080 = vmatprep.subr.mxu0 0.0
    %5081 = vmatpush1.msra.mxu0 0.0
    %5082 = vmatprep.subr.mxu0 0.0
    %5083 = vmatpush1.msra.mxu0 0.0
    %5084 = vmatprep.subr.mxu0 0.0
    %5085 = vmatpush1.msra.mxu0 0.0
    %5086 = vmatprep.subr.mxu0 0.0
    %5087 = vmatpush1.msra.mxu0 0.0
    %5088 = vmatprep.subr.mxu0 0.0
    %5089 = vmatpush1.msra.mxu0 0.0
    %5090 = vmatprep.subr.mxu0 0.0
    %5091 = vmatpush1.msra.mxu0 0.0
    %5092 = vmatprep.subr.mxu0 0.0
    %5093 = vmatpush1.msra.mxu0 0.0
    %5094 = vmatprep.subr.mxu0 0.0
    %5095 = vmatpush1.msra.mxu0 0.0
    %5096 = vmatprep.subr.mxu0 0.0
    %5097 = vmatpush1.msra.mxu0 0.0
    %5098 = vmatprep.subr.mxu0 0.0
    %5099 = vmatpush1.msra.mxu0 0.0
    %5100 = vmatprep.subr.mxu0 0.0
    %5101 = vmatpush1.msra.mxu0 0.0
    %5102 = vmatprep.subr.mxu0 0.0
    %5103 = vmatpush1.msra.mxu0 0.0
    %5104 = vmatprep.subr.mxu0 0.0
    %5105 = vmatpush1.msra.mxu0 0.0
    %5106 = vmatprep.subr.mxu0 0.0
    %5107 = vmatpush1.msra.mxu0 0.0
    %5108 = vmatprep.subr.mxu0 0.0
    %5109 = vmatpush1.msra.mxu0 0.0
    %5110 = vmatprep.subr.mxu0 0.0
    %5111 = vmatpush1.msra.mxu0 0.0
    %5112 = vmatprep.subr.mxu0 0.0
    %5113 = vmatpush1.msra.mxu0 0.0
    %5114 = vmatprep.subr.mxu0 0.0
    %5115 = vmatpush1.msra.mxu0 0.0
    %5116 = vmatprep.subr.mxu0 0.0
    %5117 = vmatpush1.msra.mxu0 0.0
    %5118 = vmatprep.subr.mxu0 0.0
    %5119 = vmatpush1.msra.mxu0 0.0
    %5120 = vmatprep.subr.mxu0 0.0
    %5121 = vmatpush1.msra.mxu0 0.0
    %5122 = vmatprep.subr.mxu0 0.0
    %5123 = vmatpush1.msra.mxu0 0.0
    %5124 = vmatprep.subr.mxu0 0.0
    %5125 = vmatpush1.msra.mxu0 0.0
    %5126 = vmatprep.subr.mxu0 0.0
    %5127 = vmatpush1.msra.mxu0 0.0
    %5128 = vmatprep.subr.mxu0 0.0
    %5129 = vmatpush1.msra.mxu0 0.0
    %5130 = vmatprep.subr.mxu0 0.0
    %5131 = vmatpush1.msra.mxu0 0.0
    %5132 = vmatprep.subr.mxu0 0.0
    %5133 = vmatpush1.msra.mxu0 0.0
    %5134 = vmatprep.mubr.f32.mxu0 0.0
    %5135 = vmatmul.mubr.f32.gmra.mrb[0].mxu0 %v5065
    %v5136 = vpop.f32.mrb[0].mxu0
    %v5137 = vadd.f32 %v5062, %v5136
    %v5138 = vpop.f32.mrb[0].mxu0
    %5139 = vmatprep.mubr.f32.mxu0 0.0
    %5140 = vmatmul.mubr.f32.gmra.mrb[0].mxu0 %v5068
    %v5141 = vpop.f32.mrb[0].mxu0
    %v5142 = vadd.f32 %v5062, %v5141
    %v5143 = vpop.f32.mrb[0].mxu0
    %5144 = vdwg.mxu0
    %v5145 = vmul.f32 %v5137, 0.5
    %v5146 = vmul.f32 %v5142, 0.5
    %v5147 = vmul.f32 %v5137, 0.70710677
    %v5148 = vmul.f32 %v5142, 0.70710677
    %v5149 = vand.u32 2147483647, %v5147
    %v5150 = vand.u32 2147483647, %v5148
    %v5151 = vmul.f32 %v5149, 0.3275911
    %v5152 = vmul.f32 %v5150, 0.3275911
    %v5153 = vadd.f32 %v5151, 1.0
    %v5154 = vadd.f32 %v5152, 1.0
    %v5155 = vrcp.pop %v5153
    %v5156 = vmul.f32 1.0, %v5155
    %v5157 = vrcp.pop %v5154
    %v5158 = vmul.f32 1.0, %v5157
    %v5159 = vmul.f32 %v5156, 1.0614054
    %v5160 = vmul.f32 %v5158, 1.0614054
    %v5161 = vadd.f32 %v5159, -1.4531521
    %v5162 = vadd.f32 %v5160, -1.4531521
    %v5163 = vmul.f32 %v5161, %v5156
    %v5164 = vmul.f32 %v5162, %v5158
    %v5165 = vadd.f32 %v5163, 1.4214138
    %v5166 = vadd.f32 %v5164, 1.4214138
    %v5167 = vmul.f32 %v5165, %v5156
    %v5168 = vmul.f32 %v5166, %v5158
    %v5169 = vadd.f32 %v5167, -0.28449672
    %v5170 = vadd.f32 %v5168, -0.28449672
    %v5171 = vmul.f32 %v5169, %v5156
    %v5172 = vmul.f32 %v5170, %v5158
    %v5173 = vadd.f32 %v5171, 0.2548296
    %v5174 = vadd.f32 %v5172, 0.2548296
    %v5175 = vmul.f32 %v5173, %v5156
    %v5176 = vmul.f32 %v5174, %v5158
    %v5177 = vsub.f32 0.0, %v5149
    %v5178 = vsub.f32 0.0, %v5150
    %v5179 = vmul.f32 %v5177, %v5149
    %v5180 = vmul.f32 %v5178, %v5150
    %v5181 = vmul.f32 %v5179, 1.442695
    %v5182 = vpow.pop %v5181
    %v5183 = vmul.f32 %v5180, 1.442695
    %v5184 = vpow.pop %v5183
    %v5185 = vmul.f32 %v5175, %v5182
    %v5186 = vmul.f32 %v5176, %v5184
    %v5187 = vsub.f32 1.0, %v5185
    %v5188 = vsub.f32 1.0, %v5186
    %vm5189 = vcmp.ge.f32.partialorder %v5147, 0.0
    %vm5190 = vcmp.ge.f32.partialorder %v5148, 0.0
    %v5191 = vsub.f32 0.0, %v5187
    %v5192 = vsub.f32 0.0, %v5188
    %v5193 = vsel %vm5189, %v5187, %v5191
    %v5194 = vsel %vm5190, %v5188, %v5192
    %v5195 = vadd.f32 %v5193, 1.0
    %v5196 = vadd.f32 %v5194, 1.0
    %v5197 = vmul.f32 %v5145, %v5195
    %v5198 = vmul.f32 %v5146, %v5196
    %v5199 = vld [vmem:[%s11] sm:$0xff]
    %v5200 = vld [vmem:[%s11 + $0x8] sm:$0xff]
    %v5201 = vld [vmem:[%s11 + $0x10] sm:$0xff]
    %v5202 = vld [vmem:[%s11 + $0x18] sm:$0xff]
    %v5203 = vld [vmem:[%s11 + $0x20] sm:$0xff]
    %v5204 = vld [vmem:[%s11 + $0x28] sm:$0xff]
    %v5205 = vld [vmem:[%s11 + $0x30] sm:$0xff]
    %v5206 = vld [vmem:[%s11 + $0x38] sm:$0xff]
    %v5207 = vld [vmem:[%s11 + $0x40] sm:$0xff]
    %v5208 = vld [vmem:[%s11 + $0x48] sm:$0xff]
    %v5209 = vld [vmem:[%s11 + $0x50] sm:$0xff]
    %v5210 = vld [vmem:[%s11 + $0x58] sm:$0xff]
    %v5211 = vld [vmem:[%s11 + $0x60] sm:$0xff]
    %v5212 = vld [vmem:[%s11 + $0x68] sm:$0xff]
    %v5213 = vld [vmem:[%s11 + $0x70] sm:$0xff]
    %v5214 = vld [vmem:[%s11 + $0x78] sm:$0xff]
    %v5215 = vld [vmem:[%s12] sm:$0x1]
    %v5217 = vlaneseq
    %v5218 = vshrl.u32 %v5217, 7
    %v5219 = vsub.s32 0, %v5218
    %v5220 = vrot.slane %v5215, %v5219
    %5222 = vmatprep.subr.mxu0 0.0
    %5223 = vmatpush1.msra.mxu0 %v5199
    %5224 = vmatprep.subr.mxu0 0.0
    %5225 = vmatpush1.msra.mxu0 %v5200
    %5226 = vmatprep.subr.mxu0 0.0
    %5227 = vmatpush1.msra.mxu0 %v5201
    %5228 = vmatprep.subr.mxu0 0.0
    %5229 = vmatpush1.msra.mxu0 %v5202
    %5230 = vmatprep.subr.mxu0 0.0
    %5231 = vmatpush1.msra.mxu0 %v5203
    %5232 = vmatprep.subr.mxu0 0.0
    %5233 = vmatpush1.msra.mxu0 %v5204
    %5234 = vmatprep.subr.mxu0 0.0
    %5235 = vmatpush1.msra.mxu0 %v5205
    %5236 = vmatprep.subr.mxu0 0.0
    %5237 = vmatpush1.msra.mxu0 %v5206
    %5238 = vmatprep.subr.mxu0 0.0
    %5239 = vmatpush1.msra.mxu0 %v5207
    %5240 = vmatprep.subr.mxu0 0.0
    %5241 = vmatpush1.msra.mxu0 %v5208
    %5242 = vmatprep.subr.mxu0 0.0
    %5243 = vmatpush1.msra.mxu0 %v5209
    %5244 = vmatprep.subr.mxu0 0.0
    %5245 = vmatpush1.msra.mxu0 %v5210
    %5246 = vmatprep.subr.mxu0 0.0
    %5247 = vmatpush1.msra.mxu0 %v5211
    %5248 = vmatprep.subr.mxu0 0.0
    %5249 = vmatpush1.msra.mxu0 %v5212
    %5250 = vmatprep.subr.mxu0 0.0
    %5251 = vmatpush1.msra.mxu0 %v5213
    %5252 = vmatprep.subr.mxu0 0.0
    %5253 = vmatpush1.msra.mxu0 %v5214
    %5254 = vmatprep.subr.mxu0 0.0
    %5255 = vmatpush1.msra.mxu0 0.0
    %5256 = vmatprep.subr.mxu0 0.0
    %5257 = vmatpush1.msra.mxu0 0.0
    %5258 = vmatprep.subr.mxu0 0.0
    %5259 = vmatpush1.msra.mxu0 0.0
    %5260 = vmatprep.subr.mxu0 0.0
    %5261 = vmatpush1.msra.mxu0 0.0
    %5262 = vmatprep.subr.mxu0 0.0
    %5263 = vmatpush1.msra.mxu0 0.0
    %5264 = vmatprep.subr.mxu0 0.0
    %5265 = vmatpush1.msra.mxu0 0.0
    %5266 = vmatprep.subr.mxu0 0.0
    %5267 = vmatpush1.msra.mxu0 0.0
    %5268 = vmatprep.subr.mxu0 0.0
    %5269 = vmatpush1.msra.mxu0 0.0
    %5270 = vmatprep.subr.mxu0 0.0
    %5271 = vmatpush1.msra.mxu0 0.0
    %5272 = vmatprep.subr.mxu0 0.0
    %5273 = vmatpush1.msra.mxu0 0.0
    %5274 = vmatprep.subr.mxu0 0.0
    %5275 = vmatpush1.msra.mxu0 0.0
    %5276 = vmatprep.subr.mxu0 0.0
    %5277 = vmatpush1.msra.mxu0 0.0
    %5278 = vmatprep.subr.mxu0 0.0
    %5279 = vmatpush1.msra.mxu0 0.0
    %5280 = vmatprep.subr.mxu0 0.0
    %5281 = vmatpush1.msra.mxu0 0.0
    %5282 = vmatprep.subr.mxu0 0.0
    %5283 = vmatpush1.msra.mxu0 0.0
    %5284 = vmatprep.subr.mxu0 0.0
    %5285 = vmatpush1.msra.mxu0 0.0
    %5286 = vmatprep.mubr.f32.mxu0 0.0
    %5287 = vmatmul.mubr.f32.gmra.mrb[0].mxu0 %v5197
    %v5288 = vpop.f32.mrb[0].mxu0
    %v5289 = vadd.f32 %v5220, %v5288
    %v5290 = vpop.f32.mrb[0].mxu0
    %5291 = vmatprep.mubr.f32.mxu0 0.0
    %5292 = vmatmul.mubr.f32.gmra.mrb[0].mxu0 %v5198
    %v5293 = vpop.f32.mrb[0].mxu0
    %v5294 = vadd.f32 %v5220, %v5293
    %v5295 = vpop.f32.mrb[0].mxu0
    %5296 = vdwg.mxu0
    %v5297 = vadd.f32 %v5051, %v5289
    %v5298 = vadd.f32 %v5052, %v5294
    %v5299 = vld [vmem:[%s13] sm:$0x1]
    %v5300 = vld [vmem:[%s14] sm:$0x1]
    %v5301 = vsel %vm294, %v5297, 0.0
    %5302 = vadd.xlane.f32.xlu0 %v5301
    %v5303 = vpop.xlane.xlu0 %5302
    %v5304 = vsel %vm1540, %v5298, 0.0
    %5305 = vadd.xlane.f32.xlu0 %v5304
    %v5306 = vpop.xlane.xlu0 %5305
    %v5307 = vmul.f32 %v5303, %v1544
    %v5308 = vmul.f32 %v5306, %v1544
    %v5309 = vsub.f32 %v5297, %v5307
    %v5310 = vsub.f32 %v5298, %v5308
    %v5311 = vmul.f32 %v5309, %v5309
    %v5312 = vmul.f32 %v5310, %v5310
    %v5313 = vsel %vm294, %v5311, 0.0
    %5314 = vadd.xlane.f32.xlu0 %v5313
    %v5315 = vpop.xlane.xlu0 %5314
    %v5316 = vsel %vm1540, %v5312, 0.0
    %5317 = vadd.xlane.f32.xlu0 %v5316
    %v5318 = vpop.xlane.xlu0 %5317
    %v5319 = vmul.f32 %v5315, %v1544
    %v5320 = vmul.f32 %v5318, %v1544
    %v5321 = vadd.f32 %v5319, 1e-05
    %v5322 = vadd.f32 %v5320, 1e-05
    %v5323 = vrsqrt.pop %v5321
    %v5324 = vrsqrt.pop %v5322
    %v5325 = vmul.f32 %v5309, %v5323
    %v5326 = vmul.f32 %v5310, %v5324
    %v5328 = vlaneseq
    %v5329 = vshrl.u32 %v5328, 7
    %v5330 = vsub.s32 0, %v5329
    %v5331 = vrot.slane %v5299, %v5330
    %v5333 = vmul.f32 %v5325, %v5331
    %v5334 = vmul.f32 %v5326, %v5331
    %v5336 = vlaneseq
    %v5337 = vshrl.u32 %v5336, 7
    %v5338 = vsub.s32 0, %v5337
    %v5339 = vrot.slane %v5300, %v5338
    %v5341 = vadd.f32 %v5333, %v5339
    %v5342 = vadd.f32 %v5334, %v5339
    %v5343 = vld [vmem:[%s1871] sm:$0xff]
    %v5344 = vld [vmem:[%s1871 + $0x8] sm:$0xff]
    %v5345 = vld [vmem:[%s1871 + $0x10] sm:$0xff]
    %v5346 = vld [vmem:[%s1871 + $0x18] sm:$0xff]
    %v5347 = vld [vmem:[%s1876] sm:$0x1]
    %v5349 = vlaneseq
    %v5350 = vshrl.u32 %v5349, 7
    %v5351 = vsub.s32 0, %v5350
    %v5352 = vrot.slane %v5347, %v5351
    %v5355 = vsel %vm294, %v5341, 0
    %v5358 = vsel %vm294, %v5342, 0
    %5360 = vmatprep.subr.mxu0 0.0
    %5361 = vmatpush1.msra.mxu0 %v5343
    %5362 = vmatprep.subr.mxu0 0.0
    %5363 = vmatpush1.msra.mxu0 %v5344
    %5364 = vmatprep.subr.mxu0 0.0
    %5365 = vmatpush1.msra.mxu0 %v5345
    %5366 = vmatprep.subr.mxu0 0.0
    %5367 = vmatpush1.msra.mxu0 %v5346
    %5368 = vmatprep.subr.mxu0 0.0
    %5369 = vmatpush1.msra.mxu0 0.0
    %5370 = vmatprep.subr.mxu0 0.0
    %5371 = vmatpush1.msra.mxu0 0.0
    %5372 = vmatprep.subr.mxu0 0.0
    %5373 = vmatpush1.msra.mxu0 0.0
    %5374 = vmatprep.subr.mxu0 0.0
    %5375 = vmatpush1.msra.mxu0 0.0
    %5376 = vmatprep.subr.mxu0 0.0
    %5377 = vmatpush1.msra.mxu0 0.0
    %5378 = vmatprep.subr.mxu0 0.0
    %5379 = vmatpush1.msra.mxu0 0.0
    %5380 = vmatprep.subr.mxu0 0.0
    %5381 = vmatpush1.msra.mxu0 0.0
    %5382 = vmatprep.subr.mxu0 0.0
    %5383 = vmatpush1.msra.mxu0 0.0
    %5384 = vmatprep.subr.mxu0 0.0
    %5385 = vmatpush1.msra.mxu0 0.0
    %5386 = vmatprep.subr.mxu0 0.0
    %5387 = vmatpush1.msra.mxu0 0.0
    %5388 = vmatprep.subr.mxu0 0.0
    %5389 = vmatpush1.msra.mxu0 0.0
    %5390 = vmatprep.subr.mxu0 0.0
    %5391 = vmatpush1.msra.mxu0 0.0
    %5392 = vmatprep.subr.mxu0 0.0
    %5393 = vmatpush1.msra.mxu0 0.0
    %5394 = vmatprep.subr.mxu0 0.0
    %5395 = vmatpush1.msra.mxu0 0.0
    %5396 = vmatprep.subr.mxu0 0.0
    %5397 = vmatpush1.msra.mxu0 0.0
    %5398 = vmatprep.subr.mxu0 0.0
    %5399 = vmatpush1.msra.mxu0 0.0
    %5400 = vmatprep.subr.mxu0 0.0
    %5401 = vmatpush1.msra.mxu0 0.0
    %5402 = vmatprep.subr.mxu0 0.0
    %5403 = vmatpush1.msra.mxu0 0.0
    %5404 = vmatprep.subr.mxu0 0.0
    %5405 = vmatpush1.msra.mxu0 0.0
    %5406 = vmatprep.subr.mxu0 0.0
    %5407 = vmatpush1.msra.mxu0 0.0
    %5408 = vmatprep.subr.mxu0 0.0
    %5409 = vmatpush1.msra.mxu0 0.0
    %5410 = vmatprep.subr.mxu0 0.0
    %5411 = vmatpush1.msra.mxu0 0.0
    %5412 = vmatprep.subr.mxu0 0.0
    %5413 = vmatpush1.msra.mxu0 0.0
    %5414 = vmatprep.subr.mxu0 0.0
    %5415 = vmatpush1.msra.mxu0 0.0
    %5416 = vmatprep.subr.mxu0 0.0
    %5417 = vmatpush1.msra.mxu0 0.0
    %5418 = vmatprep.subr.mxu0 0.0
    %5419 = vmatpush1.msra.mxu0 0.0
    %5420 = vmatprep.subr.mxu0 0.0
    %5421 = vmatpush1.msra.mxu0 0.0
    %5422 = vmatprep.subr.mxu0 0.0
    %5423 = vmatpush1.msra.mxu0 0.0
    %5424 = vmatprep.mubr.f32.mxu0 0.0
    %5425 = vmatmul.mubr.f32.gmra.mrb[0].mxu0 %v5355
    %v5426 = vpop.f32.mrb[0].mxu0
    %v5427 = vadd.f32 %v5352, %v5426
    %v5428 = vpop.f32.mrb[0].mxu0
    %5429 = vmatprep.mubr.f32.mxu0 0.0
    %5430 = vmatmul.mubr.f32.gmra.mrb[0].mxu0 %v5358
    %v5431 = vpop.f32.mrb[0].mxu0
    %v5432 = vadd.f32 %v5352, %v5431
    %v5433 = vpop.f32.mrb[0].mxu0
    %5434 = vdwg.mxu0
    %v5435 = vld [vmem:[%s1965] sm:$0x1]
    %5438 = vrot.lane.b32.xlu0 %v5427, 96
    %v5439 = vpop.permute.xlu0 %5438
    %5440 = vrot.lane.b32.xlu0 %v5432, 96
    %v5441 = vpop.permute.xlu0 %5440
    %v5442 = vsel %vm383, %v5427, 0
    %v5444 = vsel %vm383, %v5432, 0
    %v5446 = vsel %vm383, %v5439, 0
    %v5448 = vsel %vm383, %v5441, 0
    %5450 = vmatprep.subr.mxu0 0.0
    %5451 = vmatpush1.xpose.msra.mxu0 %v5446
    %5452 = vmatprep.subr.mxu0 0.0
    %5453 = vmatpush1.xpose.msra.mxu0 %v5448
    %5454 = vmatprep.subr.mxu0 0.0
    %5455 = vmatpush1.xpose.msra.mxu0 0.0
    %5456 = vmatprep.subr.mxu0 0.0
    %5457 = vmatpush1.xpose.msra.mxu0 0.0
    %5458 = vmatprep.subr.mxu0 0.0
    %5459 = vmatpush1.xpose.msra.mxu0 0.0
    %5460 = vmatprep.subr.mxu0 0.0
    %5461 = vmatpush1.xpose.msra.mxu0 0.0
    %5462 = vmatprep.subr.mxu0 0.0
    %5463 = vmatpush1.xpose.msra.mxu0 0.0
    %5464 = vmatprep.subr.mxu0 0.0
    %5465 = vmatpush1.xpose.msra.mxu0 0.0
    %5466 = vmatprep.subr.mxu0 0.0
    %5467 = vmatpush1.xpose.msra.mxu0 0.0
    %5468 = vmatprep.subr.mxu0 0.0
    %5469 = vmatpush1.xpose.msra.mxu0 0.0
    %5470 = vmatprep.subr.mxu0 0.0
    %5471 = vmatpush1.xpose.msra.mxu0 0.0
    %5472 = vmatprep.subr.mxu0 0.0
    %5473 = vmatpush1.xpose.msra.mxu0 0.0
    %5474 = vmatprep.subr.mxu0 0.0
    %5475 = vmatpush1.xpose.msra.mxu0 0.0
    %5476 = vmatprep.subr.mxu0 0.0
    %5477 = vmatpush1.xpose.msra.mxu0 0.0
    %5478 = vmatprep.subr.mxu0 0.0
    %5479 = vmatpush1.xpose.msra.mxu0 0.0
    %5480 = vmatprep.subr.mxu0 0.0
    %5481 = vmatpush1.xpose.msra.mxu0 0.0
    %5482 = vmatprep.subr.mxu0 0.0
    %5483 = vmatpush1.xpose.msra.mxu0 0.0
    %5484 = vmatprep.subr.mxu0 0.0
    %5485 = vmatpush1.xpose.msra.mxu0 0.0
    %5486 = vmatprep.subr.mxu0 0.0
    %5487 = vmatpush1.xpose.msra.mxu0 0.0
    %5488 = vmatprep.subr.mxu0 0.0
    %5489 = vmatpush1.xpose.msra.mxu0 0.0
    %5490 = vmatprep.subr.mxu0 0.0
    %5491 = vmatpush1.xpose.msra.mxu0 0.0
    %5492 = vmatprep.subr.mxu0 0.0
    %5493 = vmatpush1.xpose.msra.mxu0 0.0
    %5494 = vmatprep.subr.mxu0 0.0
    %5495 = vmatpush1.xpose.msra.mxu0 0.0
    %5496 = vmatprep.subr.mxu0 0.0
    %5497 = vmatpush1.xpose.msra.mxu0 0.0
    %5498 = vmatprep.subr.mxu0 0.0
    %5499 = vmatpush1.xpose.msra.mxu0 0.0
    %5500 = vmatprep.subr.mxu0 0.0
    %5501 = vmatpush1.xpose.msra.mxu0 0.0
    %5502 = vmatprep.subr.mxu0 0.0
    %5503 = vmatpush1.xpose.msra.mxu0 0.0
    %5504 = vmatprep.subr.mxu0 0.0
    %5505 = vmatpush1.xpose.msra.mxu0 0.0
    %5506 = vmatprep.subr.mxu0 0.0
    %5507 = vmatpush1.xpose.msra.mxu0 0.0
    %5508 = vmatprep.subr.mxu0 0.0
    %5509 = vmatpush1.xpose.msra.mxu0 0.0
    %5510 = vmatprep.subr.mxu0 0.0
    %5511 = vmatpush1.xpose.msra.mxu0 0.0
    %5512 = vmatprep.subr.mxu0 0.0
    %5513 = vmatpush1.xpose.msra.mxu0 0.0
    %5514 = vmatprep.mubr.f32.mxu0 0.0
    %5515 = vmatmul.mubr.f32.gmra.mrb[0].mxu0 %v5442
    %v5516 = vpop.f32.mrb[0].mxu0
    %v5517 = vadd.f32 0.0, %v5516
    %v5518 = vpop.f32.mrb[0].mxu0
    %5519 = vmatprep.mubr.f32.mxu0 0.0
    %5520 = vmatmul.mubr.f32.gmra.mrb[0].mxu0 %v5444
    %v5521 = vpop.f32.mrb[0].mxu0
    %v5522 = vadd.f32 0.0, %v5521
    %v5523 = vpop.f32.mrb[0].mxu0
    %5524 = vdwg.mxu0
    %v5525 = vmul.f32 %v5517, 0.35355338
    %v5526 = vmul.f32 %v5522, 0.35355338
    %v5527 = vsel %vm469, %v5525, -inf
    %5528 = vmax.xlane.f32.xlu0 %v5527
    %v5529 = vpop.xlane.xlu0 %5528
    %v5530 = vsel %vm473, %v5526, -inf
    %5531 = vmax.xlane.f32.xlu0 %v5530
    %v5532 = vpop.xlane.xlu0 %5531
    %v5533 = vsub.f32 %v5525, %v5529
    %v5534 = vsub.f32 %v5526, %v5532
    %v5535 = vmul.f32 %v5533, 1.442695
    %v5536 = vpow.pop %v5535
    %v5537 = vmul.f32 %v5534, 1.442695
    %v5538 = vpow.pop %v5537
    %v5539 = vsel %vm469, %v5536, 0.0
    %5540 = vadd.xlane.f32.xlu0 %v5539
    %v5541 = vpop.xlane.xlu0 %5540
    %v5542 = vsel %vm473, %v5538, 0.0
    %5543 = vadd.xlane.f32.xlu0 %v5542
    %v5544 = vpop.xlane.xlu0 %5543
    %v5545 = vrcp.pop %v5541
    %v5546 = vrcp.pop %v5544
    %v5547 = vmul.f32 %v5536, %v5545
    %v5548 = vmul.f32 %v5538, %v5546
    %5549 = vrot.lane.b32.xlu0 %v5427, 64
    %v5550 = vpop.permute.xlu0 %5549
    %5551 = vrot.lane.b32.xlu0 %v5432, 64
    %v5552 = vpop.permute.xlu0 %5551
    %v5555 = vsel %vm469, %v5547, 0
    %v5558 = vsel %vm469, %v5548, 0
    %v5560 = vsel %vm504, %v5552, 0
    %5562 = vmatprep.subr.mxu0 0.0
    %5563 = vmatpush1.msra.mxu0 %v5550
    %5564 = vmatprep.subr.mxu0 0.0
    %5565 = vmatpush1.msra.mxu0 %v5560
    %5566 = vmatprep.subr.mxu0 0.0
    %5567 = vmatpush1.msra.mxu0 0.0
    %5568 = vmatprep.subr.mxu0 0.0
    %5569 = vmatpush1.msra.mxu0 0.0
    %5570 = vmatprep.subr.mxu0 0.0
    %5571 = vmatpush1.msra.mxu0 0.0
    %5572 = vmatprep.subr.mxu0 0.0
    %5573 = vmatpush1.msra.mxu0 0.0
    %5574 = vmatprep.subr.mxu0 0.0
    %5575 = vmatpush1.msra.mxu0 0.0
    %5576 = vmatprep.subr.mxu0 0.0
    %5577 = vmatpush1.msra.mxu0 0.0
    %5578 = vmatprep.subr.mxu0 0.0
    %5579 = vmatpush1.msra.mxu0 0.0
    %5580 = vmatprep.subr.mxu0 0.0
    %5581 = vmatpush1.msra.mxu0 0.0
    %5582 = vmatprep.subr.mxu0 0.0
    %5583 = vmatpush1.msra.mxu0 0.0
    %5584 = vmatprep.subr.mxu0 0.0
    %5585 = vmatpush1.msra.mxu0 0.0
    %5586 = vmatprep.subr.mxu0 0.0
    %5587 = vmatpush1.msra.mxu0 0.0
    %5588 = vmatprep.subr.mxu0 0.0
    %5589 = vmatpush1.msra.mxu0 0.0
    %5590 = vmatprep.subr.mxu0 0.0
    %5591 = vmatpush1.msra.mxu0 0.0
    %5592 = vmatprep.subr.mxu0 0.0
    %5593 = vmatpush1.msra.mxu0 0.0
    %5594 = vmatprep.subr.mxu0 0.0
    %5595 = vmatpush1.msra.mxu0 0.0
    %5596 = vmatprep.subr.mxu0 0.0
    %5597 = vmatpush1.msra.mxu0 0.0
    %5598 = vmatprep.subr.mxu0 0.0
    %5599 = vmatpush1.msra.mxu0 0.0
    %5600 = vmatprep.subr.mxu0 0.0
    %5601 = vmatpush1.msra.mxu0 0.0
    %5602 = vmatprep.subr.mxu0 0.0
    %5603 = vmatpush1.msra.mxu0 0.0
    %5604 = vmatprep.subr.mxu0 0.0
    %5605 = vmatpush1.msra.mxu0 0.0
    %5606 = vmatprep.subr.mxu0 0.0
    %5607 = vmatpush1.msra.mxu0 0.0
    %5608 = vmatprep.subr.mxu0 0.0
    %5609 = vmatpush1.msra.mxu0 0.0
    %5610 = vmatprep.subr.mxu0 0.0
    %5611 = vmatpush1.msra.mxu0 0.0
    %5612 = vmatprep.subr.mxu0 0.0
    %5613 = vmatpush1.msra.mxu0 0.0
    %5614 = vmatprep.subr.mxu0 0.0
    %5615 = vmatpush1.msra.mxu0 0.0
    %5616 = vmatprep.subr.mxu0 0.0
    %5617 = vmatpush1.msra.mxu0 0.0
    %5618 = vmatprep.subr.mxu0 0.0
    %5619 = vmatpush1.msra.mxu0 0.0
    %5620 = vmatprep.subr.mxu0 0.0
    %5621 = vmatpush1.msra.mxu0 0.0
    %5622 = vmatprep.subr.mxu0 0.0
    %5623 = vmatpush1.msra.mxu0 0.0
    %5624 = vmatprep.subr.mxu0 0.0
    %5625 = vmatpush1.msra.mxu0 0.0
    %5626 = vmatprep.mubr.f32.mxu0 0.0
    %5627 = vmatmul.mubr.f32.gmra.mrb[0].mxu0 %v5555
    %v5628 = vpop.f32.mrb[0].mxu0
    %v5629 = vadd.f32 0.0, %v5628
    %v5630 = vpop.f32.mrb[0].mxu0
    %5631 = vmatprep.mubr.f32.mxu0 0.0
    %5632 = vmatmul.mubr.f32.gmra.mrb[0].mxu0 %v5558
    %v5633 = vpop.f32.mrb[0].mxu0
    %v5634 = vadd.f32 0.0, %v5633
    %v5635 = vpop.f32.mrb[0].mxu0
    %5636 = vdwg.mxu0
    %v5637 = vld [vmem:[%s2168] sm:$0xff]
    %v5639 = vsel %vm383, %v5629, 0
    %v5642 = vsel %vm383, %v5634, 0
    %5644 = vmatprep.subr.mxu0 0.0
    %5645 = vmatpush1.msra.mxu0 %v5637
    %5646 = vmatprep.subr.mxu0 0.0
    %5647 = vmatpush1.msra.mxu0 0.0
    %5648 = vmatprep.subr.mxu0 0.0
    %5649 = vmatpush1.msra.mxu0 0.0
    %5650 = vmatprep.subr.mxu0 0.0
    %5651 = vmatpush1.msra.mxu0 0.0
    %5652 = vmatprep.subr.mxu0 0.0
    %5653 = vmatpush1.msra.mxu0 0.0
    %5654 = vmatprep.subr.mxu0 0.0
    %5655 = vmatpush1.msra.mxu0 0.0
    %5656 = vmatprep.subr.mxu0 0.0
    %5657 = vmatpush1.msra.mxu0 0.0
    %5658 = vmatprep.subr.mxu0 0.0
    %5659 = vmatpush1.msra.mxu0 0.0
    %5660 = vmatprep.subr.mxu0 0.0
    %5661 = vmatpush1.msra.mxu0 0.0
    %5662 = vmatprep.subr.mxu0 0.0
    %5663 = vmatpush1.msra.mxu0 0.0
    %5664 = vmatprep.subr.mxu0 0.0
    %5665 = vmatpush1.msra.mxu0 0.0
    %5666 = vmatprep.subr.mxu0 0.0
    %5667 = vmatpush1.msra.mxu0 0.0
    %5668 = vmatprep.subr.mxu0 0.0
    %5669 = vmatpush1.msra.mxu0 0.0
    %5670 = vmatprep.subr.mxu0 0.0
    %5671 = vmatpush1.msra.mxu0 0.0
    %5672 = vmatprep.subr.mxu0 0.0
    %5673 = vmatpush1.msra.mxu0 0.0
    %5674 = vmatprep.subr.mxu0 0.0
    %5675 = vmatpush1.msra.mxu0 0.0
    %5676 = vmatprep.subr.mxu0 0.0
    %5677 = vmatpush1.msra.mxu0 0.0
    %5678 = vmatprep.subr.mxu0 0.0
    %5679 = vmatpush1.msra.mxu0 0.0
    %5680 = vmatprep.subr.mxu0 0.0
    %5681 = vmatpush1.msra.mxu0 0.0
    %5682 = vmatprep.subr.mxu0 0.0
    %5683 = vmatpush1.msra.mxu0 0.0
    %5684 = vmatprep.subr.mxu0 0.0
    %5685 = vmatpush1.msra.mxu0 0.0
    %5686 = vmatprep.subr.mxu0 0.0
    %5687 = vmatpush1.msra.mxu0 0.0
    %5688 = vmatprep.subr.mxu0 0.0
    %5689 = vmatpush1.msra.mxu0 0.0
    %5690 = vmatprep.subr.mxu0 0.0
    %5691 = vmatpush1.msra.mxu0 0.0
    %5692 = vmatprep.subr.mxu0 0.0
    %5693 = vmatpush1.msra.mxu0 0.0
    %5694 = vmatprep.subr.mxu0 0.0
    %5695 = vmatpush1.msra.mxu0 0.0
    %5696 = vmatprep.subr.mxu0 0.0
    %5697 = vmatpush1.msra.mxu0 0.0
    %5698 = vmatprep.subr.mxu0 0.0
    %5699 = vmatpush1.msra.mxu0 0.0
    %5700 = vmatprep.subr.mxu0 0.0
    %5701 = vmatpush1.msra.mxu0 0.0
    %5702 = vmatprep.subr.mxu0 0.0
    %5703 = vmatpush1.msra.mxu0 0.0
    %5704 = vmatprep.subr.mxu0 0.0
    %5705 = vmatpush1.msra.mxu0 0.0
    %5706 = vmatprep.subr.mxu0 0.0
    %5707 = vmatpush1.msra.mxu0 0.0
    %5708 = vmatprep.mubr.f32.mxu0 0.0
    %5709 = vmatmul.mubr.f32.gmra.mrb[0].mxu0 %v5639
    %v5710 = vpop.f32.mrb[0].mxu0
    %v5711 = vadd.f32 0.0, %v5710
    %v5712 = vpop.f32.mrb[0].mxu0
    %5713 = vmatprep.mubr.f32.mxu0 0.0
    %5714 = vmatmul.mubr.f32.gmra.mrb[0].mxu0 %v5642
    %v5715 = vpop.f32.mrb[0].mxu0
    %v5716 = vadd.f32 0.0, %v5715
    %v5717 = vpop.f32.mrb[0].mxu0
    %5718 = vdwg.mxu0
    %v5720 = vlaneseq
    %v5721 = vshrl.u32 %v5720, 7
    %v5722 = vsub.s32 0, %v5721
    %v5723 = vrot.slane %v5435, %v5722
    %v5725 = vadd.f32 %v5723, %v5711
    %v5726 = vadd.f32 %v5723, %v5716
    %5727 = vrot.lane.b32.xlu0 %v5427, 120
    %v5728 = vpop.permute.xlu0 %5727
    %5729 = vrot.lane.b32.xlu0 %v5432, 120
    %v5730 = vpop.permute.xlu0 %5729
    %5731 = vrot.lane.b32.xlu0 %v5427, 88
    %v5732 = vpop.permute.xlu0 %5731
    %5733 = vrot.lane.b32.xlu0 %v5432, 88
    %v5734 = vpop.permute.xlu0 %5733
    %v5735 = vsel %vm383, %v5728, 0
    %v5737 = vsel %vm383, %v5730, 0
    %v5739 = vsel %vm383, %v5732, 0
    %v5741 = vsel %vm383, %v5734, 0
    %5743 = vmatprep.subr.mxu0 0.0
    %5744 = vmatpush1.xpose.msra.mxu0 %v5739
    %5745 = vmatprep.subr.mxu0 0.0
    %5746 = vmatpush1.xpose.msra.mxu0 %v5741
    %5747 = vmatprep.subr.mxu0 0.0
    %5748 = vmatpush1.xpose.msra.mxu0 0.0
    %5749 = vmatprep.subr.mxu0 0.0
    %5750 = vmatpush1.xpose.msra.mxu0 0.0
    %5751 = vmatprep.subr.mxu0 0.0
    %5752 = vmatpush1.xpose.msra.mxu0 0.0
    %5753 = vmatprep.subr.mxu0 0.0
    %5754 = vmatpush1.xpose.msra.mxu0 0.0
    %5755 = vmatprep.subr.mxu0 0.0
    %5756 = vmatpush1.xpose.msra.mxu0 0.0
    %5757 = vmatprep.subr.mxu0 0.0
    %5758 = vmatpush1.xpose.msra.mxu0 0.0
    %5759 = vmatprep.subr.mxu0 0.0
    %5760 = vmatpush1.xpose.msra.mxu0 0.0
    %5761 = vmatprep.subr.mxu0 0.0
    %5762 = vmatpush1.xpose.msra.mxu0 0.0
    %5763 = vmatprep.subr.mxu0 0.0
    %5764 = vmatpush1.xpose.msra.mxu0 0.0
    %5765 = vmatprep.subr.mxu0 0.0
    %5766 = vmatpush1.xpose.msra.mxu0 0.0
    %5767 = vmatprep.subr.mxu0 0.0
    %5768 = vmatpush1.xpose.msra.mxu0 0.0
    %5769 = vmatprep.subr.mxu0 0.0
    %5770 = vmatpush1.xpose.msra.mxu0 0.0
    %5771 = vmatprep.subr.mxu0 0.0
    %5772 = vmatpush1.xpose.msra.mxu0 0.0
    %5773 = vmatprep.subr.mxu0 0.0
    %5774 = vmatpush1.xpose.msra.mxu0 0.0
    %5775 = vmatprep.subr.mxu0 0.0
    %5776 = vmatpush1.xpose.msra.mxu0 0.0
    %5777 = vmatprep.subr.mxu0 0.0
    %5778 = vmatpush1.xpose.msra.mxu0 0.0
    %5779 = vmatprep.subr.mxu0 0.0
    %5780 = vmatpush1.xpose.msra.mxu0 0.0
    %5781 = vmatprep.subr.mxu0 0.0
    %5782 = vmatpush1.xpose.msra.mxu0 0.0
    %5783 = vmatprep.subr.mxu0 0.0
    %5784 = vmatpush1.xpose.msra.mxu0 0.0
    %5785 = vmatprep.subr.mxu0 0.0
    %5786 = vmatpush1.xpose.msra.mxu0 0.0
    %5787 = vmatprep.subr.mxu0 0.0
    %5788 = vmatpush1.xpose.msra.mxu0 0.0
    %5789 = vmatprep.subr.mxu0 0.0
    %5790 = vmatpush1.xpose.msra.mxu0 0.0
    %5791 = vmatprep.subr.mxu0 0.0
    %5792 = vmatpush1.xpose.msra.mxu0 0.0
    %5793 = vmatprep.subr.mxu0 0.0
    %5794 = vmatpush1.xpose.msra.mxu0 0.0
    %5795 = vmatprep.subr.mxu0 0.0
    %5796 = vmatpush1.xpose.msra.mxu0 0.0
    %5797 = vmatprep.subr.mxu0 0.0
    %5798 = vmatpush1.xpose.msra.mxu0 0.0
    %5799 = vmatprep.subr.mxu0 0.0
    %5800 = vmatpush1.xpose.msra.mxu0 0.0
    %5801 = vmatprep.subr.mxu0 0.0
    %5802 = vmatpush1.xpose.msra.mxu0 0.0
    %5803 = vmatprep.subr.mxu0 0.0
    %5804 = vmatpush1.xpose.msra.mxu0 0.0
    %5805 = vmatprep.subr.mxu0 0.0
    %5806 = vmatpush1.xpose.msra.mxu0 0.0
    %5807 = vmatprep.mubr.f32.mxu0 0.0
    %5808 = vmatmul.mubr.f32.gmra.mrb[0].mxu0 %v5735
    %v5809 = vpop.f32.mrb[0].mxu0
    %v5810 = vadd.f32 0.0, %v5809
    %v5811 = vpop.f32.mrb[0].mxu0
    %5812 = vmatprep.mubr.f32.mxu0 0.0
    %5813 = vmatmul.mubr.f32.gmra.mrb[0].mxu0 %v5737
    %v5814 = vpop.f32.mrb[0].mxu0
    %v5815 = vadd.f32 0.0, %v5814
    %v5816 = vpop.f32.mrb[0].mxu0
    %5817 = vdwg.mxu0
    %v5818 = vmul.f32 %v5810, 0.35355338
    %v5819 = vmul.f32 %v5815, 0.35355338
    %v5820 = vsel %vm469, %v5818, -inf
    %5821 = vmax.xlane.f32.xlu0 %v5820
    %v5822 = vpop.xlane.xlu0 %5821
    %v5823 = vsel %vm473, %v5819, -inf
    %5824 = vmax.xlane.f32.xlu0 %v5823
    %v5825 = vpop.xlane.xlu0 %5824
    %v5826 = vsub.f32 %v5818, %v5822
    %v5827 = vsub.f32 %v5819, %v5825
    %v5828 = vmul.f32 %v5826, 1.442695
    %v5829 = vpow.pop %v5828
    %v5830 = vmul.f32 %v5827, 1.442695
    %v5831 = vpow.pop %v5830
    %v5832 = vsel %vm469, %v5829, 0.0
    %5833 = vadd.xlane.f32.xlu0 %v5832
    %v5834 = vpop.xlane.xlu0 %5833
    %v5835 = vsel %vm473, %v5831, 0.0
    %5836 = vadd.xlane.f32.xlu0 %v5835
    %v5837 = vpop.xlane.xlu0 %5836
    %v5838 = vrcp.pop %v5834
    %v5839 = vrcp.pop %v5837
    %v5840 = vmul.f32 %v5829, %v5838
    %v5841 = vmul.f32 %v5831, %v5839
    %5842 = vrot.lane.b32.xlu0 %v5427, 56
    %v5843 = vpop.permute.xlu0 %5842
    %5844 = vrot.lane.b32.xlu0 %v5432, 56
    %v5845 = vpop.permute.xlu0 %5844
    %v5848 = vsel %vm469, %v5840, 0
    %v5851 = vsel %vm469, %v5841, 0
    %v5853 = vsel %vm504, %v5845, 0
    %5855 = vmatprep.subr.mxu0 0.0
    %5856 = vmatpush1.msra.mxu0 %v5843
    %5857 = vmatprep.subr.mxu0 0.0
    %5858 = vmatpush1.msra.mxu0 %v5853
    %5859 = vmatprep.subr.mxu0 0.0
    %5860 = vmatpush1.msra.mxu0 0.0
    %5861 = vmatprep.subr.mxu0 0.0
    %5862 = vmatpush1.msra.mxu0 0.0
    %5863 = vmatprep.subr.mxu0 0.0
    %5864 = vmatpush1.msra.mxu0 0.0
    %5865 = vmatprep.subr.mxu0 0.0
    %5866 = vmatpush1.msra.mxu0 0.0
    %5867 = vmatprep.subr.mxu0 0.0
    %5868 = vmatpush1.msra.mxu0 0.0
    %5869 = vmatprep.subr.mxu0 0.0
    %5870 = vmatpush1.msra.mxu0 0.0
    %5871 = vmatprep.subr.mxu0 0.0
    %5872 = vmatpush1.msra.mxu0 0.0
    %5873 = vmatprep.subr.mxu0 0.0
    %5874 = vmatpush1.msra.mxu0 0.0
    %5875 = vmatprep.subr.mxu0 0.0
    %5876 = vmatpush1.msra.mxu0 0.0
    %5877 = vmatprep.subr.mxu0 0.0
    %5878 = vmatpush1.msra.mxu0 0.0
    %5879 = vmatprep.subr.mxu0 0.0
    %5880 = vmatpush1.msra.mxu0 0.0
    %5881 = vmatprep.subr.mxu0 0.0
    %5882 = vmatpush1.msra.mxu0 0.0
    %5883 = vmatprep.subr.mxu0 0.0
    %5884 = vmatpush1.msra.mxu0 0.0
    %5885 = vmatprep.subr.mxu0 0.0
    %5886 = vmatpush1.msra.mxu0 0.0
    %5887 = vmatprep.subr.mxu0 0.0
    %5888 = vmatpush1.msra.mxu0 0.0
    %5889 = vmatprep.subr.mxu0 0.0
    %5890 = vmatpush1.msra.mxu0 0.0
    %5891 = vmatprep.subr.mxu0 0.0
    %5892 = vmatpush1.msra.mxu0 0.0
    %5893 = vmatprep.subr.mxu0 0.0
    %5894 = vmatpush1.msra.mxu0 0.0
    %5895 = vmatprep.subr.mxu0 0.0
    %5896 = vmatpush1.msra.mxu0 0.0
    %5897 = vmatprep.subr.mxu0 0.0
    %5898 = vmatpush1.msra.mxu0 0.0
    %5899 = vmatprep.subr.mxu0 0.0
    %5900 = vmatpush1.msra.mxu0 0.0
    %5901 = vmatprep.subr.mxu0 0.0
    %5902 = vmatpush1.msra.mxu0 0.0
    %5903 = vmatprep.subr.mxu0 0.0
    %5904 = vmatpush1.msra.mxu0 0.0
    %5905 = vmatprep.subr.mxu0 0.0
    %5906 = vmatpush1.msra.mxu0 0.0
    %5907 = vmatprep.subr.mxu0 0.0
    %5908 = vmatpush1.msra.mxu0 0.0
    %5909 = vmatprep.subr.mxu0 0.0
    %5910 = vmatpush1.msra.mxu0 0.0
    %5911 = vmatprep.subr.mxu0 0.0
    %5912 = vmatpush1.msra.mxu0 0.0
    %5913 = vmatprep.subr.mxu0 0.0
    %5914 = vmatpush1.msra.mxu0 0.0
    %5915 = vmatprep.subr.mxu0 0.0
    %5916 = vmatpush1.msra.mxu0 0.0
    %5917 = vmatprep.subr.mxu0 0.0
    %5918 = vmatpush1.msra.mxu0 0.0
    %5919 = vmatprep.mubr.f32.mxu0 0.0
    %5920 = vmatmul.mubr.f32.gmra.mrb[0].mxu0 %v5848
    %v5921 = vpop.f32.mrb[0].mxu0
    %v5922 = vadd.f32 0.0, %v5921
    %v5923 = vpop.f32.mrb[0].mxu0
    %5924 = vmatprep.mubr.f32.mxu0 0.0
    %5925 = vmatmul.mubr.f32.gmra.mrb[0].mxu0 %v5851
    %v5926 = vpop.f32.mrb[0].mxu0
    %v5927 = vadd.f32 0.0, %v5926
    %v5928 = vpop.f32.mrb[0].mxu0
    %5929 = vdwg.mxu0
    %v5930 = vld [vmem:[%s2168 + $0x8] sm:$0xff]
    %v5932 = vsel %vm383, %v5922, 0
    %v5935 = vsel %vm383, %v5927, 0
    %5937 = vmatprep.subr.mxu0 0.0
    %5938 = vmatpush1.msra.mxu0 %v5930
    %5939 = vmatprep.subr.mxu0 0.0
    %5940 = vmatpush1.msra.mxu0 0.0
    %5941 = vmatprep.subr.mxu0 0.0
    %5942 = vmatpush1.msra.mxu0 0.0
    %5943 = vmatprep.subr.mxu0 0.0
    %5944 = vmatpush1.msra.mxu0 0.0
    %5945 = vmatprep.subr.mxu0 0.0
    %5946 = vmatpush1.msra.mxu0 0.0
    %5947 = vmatprep.subr.mxu0 0.0
    %5948 = vmatpush1.msra.mxu0 0.0
    %5949 = vmatprep.subr.mxu0 0.0
    %5950 = vmatpush1.msra.mxu0 0.0
    %5951 = vmatprep.subr.mxu0 0.0
    %5952 = vmatpush1.msra.mxu0 0.0
    %5953 = vmatprep.subr.mxu0 0.0
    %5954 = vmatpush1.msra.mxu0 0.0
    %5955 = vmatprep.subr.mxu0 0.0
    %5956 = vmatpush1.msra.mxu0 0.0
    %5957 = vmatprep.subr.mxu0 0.0
    %5958 = vmatpush1.msra.mxu0 0.0
    %5959 = vmatprep.subr.mxu0 0.0
    %5960 = vmatpush1.msra.mxu0 0.0
    %5961 = vmatprep.subr.mxu0 0.0
    %5962 = vmatpush1.msra.mxu0 0.0
    %5963 = vmatprep.subr.mxu0 0.0
    %5964 = vmatpush1.msra.mxu0 0.0
    %5965 = vmatprep.subr.mxu0 0.0
    %5966 = vmatpush1.msra.mxu0 0.0
    %5967 = vmatprep.subr.mxu0 0.0
    %5968 = vmatpush1.msra.mxu0 0.0
    %5969 = vmatprep.subr.mxu0 0.0
    %5970 = vmatpush1.msra.mxu0 0.0
    %5971 = vmatprep.subr.mxu0 0.0
    %5972 = vmatpush1.msra.mxu0 0.0
    %5973 = vmatprep.subr.mxu0 0.0
    %5974 = vmatpush1.msra.mxu0 0.0
    %5975 = vmatprep.subr.mxu0 0.0
    %5976 = vmatpush1.msra.mxu0 0.0
    %5977 = vmatprep.subr.mxu0 0.0
    %5978 = vmatpush1.msra.mxu0 0.0
    %5979 = vmatprep.subr.mxu0 0.0
    %5980 = vmatpush1.msra.mxu0 0.0
    %5981 = vmatprep.subr.mxu0 0.0
    %5982 = vmatpush1.msra.mxu0 0.0
    %5983 = vmatprep.subr.mxu0 0.0
    %5984 = vmatpush1.msra.mxu0 0.0
    %5985 = vmatprep.subr.mxu0 0.0
    %5986 = vmatpush1.msra.mxu0 0.0
    %5987 = vmatprep.subr.mxu0 0.0
    %5988 = vmatpush1.msra.mxu0 0.0
    %5989 = vmatprep.subr.mxu0 0.0
    %5990 = vmatpush1.msra.mxu0 0.0
    %5991 = vmatprep.subr.mxu0 0.0
    %5992 = vmatpush1.msra.mxu0 0.0
    %5993 = vmatprep.subr.mxu0 0.0
    %5994 = vmatpush1.msra.mxu0 0.0
    %5995 = vmatprep.subr.mxu0 0.0
    %5996 = vmatpush1.msra.mxu0 0.0
    %5997 = vmatprep.subr.mxu0 0.0
    %5998 = vmatpush1.msra.mxu0 0.0
    %5999 = vmatprep.subr.mxu0 0.0
    %6000 = vmatpush1.msra.mxu0 0.0
    %6001 = vmatprep.mubr.f32.mxu0 0.0
    %6002 = vmatmul.mubr.f32.gmra.mrb[0].mxu0 %v5932
    %v6003 = vpop.f32.mrb[0].mxu0
    %v6004 = vadd.f32 0.0, %v6003
    %v6005 = vpop.f32.mrb[0].mxu0
    %6006 = vmatprep.mubr.f32.mxu0 0.0
    %6007 = vmatmul.mubr.f32.gmra.mrb[0].mxu0 %v5935
    %v6008 = vpop.f32.mrb[0].mxu0
    %v6009 = vadd.f32 0.0, %v6008
    %v6010 = vpop.f32.mrb[0].mxu0
    %6011 = vdwg.mxu0
    %v6012 = vadd.f32 %v5725, %v6004
    %v6013 = vadd.f32 %v5726, %v6009
    %6014 = vrot.lane.b32.xlu0 %v5427, 112
    %v6015 = vpop.permute.xlu0 %6014
    %6016 = vrot.lane.b32.xlu0 %v5432, 112
    %v6017 = vpop.permute.xlu0 %6016
    %6018 = vrot.lane.b32.xlu0 %v5427, 80
    %v6019 = vpop.permute.xlu0 %6018
    %6020 = vrot.lane.b32.xlu0 %v5432, 80
    %v6021 = vpop.permute.xlu0 %6020
    %v6022 = vsel %vm383, %v6015, 0
    %v6024 = vsel %vm383, %v6017, 0
    %v6026 = vsel %vm383, %v6019, 0
    %v6028 = vsel %vm383, %v6021, 0
    %6030 = vmatprep.subr.mxu0 0.0
    %6031 = vmatpush1.xpose.msra.mxu0 %v6026
    %6032 = vmatprep.subr.mxu0 0.0
    %6033 = vmatpush1.xpose.msra.mxu0 %v6028
    %6034 = vmatprep.subr.mxu0 0.0
    %6035 = vmatpush1.xpose.msra.mxu0 0.0
    %6036 = vmatprep.subr.mxu0 0.0
    %6037 = vmatpush1.xpose.msra.mxu0 0.0
    %6038 = vmatprep.subr.mxu0 0.0
    %6039 = vmatpush1.xpose.msra.mxu0 0.0
    %6040 = vmatprep.subr.mxu0 0.0
    %6041 = vmatpush1.xpose.msra.mxu0 0.0
    %6042 = vmatprep.subr.mxu0 0.0
    %6043 = vmatpush1.xpose.msra.mxu0 0.0
    %6044 = vmatprep.subr.mxu0 0.0
    %6045 = vmatpush1.xpose.msra.mxu0 0.0
    %6046 = vmatprep.subr.mxu0 0.0
    %6047 = vmatpush1.xpose.msra.mxu0 0.0
    %6048 = vmatprep.subr.mxu0 0.0
    %6049 = vmatpush1.xpose.msra.mxu0 0.0
    %6050 = vmatprep.subr.mxu0 0.0
    %6051 = vmatpush1.xpose.msra.mxu0 0.0
    %6052 = vmatprep.subr.mxu0 0.0
    %6053 = vmatpush1.xpose.msra.mxu0 0.0
    %6054 = vmatprep.subr.mxu0 0.0
    %6055 = vmatpush1.xpose.msra.mxu0 0.0
    %6056 = vmatprep.subr.mxu0 0.0
    %6057 = vmatpush1.xpose.msra.mxu0 0.0
    %6058 = vmatprep.subr.mxu0 0.0
    %6059 = vmatpush1.xpose.msra.mxu0 0.0
    %6060 = vmatprep.subr.mxu0 0.0
    %6061 = vmatpush1.xpose.msra.mxu0 0.0
    %6062 = vmatprep.subr.mxu0 0.0
    %6063 = vmatpush1.xpose.msra.mxu0 0.0
    %6064 = vmatprep.subr.mxu0 0.0
    %6065 = vmatpush1.xpose.msra.mxu0 0.0
    %6066 = vmatprep.subr.mxu0 0.0
    %6067 = vmatpush1.xpose.msra.mxu0 0.0
    %6068 = vmatprep.subr.mxu0 0.0
    %6069 = vmatpush1.xpose.msra.mxu0 0.0
    %6070 = vmatprep.subr.mxu0 0.0
    %6071 = vmatpush1.xpose.msra.mxu0 0.0
    %6072 = vmatprep.subr.mxu0 0.0
    %6073 = vmatpush1.xpose.msra.mxu0 0.0
    %6074 = vmatprep.subr.mxu0 0.0
    %6075 = vmatpush1.xpose.msra.mxu0 0.0
    %6076 = vmatprep.subr.mxu0 0.0
    %6077 = vmatpush1.xpose.msra.mxu0 0.0
    %6078 = vmatprep.subr.mxu0 0.0
    %6079 = vmatpush1.xpose.msra.mxu0 0.0
    %6080 = vmatprep.subr.mxu0 0.0
    %6081 = vmatpush1.xpose.msra.mxu0 0.0
    %6082 = vmatprep.subr.mxu0 0.0
    %6083 = vmatpush1.xpose.msra.mxu0 0.0
    %6084 = vmatprep.subr.mxu0 0.0
    %6085 = vmatpush1.xpose.msra.mxu0 0.0
    %6086 = vmatprep.subr.mxu0 0.0
    %6087 = vmatpush1.xpose.msra.mxu0 0.0
    %6088 = vmatprep.subr.mxu0 0.0
    %6089 = vmatpush1.xpose.msra.mxu0 0.0
    %6090 = vmatprep.subr.mxu0 0.0
    %6091 = vmatpush1.xpose.msra.mxu0 0.0
    %6092 = vmatprep.subr.mxu0 0.0
    %6093 = vmatpush1.xpose.msra.mxu0 0.0
    %6094 = vmatprep.mubr.f32.mxu0 0.0
    %6095 = vmatmul.mubr.f32.gmra.mrb[0].mxu0 %v6022
    %v6096 = vpop.f32.mrb[0].mxu0
    %v6097 = vadd.f32 0.0, %v6096
    %v6098 = vpop.f32.mrb[0].mxu0
    %6099 = vmatprep.mubr.f32.mxu0 0.0
    %6100 = vmatmul.mubr.f32.gmra.mrb[0].mxu0 %v6024
    %v6101 = vpop.f32.mrb[0].mxu0
    %v6102 = vadd.f32 0.0, %v6101
    %v6103 = vpop.f32.mrb[0].mxu0
    %6104 = vdwg.mxu0
    %v6105 = vmul.f32 %v6097, 0.35355338
    %v6106 = vmul.f32 %v6102, 0.35355338
    %v6107 = vsel %vm469, %v6105, -inf
    %6108 = vmax.xlane.f32.xlu0 %v6107
    %v6109 = vpop.xlane.xlu0 %6108
    %v6110 = vsel %vm473, %v6106, -inf
    %6111 = vmax.xlane.f32.xlu0 %v6110
    %v6112 = vpop.xlane.xlu0 %6111
    %v6113 = vsub.f32 %v6105, %v6109
    %v6114 = vsub.f32 %v6106, %v6112
    %v6115 = vmul.f32 %v6113, 1.442695
    %v6116 = vpow.pop %v6115
    %v6117 = vmul.f32 %v6114, 1.442695
    %v6118 = vpow.pop %v6117
    %v6119 = vsel %vm469, %v6116, 0.0
    %6120 = vadd.xlane.f32.xlu0 %v6119
    %v6121 = vpop.xlane.xlu0 %6120
    %v6122 = vsel %vm473, %v6118, 0.0
    %6123 = vadd.xlane.f32.xlu0 %v6122
    %v6124 = vpop.xlane.xlu0 %6123
    %v6125 = vrcp.pop %v6121
    %v6126 = vrcp.pop %v6124
    %v6127 = vmul.f32 %v6116, %v6125
    %v6128 = vmul.f32 %v6118, %v6126
    %6129 = vrot.lane.b32.xlu0 %v5427, 48
    %v6130 = vpop.permute.xlu0 %6129
    %6131 = vrot.lane.b32.xlu0 %v5432, 48
    %v6132 = vpop.permute.xlu0 %6131
    %v6135 = vsel %vm469, %v6127, 0
    %v6138 = vsel %vm469, %v6128, 0
    %v6140 = vsel %vm504, %v6132, 0
    %6142 = vmatprep.subr.mxu0 0.0
    %6143 = vmatpush1.msra.mxu0 %v6130
    %6144 = vmatprep.subr.mxu0 0.0
    %6145 = vmatpush1.msra.mxu0 %v6140
    %6146 = vmatprep.subr.mxu0 0.0
    %6147 = vmatpush1.msra.mxu0 0.0
    %6148 = vmatprep.subr.mxu0 0.0
    %6149 = vmatpush1.msra.mxu0 0.0
    %6150 = vmatprep.subr.mxu0 0.0
    %6151 = vmatpush1.msra.mxu0 0.0
    %6152 = vmatprep.subr.mxu0 0.0
    %6153 = vmatpush1.msra.mxu0 0.0
    %6154 = vmatprep.subr.mxu0 0.0
    %6155 = vmatpush1.msra.mxu0 0.0
    %6156 = vmatprep.subr.mxu0 0.0
    %6157 = vmatpush1.msra.mxu0 0.0
    %6158 = vmatprep.subr.mxu0 0.0
    %6159 = vmatpush1.msra.mxu0 0.0
    %6160 = vmatprep.subr.mxu0 0.0
    %6161 = vmatpush1.msra.mxu0 0.0
    %6162 = vmatprep.subr.mxu0 0.0
    %6163 = vmatpush1.msra.mxu0 0.0
    %6164 = vmatprep.subr.mxu0 0.0
    %6165 = vmatpush1.msra.mxu0 0.0
    %6166 = vmatprep.subr.mxu0 0.0
    %6167 = vmatpush1.msra.mxu0 0.0
    %6168 = vmatprep.subr.mxu0 0.0
    %6169 = vmatpush1.msra.mxu0 0.0
    %6170 = vmatprep.subr.mxu0 0.0
    %6171 = vmatpush1.msra.mxu0 0.0
    %6172 = vmatprep.subr.mxu0 0.0
    %6173 = vmatpush1.msra.mxu0 0.0
    %6174 = vmatprep.subr.mxu0 0.0
    %6175 = vmatpush1.msra.mxu0 0.0
    %6176 = vmatprep.subr.mxu0 0.0
    %6177 = vmatpush1.msra.mxu0 0.0
    %6178 = vmatprep.subr.mxu0 0.0
    %6179 = vmatpush1.msra.mxu0 0.0
    %6180 = vmatprep.subr.mxu0 0.0
    %6181 = vmatpush1.msra.mxu0 0.0
    %6182 = vmatprep.subr.mxu0 0.0
    %6183 = vmatpush1.msra.mxu0 0.0
    %6184 = vmatprep.subr.mxu0 0.0
    %6185 = vmatpush1.msra.mxu0 0.0
    %6186 = vmatprep.subr.mxu0 0.0
    %6187 = vmatpush1.msra.mxu0 0.0
    %6188 = vmatprep.subr.mxu0 0.0
    %6189 = vmatpush1.msra.mxu0 0.0
    %6190 = vmatprep.subr.mxu0 0.0
    %6191 = vmatpush1.msra.mxu0 0.0
    %6192 = vmatprep.subr.mxu0 0.0
    %6193 = vmatpush1.msra.mxu0 0.0
    %6194 = vmatprep.subr.mxu0 0.0
    %6195 = vmatpush1.msra.mxu0 0.0
    %6196 = vmatprep.subr.mxu0 0.0
    %6197 = vmatpush1.msra.mxu0 0.0
    %6198 = vmatprep.subr.mxu0 0.0
    %6199 = vmatpush1.msra.mxu0 0.0
    %6200 = vmatprep.subr.mxu0 0.0
    %6201 = vmatpush1.msra.mxu0 0.0
    %6202 = vmatprep.subr.mxu0 0.0
    %6203 = vmatpush1.msra.mxu0 0.0
    %6204 = vmatprep.subr.mxu0 0.0
    %6205 = vmatpush1.msra.mxu0 0.0
    %6206 = vmatprep.mubr.f32.mxu0 0.0
    %6207 = vmatmul.mubr.f32.gmra.mrb[0].mxu0 %v6135
    %v6208 = vpop.f32.mrb[0].mxu0
    %v6209 = vadd.f32 0.0, %v6208
    %v6210 = vpop.f32.mrb[0].mxu0
    %6211 = vmatprep.mubr.f32.mxu0 0.0
    %6212 = vmatmul.mubr.f32.gmra.mrb[0].mxu0 %v6138
    %v6213 = vpop.f32.mrb[0].mxu0
    %v6214 = vadd.f32 0.0, %v6213
    %v6215 = vpop.f32.mrb[0].mxu0
    %6216 = vdwg.mxu0
    %v6217 = vld [vmem:[%s2168 + $0x10] sm:$0xff]
    %v6219 = vsel %vm383, %v6209, 0
    %v6222 = vsel %vm383, %v6214, 0
    %6224 = vmatprep.subr.mxu0 0.0
    %6225 = vmatpush1.msra.mxu0 %v6217
    %6226 = vmatprep.subr.mxu0 0.0
    %6227 = vmatpush1.msra.mxu0 0.0
    %6228 = vmatprep.subr.mxu0 0.0
    %6229 = vmatpush1.msra.mxu0 0.0
    %6230 = vmatprep.subr.mxu0 0.0
    %6231 = vmatpush1.msra.mxu0 0.0
    %6232 = vmatprep.subr.mxu0 0.0
    %6233 = vmatpush1.msra.mxu0 0.0
    %6234 = vmatprep.subr.mxu0 0.0
    %6235 = vmatpush1.msra.mxu0 0.0
    %6236 = vmatprep.subr.mxu0 0.0
    %6237 = vmatpush1.msra.mxu0 0.0
    %6238 = vmatprep.subr.mxu0 0.0
    %6239 = vmatpush1.msra.mxu0 0.0
    %6240 = vmatprep.subr.mxu0 0.0
    %6241 = vmatpush1.msra.mxu0 0.0
    %6242 = vmatprep.subr.mxu0 0.0
    %6243 = vmatpush1.msra.mxu0 0.0
    %6244 = vmatprep.subr.mxu0 0.0
    %6245 = vmatpush1.msra.mxu0 0.0
    %6246 = vmatprep.subr.mxu0 0.0
    %6247 = vmatpush1.msra.mxu0 0.0
    %6248 = vmatprep.subr.mxu0 0.0
    %6249 = vmatpush1.msra.mxu0 0.0
    %6250 = vmatprep.subr.mxu0 0.0
    %6251 = vmatpush1.msra.mxu0 0.0
    %6252 = vmatprep.subr.mxu0 0.0
    %6253 = vmatpush1.msra.mxu0 0.0
    %6254 = vmatprep.subr.mxu0 0.0
    %6255 = vmatpush1.msra.mxu0 0.0
    %6256 = vmatprep.subr.mxu0 0.0
    %6257 = vmatpush1.msra.mxu0 0.0
    %6258 = vmatprep.subr.mxu0 0.0
    %6259 = vmatpush1.msra.mxu0 0.0
    %6260 = vmatprep.subr.mxu0 0.0
    %6261 = vmatpush1.msra.mxu0 0.0
    %6262 = vmatprep.subr.mxu0 0.0
    %6263 = vmatpush1.msra.mxu0 0.0
    %6264 = vmatprep.subr.mxu0 0.0
    %6265 = vmatpush1.msra.mxu0 0.0
    %6266 = vmatprep.subr.mxu0 0.0
    %6267 = vmatpush1.msra.mxu0 0.0
    %6268 = vmatprep.subr.mxu0 0.0
    %6269 = vmatpush1.msra.mxu0 0.0
    %6270 = vmatprep.subr.mxu0 0.0
    %6271 = vmatpush1.msra.mxu0 0.0
    %6272 = vmatprep.subr.mxu0 0.0
    %6273 = vmatpush1.msra.mxu0 0.0
    %6274 = vmatprep.subr.mxu0 0.0
    %6275 = vmatpush1.msra.mxu0 0.0
    %6276 = vmatprep.subr.mxu0 0.0
    %6277 = vmatpush1.msra.mxu0 0.0
    %6278 = vmatprep.subr.mxu0 0.0
    %6279 = vmatpush1.msra.mxu0 0.0
    %6280 = vmatprep.subr.mxu0 0.0
    %6281 = vmatpush1.msra.mxu0 0.0
    %6282 = vmatprep.subr.mxu0 0.0
    %6283 = vmatpush1.msra.mxu0 0.0
    %6284 = vmatprep.subr.mxu0 0.0
    %6285 = vmatpush1.msra.mxu0 0.0
    %6286 = vmatprep.subr.mxu0 0.0
    %6287 = vmatpush1.msra.mxu0 0.0
    %6288 = vmatprep.mubr.f32.mxu0 0.0
    %6289 = vmatmul.mubr.f32.gmra.mrb[0].mxu0 %v6219
    %v6290 = vpop.f32.mrb[0].mxu0
    %v6291 = vadd.f32 0.0, %v6290
    %v6292 = vpop.f32.mrb[0].mxu0
    %6293 = vmatprep.mubr.f32.mxu0 0.0
    %6294 = vmatmul.mubr.f32.gmra.mrb[0].mxu0 %v6222
    %v6295 = vpop.f32.mrb[0].mxu0
    %v6296 = vadd.f32 0.0, %v6295
    %v6297 = vpop.f32.mrb[0].mxu0
    %6298 = vdwg.mxu0
    %v6299 = vadd.f32 %v6012, %v6291
    %v6300 = vadd.f32 %v6013, %v6296
    %6301 = vrot.lane.b32.xlu0 %v5427, 104
    %v6302 = vpop.permute.xlu0 %6301
    %6303 = vrot.lane.b32.xlu0 %v5432, 104
    %v6304 = vpop.permute.xlu0 %6303
    %6305 = vrot.lane.b32.xlu0 %v5427, 72
    %v6306 = vpop.permute.xlu0 %6305
    %6307 = vrot.lane.b32.xlu0 %v5432, 72
    %v6308 = vpop.permute.xlu0 %6307
    %v6309 = vsel %vm383, %v6302, 0
    %v6311 = vsel %vm383, %v6304, 0
    %v6313 = vsel %vm383, %v6306, 0
    %v6315 = vsel %vm383, %v6308, 0
    %6317 = vmatprep.subr.mxu0 0.0
    %6318 = vmatpush1.xpose.msra.mxu0 %v6313
    %6319 = vmatprep.subr.mxu0 0.0
    %6320 = vmatpush1.xpose.msra.mxu0 %v6315
    %6321 = vmatprep.subr.mxu0 0.0
    %6322 = vmatpush1.xpose.msra.mxu0 0.0
    %6323 = vmatprep.subr.mxu0 0.0
    %6324 = vmatpush1.xpose.msra.mxu0 0.0
    %6325 = vmatprep.subr.mxu0 0.0
    %6326 = vmatpush1.xpose.msra.mxu0 0.0
    %6327 = vmatprep.subr.mxu0 0.0
    %6328 = vmatpush1.xpose.msra.mxu0 0.0
    %6329 = vmatprep.subr.mxu0 0.0
    %6330 = vmatpush1.xpose.msra.mxu0 0.0
    %6331 = vmatprep.subr.mxu0 0.0
    %6332 = vmatpush1.xpose.msra.mxu0 0.0
    %6333 = vmatprep.subr.mxu0 0.0
    %6334 = vmatpush1.xpose.msra.mxu0 0.0
    %6335 = vmatprep.subr.mxu0 0.0
    %6336 = vmatpush1.xpose.msra.mxu0 0.0
    %6337 = vmatprep.subr.mxu0 0.0
    %6338 = vmatpush1.xpose.msra.mxu0 0.0
    %6339 = vmatprep.subr.mxu0 0.0
    %6340 = vmatpush1.xpose.msra.mxu0 0.0
    %6341 = vmatprep.subr.mxu0 0.0
    %6342 = vmatpush1.xpose.msra.mxu0 0.0
    %6343 = vmatprep.subr.mxu0 0.0
    %6344 = vmatpush1.xpose.msra.mxu0 0.0
    %6345 = vmatprep.subr.mxu0 0.0
    %6346 = vmatpush1.xpose.msra.mxu0 0.0
    %6347 = vmatprep.subr.mxu0 0.0
    %6348 = vmatpush1.xpose.msra.mxu0 0.0
    %6349 = vmatprep.subr.mxu0 0.0
    %6350 = vmatpush1.xpose.msra.mxu0 0.0
    %6351 = vmatprep.subr.mxu0 0.0
    %6352 = vmatpush1.xpose.msra.mxu0 0.0
    %6353 = vmatprep.subr.mxu0 0.0
    %6354 = vmatpush1.xpose.msra.mxu0 0.0
    %6355 = vmatprep.subr.mxu0 0.0
    %6356 = vmatpush1.xpose.msra.mxu0 0.0
    %6357 = vmatprep.subr.mxu0 0.0
    %6358 = vmatpush1.xpose.msra.mxu0 0.0
    %6359 = vmatprep.subr.mxu0 0.0
    %6360 = vmatpush1.xpose.msra.mxu0 0.0
    %6361 = vmatprep.subr.mxu0 0.0
    %6362 = vmatpush1.xpose.msra.mxu0 0.0
    %6363 = vmatprep.subr.mxu0 0.0
    %6364 = vmatpush1.xpose.msra.mxu0 0.0
    %6365 = vmatprep.subr.mxu0 0.0
    %6366 = vmatpush1.xpose.msra.mxu0 0.0
    %6367 = vmatprep.subr.mxu0 0.0
    %6368 = vmatpush1.xpose.msra.mxu0 0.0
    %6369 = vmatprep.subr.mxu0 0.0
    %6370 = vmatpush1.xpose.msra.mxu0 0.0
    %6371 = vmatprep.subr.mxu0 0.0
    %6372 = vmatpush1.xpose.msra.mxu0 0.0
    %6373 = vmatprep.subr.mxu0 0.0
    %6374 = vmatpush1.xpose.msra.mxu0 0.0
    %6375 = vmatprep.subr.mxu0 0.0
    %6376 = vmatpush1.xpose.msra.mxu0 0.0
    %6377 = vmatprep.subr.mxu0 0.0
    %6378 = vmatpush1.xpose.msra.mxu0 0.0
    %6379 = vmatprep.subr.mxu0 0.0
    %6380 = vmatpush1.xpose.msra.mxu0 0.0
    %6381 = vmatprep.mubr.f32.mxu0 0.0
    %6382 = vmatmul.mubr.f32.gmra.mrb[0].mxu0 %v6309
    %v6383 = vpop.f32.mrb[0].mxu0
    %v6384 = vadd.f32 0.0, %v6383
    %v6385 = vpop.f32.mrb[0].mxu0
    %6386 = vmatprep.mubr.f32.mxu0 0.0
    %6387 = vmatmul.mubr.f32.gmra.mrb[0].mxu0 %v6311
    %v6388 = vpop.f32.mrb[0].mxu0
    %v6389 = vadd.f32 0.0, %v6388
    %v6390 = vpop.f32.mrb[0].mxu0
    %6391 = vdwg.mxu0
    %v6392 = vmul.f32 %v6384, 0.35355338
    %v6393 = vmul.f32 %v6389, 0.35355338
    %v6394 = vsel %vm469, %v6392, -inf
    %6395 = vmax.xlane.f32.xlu0 %v6394
    %v6396 = vpop.xlane.xlu0 %6395
    %v6397 = vsel %vm473, %v6393, -inf
    %6398 = vmax.xlane.f32.xlu0 %v6397
    %v6399 = vpop.xlane.xlu0 %6398
    %v6400 = vsub.f32 %v6392, %v6396
    %v6401 = vsub.f32 %v6393, %v6399
    %v6402 = vmul.f32 %v6400, 1.442695
    %v6403 = vpow.pop %v6402
    %v6404 = vmul.f32 %v6401, 1.442695
    %v6405 = vpow.pop %v6404
    %v6406 = vsel %vm469, %v6403, 0.0
    %6407 = vadd.xlane.f32.xlu0 %v6406
    %v6408 = vpop.xlane.xlu0 %6407
    %v6409 = vsel %vm473, %v6405, 0.0
    %6410 = vadd.xlane.f32.xlu0 %v6409
    %v6411 = vpop.xlane.xlu0 %6410
    %v6412 = vrcp.pop %v6408
    %v6413 = vrcp.pop %v6411
    %v6414 = vmul.f32 %v6403, %v6412
    %v6415 = vmul.f32 %v6405, %v6413
    %6416 = vrot.lane.b32.xlu0 %v5427, 40
    %v6417 = vpop.permute.xlu0 %6416
    %6418 = vrot.lane.b32.xlu0 %v5432, 40
    %v6419 = vpop.permute.xlu0 %6418
    %v6422 = vsel %vm469, %v6414, 0
    %v6425 = vsel %vm469, %v6415, 0
    %v6427 = vsel %vm504, %v6419, 0
    %6429 = vmatprep.subr.mxu0 0.0
    %6430 = vmatpush1.msra.mxu0 %v6417
    %6431 = vmatprep.subr.mxu0 0.0
    %6432 = vmatpush1.msra.mxu0 %v6427
    %6433 = vmatprep.subr.mxu0 0.0
    %6434 = vmatpush1.msra.mxu0 0.0
    %6435 = vmatprep.subr.mxu0 0.0
    %6436 = vmatpush1.msra.mxu0 0.0
    %6437 = vmatprep.subr.mxu0 0.0
    %6438 = vmatpush1.msra.mxu0 0.0
    %6439 = vmatprep.subr.mxu0 0.0
    %6440 = vmatpush1.msra.mxu0 0.0
    %6441 = vmatprep.subr.mxu0 0.0
    %6442 = vmatpush1.msra.mxu0 0.0
    %6443 = vmatprep.subr.mxu0 0.0
    %6444 = vmatpush1.msra.mxu0 0.0
    %6445 = vmatprep.subr.mxu0 0.0
    %6446 = vmatpush1.msra.mxu0 0.0
    %6447 = vmatprep.subr.mxu0 0.0
    %6448 = vmatpush1.msra.mxu0 0.0
    %6449 = vmatprep.subr.mxu0 0.0
    %6450 = vmatpush1.msra.mxu0 0.0
    %6451 = vmatprep.subr.mxu0 0.0
    %6452 = vmatpush1.msra.mxu0 0.0
    %6453 = vmatprep.subr.mxu0 0.0
    %6454 = vmatpush1.msra.mxu0 0.0
    %6455 = vmatprep.subr.mxu0 0.0
    %6456 = vmatpush1.msra.mxu0 0.0
    %6457 = vmatprep.subr.mxu0 0.0
    %6458 = vmatpush1.msra.mxu0 0.0
    %6459 = vmatprep.subr.mxu0 0.0
    %6460 = vmatpush1.msra.mxu0 0.0
    %6461 = vmatprep.subr.mxu0 0.0
    %6462 = vmatpush1.msra.mxu0 0.0
    %6463 = vmatprep.subr.mxu0 0.0
    %6464 = vmatpush1.msra.mxu0 0.0
    %6465 = vmatprep.subr.mxu0 0.0
    %6466 = vmatpush1.msra.mxu0 0.0
    %6467 = vmatprep.subr.mxu0 0.0
    %6468 = vmatpush1.msra.mxu0 0.0
    %6469 = vmatprep.subr.mxu0 0.0
    %6470 = vmatpush1.msra.mxu0 0.0
    %6471 = vmatprep.subr.mxu0 0.0
    %6472 = vmatpush1.msra.mxu0 0.0
    %6473 = vmatprep.subr.mxu0 0.0
    %6474 = vmatpush1.msra.mxu0 0.0
    %6475 = vmatprep.subr.mxu0 0.0
    %6476 = vmatpush1.msra.mxu0 0.0
    %6477 = vmatprep.subr.mxu0 0.0
    %6478 = vmatpush1.msra.mxu0 0.0
    %6479 = vmatprep.subr.mxu0 0.0
    %6480 = vmatpush1.msra.mxu0 0.0
    %6481 = vmatprep.subr.mxu0 0.0
    %6482 = vmatpush1.msra.mxu0 0.0
    %6483 = vmatprep.subr.mxu0 0.0
    %6484 = vmatpush1.msra.mxu0 0.0
    %6485 = vmatprep.subr.mxu0 0.0
    %6486 = vmatpush1.msra.mxu0 0.0
    %6487 = vmatprep.subr.mxu0 0.0
    %6488 = vmatpush1.msra.mxu0 0.0
    %6489 = vmatprep.subr.mxu0 0.0
    %6490 = vmatpush1.msra.mxu0 0.0
    %6491 = vmatprep.subr.mxu0 0.0
    %6492 = vmatpush1.msra.mxu0 0.0
    %6493 = vmatprep.mubr.f32.mxu0 0.0
    %6494 = vmatmul.mubr.f32.gmra.mrb[0].mxu0 %v6422
    %v6495 = vpop.f32.mrb[0].mxu0
    %v6496 = vadd.f32 0.0, %v6495
    %v6497 = vpop.f32.mrb[0].mxu0
    %6498 = vmatprep.mubr.f32.mxu0 0.0
    %6499 = vmatmul.mubr.f32.gmra.mrb[0].mxu0 %v6425
    %v6500 = vpop.f32.mrb[0].mxu0
    %v6501 = vadd.f32 0.0, %v6500
    %v6502 = vpop.f32.mrb[0].mxu0
    %6503 = vdwg.mxu0
    %v6504 = vld [vmem:[%s2168 + $0x18] sm:$0xff]
    %v6506 = vsel %vm383, %v6496, 0
    %v6509 = vsel %vm383, %v6501, 0
    %6511 = vmatprep.subr.mxu0 0.0
    %6512 = vmatpush1.msra.mxu0 %v6504
    %6513 = vmatprep.subr.mxu0 0.0
    %6514 = vmatpush1.msra.mxu0 0.0
    %6515 = vmatprep.subr.mxu0 0.0
    %6516 = vmatpush1.msra.mxu0 0.0
    %6517 = vmatprep.subr.mxu0 0.0
    %6518 = vmatpush1.msra.mxu0 0.0
    %6519 = vmatprep.subr.mxu0 0.0
    %6520 = vmatpush1.msra.mxu0 0.0
    %6521 = vmatprep.subr.mxu0 0.0
    %6522 = vmatpush1.msra.mxu0 0.0
    %6523 = vmatprep.subr.mxu0 0.0
    %6524 = vmatpush1.msra.mxu0 0.0
    %6525 = vmatprep.subr.mxu0 0.0
    %6526 = vmatpush1.msra.mxu0 0.0
    %6527 = vmatprep.subr.mxu0 0.0
    %6528 = vmatpush1.msra.mxu0 0.0
    %6529 = vmatprep.subr.mxu0 0.0
    %6530 = vmatpush1.msra.mxu0 0.0
    %6531 = vmatprep.subr.mxu0 0.0
    %6532 = vmatpush1.msra.mxu0 0.0
    %6533 = vmatprep.subr.mxu0 0.0
    %6534 = vmatpush1.msra.mxu0 0.0
    %6535 = vmatprep.subr.mxu0 0.0
    %6536 = vmatpush1.msra.mxu0 0.0
    %6537 = vmatprep.subr.mxu0 0.0
    %6538 = vmatpush1.msra.mxu0 0.0
    %6539 = vmatprep.subr.mxu0 0.0
    %6540 = vmatpush1.msra.mxu0 0.0
    %6541 = vmatprep.subr.mxu0 0.0
    %6542 = vmatpush1.msra.mxu0 0.0
    %6543 = vmatprep.subr.mxu0 0.0
    %6544 = vmatpush1.msra.mxu0 0.0
    %6545 = vmatprep.subr.mxu0 0.0
    %6546 = vmatpush1.msra.mxu0 0.0
    %6547 = vmatprep.subr.mxu0 0.0
    %6548 = vmatpush1.msra.mxu0 0.0
    %6549 = vmatprep.subr.mxu0 0.0
    %6550 = vmatpush1.msra.mxu0 0.0
    %6551 = vmatprep.subr.mxu0 0.0
    %6552 = vmatpush1.msra.mxu0 0.0
    %6553 = vmatprep.subr.mxu0 0.0
    %6554 = vmatpush1.msra.mxu0 0.0
    %6555 = vmatprep.subr.mxu0 0.0
    %6556 = vmatpush1.msra.mxu0 0.0
    %6557 = vmatprep.subr.mxu0 0.0
    %6558 = vmatpush1.msra.mxu0 0.0
    %6559 = vmatprep.subr.mxu0 0.0
    %6560 = vmatpush1.msra.mxu0 0.0
    %6561 = vmatprep.subr.mxu0 0.0
    %6562 = vmatpush1.msra.mxu0 0.0
    %6563 = vmatprep.subr.mxu0 0.0
    %6564 = vmatpush1.msra.mxu0 0.0
    %6565 = vmatprep.subr.mxu0 0.0
    %6566 = vmatpush1.msra.mxu0 0.0
    %6567 = vmatprep.subr.mxu0 0.0
    %6568 = vmatpush1.msra.mxu0 0.0
    %6569 = vmatprep.subr.mxu0 0.0
    %6570 = vmatpush1.msra.mxu0 0.0
    %6571 = vmatprep.subr.mxu0 0.0
    %6572 = vmatpush1.msra.mxu0 0.0
    %6573 = vmatprep.subr.mxu0 0.0
    %6574 = vmatpush1.msra.mxu0 0.0
    %6575 = vmatprep.mubr.f32.mxu0 0.0
    %6576 = vmatmul.mubr.f32.gmra.mrb[0].mxu0 %v6506
    %v6577 = vpop.f32.mrb[0].mxu0
    %v6578 = vadd.f32 0.0, %v6577
    %v6579 = vpop.f32.mrb[0].mxu0
    %6580 = vmatprep.mubr.f32.mxu0 0.0
    %6581 = vmatmul.mubr.f32.gmra.mrb[0].mxu0 %v6509
    %v6582 = vpop.f32.mrb[0].mxu0
    %v6583 = vadd.f32 0.0, %v6582
    %v6584 = vpop.f32.mrb[0].mxu0
    %6585 = vdwg.mxu0
    %v6586 = vadd.f32 %v6299, %v6578
    %v6587 = vadd.f32 %v6300, %v6583
    %v6588 = vadd.f32 %v5341, %v6586
    %v6589 = vadd.f32 %v5342, %v6587
    %v6590 = vld [vmem:[%s3122] sm:$0x1]
    %v6591 = vld [vmem:[%s3124] sm:$0x1]
    %v6592 = vsel %vm294, %v6588, 0.0
    %6593 = vadd.xlane.f32.xlu0 %v6592
    %v6594 = vpop.xlane.xlu0 %6593
    %v6595 = vsel %vm1540, %v6589, 0.0
    %6596 = vadd.xlane.f32.xlu0 %v6595
    %v6597 = vpop.xlane.xlu0 %6596
    %v6598 = vmul.f32 %v6594, %v1544
    %v6599 = vmul.f32 %v6597, %v1544
    %v6600 = vsub.f32 %v6588, %v6598
    %v6601 = vsub.f32 %v6589, %v6599
    %v6602 = vmul.f32 %v6600, %v6600
    %v6603 = vmul.f32 %v6601, %v6601
    %v6604 = vsel %vm294, %v6602, 0.0
    %6605 = vadd.xlane.f32.xlu0 %v6604
    %v6606 = vpop.xlane.xlu0 %6605
    %v6607 = vsel %vm1540, %v6603, 0.0
    %6608 = vadd.xlane.f32.xlu0 %v6607
    %v6609 = vpop.xlane.xlu0 %6608
    %v6610 = vmul.f32 %v6606, %v1544
    %v6611 = vmul.f32 %v6609, %v1544
    %v6612 = vadd.f32 %v6610, 1e-05
    %v6613 = vadd.f32 %v6611, 1e-05
    %v6614 = vrsqrt.pop %v6612
    %v6615 = vrsqrt.pop %v6613
    %v6616 = vmul.f32 %v6600, %v6614
    %v6617 = vmul.f32 %v6601, %v6615
    %v6619 = vlaneseq
    %v6620 = vshrl.u32 %v6619, 7
    %v6621 = vsub.s32 0, %v6620
    %v6622 = vrot.slane %v6590, %v6621
    %v6624 = vmul.f32 %v6616, %v6622
    %v6625 = vmul.f32 %v6617, %v6622
    %v6627 = vlaneseq
    %v6628 = vshrl.u32 %v6627, 7
    %v6629 = vsub.s32 0, %v6628
    %v6630 = vrot.slane %v6591, %v6629
    %v6632 = vadd.f32 %v6624, %v6630
    %v6633 = vadd.f32 %v6625, %v6630
    %v6634 = vld [vmem:[%s3168] sm:$0xff]
    %v6635 = vld [vmem:[%s3168 + $0x8] sm:$0xff]
    %v6636 = vld [vmem:[%s3168 + $0x10] sm:$0xff]
    %v6637 = vld [vmem:[%s3168 + $0x18] sm:$0xff]
    %v6638 = vld [vmem:[%s3173] sm:$0x1]
    %v6640 = vlaneseq
    %v6641 = vshrl.u32 %v6640, 7
    %v6642 = vsub.s32 0, %v6641
    %v6643 = vrot.slane %v6638, %v6642
    %v6646 = vsel %vm294, %v6632, 0
    %v6649 = vsel %vm294, %v6633, 0
    %6651 = vmatprep.subr.mxu0 0.0
    %6652 = vmatpush1.msra.mxu0 %v6634
    %6653 = vmatprep.subr.mxu0 0.0
    %6654 = vmatpush1.msra.mxu0 %v6635
    %6655 = vmatprep.subr.mxu0 0.0
    %6656 = vmatpush1.msra.mxu0 %v6636
    %6657 = vmatprep.subr.mxu0 0.0
    %6658 = vmatpush1.msra.mxu0 %v6637
    %6659 = vmatprep.subr.mxu0 0.0
    %6660 = vmatpush1.msra.mxu0 0.0
    %6661 = vmatprep.subr.mxu0 0.0
    %6662 = vmatpush1.msra.mxu0 0.0
    %6663 = vmatprep.subr.mxu0 0.0
    %6664 = vmatpush1.msra.mxu0 0.0
    %6665 = vmatprep.subr.mxu0 0.0
    %6666 = vmatpush1.msra.mxu0 0.0
    %6667 = vmatprep.subr.mxu0 0.0
    %6668 = vmatpush1.msra.mxu0 0.0
    %6669 = vmatprep.subr.mxu0 0.0
    %6670 = vmatpush1.msra.mxu0 0.0
    %6671 = vmatprep.subr.mxu0 0.0
    %6672 = vmatpush1.msra.mxu0 0.0
    %6673 = vmatprep.subr.mxu0 0.0
    %6674 = vmatpush1.msra.mxu0 0.0
    %6675 = vmatprep.subr.mxu0 0.0
    %6676 = vmatpush1.msra.mxu0 0.0
    %6677 = vmatprep.subr.mxu0 0.0
    %6678 = vmatpush1.msra.mxu0 0.0
    %6679 = vmatprep.subr.mxu0 0.0
    %6680 = vmatpush1.msra.mxu0 0.0
    %6681 = vmatprep.subr.mxu0 0.0
    %6682 = vmatpush1.msra.mxu0 0.0
    %6683 = vmatprep.subr.mxu0 0.0
    %6684 = vmatpush1.msra.mxu0 0.0
    %6685 = vmatprep.subr.mxu0 0.0
    %6686 = vmatpush1.msra.mxu0 0.0
    %6687 = vmatprep.subr.mxu0 0.0
    %6688 = vmatpush1.msra.mxu0 0.0
    %6689 = vmatprep.subr.mxu0 0.0
    %6690 = vmatpush1.msra.mxu0 0.0
    %6691 = vmatprep.subr.mxu0 0.0
    %6692 = vmatpush1.msra.mxu0 0.0
    %6693 = vmatprep.subr.mxu0 0.0
    %6694 = vmatpush1.msra.mxu0 0.0
    %6695 = vmatprep.subr.mxu0 0.0
    %6696 = vmatpush1.msra.mxu0 0.0
    %6697 = vmatprep.subr.mxu0 0.0
    %6698 = vmatpush1.msra.mxu0 0.0
    %6699 = vmatprep.subr.mxu0 0.0
    %6700 = vmatpush1.msra.mxu0 0.0
    %6701 = vmatprep.subr.mxu0 0.0
    %6702 = vmatpush1.msra.mxu0 0.0
    %6703 = vmatprep.subr.mxu0 0.0
    %6704 = vmatpush1.msra.mxu0 0.0
    %6705 = vmatprep.subr.mxu0 0.0
    %6706 = vmatpush1.msra.mxu0 0.0
    %6707 = vmatprep.subr.mxu0 0.0
    %6708 = vmatpush1.msra.mxu0 0.0
    %6709 = vmatprep.subr.mxu0 0.0
    %6710 = vmatpush1.msra.mxu0 0.0
    %6711 = vmatprep.subr.mxu0 0.0
    %6712 = vmatpush1.msra.mxu0 0.0
    %6713 = vmatprep.subr.mxu0 0.0
    %6714 = vmatpush1.msra.mxu0 0.0
    %6715 = vmatprep.mubr.f32.mxu0 0.0
    %6716 = vmatmul.mubr.f32.gmra.mrb[0].mxu0 %v6646
    %v6717 = vpop.f32.mrb[0].mxu0
    %v6718 = vadd.f32 %v6643, %v6717
    %v6719 = vpop.f32.mrb[0].mxu0
    %6720 = vmatprep.mubr.f32.mxu0 0.0
    %6721 = vmatmul.mubr.f32.gmra.mrb[0].mxu0 %v6649
    %v6722 = vpop.f32.mrb[0].mxu0
    %v6723 = vadd.f32 %v6643, %v6722
    %v6724 = vpop.f32.mrb[0].mxu0
    %6725 = vdwg.mxu0
    %v6726 = vmul.f32 %v6718, 0.5
    %v6727 = vmul.f32 %v6723, 0.5
    %v6728 = vmul.f32 %v6718, 0.70710677
    %v6729 = vmul.f32 %v6723, 0.70710677
    %v6730 = vand.u32 2147483647, %v6728
    %v6731 = vand.u32 2147483647, %v6729
    %v6732 = vmul.f32 %v6730, 0.3275911
    %v6733 = vmul.f32 %v6731, 0.3275911
    %v6734 = vadd.f32 %v6732, 1.0
    %v6735 = vadd.f32 %v6733, 1.0
    %v6736 = vrcp.pop %v6734
    %v6737 = vmul.f32 1.0, %v6736
    %v6738 = vrcp.pop %v6735
    %v6739 = vmul.f32 1.0, %v6738
    %v6740 = vmul.f32 %v6737, 1.0614054
    %v6741 = vmul.f32 %v6739, 1.0614054
    %v6742 = vadd.f32 %v6740, -1.4531521
    %v6743 = vadd.f32 %v6741, -1.4531521
    %v6744 = vmul.f32 %v6742, %v6737
    %v6745 = vmul.f32 %v6743, %v6739
    %v6746 = vadd.f32 %v6744, 1.4214138
    %v6747 = vadd.f32 %v6745, 1.4214138
    %v6748 = vmul.f32 %v6746, %v6737
    %v6749 = vmul.f32 %v6747, %v6739
    %v6750 = vadd.f32 %v6748, -0.28449672
    %v6751 = vadd.f32 %v6749, -0.28449672
    %v6752 = vmul.f32 %v6750, %v6737
    %v6753 = vmul.f32 %v6751, %v6739
    %v6754 = vadd.f32 %v6752, 0.2548296
    %v6755 = vadd.f32 %v6753, 0.2548296
    %v6756 = vmul.f32 %v6754, %v6737
    %v6757 = vmul.f32 %v6755, %v6739
    %v6758 = vsub.f32 0.0, %v6730
    %v6759 = vsub.f32 0.0, %v6731
    %v6760 = vmul.f32 %v6758, %v6730
    %v6761 = vmul.f32 %v6759, %v6731
    %v6762 = vmul.f32 %v6760, 1.442695
    %v6763 = vpow.pop %v6762
    %v6764 = vmul.f32 %v6761, 1.442695
    %v6765 = vpow.pop %v6764
    %v6766 = vmul.f32 %v6756, %v6763
    %v6767 = vmul.f32 %v6757, %v6765
    %v6768 = vsub.f32 1.0, %v6766
    %v6769 = vsub.f32 1.0, %v6767
    %vm6770 = vcmp.ge.f32.partialorder %v6728, 0.0
    %vm6771 = vcmp.ge.f32.partialorder %v6729, 0.0
    %v6772 = vsub.f32 0.0, %v6768
    %v6773 = vsub.f32 0.0, %v6769
    %v6774 = vsel %vm6770, %v6768, %v6772
    %v6775 = vsel %vm6771, %v6769, %v6773
    %v6776 = vadd.f32 %v6774, 1.0
    %v6777 = vadd.f32 %v6775, 1.0
    %v6778 = vmul.f32 %v6726, %v6776
    %v6779 = vmul.f32 %v6727, %v6777
    %v6780 = vld [vmem:[%s3316] sm:$0xff]
    %v6781 = vld [vmem:[%s3316 + $0x8] sm:$0xff]
    %v6782 = vld [vmem:[%s3316 + $0x10] sm:$0xff]
    %v6783 = vld [vmem:[%s3316 + $0x18] sm:$0xff]
    %v6784 = vld [vmem:[%s3316 + $0x20] sm:$0xff]
    %v6785 = vld [vmem:[%s3316 + $0x28] sm:$0xff]
    %v6786 = vld [vmem:[%s3316 + $0x30] sm:$0xff]
    %v6787 = vld [vmem:[%s3316 + $0x38] sm:$0xff]
    %v6788 = vld [vmem:[%s3316 + $0x40] sm:$0xff]
    %v6789 = vld [vmem:[%s3316 + $0x48] sm:$0xff]
    %v6790 = vld [vmem:[%s3316 + $0x50] sm:$0xff]
    %v6791 = vld [vmem:[%s3316 + $0x58] sm:$0xff]
    %v6792 = vld [vmem:[%s3316 + $0x60] sm:$0xff]
    %v6793 = vld [vmem:[%s3316 + $0x68] sm:$0xff]
    %v6794 = vld [vmem:[%s3316 + $0x70] sm:$0xff]
    %v6795 = vld [vmem:[%s3316 + $0x78] sm:$0xff]
    %v6796 = vld [vmem:[%s3333] sm:$0x1]
    %v6798 = vlaneseq
    %v6799 = vshrl.u32 %v6798, 7
    %v6800 = vsub.s32 0, %v6799
    %v6801 = vrot.slane %v6796, %v6800
    %6803 = vmatprep.subr.mxu0 0.0
    %6804 = vmatpush1.msra.mxu0 %v6780
    %6805 = vmatprep.subr.mxu0 0.0
    %6806 = vmatpush1.msra.mxu0 %v6781
    %6807 = vmatprep.subr.mxu0 0.0
    %6808 = vmatpush1.msra.mxu0 %v6782
    %6809 = vmatprep.subr.mxu0 0.0
    %6810 = vmatpush1.msra.mxu0 %v6783
    %6811 = vmatprep.subr.mxu0 0.0
    %6812 = vmatpush1.msra.mxu0 %v6784
    %6813 = vmatprep.subr.mxu0 0.0
    %6814 = vmatpush1.msra.mxu0 %v6785
    %6815 = vmatprep.subr.mxu0 0.0
    %6816 = vmatpush1.msra.mxu0 %v6786
    %6817 = vmatprep.subr.mxu0 0.0
    %6818 = vmatpush1.msra.mxu0 %v6787
    %6819 = vmatprep.subr.mxu0 0.0
    %6820 = vmatpush1.msra.mxu0 %v6788
    %6821 = vmatprep.subr.mxu0 0.0
    %6822 = vmatpush1.msra.mxu0 %v6789
    %6823 = vmatprep.subr.mxu0 0.0
    %6824 = vmatpush1.msra.mxu0 %v6790
    %6825 = vmatprep.subr.mxu0 0.0
    %6826 = vmatpush1.msra.mxu0 %v6791
    %6827 = vmatprep.subr.mxu0 0.0
    %6828 = vmatpush1.msra.mxu0 %v6792
    %6829 = vmatprep.subr.mxu0 0.0
    %6830 = vmatpush1.msra.mxu0 %v6793
    %6831 = vmatprep.subr.mxu0 0.0
    %6832 = vmatpush1.msra.mxu0 %v6794
    %6833 = vmatprep.subr.mxu0 0.0
    %6834 = vmatpush1.msra.mxu0 %v6795
    %6835 = vmatprep.subr.mxu0 0.0
    %6836 = vmatpush1.msra.mxu0 0.0
    %6837 = vmatprep.subr.mxu0 0.0
    %6838 = vmatpush1.msra.mxu0 0.0
    %6839 = vmatprep.subr.mxu0 0.0
    %6840 = vmatpush1.msra.mxu0 0.0
    %6841 = vmatprep.subr.mxu0 0.0
    %6842 = vmatpush1.msra.mxu0 0.0
    %6843 = vmatprep.subr.mxu0 0.0
    %6844 = vmatpush1.msra.mxu0 0.0
    %6845 = vmatprep.subr.mxu0 0.0
    %6846 = vmatpush1.msra.mxu0 0.0
    %6847 = vmatprep.subr.mxu0 0.0
    %6848 = vmatpush1.msra.mxu0 0.0
    %6849 = vmatprep.subr.mxu0 0.0
    %6850 = vmatpush1.msra.mxu0 0.0
    %6851 = vmatprep.subr.mxu0 0.0
    %6852 = vmatpush1.msra.mxu0 0.0
    %6853 = vmatprep.subr.mxu0 0.0
    %6854 = vmatpush1.msra.mxu0 0.0
    %6855 = vmatprep.subr.mxu0 0.0
    %6856 = vmatpush1.msra.mxu0 0.0
    %6857 = vmatprep.subr.mxu0 0.0
    %6858 = vmatpush1.msra.mxu0 0.0
    %6859 = vmatprep.subr.mxu0 0.0
    %6860 = vmatpush1.msra.mxu0 0.0
    %6861 = vmatprep.subr.mxu0 0.0
    %6862 = vmatpush1.msra.mxu0 0.0
    %6863 = vmatprep.subr.mxu0 0.0
    %6864 = vmatpush1.msra.mxu0 0.0
    %6865 = vmatprep.subr.mxu0 0.0
    %6866 = vmatpush1.msra.mxu0 0.0
    %6867 = vmatprep.mubr.f32.mxu0 0.0
    %6868 = vmatmul.mubr.f32.gmra.mrb[0].mxu0 %v6778
    %v6869 = vpop.f32.mrb[0].mxu0
    %v6870 = vadd.f32 %v6801, %v6869
    %v6871 = vpop.f32.mrb[0].mxu0
    %6872 = vmatprep.mubr.f32.mxu0 0.0
    %6873 = vmatmul.mubr.f32.gmra.mrb[0].mxu0 %v6779
    %v6874 = vpop.f32.mrb[0].mxu0
    %v6875 = vpop.f32.mrb[0].mxu0
    %6876 = vdwg.mxu0
    %v6877 = vadd.f32 %v6632, %v6870
    %v6878 = vld [vmem:[%s3416] sm:$0x1]
    %v6879 = vld [vmem:[%s3418] sm:$0x1]
    %v6880 = vsel %vm294, %v6877, 0.0
    %6881 = vadd.xlane.f32.xlu0 %v6880
    %v6882 = vpop.xlane.xlu0 %6881
    %v6883 = vmul.f32 %v6882, %v1544
    %v6884 = vsub.f32 %v6877, %v6883
    %v6885 = vmul.f32 %v6884, %v6884
    %v6886 = vsel %vm294, %v6885, 0.0
    %6887 = vadd.xlane.f32.xlu0 %v6886
    %v6888 = vpop.xlane.xlu0 %6887
    %v6889 = vmul.f32 %v6888, %v1544
    %v6890 = vadd.f32 %v6889, 1e-05
    %v6891 = vrsqrt.pop %v6890
    %v6892 = vmul.f32 %v6884, %v6891
    %v6894 = vlaneseq
    %v6895 = vshrl.u32 %v6894, 7
    %v6896 = vsub.s32 0, %v6895
    %v6897 = vrot.slane %v6878, %v6896
    %v6899 = vmul.f32 %v6892, %v6897
    %v6901 = vlaneseq
    %v6902 = vshrl.u32 %v6901, 7
    %v6903 = vsub.s32 0, %v6902
    %v6904 = vrot.slane %v6879, %v6903
    %v6906 = vadd.f32 %v6899, %v6904
    %v6907 = vld [vmem:[%s15] sm:$0x1]
    %v6908 = vld [vmem:[%s16] sm:$0x1]
    %v6909 = vsel %vm1540, %v6906, 0.0
    %6910 = vadd.xlane.f32.xlu0 %v6909
    %v6911 = vpop.xlane.xlu0 %6910
    %v6912 = vmul.f32 %v6911, %v1544
    %v6913 = vsub.f32 %v6906, %v6912
    %v6914 = vmul.f32 %v6913, %v6913
    %v6915 = vsel %vm1540, %v6914, 0.0
    %6916 = vadd.xlane.f32.xlu0 %v6915
    %v6917 = vpop.xlane.xlu0 %6916
    %v6918 = vmul.f32 %v6917, %v1544
    %v6919 = vadd.f32 %v6918, 1e-05
    %v6920 = vrsqrt.pop %v6919
    %v6921 = vmul.f32 %v6913, %v6920
    %v6922 = vmul.f32 %v6921, %v6907
    %v6923 = vadd.f32 %v6922, %v6908
    %v6924 = vld [vmem:[%s17] sm:$0xff]
    %v6925 = vld [vmem:[%s17 + $0x8] sm:$0xff]
    %v6926 = vld [vmem:[%s17 + $0x10] sm:$0xff]
    %v6927 = vld [vmem:[%s17 + $0x18] sm:$0xff]
    %v6928 = vld [vmem:[%s18] sm:$0x1]
    %v6930 = vsel %vm294, %v6923, 0
    %6932 = vmatprep.subr.mxu0 0.0
    %6933 = vmatpush1.msra.mxu0 %v6924
    %6934 = vmatprep.subr.mxu0 0.0
    %6935 = vmatpush1.msra.mxu0 %v6925
    %6936 = vmatprep.subr.mxu0 0.0
    %6937 = vmatpush1.msra.mxu0 %v6926
    %6938 = vmatprep.subr.mxu0 0.0
    %6939 = vmatpush1.msra.mxu0 %v6927
    %6940 = vmatprep.subr.mxu0 0.0
    %6941 = vmatpush1.msra.mxu0 0.0
    %6942 = vmatprep.subr.mxu0 0.0
    %6943 = vmatpush1.msra.mxu0 0.0
    %6944 = vmatprep.subr.mxu0 0.0
    %6945 = vmatpush1.msra.mxu0 0.0
    %6946 = vmatprep.subr.mxu0 0.0
    %6947 = vmatpush1.msra.mxu0 0.0
    %6948 = vmatprep.subr.mxu0 0.0
    %6949 = vmatpush1.msra.mxu0 0.0
    %6950 = vmatprep.subr.mxu0 0.0
    %6951 = vmatpush1.msra.mxu0 0.0
    %6952 = vmatprep.subr.mxu0 0.0
    %6953 = vmatpush1.msra.mxu0 0.0
    %6954 = vmatprep.subr.mxu0 0.0
    %6955 = vmatpush1.msra.mxu0 0.0
    %6956 = vmatprep.subr.mxu0 0.0
    %6957 = vmatpush1.msra.mxu0 0.0
    %6958 = vmatprep.subr.mxu0 0.0
    %6959 = vmatpush1.msra.mxu0 0.0
    %6960 = vmatprep.subr.mxu0 0.0
    %6961 = vmatpush1.msra.mxu0 0.0
    %6962 = vmatprep.subr.mxu0 0.0
    %6963 = vmatpush1.msra.mxu0 0.0
    %6964 = vmatprep.subr.mxu0 0.0
    %6965 = vmatpush1.msra.mxu0 0.0
    %6966 = vmatprep.subr.mxu0 0.0
    %6967 = vmatpush1.msra.mxu0 0.0
    %6968 = vmatprep.subr.mxu0 0.0
    %6969 = vmatpush1.msra.mxu0 0.0
    %6970 = vmatprep.subr.mxu0 0.0
    %6971 = vmatpush1.msra.mxu0 0.0
    %6972 = vmatprep.subr.mxu0 0.0
    %6973 = vmatpush1.msra.mxu0 0.0
    %6974 = vmatprep.subr.mxu0 0.0
    %6975 = vmatpush1.msra.mxu0 0.0
    %6976 = vmatprep.subr.mxu0 0.0
    %6977 = vmatpush1.msra.mxu0 0.0
    %6978 = vmatprep.subr.mxu0 0.0
    %6979 = vmatpush1.msra.mxu0 0.0
    %6980 = vmatprep.subr.mxu0 0.0
    %6981 = vmatpush1.msra.mxu0 0.0
    %6982 = vmatprep.subr.mxu0 0.0
    %6983 = vmatpush1.msra.mxu0 0.0
    %6984 = vmatprep.subr.mxu0 0.0
    %6985 = vmatpush1.msra.mxu0 0.0
    %6986 = vmatprep.subr.mxu0 0.0
    %6987 = vmatpush1.msra.mxu0 0.0
    %6988 = vmatprep.subr.mxu0 0.0
    %6989 = vmatpush1.msra.mxu0 0.0
    %6990 = vmatprep.subr.mxu0 0.0
    %6991 = vmatpush1.msra.mxu0 0.0
    %6992 = vmatprep.subr.mxu0 0.0
    %6993 = vmatpush1.msra.mxu0 0.0
    %6994 = vmatprep.subr.mxu0 0.0
    %6995 = vmatpush1.msra.mxu0 0.0
    %6996 = vmatprep.mubr.f32.mxu0 0.0
    %6997 = vmatmul.mubr.f32.gmra.mrb[0].mxu0 %v6930
    %v6998 = vpop.f32.mrb[0].mxu0
    %v6999 = vadd.f32 %v6928, %v6998
    %v7000 = vpop.f32.mrb[0].mxu0
    %7001 = vdwg.mxu0
    %s7002 = scalar_lea.vmem [#allocation2], 1
    %7003 = vst [vmem:[%s7002] sm:$0x1] %v6999
    // Predicated region
    $region78: #{tpu_custom_call.1} parent=1 // pred_check
      _
    $region79: #{tpu_custom_call.1} parent=1 // pred_check_branch
      %7005 = sbr.rel (0) target = $region81
    $region80: #{tpu_custom_call.1} parent=1 // pred_region
      %s7007 = ssub.s32 32, 32
      %7008 = vsyncadd [#allocation3], %s7007
      %s7009 = sshll.u32 [#allocation2], 4
      %s7010 = int_to_ptr.vmem [resolvable:$true] %s7009
      %7015 = dma.vmem_to_hbm [thread:$0]  %s7010, 32, %s19, [#allocation3], 16, 16, 1
    $region81: #{tpu_custom_call.1} parent=1 // pred_fallthru
      _
    // Predicated region
    $region82: #{tpu_custom_call.1} parent=1 // pred_check
      _
    $region83: #{tpu_custom_call.1} parent=1 // pred_check_branch
      %7017 = sbr.rel (0) target = $region85
    $region84: #{tpu_custom_call.1} parent=1 // pred_region
      %7018 = dma.done [#allocation3], 32
    $region85: #{tpu_custom_call.1} parent=1 // pred_fallthru
      _
    %7019 = vsyncpa [#allocation3], 1

</llo_original>
